<compile_context>
chip_gen: v7x
topology: tpu7x:2x2x1
jax: 0.10.0
libtpu: 0.0.40
codegen_flags: <defaults>
</compile_context>

<pallas_src>
import functools
import math

import jax
import jax.numpy as jnp
from jax import lax
from jax.experimental import pallas as pl
from jax.experimental.pallas import tpu as pltpu

NMF_EPS = 1e-6

# dot_general dimension numbers for 2-D operands
TN = (((0,), (0,)), ((), ()))   # lhs^T @ rhs
NT = (((1,), (1,)), ((), ()))   # lhs  @ rhs^T


def hamburger_kernel(x_ref, win_ref, bin_ref, wout_ref, bout_ref, bases_ref,
                     o_ref, zb_ref, zc_ref, *, steps):
    # x_ref     : (1, C, N) f32   input features, channels-major (C, H*W)
    # win_ref   : (C, C)    bf16  ham_in 1x1 conv weight (out = W @ x + b)
    # bin_ref   : (C, 1)    f32
    # wout_ref  : (C, C)    bf16  ham_out 1x1 conv weight
    # bout_ref  : (C, 1)    f32
    # bases_ref : (1, C, R) f32   random L2-normalized NMF bases (per batch)
    # o_ref     : (1, C, N) f32
    # zb_ref    : (C, N+R)  bf16  scratch: [ z | bases ]        (lane concat)
    # zc_ref    : (C+R, N)  bf16  scratch: [ z ; coef^T ]       (sublane concat)
    D, NR = zb_ref.shape
    _, N = zc_ref.shape
    R = NR - N
    bf16 = jnp.bfloat16

    x = x_ref[0]                                              # (C, N) f32

    # --- bread #1: ham_in (1x1 conv) + ReLU (bf16 MXU, f32 accumulate) -----
    z = jnp.dot(win_ref[...], x.astype(bf16),
                preferred_element_type=jnp.float32)
    z = jnp.maximum(z + bin_ref[...], 0.0)                    # (D, N) f32
    z_bf = z.astype(bf16)

    # fill the persistent fusion scratches (z written once per grid step)
    zb_ref[:, :N] = z_bf
    zc_ref[:D, :] = z_bf

    bases = bases_ref[0]                                      # (D, R) f32
    bases_bf = bases.astype(bf16)
    zb_ref[:, N:] = bases_bf

    def fused_cb(b_bf):
        # bases^T @ [z | bases] -> [ numer_c^T (R,N) | gram(bases) (R,R) ]
        cb = lax.dot_general(b_bf, zb_ref[...], TN,
                             preferred_element_type=jnp.float32)
        return cb[:, :N], cb[:, N:]

    def fused_bc(c_bf):
        # [z ; coef^T] @ coef -> [ numer_b (D,R) ; gram(coef) (R,R) ],  K = N
        bc = lax.dot_general(zc_ref[...], c_bf, NT,
                             preferred_element_type=jnp.float32)
        return bc[:D, :], bc[D:, :]

    # --- ham: NMF2D ---------------------------------------------------------
    # coef = softmax(inv_t * x^T bases), inv_t = 1 for NMF2D.  The logits are
    # exactly the first-iteration numerator (bases unchanged), so they and
    # gram(bases) come from one fused matmul and are reused below.
    numer_ct, gram_b = fused_cb(bases_bf)                     # (R,N), (R,R)
    m = jnp.max(numer_ct, axis=0, keepdims=True)
    p = jnp.exp(numer_ct - m)
    coef_t = p * pl.reciprocal(jnp.sum(p, axis=0, keepdims=True), approx=True)

    # steps MU iterations + final compute_coef (= one extra coef update).
    # TODO(synk): switch to lax.fori_loop(..., unroll=2) with (coef_t, bases,
    # numer_ct, gram_b) carry at production shapes; full unroll is best here.
    for it in range(steps + 1):
        # coefficient update: coef *= numer / (coef @ gram(bases) + eps)
        denom_ct = jnp.dot(gram_b.astype(bf16), coef_t.astype(bf16),
                           preferred_element_type=jnp.float32)
        coef_t = coef_t * numer_ct * pl.reciprocal(denom_ct + NMF_EPS,
                                                   approx=True)
        if it == steps:
            break                                             # compute_coef

        coef_bf = coef_t.astype(bf16)
        zc_ref[D:, :] = coef_bf
        numer_b, gram_c = fused_bc(coef_bf)                   # (D,R), (R,R)

        # bases update: bases *= numer / (bases @ gram(coef) + eps)
        denom_b = jnp.dot(bases_bf, gram_c.astype(bf16),
                          preferred_element_type=jnp.float32)
        bases = bases * numer_b * pl.reciprocal(denom_b + NMF_EPS, approx=True)
        bases_bf = bases.astype(bf16)
        zb_ref[:, N:] = bases_bf
        numer_ct, gram_b = fused_cb(bases_bf)                 # for next iter

    # reconstruction: bases @ coef^T -> (D, N)
    y = jnp.dot(bases_bf, coef_t.astype(bf16),
                preferred_element_type=jnp.float32)

    # --- bread #2: ham_out (1x1 conv + bias), residual + ReLU ---------------
    enjoy = jnp.dot(wout_ref[...], y.astype(bf16),
                    preferred_element_type=jnp.float32) + bout_ref[...]
    o_ref[0] = jnp.maximum(x + enjoy, 0.0).astype(o_ref.dtype)


def _cost_estimate(B, C, N, R, steps):
    fused_cb = 2 * R * (N + R) * C
    denom_c = 2 * R * R * N
    fused_bc = 2 * (C + R) * R * N
    denom_b = 2 * C * R * R
    recon = 2 * C * R * N
    bread = 2 * (2 * C * C * N)
    flops = B * (bread + (steps + 1) * (fused_cb + denom_c)
                 + steps * (fused_bc + denom_b) + recon)
    transcendentals = B * (N * R + N + (steps + 1) * N * R + steps * C * R)
    bytes_accessed = 4 * (2 * B * C * N + B * C * R + 2 * C) + 2 * (2 * C * C)
    return pl.CostEstimate(flops=flops, transcendentals=transcendentals,
                           bytes_accessed=bytes_accessed)


def hamburger(x_nchw, params, bases, *, steps=6):
    """x_nchw: (B, C, H, W) f32; bases: (B, C, R) f32. Returns (B, C, H, W)."""
    w_in, b_in, w_out, b_out = params
    B, C, H, W = x_nchw.shape
    N = H * W
    R = bases.shape[-1]

    x_cn = x_nchw.reshape(B, C, N)            # free reshape, no transpose
    w_in_bf = w_in.astype(jnp.bfloat16)
    w_out_bf = w_out.astype(jnp.bfloat16)

    out_cn = pl.pallas_call(
        functools.partial(hamburger_kernel, steps=steps),
        out_shape=jax.ShapeDtypeStruct((B, C, N), jnp.float32),
        grid=(B,),
        in_specs=[
            pl.BlockSpec((1, C, N), lambda b: (b, 0, 0)),     # x
            pl.BlockSpec((C, C), lambda b: (0, 0)),           # W_in (bf16)
            pl.BlockSpec((C, 1), lambda b: (0, 0)),           # b_in
            pl.BlockSpec((C, C), lambda b: (0, 0)),           # W_out (bf16)
            pl.BlockSpec((C, 1), lambda b: (0, 0)),           # b_out
            pl.BlockSpec((1, C, R), lambda b: (b, 0, 0)),     # bases
        ],
        out_specs=pl.BlockSpec((1, C, N), lambda b: (b, 0, 0)),
        scratch_shapes=[
            pltpu.VMEM((C, N + R), jnp.bfloat16),             # [ z | bases ]
            pltpu.VMEM((C + R, N), jnp.bfloat16),             # [ z ; coef^T ]
        ],
        compiler_params=pltpu.CompilerParams(
            dimension_semantics=("parallel",)),
        cost_estimate=_cost_estimate(B, C, N, R, steps),
    )(x_cn, w_in_bf, b_in, w_out_bf, b_out, bases)

    return out_cn.reshape(B, C, H, W)


def reference_hamburger(x_nchw, params, bases, *, steps=6, bf16=False):
    """Pure-JAX reference.  bf16=True mirrors the kernel's matmul precision
    (bf16 operands, f32 accumulation); bf16=False is the full-f32 ground
    truth of the PyTorch module."""
    w_in, b_in, w_out, b_out = params
    B, C, H, W = x_nchw.shape
    N = H * W
    cast = (lambda a: a.astype(jnp.bfloat16)) if bf16 else (lambda a: a)

    def mm(eq, a, b):
        return jnp.einsum(eq, cast(a), cast(b),
                          preferred_element_type=jnp.float32)

    with jax.default_matmul_precision("highest"):
        x_dn = x_nchw.reshape(B, C, N)
        z = jnp.maximum(mm("oc,bcn->bon", w_in, x_dn) + b_in[None], 0.0)

        b_ = bases
        coef = jax.nn.softmax(mm("bdn,bdr->bnr", z, b_), axis=-1)
        for _ in range(steps):
            numer = mm("bdn,bdr->bnr", z, b_)
            denom = mm("bnr,brs->bns", coef, mm("bdr,bds->brs", b_, b_))
            coef = coef * numer / (denom + NMF_EPS)
            numer_b = mm("bdn,bnr->bdr", z, coef)
            denom_b = mm("bdr,brs->bds", b_, mm("bnr,bns->brs", coef, coef))
            b_ = b_ * numer_b / (denom_b + NMF_EPS)
        numer = mm("bdn,bdr->bnr", z, b_)
        denom = mm("bnr,brs->bns", coef, mm("bdr,bds->brs", b_, b_))
        coef = coef * numer / (denom + NMF_EPS)

        y = mm("bdr,bnr->bdn", b_, coef)
        enjoy = mm("oc,bcn->bon", w_out, y) + b_out[None]
        ham = jnp.maximum(x_dn + enjoy, 0.0)
    return ham.reshape(B, C, H, W)


def init_params(key, c):
    k1, k2, k3, k4 = jax.random.split(key, 4)
    scale = 1.0 / math.sqrt(c)
    w_in = jax.random.normal(k1, (c, c), jnp.float32) * scale     # (Cout, Cin)
    b_in = jax.random.normal(k2, (c, 1), jnp.float32) * 0.1
    w_out = jax.random.normal(k3, (c, c), jnp.float32) * scale
    b_out = jax.random.normal(k4, (c, 1), jnp.float32) * 0.1
    return w_in, b_in, w_out, b_out


def build_bases(key, B, D, R):
    """rand_init=True: uniform random bases, L2-normalized along D (dim=1)."""
    bases = jax.random.uniform(key, (B, D, R), jnp.float32)
    norm = jnp.sqrt(jnp.sum(bases * bases, axis=1, keepdims=True))
    return bases / jnp.maximum(norm, 1e-12)


if __name__ == "__main__":
    B, C, H, W, R = 2, 128, 16, 16, 64     # ham_channels=128, MD_R=64
    STEPS = 6                              # train_steps (fresh module mode)

    key = jax.random.PRNGKey(0)
    k_x, k_p, k_b = jax.random.split(key, 3)
    x = jax.random.normal(k_x, (B, C, H, W), jnp.float32)   # NCHW, like PyTorch
    params = init_params(k_p, C)
    bases = build_bases(k_b, B, C, R)

    out = jax.block_until_ready(hamburger(x, params, bases, steps=STEPS))
    assert out.shape == (B, C, H, W)

    # implementation check vs. a precision-matched (bf16-matmul) reference
    ref_bf = reference_hamburger(x, params, bases, steps=STEPS, bf16=True)
    err_impl = float(jnp.max(jnp.abs(out - ref_bf)))
    assert jnp.allclose(out, ref_bf, atol=3e-2, rtol=3e-2), err_impl

    # semantic sanity vs. the full-f32 ground truth (bf16 MXU drift expected)
    ref_f32 = reference_hamburger(x, params, bases, steps=STEPS, bf16=False)
    rel = float(jnp.linalg.norm(out - ref_f32) / jnp.linalg.norm(ref_f32))
    assert rel < 5e-2, rel

    print("KERNEL_OK")
</pallas_src>

<mosaic_0001>
module attributes {stable_mosaic.version = 11 : i64} {
  func.func @hamburger_kernel(%arg0: i32, %arg1: memref<1x128x256xf32, #tpu.memory_space<vmem>>, %arg2: memref<128x128xbf16, #tpu.memory_space<vmem>>, %arg3: memref<128x1xf32, #tpu.memory_space<vmem>>, %arg4: memref<128x128xbf16, #tpu.memory_space<vmem>>, %arg5: memref<128x1xf32, #tpu.memory_space<vmem>>, %arg6: memref<1x128x64xf32, #tpu.memory_space<vmem>>, %arg7: memref<1x128x256xf32, #tpu.memory_space<vmem>>, %arg8: memref<128x320xbf16, #tpu.memory_space<vmem>>, %arg9: memref<192x256xbf16, #tpu.memory_space<vmem>>) attributes {dimension_semantics = [#tpu.dimension_semantics<parallel>], iteration_bounds = array<i64: 2>, scalar_prefetch = 0 : i64, scratch_operands = 2 : i64, tpu.core_type = #tpu.core_type<tc>, window_params = [{transform_indices = @transform_0, window_bounds = array<i64: 1, 128, 256>}, {pipeline_mode = #tpu.pipeline_mode<synchronous>, transform_indices = @transform_1, window_bounds = array<i64: 128, 128>}, {pipeline_mode = #tpu.pipeline_mode<synchronous>, transform_indices = @transform_2, window_bounds = array<i64: 128, 1>}, {pipeline_mode = #tpu.pipeline_mode<synchronous>, transform_indices = @transform_3, window_bounds = array<i64: 128, 128>}, {pipeline_mode = #tpu.pipeline_mode<synchronous>, transform_indices = @transform_4, window_bounds = array<i64: 128, 1>}, {transform_indices = @transform_5, window_bounds = array<i64: 1, 128, 64>}, {transform_indices = @transform_6, window_bounds = array<i64: 1, 128, 256>}]} {
    %c0 = arith.constant 0 : index
    %c0_0 = arith.constant 0 : index
    %c0_1 = arith.constant 0 : index
    %0 = vector.load %arg1[%c0, %c0_0, %c0_1] : memref<1x128x256xf32, #tpu.memory_space<vmem>>, vector<1x128x256xf32>
    %1 = vector.shape_cast %0 : vector<1x128x256xf32> to vector<128x256xf32>
    %c0_2 = arith.constant 0 : index
    %c0_3 = arith.constant 0 : index
    %2 = vector.load %arg2[%c0_2, %c0_3] : memref<128x128xbf16, #tpu.memory_space<vmem>>, vector<128x128xbf16>
    %3 = arith.truncf %1 : vector<128x256xf32> to vector<128x256xbf16>
    %cst = arith.constant dense<0.000000e+00> : vector<128x256xf32>
    %4 = tpu.matmul %2, %3, %cst {dimension_numbers = #tpu.dot_dimension_numbers<[1], [0], [0], [1], [0, 0, 1, 1], [], []>} : vector<128x128xbf16>, vector<128x256xbf16>, vector<128x256xf32> -> vector<128x256xf32>
    %c0_4 = arith.constant 0 : index
    %c0_5 = arith.constant 0 : index
    %5 = vector.load %arg3[%c0_4, %c0_5] : memref<128x1xf32, #tpu.memory_space<vmem>>, vector<128x1xf32>
    %6 = vector.broadcast %5 : vector<128x1xf32> to vector<128x256xf32>
    %7 = arith.addf %4, %6 : vector<128x256xf32>
    %cst_6 = arith.constant 0.000000e+00 : f32
    %8 = vector.broadcast %cst_6 : f32 to vector<128x256xf32>
    %9 = arith.maximumf %7, %8 : vector<128x256xf32>
    %10 = arith.truncf %9 : vector<128x256xf32> to vector<128x256xbf16>
    %c0_7 = arith.constant 0 : index
    %c0_8 = arith.constant 0 : index
    %11 = vector.load %arg8[%c0_7, %c0_8] : memref<128x320xbf16, #tpu.memory_space<vmem>>, vector<128x256xbf16>
    tpu.vector_store %arg8[%c0_7, %c0_8], %10 {strides = array<i32>} : memref<128x320xbf16, #tpu.memory_space<vmem>>, vector<128x256xbf16>,
    %c0_9 = arith.constant 0 : index
    %c0_10 = arith.constant 0 : index
    %12 = vector.load %arg9[%c0_9, %c0_10] : memref<192x256xbf16, #tpu.memory_space<vmem>>, vector<128x256xbf16>
    tpu.vector_store %arg9[%c0_9, %c0_10], %10 {strides = array<i32>} : memref<192x256xbf16, #tpu.memory_space<vmem>>, vector<128x256xbf16>,
    %c0_11 = arith.constant 0 : index
    %c0_12 = arith.constant 0 : index
    %c0_13 = arith.constant 0 : index
    %13 = vector.load %arg6[%c0_11, %c0_12, %c0_13] : memref<1x128x64xf32, #tpu.memory_space<vmem>>, vector<1x128x64xf32>
    %14 = vector.shape_cast %13 : vector<1x128x64xf32> to vector<128x64xf32>
    %15 = arith.truncf %14 : vector<128x64xf32> to vector<128x64xbf16>
    %c0_14 = arith.constant 0 : index
    %c256 = arith.constant 256 : index
    %16 = vector.load %arg8[%c0_14, %c256] : memref<128x320xbf16, #tpu.memory_space<vmem>>, vector<128x64xbf16>
    tpu.vector_store %arg8[%c0_14, %c256], %15 {strides = array<i32>} : memref<128x320xbf16, #tpu.memory_space<vmem>>, vector<128x64xbf16>,
    %c0_15 = arith.constant 0 : index
    %c0_16 = arith.constant 0 : index
    %17 = vector.load %arg8[%c0_15, %c0_16] : memref<128x320xbf16, #tpu.memory_space<vmem>>, vector<128x320xbf16>
    %cst_17 = arith.constant dense<0.000000e+00> : vector<64x320xf32>
    %18 = tpu.matmul %15, %17, %cst_17 {dimension_numbers = #tpu.dot_dimension_numbers<[0], [0], [1], [1], [0, 1, 1, 1], [], []>} : vector<128x64xbf16>, vector<128x320xbf16>, vector<64x320xf32> -> vector<64x320xf32>
    %19 = vector.extract_strided_slice %18 {offsets = [0, 0], sizes = [64, 256], strides = [1, 1]} : vector<64x320xf32> to vector<64x256xf32>
    %20 = vector.extract_strided_slice %18 {offsets = [0, 256], sizes = [64, 64], strides = [1, 1]} : vector<64x320xf32> to vector<64x64xf32>
    %cst_18 = arith.constant dense<0xFF800000> : vector<256xf32>
    %21 = vector.multi_reduction <maximumf>, %19, %cst_18 [0] : vector<64x256xf32> to vector<256xf32>
    %22 = vector.shape_cast %21 : vector<256xf32> to vector<1x256xf32>
    %23 = vector.broadcast %22 : vector<1x256xf32> to vector<64x256xf32>
    %24 = arith.subf %19, %23 : vector<64x256xf32>
    %25 = math.exp %24 : vector<64x256xf32>
    %cst_19 = arith.constant dense<0.000000e+00> : vector<256xf32>
    %26 = vector.multi_reduction <add>, %25, %cst_19 [0] : vector<64x256xf32> to vector<256xf32>
    %27 = vector.shape_cast %26 : vector<256xf32> to vector<1x256xf32>
    %28 = tpu.reciprocal %27 {approx = true} : vector<1x256xf32> -> vector<1x256xf32>
    %29 = vector.broadcast %28 : vector<1x256xf32> to vector<64x256xf32>
    %30 = arith.mulf %25, %29 : vector<64x256xf32>
    %31 = arith.truncf %20 : vector<64x64xf32> to vector<64x64xbf16>
    %32 = arith.truncf %30 : vector<64x256xf32> to vector<64x256xbf16>
    %cst_20 = arith.constant dense<0.000000e+00> : vector<64x256xf32>
    %33 = tpu.matmul %31, %32, %cst_20 {dimension_numbers = #tpu.dot_dimension_numbers<[1], [0], [0], [1], [0, 0, 1, 1], [], []>} : vector<64x64xbf16>, vector<64x256xbf16>, vector<64x256xf32> -> vector<64x256xf32>
    %34 = arith.mulf %30, %19 : vector<64x256xf32>
    %cst_21 = arith.constant 9.99999997E-7 : f32
    %35 = vector.broadcast %cst_21 : f32 to vector<64x256xf32>
    %36 = arith.addf %33, %35 : vector<64x256xf32>
    %37 = tpu.reciprocal %36 {approx = true} : vector<64x256xf32> -> vector<64x256xf32>
    %38 = arith.mulf %34, %37 : vector<64x256xf32>
    %39 = arith.truncf %38 : vector<64x256xf32> to vector<64x256xbf16>
    %c128 = arith.constant 128 : index
    %c0_22 = arith.constant 0 : index
    %40 = vector.load %arg9[%c128, %c0_22] : memref<192x256xbf16, #tpu.memory_space<vmem>>, vector<64x256xbf16>
    tpu.vector_store %arg9[%c128, %c0_22], %39 {strides = array<i32>} : memref<192x256xbf16, #tpu.memory_space<vmem>>, vector<64x256xbf16>,
    %c0_23 = arith.constant 0 : index
    %c0_24 = arith.constant 0 : index
    %41 = vector.load %arg9[%c0_23, %c0_24] : memref<192x256xbf16, #tpu.memory_space<vmem>>, vector<192x256xbf16>
    %cst_25 = arith.constant dense<0.000000e+00> : vector<192x64xf32>
    %42 = tpu.matmul %41, %39, %cst_25 {dimension_numbers = #tpu.dot_dimension_numbers<[1], [1], [0], [0], [0, 0, 1, 0], [], []>} : vector<192x256xbf16>, vector<64x256xbf16>, vector<192x64xf32> -> vector<192x64xf32>
    %43 = vector.extract_strided_slice %42 {offsets = [0, 0], sizes = [128, 64], strides = [1, 1]} : vector<192x64xf32> to vector<128x64xf32>
    %44 = vector.extract_strided_slice %42 {offsets = [128, 0], sizes = [64, 64], strides = [1, 1]} : vector<192x64xf32> to vector<64x64xf32>
    %45 = arith.truncf %44 : vector<64x64xf32> to vector<64x64xbf16>
    %cst_26 = arith.constant dense<0.000000e+00> : vector<128x64xf32>
    %46 = tpu.matmul %15, %45, %cst_26 {dimension_numbers = #tpu.dot_dimension_numbers<[1], [0], [0], [1], [0, 0, 1, 1], [], []>} : vector<128x64xbf16>, vector<64x64xbf16>, vector<128x64xf32> -> vector<128x64xf32>
    %47 = arith.mulf %14, %43 : vector<128x64xf32>
    %cst_27 = arith.constant 9.99999997E-7 : f32
    %48 = vector.broadcast %cst_27 : f32 to vector<128x64xf32>
    %49 = arith.addf %46, %48 : vector<128x64xf32>
    %50 = tpu.reciprocal %49 {approx = true} : vector<128x64xf32> -> vector<128x64xf32>
    %51 = arith.mulf %47, %50 : vector<128x64xf32>
    %52 = arith.truncf %51 : vector<128x64xf32> to vector<128x64xbf16>
    %c0_28 = arith.constant 0 : index
    %c256_29 = arith.constant 256 : index
    %53 = vector.load %arg8[%c0_28, %c256_29] : memref<128x320xbf16, #tpu.memory_space<vmem>>, vector<128x64xbf16>
    tpu.vector_store %arg8[%c0_28, %c256_29], %52 {strides = array<i32>} : memref<128x320xbf16, #tpu.memory_space<vmem>>, vector<128x64xbf16>,
    %c0_30 = arith.constant 0 : index
    %c0_31 = arith.constant 0 : index
    %54 = vector.load %arg8[%c0_30, %c0_31] : memref<128x320xbf16, #tpu.memory_space<vmem>>, vector<128x320xbf16>
    %cst_32 = arith.constant dense<0.000000e+00> : vector<64x320xf32>
    %55 = tpu.matmul %52, %54, %cst_32 {dimension_numbers = #tpu.dot_dimension_numbers<[0], [0], [1], [1], [0, 1, 1, 1], [], []>} : vector<128x64xbf16>, vector<128x320xbf16>, vector<64x320xf32> -> vector<64x320xf32>
    %56 = vector.extract_strided_slice %55 {offsets = [0, 0], sizes = [64, 256], strides = [1, 1]} : vector<64x320xf32> to vector<64x256xf32>
    %57 = vector.extract_strided_slice %55 {offsets = [0, 256], sizes = [64, 64], strides = [1, 1]} : vector<64x320xf32> to vector<64x64xf32>
    %58 = arith.truncf %57 : vector<64x64xf32> to vector<64x64xbf16>
    %59 = arith.truncf %38 : vector<64x256xf32> to vector<64x256xbf16>
    %cst_33 = arith.constant dense<0.000000e+00> : vector<64x256xf32>
    %60 = tpu.matmul %58, %59, %cst_33 {dimension_numbers = #tpu.dot_dimension_numbers<[1], [0], [0], [1], [0, 0, 1, 1], [], []>} : vector<64x64xbf16>, vector<64x256xbf16>, vector<64x256xf32> -> vector<64x256xf32>
    %61 = arith.mulf %38, %56 : vector<64x256xf32>
    %cst_34 = arith.constant 9.99999997E-7 : f32
    %62 = vector.broadcast %cst_34 : f32 to vector<64x256xf32>
    %63 = arith.addf %60, %62 : vector<64x256xf32>
    %64 = tpu.reciprocal %63 {approx = true} : vector<64x256xf32> -> vector<64x256xf32>
    %65 = arith.mulf %61, %64 : vector<64x256xf32>
    %66 = arith.truncf %65 : vector<64x256xf32> to vector<64x256xbf16>
    %c128_35 = arith.constant 128 : index
    %c0_36 = arith.constant 0 : index
    %67 = vector.load %arg9[%c128_35, %c0_36] : memref<192x256xbf16, #tpu.memory_space<vmem>>, vector<64x256xbf16>
    tpu.vector_store %arg9[%c128_35, %c0_36], %66 {strides = array<i32>} : memref<192x256xbf16, #tpu.memory_space<vmem>>, vector<64x256xbf16>,
    %c0_37 = arith.constant 0 : index
    %c0_38 = arith.constant 0 : index
    %68 = vector.load %arg9[%c0_37, %c0_38] : memref<192x256xbf16, #tpu.memory_space<vmem>>, vector<192x256xbf16>
    %cst_39 = arith.constant dense<0.000000e+00> : vector<192x64xf32>
    %69 = tpu.matmul %68, %66, %cst_39 {dimension_numbers = #tpu.dot_dimension_numbers<[1], [1], [0], [0], [0, 0, 1, 0], [], []>} : vector<192x256xbf16>, vector<64x256xbf16>, vector<192x64xf32> -> vector<192x64xf32>
    %70 = vector.extract_strided_slice %69 {offsets = [0, 0], sizes = [128, 64], strides = [1, 1]} : vector<192x64xf32> to vector<128x64xf32>
    %71 = vector.extract_strided_slice %69 {offsets = [128, 0], sizes = [64, 64], strides = [1, 1]} : vector<192x64xf32> to vector<64x64xf32>
    %72 = arith.truncf %71 : vector<64x64xf32> to vector<64x64xbf16>
    %cst_40 = arith.constant dense<0.000000e+00> : vector<128x64xf32>
    %73 = tpu.matmul %52, %72, %cst_40 {dimension_numbers = #tpu.dot_dimension_numbers<[1], [0], [0], [1], [0, 0, 1, 1], [], []>} : vector<128x64xbf16>, vector<64x64xbf16>, vector<128x64xf32> -> vector<128x64xf32>
    %74 = arith.mulf %51, %70 : vector<128x64xf32>
    %cst_41 = arith.constant 9.99999997E-7 : f32
    %75 = vector.broadcast %cst_41 : f32 to vector<128x64xf32>
    %76 = arith.addf %73, %75 : vector<128x64xf32>
    %77 = tpu.reciprocal %76 {approx = true} : vector<128x64xf32> -> vector<128x64xf32>
    %78 = arith.mulf %74, %77 : vector<128x64xf32>
    %79 = arith.truncf %78 : vector<128x64xf32> to vector<128x64xbf16>
    %c0_42 = arith.constant 0 : index
    %c256_43 = arith.constant 256 : index
    %80 = vector.load %arg8[%c0_42, %c256_43] : memref<128x320xbf16, #tpu.memory_space<vmem>>, vector<128x64xbf16>
    tpu.vector_store %arg8[%c0_42, %c256_43], %79 {strides = array<i32>} : memref<128x320xbf16, #tpu.memory_space<vmem>>, vector<128x64xbf16>,
    %c0_44 = arith.constant 0 : index
    %c0_45 = arith.constant 0 : index
    %81 = vector.load %arg8[%c0_44, %c0_45] : memref<128x320xbf16, #tpu.memory_space<vmem>>, vector<128x320xbf16>
    %cst_46 = arith.constant dense<0.000000e+00> : vector<64x320xf32>
    %82 = tpu.matmul %79, %81, %cst_46 {dimension_numbers = #tpu.dot_dimension_numbers<[0], [0], [1], [1], [0, 1, 1, 1], [], []>} : vector<128x64xbf16>, vector<128x320xbf16>, vector<64x320xf32> -> vector<64x320xf32>
    %83 = vector.extract_strided_slice %82 {offsets = [0, 0], sizes = [64, 256], strides = [1, 1]} : vector<64x320xf32> to vector<64x256xf32>
    %84 = vector.extract_strided_slice %82 {offsets = [0, 256], sizes = [64, 64], strides = [1, 1]} : vector<64x320xf32> to vector<64x64xf32>
    %85 = arith.truncf %84 : vector<64x64xf32> to vector<64x64xbf16>
    %86 = arith.truncf %65 : vector<64x256xf32> to vector<64x256xbf16>
    %cst_47 = arith.constant dense<0.000000e+00> : vector<64x256xf32>
    %87 = tpu.matmul %85, %86, %cst_47 {dimension_numbers = #tpu.dot_dimension_numbers<[1], [0], [0], [1], [0, 0, 1, 1], [], []>} : vector<64x64xbf16>, vector<64x256xbf16>, vector<64x256xf32> -> vector<64x256xf32>
    %88 = arith.mulf %65, %83 : vector<64x256xf32>
    %cst_48 = arith.constant 9.99999997E-7 : f32
    %89 = vector.broadcast %cst_48 : f32 to vector<64x256xf32>
    %90 = arith.addf %87, %89 : vector<64x256xf32>
    %91 = tpu.reciprocal %90 {approx = true} : vector<64x256xf32> -> vector<64x256xf32>
    %92 = arith.mulf %88, %91 : vector<64x256xf32>
    %93 = arith.truncf %92 : vector<64x256xf32> to vector<64x256xbf16>
    %c128_49 = arith.constant 128 : index
    %c0_50 = arith.constant 0 : index
    %94 = vector.load %arg9[%c128_49, %c0_50] : memref<192x256xbf16, #tpu.memory_space<vmem>>, vector<64x256xbf16>
    tpu.vector_store %arg9[%c128_49, %c0_50], %93 {strides = array<i32>} : memref<192x256xbf16, #tpu.memory_space<vmem>>, vector<64x256xbf16>,
    %c0_51 = arith.constant 0 : index
    %c0_52 = arith.constant 0 : index
    %95 = vector.load %arg9[%c0_51, %c0_52] : memref<192x256xbf16, #tpu.memory_space<vmem>>, vector<192x256xbf16>
    %cst_53 = arith.constant dense<0.000000e+00> : vector<192x64xf32>
    %96 = tpu.matmul %95, %93, %cst_53 {dimension_numbers = #tpu.dot_dimension_numbers<[1], [1], [0], [0], [0, 0, 1, 0], [], []>} : vector<192x256xbf16>, vector<64x256xbf16>, vector<192x64xf32> -> vector<192x64xf32>
    %97 = vector.extract_strided_slice %96 {offsets = [0, 0], sizes = [128, 64], strides = [1, 1]} : vector<192x64xf32> to vector<128x64xf32>
    %98 = vector.extract_strided_slice %96 {offsets = [128, 0], sizes = [64, 64], strides = [1, 1]} : vector<192x64xf32> to vector<64x64xf32>
    %99 = arith.truncf %98 : vector<64x64xf32> to vector<64x64xbf16>
    %cst_54 = arith.constant dense<0.000000e+00> : vector<128x64xf32>
    %100 = tpu.matmul %79, %99, %cst_54 {dimension_numbers = #tpu.dot_dimension_numbers<[1], [0], [0], [1], [0, 0, 1, 1], [], []>} : vector<128x64xbf16>, vector<64x64xbf16>, vector<128x64xf32> -> vector<128x64xf32>
    %101 = arith.mulf %78, %97 : vector<128x64xf32>
    %cst_55 = arith.constant 9.99999997E-7 : f32
    %102 = vector.broadcast %cst_55 : f32 to vector<128x64xf32>
    %103 = arith.addf %100, %102 : vector<128x64xf32>
    %104 = tpu.reciprocal %103 {approx = true} : vector<128x64xf32> -> vector<128x64xf32>
    %105 = arith.mulf %101, %104 : vector<128x64xf32>
    %106 = arith.truncf %105 : vector<128x64xf32> to vector<128x64xbf16>
    %c0_56 = arith.constant 0 : index
    %c256_57 = arith.constant 256 : index
    %107 = vector.load %arg8[%c0_56, %c256_57] : memref<128x320xbf16, #tpu.memory_space<vmem>>, vector<128x64xbf16>
    tpu.vector_store %arg8[%c0_56, %c256_57], %106 {strides = array<i32>} : memref<128x320xbf16, #tpu.memory_space<vmem>>, vector<128x64xbf16>,
    %c0_58 = arith.constant 0 : index
    %c0_59 = arith.constant 0 : index
    %108 = vector.load %arg8[%c0_58, %c0_59] : memref<128x320xbf16, #tpu.memory_space<vmem>>, vector<128x320xbf16>
    %cst_60 = arith.constant dense<0.000000e+00> : vector<64x320xf32>
    %109 = tpu.matmul %106, %108, %cst_60 {dimension_numbers = #tpu.dot_dimension_numbers<[0], [0], [1], [1], [0, 1, 1, 1], [], []>} : vector<128x64xbf16>, vector<128x320xbf16>, vector<64x320xf32> -> vector<64x320xf32>
    %110 = vector.extract_strided_slice %109 {offsets = [0, 0], sizes = [64, 256], strides = [1, 1]} : vector<64x320xf32> to vector<64x256xf32>
    %111 = vector.extract_strided_slice %109 {offsets = [0, 256], sizes = [64, 64], strides = [1, 1]} : vector<64x320xf32> to vector<64x64xf32>
    %112 = arith.truncf %111 : vector<64x64xf32> to vector<64x64xbf16>
    %113 = arith.truncf %92 : vector<64x256xf32> to vector<64x256xbf16>
    %cst_61 = arith.constant dense<0.000000e+00> : vector<64x256xf32>
    %114 = tpu.matmul %112, %113, %cst_61 {dimension_numbers = #tpu.dot_dimension_numbers<[1], [0], [0], [1], [0, 0, 1, 1], [], []>} : vector<64x64xbf16>, vector<64x256xbf16>, vector<64x256xf32> -> vector<64x256xf32>
    %115 = arith.mulf %92, %110 : vector<64x256xf32>
    %cst_62 = arith.constant 9.99999997E-7 : f32
    %116 = vector.broadcast %cst_62 : f32 to vector<64x256xf32>
    %117 = arith.addf %114, %116 : vector<64x256xf32>
    %118 = tpu.reciprocal %117 {approx = true} : vector<64x256xf32> -> vector<64x256xf32>
    %119 = arith.mulf %115, %118 : vector<64x256xf32>
    %120 = arith.truncf %119 : vector<64x256xf32> to vector<64x256xbf16>
    %c128_63 = arith.constant 128 : index
    %c0_64 = arith.constant 0 : index
    %121 = vector.load %arg9[%c128_63, %c0_64] : memref<192x256xbf16, #tpu.memory_space<vmem>>, vector<64x256xbf16>
    tpu.vector_store %arg9[%c128_63, %c0_64], %120 {strides = array<i32>} : memref<192x256xbf16, #tpu.memory_space<vmem>>, vector<64x256xbf16>,
    %c0_65 = arith.constant 0 : index
    %c0_66 = arith.constant 0 : index
    %122 = vector.load %arg9[%c0_65, %c0_66] : memref<192x256xbf16, #tpu.memory_space<vmem>>, vector<192x256xbf16>
    %cst_67 = arith.constant dense<0.000000e+00> : vector<192x64xf32>
    %123 = tpu.matmul %122, %120, %cst_67 {dimension_numbers = #tpu.dot_dimension_numbers<[1], [1], [0], [0], [0, 0, 1, 0], [], []>} : vector<192x256xbf16>, vector<64x256xbf16>, vector<192x64xf32> -> vector<192x64xf32>
    %124 = vector.extract_strided_slice %123 {offsets = [0, 0], sizes = [128, 64], strides = [1, 1]} : vector<192x64xf32> to vector<128x64xf32>
    %125 = vector.extract_strided_slice %123 {offsets = [128, 0], sizes = [64, 64], strides = [1, 1]} : vector<192x64xf32> to vector<64x64xf32>
    %126 = arith.truncf %125 : vector<64x64xf32> to vector<64x64xbf16>
    %cst_68 = arith.constant dense<0.000000e+00> : vector<128x64xf32>
    %127 = tpu.matmul %106, %126, %cst_68 {dimension_numbers = #tpu.dot_dimension_numbers<[1], [0], [0], [1], [0, 0, 1, 1], [], []>} : vector<128x64xbf16>, vector<64x64xbf16>, vector<128x64xf32> -> vector<128x64xf32>
    %128 = arith.mulf %105, %124 : vector<128x64xf32>
    %cst_69 = arith.constant 9.99999997E-7 : f32
    %129 = vector.broadcast %cst_69 : f32 to vector<128x64xf32>
    %130 = arith.addf %127, %129 : vector<128x64xf32>
    %131 = tpu.reciprocal %130 {approx = true} : vector<128x64xf32> -> vector<128x64xf32>
    %132 = arith.mulf %128, %131 : vector<128x64xf32>
    %133 = arith.truncf %132 : vector<128x64xf32> to vector<128x64xbf16>
    %c0_70 = arith.constant 0 : index
    %c256_71 = arith.constant 256 : index
    %134 = vector.load %arg8[%c0_70, %c256_71] : memref<128x320xbf16, #tpu.memory_space<vmem>>, vector<128x64xbf16>
    tpu.vector_store %arg8[%c0_70, %c256_71], %133 {strides = array<i32>} : memref<128x320xbf16, #tpu.memory_space<vmem>>, vector<128x64xbf16>,
    %c0_72 = arith.constant 0 : index
    %c0_73 = arith.constant 0 : index
    %135 = vector.load %arg8[%c0_72, %c0_73] : memref<128x320xbf16, #tpu.memory_space<vmem>>, vector<128x320xbf16>
    %cst_74 = arith.constant dense<0.000000e+00> : vector<64x320xf32>
    %136 = tpu.matmul %133, %135, %cst_74 {dimension_numbers = #tpu.dot_dimension_numbers<[0], [0], [1], [1], [0, 1, 1, 1], [], []>} : vector<128x64xbf16>, vector<128x320xbf16>, vector<64x320xf32> -> vector<64x320xf32>
    %137 = vector.extract_strided_slice %136 {offsets = [0, 0], sizes = [64, 256], strides = [1, 1]} : vector<64x320xf32> to vector<64x256xf32>
    %138 = vector.extract_strided_slice %136 {offsets = [0, 256], sizes = [64, 64], strides = [1, 1]} : vector<64x320xf32> to vector<64x64xf32>
    %139 = arith.truncf %138 : vector<64x64xf32> to vector<64x64xbf16>
    %140 = arith.truncf %119 : vector<64x256xf32> to vector<64x256xbf16>
    %cst_75 = arith.constant dense<0.000000e+00> : vector<64x256xf32>
    %141 = tpu.matmul %139, %140, %cst_75 {dimension_numbers = #tpu.dot_dimension_numbers<[1], [0], [0], [1], [0, 0, 1, 1], [], []>} : vector<64x64xbf16>, vector<64x256xbf16>, vector<64x256xf32> -> vector<64x256xf32>
    %142 = arith.mulf %119, %137 : vector<64x256xf32>
    %cst_76 = arith.constant 9.99999997E-7 : f32
    %143 = vector.broadcast %cst_76 : f32 to vector<64x256xf32>
    %144 = arith.addf %141, %143 : vector<64x256xf32>
    %145 = tpu.reciprocal %144 {approx = true} : vector<64x256xf32> -> vector<64x256xf32>
    %146 = arith.mulf %142, %145 : vector<64x256xf32>
    %147 = arith.truncf %146 : vector<64x256xf32> to vector<64x256xbf16>
    %c128_77 = arith.constant 128 : index
    %c0_78 = arith.constant 0 : index
    %148 = vector.load %arg9[%c128_77, %c0_78] : memref<192x256xbf16, #tpu.memory_space<vmem>>, vector<64x256xbf16>
    tpu.vector_store %arg9[%c128_77, %c0_78], %147 {strides = array<i32>} : memref<192x256xbf16, #tpu.memory_space<vmem>>, vector<64x256xbf16>,
    %c0_79 = arith.constant 0 : index
    %c0_80 = arith.constant 0 : index
    %149 = vector.load %arg9[%c0_79, %c0_80] : memref<192x256xbf16, #tpu.memory_space<vmem>>, vector<192x256xbf16>
    %cst_81 = arith.constant dense<0.000000e+00> : vector<192x64xf32>
    %150 = tpu.matmul %149, %147, %cst_81 {dimension_numbers = #tpu.dot_dimension_numbers<[1], [1], [0], [0], [0, 0, 1, 0], [], []>} : vector<192x256xbf16>, vector<64x256xbf16>, vector<192x64xf32> -> vector<192x64xf32>
    %151 = vector.extract_strided_slice %150 {offsets = [0, 0], sizes = [128, 64], strides = [1, 1]} : vector<192x64xf32> to vector<128x64xf32>
    %152 = vector.extract_strided_slice %150 {offsets = [128, 0], sizes = [64, 64], strides = [1, 1]} : vector<192x64xf32> to vector<64x64xf32>
    %153 = arith.truncf %152 : vector<64x64xf32> to vector<64x64xbf16>
    %cst_82 = arith.constant dense<0.000000e+00> : vector<128x64xf32>
    %154 = tpu.matmul %133, %153, %cst_82 {dimension_numbers = #tpu.dot_dimension_numbers<[1], [0], [0], [1], [0, 0, 1, 1], [], []>} : vector<128x64xbf16>, vector<64x64xbf16>, vector<128x64xf32> -> vector<128x64xf32>
    %155 = arith.mulf %132, %151 : vector<128x64xf32>
    %cst_83 = arith.constant 9.99999997E-7 : f32
    %156 = vector.broadcast %cst_83 : f32 to vector<128x64xf32>
    %157 = arith.addf %154, %156 : vector<128x64xf32>
    %158 = tpu.reciprocal %157 {approx = true} : vector<128x64xf32> -> vector<128x64xf32>
    %159 = arith.mulf %155, %158 : vector<128x64xf32>
    %160 = arith.truncf %159 : vector<128x64xf32> to vector<128x64xbf16>
    %c0_84 = arith.constant 0 : index
    %c256_85 = arith.constant 256 : index
    %161 = vector.load %arg8[%c0_84, %c256_85] : memref<128x320xbf16, #tpu.memory_space<vmem>>, vector<128x64xbf16>
    tpu.vector_store %arg8[%c0_84, %c256_85], %160 {strides = array<i32>} : memref<128x320xbf16, #tpu.memory_space<vmem>>, vector<128x64xbf16>,
    %c0_86 = arith.constant 0 : index
    %c0_87 = arith.constant 0 : index
    %162 = vector.load %arg8[%c0_86, %c0_87] : memref<128x320xbf16, #tpu.memory_space<vmem>>, vector<128x320xbf16>
    %cst_88 = arith.constant dense<0.000000e+00> : vector<64x320xf32>
    %163 = tpu.matmul %160, %162, %cst_88 {dimension_numbers = #tpu.dot_dimension_numbers<[0], [0], [1], [1], [0, 1, 1, 1], [], []>} : vector<128x64xbf16>, vector<128x320xbf16>, vector<64x320xf32> -> vector<64x320xf32>
    %164 = vector.extract_strided_slice %163 {offsets = [0, 0], sizes = [64, 256], strides = [1, 1]} : vector<64x320xf32> to vector<64x256xf32>
    %165 = vector.extract_strided_slice %163 {offsets = [0, 256], sizes = [64, 64], strides = [1, 1]} : vector<64x320xf32> to vector<64x64xf32>
    %166 = arith.truncf %165 : vector<64x64xf32> to vector<64x64xbf16>
    %167 = arith.truncf %146 : vector<64x256xf32> to vector<64x256xbf16>
    %cst_89 = arith.constant dense<0.000000e+00> : vector<64x256xf32>
    %168 = tpu.matmul %166, %167, %cst_89 {dimension_numbers = #tpu.dot_dimension_numbers<[1], [0], [0], [1], [0, 0, 1, 1], [], []>} : vector<64x64xbf16>, vector<64x256xbf16>, vector<64x256xf32> -> vector<64x256xf32>
    %169 = arith.mulf %146, %164 : vector<64x256xf32>
    %cst_90 = arith.constant 9.99999997E-7 : f32
    %170 = vector.broadcast %cst_90 : f32 to vector<64x256xf32>
    %171 = arith.addf %168, %170 : vector<64x256xf32>
    %172 = tpu.reciprocal %171 {approx = true} : vector<64x256xf32> -> vector<64x256xf32>
    %173 = arith.mulf %169, %172 : vector<64x256xf32>
    %174 = arith.truncf %173 : vector<64x256xf32> to vector<64x256xbf16>
    %c128_91 = arith.constant 128 : index
    %c0_92 = arith.constant 0 : index
    %175 = vector.load %arg9[%c128_91, %c0_92] : memref<192x256xbf16, #tpu.memory_space<vmem>>, vector<64x256xbf16>
    tpu.vector_store %arg9[%c128_91, %c0_92], %174 {strides = array<i32>} : memref<192x256xbf16, #tpu.memory_space<vmem>>, vector<64x256xbf16>,
    %c0_93 = arith.constant 0 : index
    %c0_94 = arith.constant 0 : index
    %176 = vector.load %arg9[%c0_93, %c0_94] : memref<192x256xbf16, #tpu.memory_space<vmem>>, vector<192x256xbf16>
    %cst_95 = arith.constant dense<0.000000e+00> : vector<192x64xf32>
    %177 = tpu.matmul %176, %174, %cst_95 {dimension_numbers = #tpu.dot_dimension_numbers<[1], [1], [0], [0], [0, 0, 1, 0], [], []>} : vector<192x256xbf16>, vector<64x256xbf16>, vector<192x64xf32> -> vector<192x64xf32>
    %178 = vector.extract_strided_slice %177 {offsets = [0, 0], sizes = [128, 64], strides = [1, 1]} : vector<192x64xf32> to vector<128x64xf32>
    %179 = vector.extract_strided_slice %177 {offsets = [128, 0], sizes = [64, 64], strides = [1, 1]} : vector<192x64xf32> to vector<64x64xf32>
    %180 = arith.truncf %179 : vector<64x64xf32> to vector<64x64xbf16>
    %cst_96 = arith.constant dense<0.000000e+00> : vector<128x64xf32>
    %181 = tpu.matmul %160, %180, %cst_96 {dimension_numbers = #tpu.dot_dimension_numbers<[1], [0], [0], [1], [0, 0, 1, 1], [], []>} : vector<128x64xbf16>, vector<64x64xbf16>, vector<128x64xf32> -> vector<128x64xf32>
    %182 = arith.mulf %159, %178 : vector<128x64xf32>
    %cst_97 = arith.constant 9.99999997E-7 : f32
    %183 = vector.broadcast %cst_97 : f32 to vector<128x64xf32>
    %184 = arith.addf %181, %183 : vector<128x64xf32>
    %185 = tpu.reciprocal %184 {approx = true} : vector<128x64xf32> -> vector<128x64xf32>
    %186 = arith.mulf %182, %185 : vector<128x64xf32>
    %187 = arith.truncf %186 : vector<128x64xf32> to vector<128x64xbf16>
    %c0_98 = arith.constant 0 : index
    %c256_99 = arith.constant 256 : index
    %188 = vector.load %arg8[%c0_98, %c256_99] : memref<128x320xbf16, #tpu.memory_space<vmem>>, vector<128x64xbf16>
    tpu.vector_store %arg8[%c0_98, %c256_99], %187 {strides = array<i32>} : memref<128x320xbf16, #tpu.memory_space<vmem>>, vector<128x64xbf16>,
    %c0_100 = arith.constant 0 : index
    %c0_101 = arith.constant 0 : index
    %189 = vector.load %arg8[%c0_100, %c0_101] : memref<128x320xbf16, #tpu.memory_space<vmem>>, vector<128x320xbf16>
    %cst_102 = arith.constant dense<0.000000e+00> : vector<64x320xf32>
    %190 = tpu.matmul %187, %189, %cst_102 {dimension_numbers = #tpu.dot_dimension_numbers<[0], [0], [1], [1], [0, 1, 1, 1], [], []>} : vector<128x64xbf16>, vector<128x320xbf16>, vector<64x320xf32> -> vector<64x320xf32>
    %191 = vector.extract_strided_slice %190 {offsets = [0, 0], sizes = [64, 256], strides = [1, 1]} : vector<64x320xf32> to vector<64x256xf32>
    %192 = vector.extract_strided_slice %190 {offsets = [0, 256], sizes = [64, 64], strides = [1, 1]} : vector<64x320xf32> to vector<64x64xf32>
    %193 = arith.truncf %192 : vector<64x64xf32> to vector<64x64xbf16>
    %194 = arith.truncf %173 : vector<64x256xf32> to vector<64x256xbf16>
    %cst_103 = arith.constant dense<0.000000e+00> : vector<64x256xf32>
    %195 = tpu.matmul %193, %194, %cst_103 {dimension_numbers = #tpu.dot_dimension_numbers<[1], [0], [0], [1], [0, 0, 1, 1], [], []>} : vector<64x64xbf16>, vector<64x256xbf16>, vector<64x256xf32> -> vector<64x256xf32>
    %196 = arith.mulf %173, %191 : vector<64x256xf32>
    %cst_104 = arith.constant 9.99999997E-7 : f32
    %197 = vector.broadcast %cst_104 : f32 to vector<64x256xf32>
    %198 = arith.addf %195, %197 : vector<64x256xf32>
    %199 = tpu.reciprocal %198 {approx = true} : vector<64x256xf32> -> vector<64x256xf32>
    %200 = arith.mulf %196, %199 : vector<64x256xf32>
    %201 = arith.truncf %200 : vector<64x256xf32> to vector<64x256xbf16>
    %cst_105 = arith.constant dense<0.000000e+00> : vector<128x256xf32>
    %202 = tpu.matmul %187, %201, %cst_105 {dimension_numbers = #tpu.dot_dimension_numbers<[1], [0], [0], [1], [0, 0, 1, 1], [], []>} : vector<128x64xbf16>, vector<64x256xbf16>, vector<128x256xf32> -> vector<128x256xf32>
    %c0_106 = arith.constant 0 : index
    %c0_107 = arith.constant 0 : index
    %203 = vector.load %arg4[%c0_106, %c0_107] : memref<128x128xbf16, #tpu.memory_space<vmem>>, vector<128x128xbf16>
    %204 = arith.truncf %202 : vector<128x256xf32> to vector<128x256xbf16>
    %cst_108 = arith.constant dense<0.000000e+00> : vector<128x256xf32>
    %205 = tpu.matmul %203, %204, %cst_108 {dimension_numbers = #tpu.dot_dimension_numbers<[1], [0], [0], [1], [0, 0, 1, 1], [], []>} : vector<128x128xbf16>, vector<128x256xbf16>, vector<128x256xf32> -> vector<128x256xf32>
    %c0_109 = arith.constant 0 : index
    %c0_110 = arith.constant 0 : index
    %206 = vector.load %arg5[%c0_109, %c0_110] : memref<128x1xf32, #tpu.memory_space<vmem>>, vector<128x1xf32>
    %207 = vector.broadcast %206 : vector<128x1xf32> to vector<128x256xf32>
    %208 = arith.addf %205, %207 : vector<128x256xf32>
    %209 = arith.addf %1, %208 : vector<128x256xf32>
    %cst_111 = arith.constant 0.000000e+00 : f32
    %210 = vector.broadcast %cst_111 : f32 to vector<128x256xf32>
    %211 = arith.maximumf %209, %210 : vector<128x256xf32>
    %c0_112 = arith.constant 0 : index
    %c0_113 = arith.constant 0 : index
    %c0_114 = arith.constant 0 : index
    %212 = vector.load %arg7[%c0_112, %c0_113, %c0_114] : memref<1x128x256xf32, #tpu.memory_space<vmem>>, vector<1x128x256xf32>
    %213 = vector.shape_cast %212 : vector<1x128x256xf32> to vector<128x256xf32>
    %214 = vector.shape_cast %211 : vector<128x256xf32> to vector<1x128x256xf32>
    tpu.vector_store %arg7[%c0_112, %c0_113, %c0_114], %214 {strides = array<i32>} : memref<1x128x256xf32, #tpu.memory_space<vmem>>, vector<1x128x256xf32>,
    return
  }
  func.func @transform_0(%arg0: i32) -> (i32, i32, i32) {
    %c0_i32 = arith.constant 0 : i32
    %c0_i32_0 = arith.constant 0 : i32
    %c0_i32_1 = arith.constant 0 : i32
    return %arg0, %c0_i32, %c0_i32_0 : i32, i32, i32
  }
  func.func @transform_1(%arg0: i32) -> (i32, i32) {
    %c0_i32 = arith.constant 0 : i32
    %c0_i32_0 = arith.constant 0 : i32
    %c0_i32_1 = arith.constant 0 : i32
    return %c0_i32, %c0_i32_0 : i32, i32
  }
  func.func @transform_2(%arg0: i32) -> (i32, i32) {
    %c0_i32 = arith.constant 0 : i32
    %c0_i32_0 = arith.constant 0 : i32
    %c0_i32_1 = arith.constant 0 : i32
    return %c0_i32, %c0_i32_0 : i32, i32
  }
  func.func @transform_3(%arg0: i32) -> (i32, i32) {
    %c0_i32 = arith.constant 0 : i32
    %c0_i32_0 = arith.constant 0 : i32
    %c0_i32_1 = arith.constant 0 : i32
    return %c0_i32, %c0_i32_0 : i32, i32
  }
  func.func @transform_4(%arg0: i32) -> (i32, i32) {
    %c0_i32 = arith.constant 0 : i32
    %c0_i32_0 = arith.constant 0 : i32
    %c0_i32_1 = arith.constant 0 : i32
    return %c0_i32, %c0_i32_0 : i32, i32
  }
  func.func @transform_5(%arg0: i32) -> (i32, i32, i32) {
    %c0_i32 = arith.constant 0 : i32
    %c0_i32_0 = arith.constant 0 : i32
    %c0_i32_1 = arith.constant 0 : i32
    return %arg0, %c0_i32, %c0_i32_0 : i32, i32, i32
  }
  func.func @transform_6(%arg0: i32) -> (i32, i32, i32) {
    %c0_i32 = arith.constant 0 : i32
    %c0_i32_0 = arith.constant 0 : i32
    %c0_i32_1 = arith.constant 0 : i32
    return %arg0, %c0_i32, %c0_i32_0 : i32, i32, i32
  }
}

</mosaic_0001>

<llo_original>
// kernel: tpu_custom_call.1
$region0: #{tpu_custom_call.1}
  #allocation0 [shape = 'u32[]', space=smem, size = 0x4, offset = 0x4, fixed_abs, tag = 'smem constant byte address 0x4 - core index']
  #allocation1 [shape = 'u32[144,128]{1,0:T(1,128)}', space=vmem, size = 0x12000, scoped, tag = 'internal scratch']
  #allocation2 [shape = 'bf16[128,320]{1,0:T(16,128)(2,1)}', space=vmem, size = 0x18000, scoped, tag = 'scratch operand']
  #allocation3 [shape = 'bf16[192,256]{1,0:T(16,128)(2,1)}', space=vmem, size = 0x18000, scoped, tag = 'scratch operand']
  %s0 = inlined_call_operand.vmem [shape: f32[2,128,256], index: 0, kind: input, shape index: {}]
  %s1 = inlined_call_operand.hbm [shape: bf16[128,128], index: 1, kind: input, shape index: {}]
  %s2 = inlined_call_operand.vmem [shape: f32[128,1], index: 2, kind: input, shape index: {}]
  %s3 = inlined_call_operand.hbm [shape: bf16[128,128], index: 3, kind: input, shape index: {}]
  %s4 = inlined_call_operand.vmem [shape: f32[128,1], index: 4, kind: input, shape index: {}]
  %s5 = inlined_call_operand.vmem [shape: f32[2,128,64], index: 5, kind: input, shape index: {}]
  %s6 = inlined_call_operand.hbm [shape: f32[2,128,256], index: 6, kind: output, shape index: {}]
  %s7 = sld [smem:[#allocation0]]
  $region65: #{tpu_custom_call.1} parent=0
    _
  %s9 = ssub.s32 1, %s7
  %s10 = scalar_select 0, %s9, %s7
  $region1: #{tpu_custom_call.1} parent=0
    #allocation4 [shape = 'u8[32768]{0}', space=vmem, size = 0x8000, scoped, tag = 'input window, operand 1, single buffered']
    #allocation5 [shape = 's32[2]{0}', space=sflag, size = 0x8, scoped, tag = 'scoped memory for tpu_custom_call.1']
    #allocation6 [shape = 's32[2]{0}', space=sflag, size = 0x8, scoped, tag = 'scoped memory for tpu_custom_call.1']
    #allocation7 [shape = 'u8[32768]{0}', space=vmem, size = 0x8000, scoped, tag = 'input window, operand 3, single buffered']
    #allocation8 [shape = 's32[1]{0}', space=sflag, size = 0x4, scoped, tag = 'scoped memory for tpu_custom_call.1']
    #allocation9 [shape = 'u8[262144]{0}', space=vmem, size = 0x40000, scoped, tag = 'output window, operand 0']
    %11 = vsyncpa [#allocation5], 0
    %12 = vsyncpa [#allocation8], 0
    %13 = vsyncpa [#allocation6], 0
    %s14 = scalar_lea.sflag [#allocation6], 1
    %15 = vsyncpa %s14, 0
    loop: start=0, step=1, limit=4
    $region2: #{tpu_custom_call.1} parent=1 // loop_pre_header
      _
    $region3: #{tpu_custom_call.1} parent=1 // loop_header
      %s17 = sphi 0, %s21
      %p18 = scmp.ge.s32.totalorder %s17, 4
      %s27 = sphi 0, %s29
      %s30 = sphi 0, %s27
      %s31 = sphi 0, %s30
      %s47 = sphi 0, %s31
      %s51 = sphi 0, %s51
      %s53 = sphi 0, %s51
      %s54 = sphi 0, %s53
      %s68 = sphi 0, %s54
      %s72 = sphi 0, %s72
      %s74 = sphi 0, %s72
      %s75 = sphi 0, %s74
      %s89 = sphi 0, %s75
      %s93 = sphi 0, %s93
      %s95 = sphi 0, %s93
      %s96 = sphi 0, %s95
      %s110 = sphi 0, %s96
      %s114 = sphi 0, %s114
      %s116 = sphi 0, %s114
      %s117 = sphi 0, %s116
      %s131 = sphi 0, %s117
      %s137 = sphi 0, %s139
      %s140 = sphi 0, %s137
      %s141 = sphi 0, %s140
      %s157 = sphi 0, %s141
      %s163 = sphi 0, %s165
      %s166 = sphi 0, %s163
      %s167 = sphi 0, %s166
      %s183 = sphi 0, %s167
    $region4: #{tpu_custom_call.1} parent=1 // loop_header_branch
      %20 = sbr.rel (%p18) target = $region8
    $region5: #{tpu_custom_call.1} parent=1 // loop_body
      %s22 = ssub.s32 %s17, 1
      %s23 = ssub.s32 %s17, 2
      %s24 = sadd.s32 %s17, 1
      %s25 = ssub.s32 %s17, %s24
      %p26 = scmp.eq.s32.totalorder %s25, 0
      %s28 = sadd.s32 %s27, 1
      %s29 = scalar_select %p26, %s27, %s28
      %p32 = pneg %p26
      %p33 = scmp.eq.s32.totalorder %s17, 1
      %p34 = por %p32, %p33
      %p35 = scmp.ne.s32.totalorder %s27, %s30
      %p36 = scmp.eq.s32.totalorder %s17, 0
      %p37 = por %p35, %p36
      %p38 = scmp.ne.s32.totalorder %s27, %s30
      %p39 = scmp.eq.s32.totalorder %s22, 1
      %p40 = por %p38, %p39
      %p41 = scmp.ne.s32.totalorder %s30, %s31
      %p42 = scmp.eq.s32.totalorder %s22, 0
      %p43 = por %p41, %p42
      %p44 = scmp.ne.s32.totalorder %s30, %s31
      %p45 = scmp.eq.s32.totalorder %s23, 1
      %p46 = por %p44, %p45
      %p48 = scmp.ne.s32.totalorder %s31, %s47
      %p49 = scmp.eq.s32.totalorder %s23, 0
      %p50 = por %p48, %p49
      %s52 = sadd.s32 %s51, 1
      %p55 = scmp.eq.s32.totalorder %s17, 1
      %p56 = scmp.ne.s32.totalorder %s51, %s53
      %p57 = scmp.eq.s32.totalorder %s17, 0
      %p58 = por %p56, %p57
      %p59 = scmp.ne.s32.totalorder %s51, %s53
      %p60 = scmp.eq.s32.totalorder %s22, 1
      %p61 = por %p59, %p60
      %p62 = scmp.ne.s32.totalorder %s53, %s54
      %p63 = scmp.eq.s32.totalorder %s22, 0
      %p64 = por %p62, %p63
      %p65 = scmp.ne.s32.totalorder %s53, %s54
      %p66 = scmp.eq.s32.totalorder %s23, 1
      %p67 = por %p65, %p66
      %p69 = scmp.ne.s32.totalorder %s54, %s68
      %p70 = scmp.eq.s32.totalorder %s23, 0
      %p71 = por %p69, %p70
      %s73 = sadd.s32 %s72, 1
      %p76 = scmp.eq.s32.totalorder %s17, 1
      %p77 = scmp.ne.s32.totalorder %s72, %s74
      %p78 = scmp.eq.s32.totalorder %s17, 0
      %p79 = por %p77, %p78
      %p80 = scmp.ne.s32.totalorder %s72, %s74
      %p81 = scmp.eq.s32.totalorder %s22, 1
      %p82 = por %p80, %p81
      %p83 = scmp.ne.s32.totalorder %s74, %s75
      %p84 = scmp.eq.s32.totalorder %s22, 0
      %p85 = por %p83, %p84
      %p86 = scmp.ne.s32.totalorder %s74, %s75
      %p87 = scmp.eq.s32.totalorder %s23, 1
      %p88 = por %p86, %p87
      %p90 = scmp.ne.s32.totalorder %s75, %s89
      %p91 = scmp.eq.s32.totalorder %s23, 0
      %p92 = por %p90, %p91
      %s94 = sadd.s32 %s93, 1
      %p97 = scmp.eq.s32.totalorder %s17, 1
      %p98 = scmp.ne.s32.totalorder %s93, %s95
      %p99 = scmp.eq.s32.totalorder %s17, 0
      %p100 = por %p98, %p99
      %p101 = scmp.ne.s32.totalorder %s93, %s95
      %p102 = scmp.eq.s32.totalorder %s22, 1
      %p103 = por %p101, %p102
      %p104 = scmp.ne.s32.totalorder %s95, %s96
      %p105 = scmp.eq.s32.totalorder %s22, 0
      %p106 = por %p104, %p105
      %p107 = scmp.ne.s32.totalorder %s95, %s96
      %p108 = scmp.eq.s32.totalorder %s23, 1
      %p109 = por %p107, %p108
      %p111 = scmp.ne.s32.totalorder %s96, %s110
      %p112 = scmp.eq.s32.totalorder %s23, 0
      %p113 = por %p111, %p112
      %s115 = sadd.s32 %s114, 1
      %p118 = scmp.eq.s32.totalorder %s17, 1
      %p119 = scmp.ne.s32.totalorder %s114, %s116
      %p120 = scmp.eq.s32.totalorder %s17, 0
      %p121 = por %p119, %p120
      %p122 = scmp.ne.s32.totalorder %s114, %s116
      %p123 = scmp.eq.s32.totalorder %s22, 1
      %p124 = por %p122, %p123
      %p125 = scmp.ne.s32.totalorder %s116, %s117
      %p126 = scmp.eq.s32.totalorder %s22, 0
      %p127 = por %p125, %p126
      %p128 = scmp.ne.s32.totalorder %s116, %s117
      %p129 = scmp.eq.s32.totalorder %s23, 1
      %p130 = por %p128, %p129
      %p132 = scmp.ne.s32.totalorder %s117, %s131
      %p133 = scmp.eq.s32.totalorder %s23, 0
      %p134 = por %p132, %p133
      %s135 = ssub.s32 %s17, %s24
      %p136 = scmp.eq.s32.totalorder %s135, 0
      %s138 = sadd.s32 %s137, 1
      %s139 = scalar_select %p136, %s137, %s138
      %p142 = pneg %p136
      %p143 = scmp.eq.s32.totalorder %s17, 1
      %p144 = por %p142, %p143
      %p145 = scmp.ne.s32.totalorder %s137, %s140
      %p146 = scmp.eq.s32.totalorder %s17, 0
      %p147 = por %p145, %p146
      %p148 = scmp.ne.s32.totalorder %s137, %s140
      %p149 = scmp.eq.s32.totalorder %s22, 1
      %p150 = por %p148, %p149
      %p151 = scmp.ne.s32.totalorder %s140, %s141
      %p152 = scmp.eq.s32.totalorder %s22, 0
      %p153 = por %p151, %p152
      %p154 = scmp.ne.s32.totalorder %s140, %s141
      %p155 = scmp.eq.s32.totalorder %s23, 1
      %p156 = por %p154, %p155
      %p158 = scmp.ne.s32.totalorder %s141, %s157
      %p159 = scmp.eq.s32.totalorder %s23, 0
      %p160 = por %p158, %p159
      %s161 = ssub.s32 %s17, %s24
      %p162 = scmp.eq.s32.totalorder %s161, 0
      %s164 = sadd.s32 %s163, 1
      %s165 = scalar_select %p162, %s163, %s164
      %p168 = pneg %p162
      %p169 = scmp.eq.s32.totalorder %s17, 1
      %p170 = por %p168, %p169
      %p171 = scmp.ne.s32.totalorder %s163, %s166
      %p172 = scmp.eq.s32.totalorder %s17, 0
      %p173 = por %p171, %p172
      %p174 = scmp.ne.s32.totalorder %s163, %s166
      %p175 = scmp.eq.s32.totalorder %s22, 1
      %p176 = por %p174, %p175
      %p177 = scmp.ne.s32.totalorder %s166, %s167
      %p178 = scmp.eq.s32.totalorder %s22, 0
      %p179 = por %p177, %p178
      %p180 = scmp.ne.s32.totalorder %s166, %s167
      %p181 = scmp.eq.s32.totalorder %s23, 1
      %p182 = por %p180, %p181
      %p184 = scmp.ne.s32.totalorder %s167, %s183
      %p185 = scmp.eq.s32.totalorder %s23, 0
      %p186 = por %p184, %p185
      %p187 = scmp.le.s32.totalorder 1, %s17
      %p188 = scmp.lt.s32.totalorder %s17, 3
      %p189 = pnand %p187, %p188
      %p190 = pneg %p189
      // Predicated region
      $region9: #{tpu_custom_call.1} parent=5 // pred_check
        _
      $region10: #{tpu_custom_call.1} parent=5 // pred_check_branch
        %192 = sbr.rel (%p189) target = $region12
      $region11: #{tpu_custom_call.1} parent=5 // pred_region
        %s193 = ssub.s32 %s17, 1
        // Predicated region
        $region13: #{tpu_custom_call.1} parent=11 // pred_check
          %p194 = pneg %p64
        $region14: #{tpu_custom_call.1} parent=11 // pred_check_branch
          %196 = sbr.rel (%p194) target = $region16
        $region15: #{tpu_custom_call.1} parent=11 // pred_region
          %s198 = ssub.s32 1024, 1024
          %199 = vsyncadd [#allocation5], %s198
          %s200 = sshll.u32 [#allocation4], 4
          %s201 = int_to_ptr.vmem [resolvable:$true] %s200
          %206 = dma.hbm_to_vmem [thread:$0]  %s1, 1024, %s201, [#allocation5], 64, 64, 4
        $region16: #{tpu_custom_call.1} parent=11 // pred_fallthru
          _
        // Predicated region
        $region17: #{tpu_custom_call.1} parent=11 // pred_check
          %p207 = pneg %p85
        $region18: #{tpu_custom_call.1} parent=11 // pred_check_branch
          %209 = sbr.rel (%p207) target = $region20
        $region19: #{tpu_custom_call.1} parent=11 // pred_region
          _
        $region20: #{tpu_custom_call.1} parent=11 // pred_fallthru
          _
        // Predicated region
        $region21: #{tpu_custom_call.1} parent=11 // pred_check
          %p210 = pneg %p106
        $region22: #{tpu_custom_call.1} parent=11 // pred_check_branch
          %212 = sbr.rel (%p210) target = $region24
        $region23: #{tpu_custom_call.1} parent=11 // pred_region
          %s214 = ssub.s32 1024, 1024
          %215 = vsyncadd [#allocation8], %s214
          %s216 = sshll.u32 [#allocation7], 4
          %s217 = int_to_ptr.vmem [resolvable:$true] %s216
          %222 = dma.hbm_to_vmem [thread:$0]  %s3, 1024, %s217, [#allocation8], 64, 64, 4
        $region24: #{tpu_custom_call.1} parent=11 // pred_fallthru
          _
        // Predicated region
        $region25: #{tpu_custom_call.1} parent=11 // pred_check
          %p223 = pneg %p127
        $region26: #{tpu_custom_call.1} parent=11 // pred_check_branch
          %225 = sbr.rel (%p223) target = $region28
        $region27: #{tpu_custom_call.1} parent=11 // pred_region
          _
        $region28: #{tpu_custom_call.1} parent=11 // pred_fallthru
          _
      $region12: #{tpu_custom_call.1} parent=5 // pred_fallthru
        _
      %p226 = scmp.lt.s32.totalorder %s17, 2
      // Predicated region
      $region29: #{tpu_custom_call.1} parent=5 // pred_check
        %p227 = pneg %p226
      $region30: #{tpu_custom_call.1} parent=5 // pred_check_branch
        %229 = sbr.rel (%p227) target = $region32
      $region31: #{tpu_custom_call.1} parent=5 // pred_region
        // Predicated region
        $region33: #{tpu_custom_call.1} parent=31 // pred_check
          %p230 = pneg %p37
        $region34: #{tpu_custom_call.1} parent=31 // pred_check_branch
          %232 = sbr.rel (%p230) target = $region36
        $region35: #{tpu_custom_call.1} parent=31 // pred_region
          %p233 = scmp.lt.s32.totalorder %s17, 1
          %s234 = scalar_select %p233, %s17, 1
          %s235 = smul.addr %s234, 32
          %s236 = smul.addr %s235, 8
          %s237 = scalar_lea.vmem %s0, %s236
        $region36: #{tpu_custom_call.1} parent=31 // pred_fallthru
          _
        // Predicated region
        $region37: #{tpu_custom_call.1} parent=31 // pred_check
          %p238 = pneg %p147
        $region38: #{tpu_custom_call.1} parent=31 // pred_check_branch
          %240 = sbr.rel (%p238) target = $region40
        $region39: #{tpu_custom_call.1} parent=31 // pred_region
          %p241 = scmp.lt.s32.totalorder %s17, 1
          %s242 = scalar_select %p241, %s17, 1
          %s243 = smul.addr %s242, 16
          %s244 = smul.addr %s243, 8
          %s245 = scalar_lea.vmem %s5, %s244
        $region40: #{tpu_custom_call.1} parent=31 // pred_fallthru
          _
      $region32: #{tpu_custom_call.1} parent=5 // pred_fallthru
        _
      %p246 = scmp.le.s32.totalorder 1, %s17
      %p247 = scmp.lt.s32.totalorder %s17, 3
      %p248 = pnand %p246, %p247
      %p249 = pneg %p248
      // Predicated region
      $region41: #{tpu_custom_call.1} parent=5 // pred_check
        _
      $region42: #{tpu_custom_call.1} parent=5 // pred_check_branch
        %251 = sbr.rel (%p248) target = $region44
      $region43: #{tpu_custom_call.1} parent=5 // pred_region
        %s252 = ssub.s32 %s17, 1
        // Predicated region
        $region45: #{tpu_custom_call.1} parent=43 // pred_check
          %p253 = pneg %p64
        $region46: #{tpu_custom_call.1} parent=43 // pred_check_branch
          %255 = sbr.rel (%p253) target = $region48
        $region47: #{tpu_custom_call.1} parent=43 // pred_region
          %256 = dma.done [#allocation5], 1024
        $region48: #{tpu_custom_call.1} parent=43 // pred_fallthru
          _
        // Predicated region
        $region49: #{tpu_custom_call.1} parent=43 // pred_check
          %p257 = pneg %p106
        $region50: #{tpu_custom_call.1} parent=43 // pred_check_branch
          %259 = sbr.rel (%p257) target = $region52
        $region51: #{tpu_custom_call.1} parent=43 // pred_region
          %260 = dma.done [#allocation8], 1024
        $region52: #{tpu_custom_call.1} parent=43 // pred_fallthru
          _
        %p261 = scmp.lt.s32.totalorder %s22, 1
        %s262 = scalar_select %p261, %s22, 1
        %s263 = smul.addr %s262, 32
        %s264 = smul.addr %s263, 8
        %s265 = scalar_lea.vmem %s0, %s264
        %p266 = pneg %p43
        %p267 = pneg %p40
        %p268 = pneg %p64
        %p269 = pneg %p61
        %p270 = pneg %p85
        %p271 = pneg %p82
        %p272 = pneg %p106
        %p273 = pneg %p103
        %p274 = pneg %p127
        %p275 = pneg %p124
        %p276 = scmp.lt.s32.totalorder %s22, 1
        %s277 = scalar_select %p276, %s22, 1
        %s278 = smul.addr %s277, 16
        %s279 = smul.addr %s278, 8
        %s280 = scalar_lea.vmem %s5, %s279
        %p281 = pneg %p153
        %p282 = pneg %p150
        %p283 = pneg %p179
        %p284 = pneg %p176
        %s285 = sand.u32 %s166, 1
        %s286 = scalar_lea.sflag [#allocation6], %s285
        %s287 = sand.u32 %s166, 1
        %s288 = smul.addr %s287, 256
        %s289 = scalar_lea.vmem [#allocation9], %s288
        %p290 = scmp.lt.s32.totalorder %s22, 1
        %s291 = scalar_select %p290, %s22, 1
        %s292 = smul.addr %s291, 32
        %s293 = smul.addr %s292, 8
        %s294 = scalar_lea.vmem %s0, %s293
        %p295 = scmp.lt.s32.totalorder %s22, 1
        %s296 = scalar_select %p295, %s22, 1
        %s297 = smul.addr %s296, 16
        %s298 = smul.addr %s297, 8
        %s299 = scalar_lea.vmem %s5, %s298
        %v301 = vld [vmem:[%s294] sm:$0xff]
        %v302 = vld [vmem:[%s294 + $0x8] sm:$0xff]
        %v303 = vld [vmem:[%s294 + $0x10] sm:$0xff]
        %v304 = vld [vmem:[%s294 + $0x18] sm:$0xff]
        %v305 = vld [vmem:[%s294 + $0x20] sm:$0xff]
        %v306 = vld [vmem:[%s294 + $0x28] sm:$0xff]
        %v307 = vld [vmem:[%s294 + $0x30] sm:$0xff]
        %v308 = vld [vmem:[%s294 + $0x38] sm:$0xff]
        %v309 = vld [vmem:[%s294 + $0x40] sm:$0xff]
        %v310 = vld [vmem:[%s294 + $0x48] sm:$0xff]
        %v311 = vld [vmem:[%s294 + $0x50] sm:$0xff]
        %v312 = vld [vmem:[%s294 + $0x58] sm:$0xff]
        %v313 = vld [vmem:[%s294 + $0x60] sm:$0xff]
        %v314 = vld [vmem:[%s294 + $0x68] sm:$0xff]
        %v315 = vld [vmem:[%s294 + $0x70] sm:$0xff]
        %v316 = vld [vmem:[%s294 + $0x78] sm:$0xff]
        %v317 = vld [vmem:[%s294 + $0x80] sm:$0xff]
        %v318 = vld [vmem:[%s294 + $0x88] sm:$0xff]
        %v319 = vld [vmem:[%s294 + $0x90] sm:$0xff]
        %v320 = vld [vmem:[%s294 + $0x98] sm:$0xff]
        %v321 = vld [vmem:[%s294 + $0xa0] sm:$0xff]
        %v322 = vld [vmem:[%s294 + $0xa8] sm:$0xff]
        %v323 = vld [vmem:[%s294 + $0xb0] sm:$0xff]
        %v324 = vld [vmem:[%s294 + $0xb8] sm:$0xff]
        %v325 = vld [vmem:[%s294 + $0xc0] sm:$0xff]
        %v326 = vld [vmem:[%s294 + $0xc8] sm:$0xff]
        %v327 = vld [vmem:[%s294 + $0xd0] sm:$0xff]
        %v328 = vld [vmem:[%s294 + $0xd8] sm:$0xff]
        %v329 = vld [vmem:[%s294 + $0xe0] sm:$0xff]
        %v330 = vld [vmem:[%s294 + $0xe8] sm:$0xff]
        %v331 = vld [vmem:[%s294 + $0xf0] sm:$0xff]
        %v332 = vld [vmem:[%s294 + $0xf8] sm:$0xff]
        %v333 = vld [vmem:[#allocation4] sm:$0xf]
        %v334 = vld [vmem:[#allocation4 + $0x4] sm:$0xf]
        %v335 = vld [vmem:[#allocation4 + $0x8] sm:$0xf]
        %v336 = vld [vmem:[#allocation4 + $0xc] sm:$0xf]
        %v337 = vld [vmem:[#allocation4 + $0x10] sm:$0xf]
        %v338 = vld [vmem:[#allocation4 + $0x14] sm:$0xf]
        %v339 = vld [vmem:[#allocation4 + $0x18] sm:$0xf]
        %v340 = vld [vmem:[#allocation4 + $0x1c] sm:$0xf]
        %v341 = vld [vmem:[#allocation4 + $0x20] sm:$0xf]
        %v342 = vld [vmem:[#allocation4 + $0x24] sm:$0xf]
        %v343 = vld [vmem:[#allocation4 + $0x28] sm:$0xf]
        %v344 = vld [vmem:[#allocation4 + $0x2c] sm:$0xf]
        %v345 = vld [vmem:[#allocation4 + $0x30] sm:$0xf]
        %v346 = vld [vmem:[#allocation4 + $0x34] sm:$0xf]
        %v347 = vld [vmem:[#allocation4 + $0x38] sm:$0xf]
        %v348 = vld [vmem:[#allocation4 + $0x3c] sm:$0xf]
        %v349 = vpack.c.bf16 %v303, %v301
        %v350 = vpack.c.bf16 %v304, %v302
        %v351 = vpack.c.bf16 %v307, %v305
        %v352 = vpack.c.bf16 %v308, %v306
        %v353 = vpack.c.bf16 %v311, %v309
        %v354 = vpack.c.bf16 %v312, %v310
        %v355 = vpack.c.bf16 %v315, %v313
        %v356 = vpack.c.bf16 %v316, %v314
        %v357 = vpack.c.bf16 %v319, %v317
        %v358 = vpack.c.bf16 %v320, %v318
        %v359 = vpack.c.bf16 %v323, %v321
        %v360 = vpack.c.bf16 %v324, %v322
        %v361 = vpack.c.bf16 %v327, %v325
        %v362 = vpack.c.bf16 %v328, %v326
        %v363 = vpack.c.bf16 %v331, %v329
        %v364 = vpack.c.bf16 %v332, %v330
        %v365 = vld [vmem:[%s2] sm:$0xff]
        %v366 = vld [vmem:[%s2 + $0x8] sm:$0xff]
        %v367 = vld [vmem:[%s2 + $0x10] sm:$0xff]
        %v368 = vld [vmem:[%s2 + $0x18] sm:$0xff]
        %v369 = vld [vmem:[%s2 + $0x20] sm:$0xff]
        %v370 = vld [vmem:[%s2 + $0x28] sm:$0xff]
        %v371 = vld [vmem:[%s2 + $0x30] sm:$0xff]
        %v372 = vld [vmem:[%s2 + $0x38] sm:$0xff]
        %v373 = vld [vmem:[%s2 + $0x40] sm:$0xff]
        %v374 = vld [vmem:[%s2 + $0x48] sm:$0xff]
        %v375 = vld [vmem:[%s2 + $0x50] sm:$0xff]
        %v376 = vld [vmem:[%s2 + $0x58] sm:$0xff]
        %v377 = vld [vmem:[%s2 + $0x60] sm:$0xff]
        %v378 = vld [vmem:[%s2 + $0x68] sm:$0xff]
        %v379 = vld [vmem:[%s2 + $0x70] sm:$0xff]
        %v380 = vld [vmem:[%s2 + $0x78] sm:$0xff]
        %382 = vset.pattern.permute.xlu0 0
        %383 = vperm.xlu0 %382, %v365
        %v384 = vpop.permute.xlu0 %383
        %387 = vset.pattern.permute.xlu0 0
        %388 = vperm.xlu0 %387, %v366
        %v389 = vpop.permute.xlu0 %388
        %392 = vset.pattern.permute.xlu0 0
        %393 = vperm.xlu0 %392, %v367
        %v394 = vpop.permute.xlu0 %393
        %397 = vset.pattern.permute.xlu0 0
        %398 = vperm.xlu0 %397, %v368
        %v399 = vpop.permute.xlu0 %398
        %402 = vset.pattern.permute.xlu0 0
        %403 = vperm.xlu0 %402, %v369
        %v404 = vpop.permute.xlu0 %403
        %407 = vset.pattern.permute.xlu0 0
        %408 = vperm.xlu0 %407, %v370
        %v409 = vpop.permute.xlu0 %408
        %412 = vset.pattern.permute.xlu0 0
        %413 = vperm.xlu0 %412, %v371
        %v414 = vpop.permute.xlu0 %413
        %417 = vset.pattern.permute.xlu0 0
        %418 = vperm.xlu0 %417, %v372
        %v419 = vpop.permute.xlu0 %418
        %422 = vset.pattern.permute.xlu0 0
        %423 = vperm.xlu0 %422, %v373
        %v424 = vpop.permute.xlu0 %423
        %427 = vset.pattern.permute.xlu0 0
        %428 = vperm.xlu0 %427, %v374
        %v429 = vpop.permute.xlu0 %428
        %432 = vset.pattern.permute.xlu0 0
        %433 = vperm.xlu0 %432, %v375
        %v434 = vpop.permute.xlu0 %433
        %437 = vset.pattern.permute.xlu0 0
        %438 = vperm.xlu0 %437, %v376
        %v439 = vpop.permute.xlu0 %438
        %442 = vset.pattern.permute.xlu0 0
        %443 = vperm.xlu0 %442, %v377
        %v444 = vpop.permute.xlu0 %443
        %447 = vset.pattern.permute.xlu0 0
        %448 = vperm.xlu0 %447, %v378
        %v449 = vpop.permute.xlu0 %448
        %452 = vset.pattern.permute.xlu0 0
        %453 = vperm.xlu0 %452, %v379
        %v454 = vpop.permute.xlu0 %453
        %457 = vset.pattern.permute.xlu0 0
        %458 = vperm.xlu0 %457, %v380
        %v459 = vpop.permute.xlu0 %458
        %v477 = vunpack.c.l.b16 %v333
        %v478 = vunpack.c.l.b16 %v334
        %v479 = vunpack.c.l.b16 %v335
        %v480 = vunpack.c.l.b16 %v336
        %v481 = vunpack.c.l.b16 %v337
        %v482 = vunpack.c.l.b16 %v338
        %v483 = vunpack.c.l.b16 %v339
        %v484 = vunpack.c.l.b16 %v340
        %v485 = vunpack.c.l.b16 %v341
        %v486 = vunpack.c.l.b16 %v342
        %v487 = vunpack.c.l.b16 %v343
        %v488 = vunpack.c.l.b16 %v344
        %v489 = vunpack.c.l.b16 %v345
        %v490 = vunpack.c.l.b16 %v346
        %v491 = vunpack.c.l.b16 %v347
        %v492 = vunpack.c.l.b16 %v348
        %v493 = vpack.c.b16 %v478, %v477
        %v494 = vpack.c.b16 %v480, %v479
        %v495 = vpack.c.b16 %v482, %v481
        %v496 = vpack.c.b16 %v484, %v483
        %v497 = vpack.c.b16 %v486, %v485
        %v498 = vpack.c.b16 %v488, %v487
        %v499 = vpack.c.b16 %v490, %v489
        %v500 = vpack.c.b16 %v492, %v491
        %509 = vmatprep.subr.bf16.mxu0 %v350
        %510 = vmatpush1.bf16.msra.mxu0 %v349
        %511 = vmatprep.subr.bf16.mxu0 %v352
        %512 = vmatpush1.bf16.msra.mxu0 %v351
        %513 = vmatprep.subr.bf16.mxu0 %v354
        %514 = vmatpush1.bf16.msra.mxu0 %v353
        %515 = vmatprep.subr.bf16.mxu0 %v356
        %516 = vmatpush1.bf16.msra.mxu0 %v355
        %517 = vmatprep.subr.bf16.mxu0 %v358
        %518 = vmatpush1.bf16.msra.mxu0 %v357
        %519 = vmatprep.subr.bf16.mxu0 %v360
        %520 = vmatpush1.bf16.msra.mxu0 %v359
        %521 = vmatprep.subr.bf16.mxu0 %v362
        %522 = vmatpush1.bf16.msra.mxu0 %v361
        %523 = vmatprep.subr.bf16.mxu0 %v364
        %524 = vmatpush1.bf16.msra.mxu0 %v363
        %525 = vmatprep.subr.bf16.mxu0 0
        %526 = vmatpush1.bf16.msra.mxu0 0
        %527 = vmatprep.subr.bf16.mxu0 0
        %528 = vmatpush1.bf16.msra.mxu0 0
        %529 = vmatprep.subr.bf16.mxu0 0
        %530 = vmatpush1.bf16.msra.mxu0 0
        %531 = vmatprep.subr.bf16.mxu0 0
        %532 = vmatpush1.bf16.msra.mxu0 0
        %533 = vmatprep.subr.bf16.mxu0 0
        %534 = vmatpush1.bf16.msra.mxu0 0
        %535 = vmatprep.subr.bf16.mxu0 0
        %536 = vmatpush1.bf16.msra.mxu0 0
        %537 = vmatprep.subr.bf16.mxu0 0
        %538 = vmatpush1.bf16.msra.mxu0 0
        %539 = vmatprep.subr.bf16.mxu0 0
        %540 = vmatpush1.bf16.msra.mxu0 0
        %541 = vmatprep.mubr.bf16.mxu0 0
        %542 = vmatmul.mubr.bf16.gmra.mrb[0].mxu0 %v493
        %v543 = vpop.f32.mrb[0].mxu0
        %v544 = vadd.f32 %v384, %v543
        %v545 = vpop.f32.mrb[0].mxu0
        %v546 = vadd.f32 %v384, %v545
        %v547 = vpop.f32.mrb[0].mxu0
        %v548 = vadd.f32 %v389, %v547
        %v549 = vpop.f32.mrb[0].mxu0
        %v550 = vadd.f32 %v389, %v549
        %551 = vmatprep.mubr.bf16.mxu0 0
        %552 = vmatmul.mubr.bf16.gmra.mrb[0].mxu0 %v494
        %v553 = vpop.f32.mrb[0].mxu0
        %v554 = vadd.f32 %v394, %v553
        %v555 = vpop.f32.mrb[0].mxu0
        %v556 = vadd.f32 %v394, %v555
        %v557 = vpop.f32.mrb[0].mxu0
        %v558 = vadd.f32 %v399, %v557
        %v559 = vpop.f32.mrb[0].mxu0
        %v560 = vadd.f32 %v399, %v559
        %561 = vmatprep.mubr.bf16.mxu0 0
        %562 = vmatmul.mubr.bf16.gmra.mrb[0].mxu0 %v495
        %v563 = vpop.f32.mrb[0].mxu0
        %v564 = vadd.f32 %v404, %v563
        %v565 = vpop.f32.mrb[0].mxu0
        %v566 = vadd.f32 %v404, %v565
        %v567 = vpop.f32.mrb[0].mxu0
        %v568 = vadd.f32 %v409, %v567
        %v569 = vpop.f32.mrb[0].mxu0
        %v570 = vadd.f32 %v409, %v569
        %571 = vmatprep.mubr.bf16.mxu0 0
        %572 = vmatmul.mubr.bf16.gmra.mrb[0].mxu0 %v496
        %v573 = vpop.f32.mrb[0].mxu0
        %v574 = vadd.f32 %v414, %v573
        %v575 = vpop.f32.mrb[0].mxu0
        %v576 = vadd.f32 %v414, %v575
        %v577 = vpop.f32.mrb[0].mxu0
        %v578 = vadd.f32 %v419, %v577
        %v579 = vpop.f32.mrb[0].mxu0
        %v580 = vadd.f32 %v419, %v579
        %581 = vmatprep.mubr.bf16.mxu0 0
        %582 = vmatmul.mubr.bf16.gmra.mrb[0].mxu0 %v497
        %v583 = vpop.f32.mrb[0].mxu0
        %v584 = vadd.f32 %v424, %v583
        %v585 = vpop.f32.mrb[0].mxu0
        %v586 = vadd.f32 %v424, %v585
        %v587 = vpop.f32.mrb[0].mxu0
        %v588 = vadd.f32 %v429, %v587
        %v589 = vpop.f32.mrb[0].mxu0
        %v590 = vadd.f32 %v429, %v589
        %591 = vmatprep.mubr.bf16.mxu0 0
        %592 = vmatmul.mubr.bf16.gmra.mrb[0].mxu0 %v498
        %v593 = vpop.f32.mrb[0].mxu0
        %v594 = vadd.f32 %v434, %v593
        %v595 = vpop.f32.mrb[0].mxu0
        %v596 = vadd.f32 %v434, %v595
        %v597 = vpop.f32.mrb[0].mxu0
        %v598 = vadd.f32 %v439, %v597
        %v599 = vpop.f32.mrb[0].mxu0
        %v600 = vadd.f32 %v439, %v599
        %601 = vmatprep.mubr.bf16.mxu0 0
        %602 = vmatmul.mubr.bf16.gmra.mrb[0].mxu0 %v499
        %v603 = vpop.f32.mrb[0].mxu0
        %v604 = vadd.f32 %v444, %v603
        %v605 = vpop.f32.mrb[0].mxu0
        %v606 = vadd.f32 %v444, %v605
        %v607 = vpop.f32.mrb[0].mxu0
        %v608 = vadd.f32 %v449, %v607
        %v609 = vpop.f32.mrb[0].mxu0
        %v610 = vadd.f32 %v449, %v609
        %611 = vmatprep.mubr.bf16.mxu0 0
        %612 = vmatmul.mubr.bf16.gmra.mrb[0].mxu0 %v500
        %v613 = vpop.f32.mrb[0].mxu0
        %v614 = vadd.f32 %v454, %v613
        %v615 = vpop.f32.mrb[0].mxu0
        %v616 = vadd.f32 %v454, %v615
        %v617 = vpop.f32.mrb[0].mxu0
        %v618 = vadd.f32 %v459, %v617
        %v619 = vpop.f32.mrb[0].mxu0
        %v620 = vadd.f32 %v459, %v619
        %621 = vdwg.mxu0
        %v622 = vmax.f32 %v544, 0.0
        %v623 = vmax.f32 %v546, 0.0
        %v624 = vmax.f32 %v548, 0.0
        %v625 = vmax.f32 %v550, 0.0
        %v626 = vmax.f32 %v554, 0.0
        %v627 = vmax.f32 %v556, 0.0
        %v628 = vmax.f32 %v558, 0.0
        %v629 = vmax.f32 %v560, 0.0
        %v630 = vmax.f32 %v564, 0.0
        %v631 = vmax.f32 %v566, 0.0
        %v632 = vmax.f32 %v568, 0.0
        %v633 = vmax.f32 %v570, 0.0
        %v634 = vmax.f32 %v574, 0.0
        %v635 = vmax.f32 %v576, 0.0
        %v636 = vmax.f32 %v578, 0.0
        %v637 = vmax.f32 %v580, 0.0
        %v638 = vmax.f32 %v584, 0.0
        %v639 = vmax.f32 %v586, 0.0
        %v640 = vmax.f32 %v588, 0.0
        %v641 = vmax.f32 %v590, 0.0
        %v642 = vmax.f32 %v594, 0.0
        %v643 = vmax.f32 %v596, 0.0
        %v644 = vmax.f32 %v598, 0.0
        %v645 = vmax.f32 %v600, 0.0
        %v646 = vmax.f32 %v604, 0.0
        %v647 = vmax.f32 %v606, 0.0
        %v648 = vmax.f32 %v608, 0.0
        %v649 = vmax.f32 %v610, 0.0
        %v650 = vmax.f32 %v614, 0.0
        %v651 = vmax.f32 %v616, 0.0
        %v652 = vmax.f32 %v618, 0.0
        %v653 = vmax.f32 %v620, 0.0
        %v654 = vpack.c.bf16 %v624, %v622
        %v655 = vpack.c.bf16 %v625, %v623
        %v656 = vpack.c.bf16 %v628, %v626
        %v657 = vpack.c.bf16 %v629, %v627
        %v658 = vpack.c.bf16 %v632, %v630
        %v659 = vpack.c.bf16 %v633, %v631
        %v660 = vpack.c.bf16 %v636, %v634
        %v661 = vpack.c.bf16 %v637, %v635
        %v662 = vpack.c.bf16 %v640, %v638
        %v663 = vpack.c.bf16 %v641, %v639
        %v664 = vpack.c.bf16 %v644, %v642
        %v665 = vpack.c.bf16 %v645, %v643
        %v666 = vpack.c.bf16 %v648, %v646
        %v667 = vpack.c.bf16 %v649, %v647
        %v668 = vpack.c.bf16 %v652, %v650
        %v669 = vpack.c.bf16 %v653, %v651
        %670 = vst [vmem:[#allocation2] sm:$0xff] %v654
        %671 = vst [vmem:[#allocation2 + $0x8] sm:$0xff] %v655
        %672 = vst [vmem:[#allocation2 + $0x18] sm:$0xff] %v656
        %673 = vst [vmem:[#allocation2 + $0x20] sm:$0xff] %v657
        %674 = vst [vmem:[#allocation2 + $0x30] sm:$0xff] %v658
        %675 = vst [vmem:[#allocation2 + $0x38] sm:$0xff] %v659
        %676 = vst [vmem:[#allocation2 + $0x48] sm:$0xff] %v660
        %677 = vst [vmem:[#allocation2 + $0x50] sm:$0xff] %v661
        %678 = vst [vmem:[#allocation2 + $0x60] sm:$0xff] %v662
        %679 = vst [vmem:[#allocation2 + $0x68] sm:$0xff] %v663
        %680 = vst [vmem:[#allocation2 + $0x78] sm:$0xff] %v664
        %681 = vst [vmem:[#allocation2 + $0x80] sm:$0xff] %v665
        %682 = vst [vmem:[#allocation2 + $0x90] sm:$0xff] %v666
        %683 = vst [vmem:[#allocation2 + $0x98] sm:$0xff] %v667
        %684 = vst [vmem:[#allocation2 + $0xa8] sm:$0xff] %v668
        %685 = vst [vmem:[#allocation2 + $0xb0] sm:$0xff] %v669
        %686 = vst [vmem:[#allocation3] sm:$0xff] %v654
        %687 = vst [vmem:[#allocation3 + $0x8] sm:$0xff] %v655
        %688 = vst [vmem:[#allocation3 + $0x10] sm:$0xff] %v656
        %689 = vst [vmem:[#allocation3 + $0x18] sm:$0xff] %v657
        %690 = vst [vmem:[#allocation3 + $0x20] sm:$0xff] %v658
        %691 = vst [vmem:[#allocation3 + $0x28] sm:$0xff] %v659
        %692 = vst [vmem:[#allocation3 + $0x30] sm:$0xff] %v660
        %693 = vst [vmem:[#allocation3 + $0x38] sm:$0xff] %v661
        %694 = vst [vmem:[#allocation3 + $0x40] sm:$0xff] %v662
        %695 = vst [vmem:[#allocation3 + $0x48] sm:$0xff] %v663
        %696 = vst [vmem:[#allocation3 + $0x50] sm:$0xff] %v664
        %697 = vst [vmem:[#allocation3 + $0x58] sm:$0xff] %v665
        %698 = vst [vmem:[#allocation3 + $0x60] sm:$0xff] %v666
        %699 = vst [vmem:[#allocation3 + $0x68] sm:$0xff] %v667
        %700 = vst [vmem:[#allocation3 + $0x70] sm:$0xff] %v668
        %701 = vst [vmem:[#allocation3 + $0x78] sm:$0xff] %v669
        %v702 = vld [vmem:[%s299] sm:$0xff]
        %v703 = vld [vmem:[%s299 + $0x8] sm:$0xff]
        %v704 = vld [vmem:[%s299 + $0x10] sm:$0xff]
        %v705 = vld [vmem:[%s299 + $0x18] sm:$0xff]
        %v706 = vld [vmem:[%s299 + $0x20] sm:$0xff]
        %v707 = vld [vmem:[%s299 + $0x28] sm:$0xff]
        %v708 = vld [vmem:[%s299 + $0x30] sm:$0xff]
        %v709 = vld [vmem:[%s299 + $0x38] sm:$0xff]
        %v710 = vld [vmem:[%s299 + $0x40] sm:$0xff]
        %v711 = vld [vmem:[%s299 + $0x48] sm:$0xff]
        %v712 = vld [vmem:[%s299 + $0x50] sm:$0xff]
        %v713 = vld [vmem:[%s299 + $0x58] sm:$0xff]
        %v714 = vld [vmem:[%s299 + $0x60] sm:$0xff]
        %v715 = vld [vmem:[%s299 + $0x68] sm:$0xff]
        %v716 = vld [vmem:[%s299 + $0x70] sm:$0xff]
        %v717 = vld [vmem:[%s299 + $0x78] sm:$0xff]
        %v718 = vpack.c.bf16 %v703, %v702
        %v719 = vpack.c.bf16 %v705, %v704
        %v720 = vpack.c.bf16 %v707, %v706
        %v721 = vpack.c.bf16 %v709, %v708
        %v722 = vpack.c.bf16 %v711, %v710
        %v723 = vpack.c.bf16 %v713, %v712
        %v724 = vpack.c.bf16 %v715, %v714
        %v725 = vpack.c.bf16 %v717, %v716
        %vm726 = vcmask 523264
        %727 = vst.msk [vmem:[#allocation2 + $0x10] sm:$0xff] %vm726, %v718
        %728 = vst.msk [vmem:[#allocation2 + $0x28] sm:$0xff] %vm726, %v719
        %729 = vst.msk [vmem:[#allocation2 + $0x40] sm:$0xff] %vm726, %v720
        %730 = vst.msk [vmem:[#allocation2 + $0x58] sm:$0xff] %vm726, %v721
        %731 = vst.msk [vmem:[#allocation2 + $0x70] sm:$0xff] %vm726, %v722
        %732 = vst.msk [vmem:[#allocation2 + $0x88] sm:$0xff] %vm726, %v723
        %733 = vst.msk [vmem:[#allocation2 + $0xa0] sm:$0xff] %vm726, %v724
        %734 = vst.msk [vmem:[#allocation2 + $0xb8] sm:$0xff] %vm726, %v725
        %v735 = vld [vmem:[#allocation2] sm:$0xff]
        %v736 = vld [vmem:[#allocation2 + $0x8] sm:$0xff]
        %v737 = vld [vmem:[#allocation2 + $0x10] sm:$0xff]
        %v738 = vld [vmem:[#allocation2 + $0x18] sm:$0xff]
        %v739 = vld [vmem:[#allocation2 + $0x20] sm:$0xff]
        %v740 = vld [vmem:[#allocation2 + $0x28] sm:$0xff]
        %v741 = vld [vmem:[#allocation2 + $0x30] sm:$0xff]
        %v742 = vld [vmem:[#allocation2 + $0x38] sm:$0xff]
        %v743 = vld [vmem:[#allocation2 + $0x40] sm:$0xff]
        %v744 = vld [vmem:[#allocation2 + $0x48] sm:$0xff]
        %v745 = vld [vmem:[#allocation2 + $0x50] sm:$0xff]
        %v746 = vld [vmem:[#allocation2 + $0x58] sm:$0xff]
        %v747 = vld [vmem:[#allocation2 + $0x60] sm:$0xff]
        %v748 = vld [vmem:[#allocation2 + $0x68] sm:$0xff]
        %v749 = vld [vmem:[#allocation2 + $0x70] sm:$0xff]
        %v750 = vld [vmem:[#allocation2 + $0x78] sm:$0xff]
        %v751 = vld [vmem:[#allocation2 + $0x80] sm:$0xff]
        %v752 = vld [vmem:[#allocation2 + $0x88] sm:$0xff]
        %v753 = vld [vmem:[#allocation2 + $0x90] sm:$0xff]
        %v754 = vld [vmem:[#allocation2 + $0x98] sm:$0xff]
        %v755 = vld [vmem:[#allocation2 + $0xa0] sm:$0xff]
        %v756 = vld [vmem:[#allocation2 + $0xa8] sm:$0xff]
        %v757 = vld [vmem:[#allocation2 + $0xb0] sm:$0xff]
        %v758 = vld [vmem:[#allocation2 + $0xb8] sm:$0xff]
        %759 = vxpose.xlu0.c.b16.start [1/8] %v718, 128
        %760 = vxpose.xlu0.c.b16.cont [2/8] %v719, 128
        %761 = vxpose.xlu0.c.b16.cont [3/8] %v720, 128
        %762 = vxpose.xlu0.c.b16.cont [4/8] %v721, 128
        %763 = vxpose.xlu0.c.b16.cont [5/8] %v722, 128
        %764 = vxpose.xlu0.c.b16.cont [6/8] %v723, 128
        %765 = vxpose.xlu0.c.b16.cont [7/8] %v724, 128
        %766 = vxpose.xlu0.c.b16.end [8/8] %v725, 128
        %v767 = vpop.trf.xlu0
        %v768 = vpop.trf.xlu0
        %v769 = vpop.trf.xlu0
        %v770 = vpop.trf.xlu0
        %v771 = vpop.trf.xlu0
        %v772 = vpop.trf.xlu0
        %v773 = vpop.trf.xlu0
        %v774 = vpop.trf.xlu0
        %775 = vmatprep.subr.bf16.mxu0 %v736
        %776 = vmatpush1.bf16.msra.mxu0 %v735
        %777 = vmatprep.subr.bf16.mxu0 %v739
        %778 = vmatpush1.bf16.msra.mxu0 %v738
        %779 = vmatprep.subr.bf16.mxu0 %v742
        %780 = vmatpush1.bf16.msra.mxu0 %v741
        %781 = vmatprep.subr.bf16.mxu0 %v745
        %782 = vmatpush1.bf16.msra.mxu0 %v744
        %783 = vmatprep.subr.bf16.mxu0 %v748
        %784 = vmatpush1.bf16.msra.mxu0 %v747
        %785 = vmatprep.subr.bf16.mxu0 %v751
        %786 = vmatpush1.bf16.msra.mxu0 %v750
        %787 = vmatprep.subr.bf16.mxu0 %v754
        %788 = vmatpush1.bf16.msra.mxu0 %v753
        %789 = vmatprep.subr.bf16.mxu0 %v757
        %790 = vmatpush1.bf16.msra.mxu0 %v756
        %791 = vmatprep.subr.bf16.mxu0 0
        %792 = vmatpush1.bf16.msra.mxu0 0
        %793 = vmatprep.subr.bf16.mxu0 0
        %794 = vmatpush1.bf16.msra.mxu0 0
        %795 = vmatprep.subr.bf16.mxu0 0
        %796 = vmatpush1.bf16.msra.mxu0 0
        %797 = vmatprep.subr.bf16.mxu0 0
        %798 = vmatpush1.bf16.msra.mxu0 0
        %799 = vmatprep.subr.bf16.mxu0 0
        %800 = vmatpush1.bf16.msra.mxu0 0
        %801 = vmatprep.subr.bf16.mxu0 0
        %802 = vmatpush1.bf16.msra.mxu0 0
        %803 = vmatprep.subr.bf16.mxu0 0
        %804 = vmatpush1.bf16.msra.mxu0 0
        %805 = vmatprep.subr.bf16.mxu0 0
        %806 = vmatpush1.bf16.msra.mxu0 0
        %807 = vmatprep.mubr.bf16.mxu0 0
        %808 = vmatmul.mubr.bf16.gmra.mrb[0].mxu0 %v767
        %v809 = vpop.f32.mrb[0].mxu0
        %v810 = vadd.f32 0.0, %v809
        %v811 = vpop.f32.mrb[0].mxu0
        %v812 = vadd.f32 0.0, %v811
        %v813 = vpop.f32.mrb[0].mxu0
        %v814 = vadd.f32 0.0, %v813
        %v815 = vpop.f32.mrb[0].mxu0
        %v816 = vadd.f32 0.0, %v815
        %817 = vmatprep.mubr.bf16.mxu0 0
        %818 = vmatmul.mubr.bf16.gmra.mrb[0].mxu0 %v768
        %v819 = vpop.f32.mrb[0].mxu0
        %v820 = vadd.f32 0.0, %v819
        %v821 = vpop.f32.mrb[0].mxu0
        %v822 = vadd.f32 0.0, %v821
        %v823 = vpop.f32.mrb[0].mxu0
        %v824 = vadd.f32 0.0, %v823
        %v825 = vpop.f32.mrb[0].mxu0
        %v826 = vadd.f32 0.0, %v825
        %827 = vmatprep.mubr.bf16.mxu0 0
        %828 = vmatmul.mubr.bf16.gmra.mrb[0].mxu0 %v769
        %v829 = vpop.f32.mrb[0].mxu0
        %v830 = vadd.f32 0.0, %v829
        %v831 = vpop.f32.mrb[0].mxu0
        %v832 = vadd.f32 0.0, %v831
        %v833 = vpop.f32.mrb[0].mxu0
        %v834 = vadd.f32 0.0, %v833
        %v835 = vpop.f32.mrb[0].mxu0
        %v836 = vadd.f32 0.0, %v835
        %837 = vmatprep.mubr.bf16.mxu0 0
        %838 = vmatmul.mubr.bf16.gmra.mrb[0].mxu0 %v770
        %v839 = vpop.f32.mrb[0].mxu0
        %v840 = vadd.f32 0.0, %v839
        %v841 = vpop.f32.mrb[0].mxu0
        %v842 = vadd.f32 0.0, %v841
        %v843 = vpop.f32.mrb[0].mxu0
        %v844 = vadd.f32 0.0, %v843
        %v845 = vpop.f32.mrb[0].mxu0
        %v846 = vadd.f32 0.0, %v845
        %847 = vdwg.mxu0
        %848 = vmatprep.subr.bf16.mxu0 0
        %849 = vmatpush1.bf16.msra.mxu0 %v737
        %850 = vmatprep.subr.bf16.mxu0 0
        %851 = vmatpush1.bf16.msra.mxu0 %v740
        %852 = vmatprep.subr.bf16.mxu0 0
        %853 = vmatpush1.bf16.msra.mxu0 %v743
        %854 = vmatprep.subr.bf16.mxu0 0
        %855 = vmatpush1.bf16.msra.mxu0 %v746
        %856 = vmatprep.subr.bf16.mxu0 0
        %857 = vmatpush1.bf16.msra.mxu0 %v749
        %858 = vmatprep.subr.bf16.mxu0 0
        %859 = vmatpush1.bf16.msra.mxu0 %v752
        %860 = vmatprep.subr.bf16.mxu0 0
        %861 = vmatpush1.bf16.msra.mxu0 %v755
        %862 = vmatprep.subr.bf16.mxu0 0
        %863 = vmatpush1.bf16.msra.mxu0 %v758
        %864 = vmatprep.subr.bf16.mxu0 0
        %865 = vmatpush1.bf16.msra.mxu0 0
        %866 = vmatprep.subr.bf16.mxu0 0
        %867 = vmatpush1.bf16.msra.mxu0 0
        %868 = vmatprep.subr.bf16.mxu0 0
        %869 = vmatpush1.bf16.msra.mxu0 0
        %870 = vmatprep.subr.bf16.mxu0 0
        %871 = vmatpush1.bf16.msra.mxu0 0
        %872 = vmatprep.subr.bf16.mxu0 0
        %873 = vmatpush1.bf16.msra.mxu0 0
        %874 = vmatprep.subr.bf16.mxu0 0
        %875 = vmatpush1.bf16.msra.mxu0 0
        %876 = vmatprep.subr.bf16.mxu0 0
        %877 = vmatpush1.bf16.msra.mxu0 0
        %878 = vmatprep.subr.bf16.mxu0 0
        %879 = vmatpush1.bf16.msra.mxu0 0
        %880 = vmatprep.mubr.bf16.mxu0 0
        %881 = vmatmul.mubr.bf16.gmra.mrb[0].mxu0 %v767
        %v882 = vpop.f32.mrb[0].mxu0
        %v883 = vadd.f32 0.0, %v882
        %v884 = vpop.f32.mrb[0].mxu0
        %v885 = vpop.f32.mrb[0].mxu0
        %v886 = vadd.f32 0.0, %v885
        %v887 = vpop.f32.mrb[0].mxu0
        %888 = vmatprep.mubr.bf16.mxu0 0
        %889 = vmatmul.mubr.bf16.gmra.mrb[0].mxu0 %v768
        %v890 = vpop.f32.mrb[0].mxu0
        %v891 = vadd.f32 0.0, %v890
        %v892 = vpop.f32.mrb[0].mxu0
        %v893 = vpop.f32.mrb[0].mxu0
        %v894 = vadd.f32 0.0, %v893
        %v895 = vpop.f32.mrb[0].mxu0
        %896 = vmatprep.mubr.bf16.mxu0 0
        %897 = vmatmul.mubr.bf16.gmra.mrb[0].mxu0 %v769
        %v898 = vpop.f32.mrb[0].mxu0
        %v899 = vadd.f32 0.0, %v898
        %v900 = vpop.f32.mrb[0].mxu0
        %v901 = vpop.f32.mrb[0].mxu0
        %v902 = vadd.f32 0.0, %v901
        %v903 = vpop.f32.mrb[0].mxu0
        %904 = vmatprep.mubr.bf16.mxu0 0
        %905 = vmatmul.mubr.bf16.gmra.mrb[0].mxu0 %v770
        %v906 = vpop.f32.mrb[0].mxu0
        %v907 = vadd.f32 0.0, %v906
        %v908 = vpop.f32.mrb[0].mxu0
        %v909 = vpop.f32.mrb[0].mxu0
        %v910 = vadd.f32 0.0, %v909
        %v911 = vpop.f32.mrb[0].mxu0
        %912 = vdwg.mxu0
        %v913 = vmax.f32 %v810, %v820
        %v914 = vmax.f32 %v814, %v824
        %v915 = vmax.f32 %v913, %v830
        %v916 = vmax.f32 %v914, %v834
        %v917 = vmax.f32 %v915, %v840
        %v918 = vmax.f32 %v916, %v844
        %v919 = vmax.f32 %v917, %v918
        %v920 = vrot.slane %v919, 4
        %v921 = vmax.f32 %v919, %v920
        %v922 = vrot.slane %v921, 2
        %v923 = vmax.f32 %v921, %v922
        %v924 = vrot.slane %v923, 1
        %v925 = vmax.f32 %v923, %v924
        %v926 = vmax.f32 %v812, %v822
        %v927 = vmax.f32 %v816, %v826
        %v928 = vmax.f32 %v926, %v832
        %v929 = vmax.f32 %v927, %v836
        %v930 = vmax.f32 %v928, %v842
        %v931 = vmax.f32 %v929, %v846
        %v932 = vmax.f32 %v930, %v931
        %v933 = vrot.slane %v932, 4
        %v934 = vmax.f32 %v932, %v933
        %v935 = vrot.slane %v934, 2
        %v936 = vmax.f32 %v934, %v935
        %v937 = vrot.slane %v936, 1
        %v938 = vmax.f32 %v936, %v937
        %v939 = vsub.f32 %v810, %v925
        %v940 = vsub.f32 %v812, %v938
        %v941 = vsub.f32 %v814, %v925
        %v942 = vsub.f32 %v816, %v938
        %v943 = vsub.f32 %v820, %v925
        %v944 = vsub.f32 %v822, %v938
        %v945 = vsub.f32 %v824, %v925
        %v946 = vsub.f32 %v826, %v938
        %v947 = vsub.f32 %v830, %v925
        %v948 = vsub.f32 %v832, %v938
        %v949 = vsub.f32 %v834, %v925
        %v950 = vsub.f32 %v836, %v938
        %v951 = vsub.f32 %v840, %v925
        %v952 = vsub.f32 %v842, %v938
        %v953 = vsub.f32 %v844, %v925
        %v954 = vsub.f32 %v846, %v938
        %v955 = vmul.f32 %v939, 1.442695
        %v956 = vpow.pop %v955
        %v957 = vmul.f32 %v940, 1.442695
        %v958 = vpow.pop %v957
        %v959 = vmul.f32 %v941, 1.442695
        %v960 = vpow.pop %v959
        %v961 = vmul.f32 %v942, 1.442695
        %v962 = vpow.pop %v961
        %v963 = vmul.f32 %v943, 1.442695
        %v964 = vpow.pop %v963
        %v965 = vmul.f32 %v944, 1.442695
        %v966 = vpow.pop %v965
        %v967 = vmul.f32 %v945, 1.442695
        %v968 = vpow.pop %v967
        %v969 = vmul.f32 %v946, 1.442695
        %v970 = vpow.pop %v969
        %v971 = vmul.f32 %v947, 1.442695
        %v972 = vpow.pop %v971
        %v973 = vmul.f32 %v948, 1.442695
        %v974 = vpow.pop %v973
        %v975 = vmul.f32 %v949, 1.442695
        %v976 = vpow.pop %v975
        %v977 = vmul.f32 %v950, 1.442695
        %v978 = vpow.pop %v977
        %v979 = vmul.f32 %v951, 1.442695
        %v980 = vpow.pop %v979
        %v981 = vmul.f32 %v952, 1.442695
        %v982 = vpow.pop %v981
        %v983 = vmul.f32 %v953, 1.442695
        %v984 = vpow.pop %v983
        %v985 = vmul.f32 %v954, 1.442695
        %v986 = vpow.pop %v985
        %v987 = vadd.f32 %v956, %v960
        %v988 = vadd.f32 %v987, %v964
        %v989 = vadd.f32 %v988, %v968
        %v990 = vadd.f32 %v989, %v972
        %v991 = vadd.f32 %v990, %v976
        %v992 = vadd.f32 %v991, %v980
        %v993 = vadd.f32 %v992, %v984
        %v994 = vrot.slane %v993, 4
        %v995 = vadd.f32 %v993, %v994
        %v996 = vrot.slane %v995, 2
        %v997 = vadd.f32 %v995, %v996
        %v998 = vrot.slane %v997, 1
        %v999 = vadd.f32 %v997, %v998
        %v1000 = vadd.f32 %v958, %v962
        %v1001 = vadd.f32 %v1000, %v966
        %v1002 = vadd.f32 %v1001, %v970
        %v1003 = vadd.f32 %v1002, %v974
        %v1004 = vadd.f32 %v1003, %v978
        %v1005 = vadd.f32 %v1004, %v982
        %v1006 = vadd.f32 %v1005, %v986
        %v1007 = vrot.slane %v1006, 4
        %v1008 = vadd.f32 %v1006, %v1007
        %v1009 = vrot.slane %v1008, 2
        %v1010 = vadd.f32 %v1008, %v1009
        %v1011 = vrot.slane %v1010, 1
        %v1012 = vadd.f32 %v1010, %v1011
        %v1013 = vrcp.pop %v999
        %v1014 = vrcp.pop %v1012
        %v1015 = vmul.f32 %v956, %v1013
        %v1016 = vmul.f32 %v958, %v1014
        %v1017 = vmul.f32 %v960, %v1013
        %v1018 = vmul.f32 %v962, %v1014
        %v1019 = vmul.f32 %v964, %v1013
        %v1020 = vmul.f32 %v966, %v1014
        %v1021 = vmul.f32 %v968, %v1013
        %v1022 = vmul.f32 %v970, %v1014
        %v1023 = vmul.f32 %v972, %v1013
        %v1024 = vmul.f32 %v974, %v1014
        %v1025 = vmul.f32 %v976, %v1013
        %v1026 = vmul.f32 %v978, %v1014
        %v1027 = vmul.f32 %v980, %v1013
        %v1028 = vmul.f32 %v982, %v1014
        %v1029 = vmul.f32 %v984, %v1013
        %v1030 = vmul.f32 %v986, %v1014
        %v1031 = vpack.c.bf16 %v886, %v883
        %v1032 = vpack.c.bf16 %v894, %v891
        %v1033 = vpack.c.bf16 %v902, %v899
        %v1034 = vpack.c.bf16 %v910, %v907
        %v1035 = vpack.c.bf16 %v1017, %v1015
        %v1036 = vpack.c.bf16 %v1018, %v1016
        %v1037 = vpack.c.bf16 %v1021, %v1019
        %v1038 = vpack.c.bf16 %v1022, %v1020
        %v1039 = vpack.c.bf16 %v1025, %v1023
        %v1040 = vpack.c.bf16 %v1026, %v1024
        %v1041 = vpack.c.bf16 %v1029, %v1027
        %v1042 = vpack.c.bf16 %v1030, %v1028
        %v1043 = vmul.f32 %v1015, %v810
        %v1044 = vmul.f32 %v1016, %v812
        %v1045 = vmul.f32 %v1017, %v814
        %v1046 = vmul.f32 %v1018, %v816
        %v1047 = vmul.f32 %v1019, %v820
        %v1048 = vmul.f32 %v1020, %v822
        %v1049 = vmul.f32 %v1021, %v824
        %v1050 = vmul.f32 %v1022, %v826
        %v1051 = vmul.f32 %v1023, %v830
        %v1052 = vmul.f32 %v1024, %v832
        %v1053 = vmul.f32 %v1025, %v834
        %v1054 = vmul.f32 %v1026, %v836
        %v1055 = vmul.f32 %v1027, %v840
        %v1056 = vmul.f32 %v1028, %v842
        %v1057 = vmul.f32 %v1029, %v844
        %v1058 = vmul.f32 %v1030, %v846
        %v1060 = vsel %vm726, %v1031, 0
        %v1063 = vsel %vm726, %v1032, 0
        %v1066 = vsel %vm726, %v1033, 0
        %v1069 = vsel %vm726, %v1034, 0
        %1071 = vmatprep.subr.bf16.mxu0 %v1036
        %1072 = vmatpush1.bf16.msra.mxu0 %v1035
        %1073 = vmatprep.subr.bf16.mxu0 %v1038
        %1074 = vmatpush1.bf16.msra.mxu0 %v1037
        %1075 = vmatprep.subr.bf16.mxu0 %v1040
        %1076 = vmatpush1.bf16.msra.mxu0 %v1039
        %1077 = vmatprep.subr.bf16.mxu0 %v1042
        %1078 = vmatpush1.bf16.msra.mxu0 %v1041
        %1079 = vmatprep.subr.bf16.mxu0 0
        %1080 = vmatpush1.bf16.msra.mxu0 0
        %1081 = vmatprep.subr.bf16.mxu0 0
        %1082 = vmatpush1.bf16.msra.mxu0 0
        %1083 = vmatprep.subr.bf16.mxu0 0
        %1084 = vmatpush1.bf16.msra.mxu0 0
        %1085 = vmatprep.subr.bf16.mxu0 0
        %1086 = vmatpush1.bf16.msra.mxu0 0
        %1087 = vmatprep.subr.bf16.mxu0 0
        %1088 = vmatpush1.bf16.msra.mxu0 0
        %1089 = vmatprep.subr.bf16.mxu0 0
        %1090 = vmatpush1.bf16.msra.mxu0 0
        %1091 = vmatprep.subr.bf16.mxu0 0
        %1092 = vmatpush1.bf16.msra.mxu0 0
        %1093 = vmatprep.subr.bf16.mxu0 0
        %1094 = vmatpush1.bf16.msra.mxu0 0
        %1095 = vmatprep.subr.bf16.mxu0 0
        %1096 = vmatpush1.bf16.msra.mxu0 0
        %1097 = vmatprep.subr.bf16.mxu0 0
        %1098 = vmatpush1.bf16.msra.mxu0 0
        %1099 = vmatprep.subr.bf16.mxu0 0
        %1100 = vmatpush1.bf16.msra.mxu0 0
        %1101 = vmatprep.subr.bf16.mxu0 0
        %1102 = vmatpush1.bf16.msra.mxu0 0
        %1103 = vmatprep.mubr.bf16.mxu0 0
        %1104 = vmatmul.mubr.bf16.gmra.mrb[0].mxu0 %v1060
        %v1105 = vpop.f32.mrb[0].mxu0
        %v1106 = vadd.f32 1e-06, %v1105
        %v1107 = vpop.f32.mrb[0].mxu0
        %v1108 = vadd.f32 1e-06, %v1107
        %v1109 = vpop.f32.mrb[0].mxu0
        %v1110 = vadd.f32 1e-06, %v1109
        %v1111 = vpop.f32.mrb[0].mxu0
        %v1112 = vadd.f32 1e-06, %v1111
        %1113 = vmatprep.mubr.bf16.mxu0 0
        %1114 = vmatmul.mubr.bf16.gmra.mrb[0].mxu0 %v1063
        %v1115 = vpop.f32.mrb[0].mxu0
        %v1116 = vadd.f32 1e-06, %v1115
        %v1117 = vpop.f32.mrb[0].mxu0
        %v1118 = vadd.f32 1e-06, %v1117
        %v1119 = vpop.f32.mrb[0].mxu0
        %v1120 = vadd.f32 1e-06, %v1119
        %v1121 = vpop.f32.mrb[0].mxu0
        %v1122 = vadd.f32 1e-06, %v1121
        %1123 = vmatprep.mubr.bf16.mxu0 0
        %1124 = vmatmul.mubr.bf16.gmra.mrb[0].mxu0 %v1066
        %v1125 = vpop.f32.mrb[0].mxu0
        %v1126 = vadd.f32 1e-06, %v1125
        %v1127 = vpop.f32.mrb[0].mxu0
        %v1128 = vadd.f32 1e-06, %v1127
        %v1129 = vpop.f32.mrb[0].mxu0
        %v1130 = vadd.f32 1e-06, %v1129
        %v1131 = vpop.f32.mrb[0].mxu0
        %v1132 = vadd.f32 1e-06, %v1131
        %1133 = vmatprep.mubr.bf16.mxu0 0
        %1134 = vmatmul.mubr.bf16.gmra.mrb[0].mxu0 %v1069
        %v1135 = vpop.f32.mrb[0].mxu0
        %v1136 = vadd.f32 1e-06, %v1135
        %v1137 = vpop.f32.mrb[0].mxu0
        %v1138 = vadd.f32 1e-06, %v1137
        %v1139 = vpop.f32.mrb[0].mxu0
        %v1140 = vadd.f32 1e-06, %v1139
        %v1141 = vpop.f32.mrb[0].mxu0
        %v1142 = vadd.f32 1e-06, %v1141
        %1143 = vdwg.mxu0
        %v1144 = vrcp.pop %v1106
        %v1145 = vrcp.pop %v1108
        %v1146 = vrcp.pop %v1110
        %v1147 = vrcp.pop %v1112
        %v1148 = vrcp.pop %v1116
        %v1149 = vrcp.pop %v1118
        %v1150 = vrcp.pop %v1120
        %v1151 = vrcp.pop %v1122
        %v1152 = vrcp.pop %v1126
        %v1153 = vrcp.pop %v1128
        %v1154 = vrcp.pop %v1130
        %v1155 = vrcp.pop %v1132
        %v1156 = vrcp.pop %v1136
        %v1157 = vrcp.pop %v1138
        %v1158 = vrcp.pop %v1140
        %v1159 = vrcp.pop %v1142
        %v1160 = vmul.f32 %v1043, %v1144
        %v1161 = vmul.f32 %v1044, %v1145
        %v1162 = vmul.f32 %v1045, %v1146
        %v1163 = vmul.f32 %v1046, %v1147
        %v1164 = vmul.f32 %v1047, %v1148
        %v1165 = vmul.f32 %v1048, %v1149
        %v1166 = vmul.f32 %v1049, %v1150
        %v1167 = vmul.f32 %v1050, %v1151
        %v1168 = vmul.f32 %v1051, %v1152
        %v1169 = vmul.f32 %v1052, %v1153
        %v1170 = vmul.f32 %v1053, %v1154
        %v1171 = vmul.f32 %v1054, %v1155
        %v1172 = vmul.f32 %v1055, %v1156
        %v1173 = vmul.f32 %v1056, %v1157
        %v1174 = vmul.f32 %v1057, %v1158
        %v1175 = vmul.f32 %v1058, %v1159
        %v1176 = vpack.c.bf16 %v1162, %v1160
        %v1177 = vpack.c.bf16 %v1163, %v1161
        %v1178 = vpack.c.bf16 %v1166, %v1164
        %v1179 = vpack.c.bf16 %v1167, %v1165
        %v1180 = vpack.c.bf16 %v1170, %v1168
        %v1181 = vpack.c.bf16 %v1171, %v1169
        %v1182 = vpack.c.bf16 %v1174, %v1172
        %v1183 = vpack.c.bf16 %v1175, %v1173
        %1184 = vst [vmem:[#allocation3 + $0x80] sm:$0xff] %v1176
        %1185 = vst [vmem:[#allocation3 + $0x88] sm:$0xff] %v1177
        %1186 = vst [vmem:[#allocation3 + $0x90] sm:$0xff] %v1178
        %1187 = vst [vmem:[#allocation3 + $0x98] sm:$0xff] %v1179
        %1188 = vst [vmem:[#allocation3 + $0xa0] sm:$0xff] %v1180
        %1189 = vst [vmem:[#allocation3 + $0xa8] sm:$0xff] %v1181
        %1190 = vst [vmem:[#allocation3 + $0xb0] sm:$0xff] %v1182
        %1191 = vst [vmem:[#allocation3 + $0xb8] sm:$0xff] %v1183
        %v1192 = vld [vmem:[#allocation3] sm:$0xff]
        %v1193 = vld [vmem:[#allocation3 + $0x8] sm:$0xff]
        %v1194 = vld [vmem:[#allocation3 + $0x10] sm:$0xff]
        %v1195 = vld [vmem:[#allocation3 + $0x18] sm:$0xff]
        %v1196 = vld [vmem:[#allocation3 + $0x20] sm:$0xff]
        %v1197 = vld [vmem:[#allocation3 + $0x28] sm:$0xff]
        %v1198 = vld [vmem:[#allocation3 + $0x30] sm:$0xff]
        %v1199 = vld [vmem:[#allocation3 + $0x38] sm:$0xff]
        %v1200 = vld [vmem:[#allocation3 + $0x40] sm:$0xff]
        %v1201 = vld [vmem:[#allocation3 + $0x48] sm:$0xff]
        %v1202 = vld [vmem:[#allocation3 + $0x50] sm:$0xff]
        %v1203 = vld [vmem:[#allocation3 + $0x58] sm:$0xff]
        %v1204 = vld [vmem:[#allocation3 + $0x60] sm:$0xff]
        %v1205 = vld [vmem:[#allocation3 + $0x68] sm:$0xff]
        %v1206 = vld [vmem:[#allocation3 + $0x70] sm:$0xff]
        %v1207 = vld [vmem:[#allocation3 + $0x78] sm:$0xff]
        %v1208 = vld [vmem:[#allocation3 + $0x80] sm:$0xff]
        %v1209 = vld [vmem:[#allocation3 + $0x88] sm:$0xff]
        %v1210 = vld [vmem:[#allocation3 + $0x90] sm:$0xff]
        %v1211 = vld [vmem:[#allocation3 + $0x98] sm:$0xff]
        %v1212 = vld [vmem:[#allocation3 + $0xa0] sm:$0xff]
        %v1213 = vld [vmem:[#allocation3 + $0xa8] sm:$0xff]
        %v1214 = vld [vmem:[#allocation3 + $0xb0] sm:$0xff]
        %v1215 = vld [vmem:[#allocation3 + $0xb8] sm:$0xff]
        %1216 = vmatprep.subr.bf16.mxu0 %v1177
        %1217 = vmatpush1.bf16.xpose.msra.mxu0 %v1176
        %1218 = vmatprep.subr.bf16.mxu0 %v1179
        %1219 = vmatpush1.bf16.xpose.msra.mxu0 %v1178
        %1220 = vmatprep.subr.bf16.mxu0 %v1181
        %1221 = vmatpush1.bf16.xpose.msra.mxu0 %v1180
        %1222 = vmatprep.subr.bf16.mxu0 %v1183
        %1223 = vmatpush1.bf16.xpose.msra.mxu0 %v1182
        %1224 = vmatprep.subr.bf16.mxu0 0
        %1225 = vmatpush1.bf16.xpose.msra.mxu0 0
        %1226 = vmatprep.subr.bf16.mxu0 0
        %1227 = vmatpush1.bf16.xpose.msra.mxu0 0
        %1228 = vmatprep.subr.bf16.mxu0 0
        %1229 = vmatpush1.bf16.xpose.msra.mxu0 0
        %1230 = vmatprep.subr.bf16.mxu0 0
        %1231 = vmatpush1.bf16.xpose.msra.mxu0 0
        %1232 = vmatprep.subr.bf16.mxu0 0
        %1233 = vmatpush1.bf16.xpose.msra.mxu0 0
        %1234 = vmatprep.subr.bf16.mxu0 0
        %1235 = vmatpush1.bf16.xpose.msra.mxu0 0
        %1236 = vmatprep.subr.bf16.mxu0 0
        %1237 = vmatpush1.bf16.xpose.msra.mxu0 0
        %1238 = vmatprep.subr.bf16.mxu0 0
        %1239 = vmatpush1.bf16.xpose.msra.mxu0 0
        %1240 = vmatprep.subr.bf16.mxu0 0
        %1241 = vmatpush1.bf16.xpose.msra.mxu0 0
        %1242 = vmatprep.subr.bf16.mxu0 0
        %1243 = vmatpush1.bf16.xpose.msra.mxu0 0
        %1244 = vmatprep.subr.bf16.mxu0 0
        %1245 = vmatpush1.bf16.xpose.msra.mxu0 0
        %1246 = vmatprep.subr.bf16.mxu0 0
        %1247 = vmatpush1.bf16.xpose.msra.mxu0 0
        %1248 = vmatprep.mubr.bf16.mxu0 %v1193
        %1249 = vmatmul.mubr.bf16.gmra.mrb[0].mxu0 %v1192
        %v1250 = vpop.f32.mrb[0].mxu0
        %v1251 = vadd.f32 0.0, %v1250
        %v1252 = vpop.f32.mrb[0].mxu0
        %v1253 = vpop.f32.mrb[0].mxu0
        %v1254 = vadd.f32 0.0, %v1253
        %v1255 = vpop.f32.mrb[0].mxu0
        %1256 = vmatprep.mubr.bf16.mxu0 %v1195
        %1257 = vmatmul.mubr.bf16.gmra.mrb[0].mxu0 %v1194
        %v1258 = vpop.f32.mrb[0].mxu0
        %v1259 = vadd.f32 0.0, %v1258
        %v1260 = vpop.f32.mrb[0].mxu0
        %v1261 = vpop.f32.mrb[0].mxu0
        %v1262 = vadd.f32 0.0, %v1261
        %v1263 = vpop.f32.mrb[0].mxu0
        %1264 = vmatprep.mubr.bf16.mxu0 %v1197
        %1265 = vmatmul.mubr.bf16.gmra.mrb[0].mxu0 %v1196
        %v1266 = vpop.f32.mrb[0].mxu0
        %v1267 = vadd.f32 0.0, %v1266
        %v1268 = vpop.f32.mrb[0].mxu0
        %v1269 = vpop.f32.mrb[0].mxu0
        %v1270 = vadd.f32 0.0, %v1269
        %v1271 = vpop.f32.mrb[0].mxu0
        %1272 = vmatprep.mubr.bf16.mxu0 %v1199
        %1273 = vmatmul.mubr.bf16.gmra.mrb[0].mxu0 %v1198
        %v1274 = vpop.f32.mrb[0].mxu0
        %v1275 = vadd.f32 0.0, %v1274
        %v1276 = vpop.f32.mrb[0].mxu0
        %v1277 = vpop.f32.mrb[0].mxu0
        %v1278 = vadd.f32 0.0, %v1277
        %v1279 = vpop.f32.mrb[0].mxu0
        %1280 = vmatprep.mubr.bf16.mxu0 %v1201
        %1281 = vmatmul.mubr.bf16.gmra.mrb[0].mxu0 %v1200
        %v1282 = vpop.f32.mrb[0].mxu0
        %v1283 = vadd.f32 0.0, %v1282
        %v1284 = vpop.f32.mrb[0].mxu0
        %v1285 = vpop.f32.mrb[0].mxu0
        %v1286 = vadd.f32 0.0, %v1285
        %v1287 = vpop.f32.mrb[0].mxu0
        %1288 = vmatprep.mubr.bf16.mxu0 %v1203
        %1289 = vmatmul.mubr.bf16.gmra.mrb[0].mxu0 %v1202
        %v1290 = vpop.f32.mrb[0].mxu0
        %v1291 = vadd.f32 0.0, %v1290
        %v1292 = vpop.f32.mrb[0].mxu0
        %v1293 = vpop.f32.mrb[0].mxu0
        %v1294 = vadd.f32 0.0, %v1293
        %v1295 = vpop.f32.mrb[0].mxu0
        %1296 = vmatprep.mubr.bf16.mxu0 %v1205
        %1297 = vmatmul.mubr.bf16.gmra.mrb[0].mxu0 %v1204
        %v1298 = vpop.f32.mrb[0].mxu0
        %v1299 = vadd.f32 0.0, %v1298
        %v1300 = vpop.f32.mrb[0].mxu0
        %v1301 = vpop.f32.mrb[0].mxu0
        %v1302 = vadd.f32 0.0, %v1301
        %v1303 = vpop.f32.mrb[0].mxu0
        %1304 = vmatprep.mubr.bf16.mxu0 %v1207
        %1305 = vmatmul.mubr.bf16.gmra.mrb[0].mxu0 %v1206
        %v1306 = vpop.f32.mrb[0].mxu0
        %v1307 = vadd.f32 0.0, %v1306
        %v1308 = vpop.f32.mrb[0].mxu0
        %v1309 = vpop.f32.mrb[0].mxu0
        %v1310 = vadd.f32 0.0, %v1309
        %v1311 = vpop.f32.mrb[0].mxu0
        %1312 = vmatprep.mubr.bf16.mxu0 %v1209
        %1313 = vmatmul.mubr.bf16.gmra.mrb[0].mxu0 %v1208
        %v1314 = vpop.f32.mrb[0].mxu0
        %v1315 = vadd.f32 0.0, %v1314
        %v1316 = vpop.f32.mrb[0].mxu0
        %v1317 = vpop.f32.mrb[0].mxu0
        %v1318 = vadd.f32 0.0, %v1317
        %v1319 = vpop.f32.mrb[0].mxu0
        %1320 = vmatprep.mubr.bf16.mxu0 %v1211
        %1321 = vmatmul.mubr.bf16.gmra.mrb[0].mxu0 %v1210
        %v1322 = vpop.f32.mrb[0].mxu0
        %v1323 = vadd.f32 0.0, %v1322
        %v1324 = vpop.f32.mrb[0].mxu0
        %v1325 = vpop.f32.mrb[0].mxu0
        %v1326 = vadd.f32 0.0, %v1325
        %v1327 = vpop.f32.mrb[0].mxu0
        %1328 = vmatprep.mubr.bf16.mxu0 %v1213
        %1329 = vmatmul.mubr.bf16.gmra.mrb[0].mxu0 %v1212
        %v1330 = vpop.f32.mrb[0].mxu0
        %v1331 = vadd.f32 0.0, %v1330
        %v1332 = vpop.f32.mrb[0].mxu0
        %v1333 = vpop.f32.mrb[0].mxu0
        %v1334 = vadd.f32 0.0, %v1333
        %v1335 = vpop.f32.mrb[0].mxu0
        %1336 = vmatprep.mubr.bf16.mxu0 %v1215
        %1337 = vmatmul.mubr.bf16.gmra.mrb[0].mxu0 %v1214
        %v1338 = vpop.f32.mrb[0].mxu0
        %v1339 = vadd.f32 0.0, %v1338
        %v1340 = vpop.f32.mrb[0].mxu0
        %v1341 = vpop.f32.mrb[0].mxu0
        %v1342 = vadd.f32 0.0, %v1341
        %v1343 = vpop.f32.mrb[0].mxu0
        %1344 = vdwg.mxu0
        %v1345 = vpack.c.bf16 %v1318, %v1315
        %v1346 = vpack.c.bf16 %v1326, %v1323
        %v1347 = vpack.c.bf16 %v1334, %v1331
        %v1348 = vpack.c.bf16 %v1342, %v1339
        %v1349 = vmul.f32 %v702, %v1251
        %v1350 = vmul.f32 %v703, %v1254
        %v1351 = vmul.f32 %v704, %v1259
        %v1352 = vmul.f32 %v705, %v1262
        %v1353 = vmul.f32 %v706, %v1267
        %v1354 = vmul.f32 %v707, %v1270
        %v1355 = vmul.f32 %v708, %v1275
        %v1356 = vmul.f32 %v709, %v1278
        %v1357 = vmul.f32 %v710, %v1283
        %v1358 = vmul.f32 %v711, %v1286
        %v1359 = vmul.f32 %v712, %v1291
        %v1360 = vmul.f32 %v713, %v1294
        %v1361 = vmul.f32 %v714, %v1299
        %v1362 = vmul.f32 %v715, %v1302
        %v1363 = vmul.f32 %v716, %v1307
        %v1364 = vmul.f32 %v717, %v1310
        %v1366 = vsel %vm726, %v718, 0
        %v1369 = vsel %vm726, %v719, 0
        %v1372 = vsel %vm726, %v720, 0
        %v1375 = vsel %vm726, %v721, 0
        %v1378 = vsel %vm726, %v722, 0
        %v1381 = vsel %vm726, %v723, 0
        %v1384 = vsel %vm726, %v724, 0
        %v1387 = vsel %vm726, %v725, 0
        %1389 = vmatprep.subr.bf16.mxu0 0
        %1390 = vmatpush1.bf16.msra.mxu0 %v1345
        %1391 = vmatprep.subr.bf16.mxu0 0
        %1392 = vmatpush1.bf16.msra.mxu0 %v1346
        %1393 = vmatprep.subr.bf16.mxu0 0
        %1394 = vmatpush1.bf16.msra.mxu0 %v1347
        %1395 = vmatprep.subr.bf16.mxu0 0
        %1396 = vmatpush1.bf16.msra.mxu0 %v1348
        %1397 = vmatprep.subr.bf16.mxu0 0
        %1398 = vmatpush1.bf16.msra.mxu0 0
        %1399 = vmatprep.subr.bf16.mxu0 0
        %1400 = vmatpush1.bf16.msra.mxu0 0
        %1401 = vmatprep.subr.bf16.mxu0 0
        %1402 = vmatpush1.bf16.msra.mxu0 0
        %1403 = vmatprep.subr.bf16.mxu0 0
        %1404 = vmatpush1.bf16.msra.mxu0 0
        %1405 = vmatprep.subr.bf16.mxu0 0
        %1406 = vmatpush1.bf16.msra.mxu0 0
        %1407 = vmatprep.subr.bf16.mxu0 0
        %1408 = vmatpush1.bf16.msra.mxu0 0
        %1409 = vmatprep.subr.bf16.mxu0 0
        %1410 = vmatpush1.bf16.msra.mxu0 0
        %1411 = vmatprep.subr.bf16.mxu0 0
        %1412 = vmatpush1.bf16.msra.mxu0 0
        %1413 = vmatprep.subr.bf16.mxu0 0
        %1414 = vmatpush1.bf16.msra.mxu0 0
        %1415 = vmatprep.subr.bf16.mxu0 0
        %1416 = vmatpush1.bf16.msra.mxu0 0
        %1417 = vmatprep.subr.bf16.mxu0 0
        %1418 = vmatpush1.bf16.msra.mxu0 0
        %1419 = vmatprep.subr.bf16.mxu0 0
        %1420 = vmatpush1.bf16.msra.mxu0 0
        %1421 = vmatprep.mubr.bf16.mxu0 0
        %1422 = vmatmul.mubr.bf16.gmra.mrb[0].mxu0 %v1366
        %v1423 = vpop.f32.mrb[0].mxu0
        %v1424 = vadd.f32 1e-06, %v1423
        %v1425 = vpop.f32.mrb[0].mxu0
        %v1426 = vpop.f32.mrb[0].mxu0
        %v1427 = vadd.f32 1e-06, %v1426
        %v1428 = vpop.f32.mrb[0].mxu0
        %1429 = vmatprep.mubr.bf16.mxu0 0
        %1430 = vmatmul.mubr.bf16.gmra.mrb[0].mxu0 %v1369
        %v1431 = vpop.f32.mrb[0].mxu0
        %v1432 = vadd.f32 1e-06, %v1431
        %v1433 = vpop.f32.mrb[0].mxu0
        %v1434 = vpop.f32.mrb[0].mxu0
        %v1435 = vadd.f32 1e-06, %v1434
        %v1436 = vpop.f32.mrb[0].mxu0
        %1437 = vmatprep.mubr.bf16.mxu0 0
        %1438 = vmatmul.mubr.bf16.gmra.mrb[0].mxu0 %v1372
        %v1439 = vpop.f32.mrb[0].mxu0
        %v1440 = vadd.f32 1e-06, %v1439
        %v1441 = vpop.f32.mrb[0].mxu0
        %v1442 = vpop.f32.mrb[0].mxu0
        %v1443 = vadd.f32 1e-06, %v1442
        %v1444 = vpop.f32.mrb[0].mxu0
        %1445 = vmatprep.mubr.bf16.mxu0 0
        %1446 = vmatmul.mubr.bf16.gmra.mrb[0].mxu0 %v1375
        %v1447 = vpop.f32.mrb[0].mxu0
        %v1448 = vadd.f32 1e-06, %v1447
        %v1449 = vpop.f32.mrb[0].mxu0
        %v1450 = vpop.f32.mrb[0].mxu0
        %v1451 = vadd.f32 1e-06, %v1450
        %v1452 = vpop.f32.mrb[0].mxu0
        %1453 = vmatprep.mubr.bf16.mxu0 0
        %1454 = vmatmul.mubr.bf16.gmra.mrb[0].mxu0 %v1378
        %v1455 = vpop.f32.mrb[0].mxu0
        %v1456 = vadd.f32 1e-06, %v1455
        %v1457 = vpop.f32.mrb[0].mxu0
        %v1458 = vpop.f32.mrb[0].mxu0
        %v1459 = vadd.f32 1e-06, %v1458
        %v1460 = vpop.f32.mrb[0].mxu0
        %1461 = vmatprep.mubr.bf16.mxu0 0
        %1462 = vmatmul.mubr.bf16.gmra.mrb[0].mxu0 %v1381
        %v1463 = vpop.f32.mrb[0].mxu0
        %v1464 = vadd.f32 1e-06, %v1463
        %v1465 = vpop.f32.mrb[0].mxu0
        %v1466 = vpop.f32.mrb[0].mxu0
        %v1467 = vadd.f32 1e-06, %v1466
        %v1468 = vpop.f32.mrb[0].mxu0
        %1469 = vmatprep.mubr.bf16.mxu0 0
        %1470 = vmatmul.mubr.bf16.gmra.mrb[0].mxu0 %v1384
        %v1471 = vpop.f32.mrb[0].mxu0
        %v1472 = vadd.f32 1e-06, %v1471
        %v1473 = vpop.f32.mrb[0].mxu0
        %v1474 = vpop.f32.mrb[0].mxu0
        %v1475 = vadd.f32 1e-06, %v1474
        %v1476 = vpop.f32.mrb[0].mxu0
        %1477 = vmatprep.mubr.bf16.mxu0 0
        %1478 = vmatmul.mubr.bf16.gmra.mrb[0].mxu0 %v1387
        %v1479 = vpop.f32.mrb[0].mxu0
        %v1480 = vadd.f32 1e-06, %v1479
        %v1481 = vpop.f32.mrb[0].mxu0
        %v1482 = vpop.f32.mrb[0].mxu0
        %v1483 = vadd.f32 1e-06, %v1482
        %v1484 = vpop.f32.mrb[0].mxu0
        %1485 = vdwg.mxu0
        %v1486 = vrcp.pop %v1424
        %v1487 = vrcp.pop %v1427
        %v1488 = vrcp.pop %v1432
        %v1489 = vrcp.pop %v1435
        %v1490 = vrcp.pop %v1440
        %v1491 = vrcp.pop %v1443
        %v1492 = vrcp.pop %v1448
        %v1493 = vrcp.pop %v1451
        %v1494 = vrcp.pop %v1456
        %v1495 = vrcp.pop %v1459
        %v1496 = vrcp.pop %v1464
        %v1497 = vrcp.pop %v1467
        %v1498 = vrcp.pop %v1472
        %v1499 = vrcp.pop %v1475
        %v1500 = vrcp.pop %v1480
        %v1501 = vrcp.pop %v1483
        %v1502 = vmul.f32 %v1349, %v1486
        %v1503 = vmul.f32 %v1350, %v1487
        %v1504 = vmul.f32 %v1351, %v1488
        %v1505 = vmul.f32 %v1352, %v1489
        %v1506 = vmul.f32 %v1353, %v1490
        %v1507 = vmul.f32 %v1354, %v1491
        %v1508 = vmul.f32 %v1355, %v1492
        %v1509 = vmul.f32 %v1356, %v1493
        %v1510 = vmul.f32 %v1357, %v1494
        %v1511 = vmul.f32 %v1358, %v1495
        %v1512 = vmul.f32 %v1359, %v1496
        %v1513 = vmul.f32 %v1360, %v1497
        %v1514 = vmul.f32 %v1361, %v1498
        %v1515 = vmul.f32 %v1362, %v1499
        %v1516 = vmul.f32 %v1363, %v1500
        %v1517 = vmul.f32 %v1364, %v1501
        %v1518 = vpack.c.bf16 %v1503, %v1502
        %v1519 = vpack.c.bf16 %v1505, %v1504
        %v1520 = vpack.c.bf16 %v1507, %v1506
        %v1521 = vpack.c.bf16 %v1509, %v1508
        %v1522 = vpack.c.bf16 %v1511, %v1510
        %v1523 = vpack.c.bf16 %v1513, %v1512
        %v1524 = vpack.c.bf16 %v1515, %v1514
        %v1525 = vpack.c.bf16 %v1517, %v1516
        %1526 = vst.msk [vmem:[#allocation2 + $0x10] sm:$0xff] %vm726, %v1518
        %1527 = vst.msk [vmem:[#allocation2 + $0x28] sm:$0xff] %vm726, %v1519
        %1528 = vst.msk [vmem:[#allocation2 + $0x40] sm:$0xff] %vm726, %v1520
        %1529 = vst.msk [vmem:[#allocation2 + $0x58] sm:$0xff] %vm726, %v1521
        %1530 = vst.msk [vmem:[#allocation2 + $0x70] sm:$0xff] %vm726, %v1522
        %1531 = vst.msk [vmem:[#allocation2 + $0x88] sm:$0xff] %vm726, %v1523
        %1532 = vst.msk [vmem:[#allocation2 + $0xa0] sm:$0xff] %vm726, %v1524
        %1533 = vst.msk [vmem:[#allocation2 + $0xb8] sm:$0xff] %vm726, %v1525
        %v1534 = vld [vmem:[#allocation2] sm:$0xff]
        %v1535 = vld [vmem:[#allocation2 + $0x8] sm:$0xff]
        %v1536 = vld [vmem:[#allocation2 + $0x10] sm:$0xff]
        %v1537 = vld [vmem:[#allocation2 + $0x18] sm:$0xff]
        %v1538 = vld [vmem:[#allocation2 + $0x20] sm:$0xff]
        %v1539 = vld [vmem:[#allocation2 + $0x28] sm:$0xff]
        %v1540 = vld [vmem:[#allocation2 + $0x30] sm:$0xff]
        %v1541 = vld [vmem:[#allocation2 + $0x38] sm:$0xff]
        %v1542 = vld [vmem:[#allocation2 + $0x40] sm:$0xff]
        %v1543 = vld [vmem:[#allocation2 + $0x48] sm:$0xff]
        %v1544 = vld [vmem:[#allocation2 + $0x50] sm:$0xff]
        %v1545 = vld [vmem:[#allocation2 + $0x58] sm:$0xff]
        %v1546 = vld [vmem:[#allocation2 + $0x60] sm:$0xff]
        %v1547 = vld [vmem:[#allocation2 + $0x68] sm:$0xff]
        %v1548 = vld [vmem:[#allocation2 + $0x70] sm:$0xff]
        %v1549 = vld [vmem:[#allocation2 + $0x78] sm:$0xff]
        %v1550 = vld [vmem:[#allocation2 + $0x80] sm:$0xff]
        %v1551 = vld [vmem:[#allocation2 + $0x88] sm:$0xff]
        %v1552 = vld [vmem:[#allocation2 + $0x90] sm:$0xff]
        %v1553 = vld [vmem:[#allocation2 + $0x98] sm:$0xff]
        %v1554 = vld [vmem:[#allocation2 + $0xa0] sm:$0xff]
        %v1555 = vld [vmem:[#allocation2 + $0xa8] sm:$0xff]
        %v1556 = vld [vmem:[#allocation2 + $0xb0] sm:$0xff]
        %v1557 = vld [vmem:[#allocation2 + $0xb8] sm:$0xff]
        %1558 = vxpose.xlu0.c.b16.start [1/8] %v1518, 128
        %1559 = vxpose.xlu0.c.b16.cont [2/8] %v1519, 128
        %1560 = vxpose.xlu0.c.b16.cont [3/8] %v1520, 128
        %1561 = vxpose.xlu0.c.b16.cont [4/8] %v1521, 128
        %1562 = vxpose.xlu0.c.b16.cont [5/8] %v1522, 128
        %1563 = vxpose.xlu0.c.b16.cont [6/8] %v1523, 128
        %1564 = vxpose.xlu0.c.b16.cont [7/8] %v1524, 128
        %1565 = vxpose.xlu0.c.b16.end [8/8] %v1525, 128
        %v1566 = vpop.trf.xlu0
        %v1567 = vpop.trf.xlu0
        %v1568 = vpop.trf.xlu0
        %v1569 = vpop.trf.xlu0
        %v1570 = vpop.trf.xlu0
        %v1571 = vpop.trf.xlu0
        %v1572 = vpop.trf.xlu0
        %v1573 = vpop.trf.xlu0
        %1574 = vmatprep.subr.bf16.mxu0 %v1535
        %1575 = vmatpush1.bf16.msra.mxu0 %v1534
        %1576 = vmatprep.subr.bf16.mxu0 %v1538
        %1577 = vmatpush1.bf16.msra.mxu0 %v1537
        %1578 = vmatprep.subr.bf16.mxu0 %v1541
        %1579 = vmatpush1.bf16.msra.mxu0 %v1540
        %1580 = vmatprep.subr.bf16.mxu0 %v1544
        %1581 = vmatpush1.bf16.msra.mxu0 %v1543
        %1582 = vmatprep.subr.bf16.mxu0 %v1547
        %1583 = vmatpush1.bf16.msra.mxu0 %v1546
        %1584 = vmatprep.subr.bf16.mxu0 %v1550
        %1585 = vmatpush1.bf16.msra.mxu0 %v1549
        %1586 = vmatprep.subr.bf16.mxu0 %v1553
        %1587 = vmatpush1.bf16.msra.mxu0 %v1552
        %1588 = vmatprep.subr.bf16.mxu0 %v1556
        %1589 = vmatpush1.bf16.msra.mxu0 %v1555
        %1590 = vmatprep.subr.bf16.mxu0 0
        %1591 = vmatpush1.bf16.msra.mxu0 0
        %1592 = vmatprep.subr.bf16.mxu0 0
        %1593 = vmatpush1.bf16.msra.mxu0 0
        %1594 = vmatprep.subr.bf16.mxu0 0
        %1595 = vmatpush1.bf16.msra.mxu0 0
        %1596 = vmatprep.subr.bf16.mxu0 0
        %1597 = vmatpush1.bf16.msra.mxu0 0
        %1598 = vmatprep.subr.bf16.mxu0 0
        %1599 = vmatpush1.bf16.msra.mxu0 0
        %1600 = vmatprep.subr.bf16.mxu0 0
        %1601 = vmatpush1.bf16.msra.mxu0 0
        %1602 = vmatprep.subr.bf16.mxu0 0
        %1603 = vmatpush1.bf16.msra.mxu0 0
        %1604 = vmatprep.subr.bf16.mxu0 0
        %1605 = vmatpush1.bf16.msra.mxu0 0
        %1606 = vmatprep.mubr.bf16.mxu0 0
        %1607 = vmatmul.mubr.bf16.gmra.mrb[0].mxu0 %v1566
        %v1608 = vpop.f32.mrb[0].mxu0
        %v1609 = vadd.f32 0.0, %v1608
        %v1610 = vpop.f32.mrb[0].mxu0
        %v1611 = vadd.f32 0.0, %v1610
        %v1612 = vpop.f32.mrb[0].mxu0
        %v1613 = vadd.f32 0.0, %v1612
        %v1614 = vpop.f32.mrb[0].mxu0
        %v1615 = vadd.f32 0.0, %v1614
        %1616 = vmatprep.mubr.bf16.mxu0 0
        %1617 = vmatmul.mubr.bf16.gmra.mrb[0].mxu0 %v1567
        %v1618 = vpop.f32.mrb[0].mxu0
        %v1619 = vadd.f32 0.0, %v1618
        %v1620 = vpop.f32.mrb[0].mxu0
        %v1621 = vadd.f32 0.0, %v1620
        %v1622 = vpop.f32.mrb[0].mxu0
        %v1623 = vadd.f32 0.0, %v1622
        %v1624 = vpop.f32.mrb[0].mxu0
        %v1625 = vadd.f32 0.0, %v1624
        %1626 = vmatprep.mubr.bf16.mxu0 0
        %1627 = vmatmul.mubr.bf16.gmra.mrb[0].mxu0 %v1568
        %v1628 = vpop.f32.mrb[0].mxu0
        %v1629 = vadd.f32 0.0, %v1628
        %v1630 = vpop.f32.mrb[0].mxu0
        %v1631 = vadd.f32 0.0, %v1630
        %v1632 = vpop.f32.mrb[0].mxu0
        %v1633 = vadd.f32 0.0, %v1632
        %v1634 = vpop.f32.mrb[0].mxu0
        %v1635 = vadd.f32 0.0, %v1634
        %1636 = vmatprep.mubr.bf16.mxu0 0
        %1637 = vmatmul.mubr.bf16.gmra.mrb[0].mxu0 %v1569
        %v1638 = vpop.f32.mrb[0].mxu0
        %v1639 = vadd.f32 0.0, %v1638
        %v1640 = vpop.f32.mrb[0].mxu0
        %v1641 = vadd.f32 0.0, %v1640
        %v1642 = vpop.f32.mrb[0].mxu0
        %v1643 = vadd.f32 0.0, %v1642
        %v1644 = vpop.f32.mrb[0].mxu0
        %v1645 = vadd.f32 0.0, %v1644
        %1646 = vdwg.mxu0
        %1647 = vmatprep.subr.bf16.mxu0 0
        %1648 = vmatpush1.bf16.msra.mxu0 %v1536
        %1649 = vmatprep.subr.bf16.mxu0 0
        %1650 = vmatpush1.bf16.msra.mxu0 %v1539
        %1651 = vmatprep.subr.bf16.mxu0 0
        %1652 = vmatpush1.bf16.msra.mxu0 %v1542
        %1653 = vmatprep.subr.bf16.mxu0 0
        %1654 = vmatpush1.bf16.msra.mxu0 %v1545
        %1655 = vmatprep.subr.bf16.mxu0 0
        %1656 = vmatpush1.bf16.msra.mxu0 %v1548
        %1657 = vmatprep.subr.bf16.mxu0 0
        %1658 = vmatpush1.bf16.msra.mxu0 %v1551
        %1659 = vmatprep.subr.bf16.mxu0 0
        %1660 = vmatpush1.bf16.msra.mxu0 %v1554
        %1661 = vmatprep.subr.bf16.mxu0 0
        %1662 = vmatpush1.bf16.msra.mxu0 %v1557
        %1663 = vmatprep.subr.bf16.mxu0 0
        %1664 = vmatpush1.bf16.msra.mxu0 0
        %1665 = vmatprep.subr.bf16.mxu0 0
        %1666 = vmatpush1.bf16.msra.mxu0 0
        %1667 = vmatprep.subr.bf16.mxu0 0
        %1668 = vmatpush1.bf16.msra.mxu0 0
        %1669 = vmatprep.subr.bf16.mxu0 0
        %1670 = vmatpush1.bf16.msra.mxu0 0
        %1671 = vmatprep.subr.bf16.mxu0 0
        %1672 = vmatpush1.bf16.msra.mxu0 0
        %1673 = vmatprep.subr.bf16.mxu0 0
        %1674 = vmatpush1.bf16.msra.mxu0 0
        %1675 = vmatprep.subr.bf16.mxu0 0
        %1676 = vmatpush1.bf16.msra.mxu0 0
        %1677 = vmatprep.subr.bf16.mxu0 0
        %1678 = vmatpush1.bf16.msra.mxu0 0
        %1679 = vmatprep.mubr.bf16.mxu0 0
        %1680 = vmatmul.mubr.bf16.gmra.mrb[0].mxu0 %v1566
        %v1681 = vpop.f32.mrb[0].mxu0
        %v1682 = vadd.f32 0.0, %v1681
        %v1683 = vpop.f32.mrb[0].mxu0
        %v1684 = vpop.f32.mrb[0].mxu0
        %v1685 = vadd.f32 0.0, %v1684
        %v1686 = vpop.f32.mrb[0].mxu0
        %1687 = vmatprep.mubr.bf16.mxu0 0
        %1688 = vmatmul.mubr.bf16.gmra.mrb[0].mxu0 %v1567
        %v1689 = vpop.f32.mrb[0].mxu0
        %v1690 = vadd.f32 0.0, %v1689
        %v1691 = vpop.f32.mrb[0].mxu0
        %v1692 = vpop.f32.mrb[0].mxu0
        %v1693 = vadd.f32 0.0, %v1692
        %v1694 = vpop.f32.mrb[0].mxu0
        %1695 = vmatprep.mubr.bf16.mxu0 0
        %1696 = vmatmul.mubr.bf16.gmra.mrb[0].mxu0 %v1568
        %v1697 = vpop.f32.mrb[0].mxu0
        %v1698 = vadd.f32 0.0, %v1697
        %v1699 = vpop.f32.mrb[0].mxu0
        %v1700 = vpop.f32.mrb[0].mxu0
        %v1701 = vadd.f32 0.0, %v1700
        %v1702 = vpop.f32.mrb[0].mxu0
        %1703 = vmatprep.mubr.bf16.mxu0 0
        %1704 = vmatmul.mubr.bf16.gmra.mrb[0].mxu0 %v1569
        %v1705 = vpop.f32.mrb[0].mxu0
        %v1706 = vadd.f32 0.0, %v1705
        %v1707 = vpop.f32.mrb[0].mxu0
        %v1708 = vpop.f32.mrb[0].mxu0
        %v1709 = vadd.f32 0.0, %v1708
        %v1710 = vpop.f32.mrb[0].mxu0
        %1711 = vdwg.mxu0
        %v1712 = vpack.c.bf16 %v1685, %v1682
        %v1713 = vpack.c.bf16 %v1693, %v1690
        %v1714 = vpack.c.bf16 %v1701, %v1698
        %v1715 = vpack.c.bf16 %v1709, %v1706
        %v1716 = vmul.f32 %v1160, %v1609
        %v1717 = vmul.f32 %v1161, %v1611
        %v1718 = vmul.f32 %v1162, %v1613
        %v1719 = vmul.f32 %v1163, %v1615
        %v1720 = vmul.f32 %v1164, %v1619
        %v1721 = vmul.f32 %v1165, %v1621
        %v1722 = vmul.f32 %v1166, %v1623
        %v1723 = vmul.f32 %v1167, %v1625
        %v1724 = vmul.f32 %v1168, %v1629
        %v1725 = vmul.f32 %v1169, %v1631
        %v1726 = vmul.f32 %v1170, %v1633
        %v1727 = vmul.f32 %v1171, %v1635
        %v1728 = vmul.f32 %v1172, %v1639
        %v1729 = vmul.f32 %v1173, %v1641
        %v1730 = vmul.f32 %v1174, %v1643
        %v1731 = vmul.f32 %v1175, %v1645
        %v1733 = vsel %vm726, %v1712, 0
        %v1736 = vsel %vm726, %v1713, 0
        %v1739 = vsel %vm726, %v1714, 0
        %v1742 = vsel %vm726, %v1715, 0
        %1744 = vmatprep.subr.bf16.mxu0 %v1177
        %1745 = vmatpush1.bf16.msra.mxu0 %v1176
        %1746 = vmatprep.subr.bf16.mxu0 %v1179
        %1747 = vmatpush1.bf16.msra.mxu0 %v1178
        %1748 = vmatprep.subr.bf16.mxu0 %v1181
        %1749 = vmatpush1.bf16.msra.mxu0 %v1180
        %1750 = vmatprep.subr.bf16.mxu0 %v1183
        %1751 = vmatpush1.bf16.msra.mxu0 %v1182
        %1752 = vmatprep.subr.bf16.mxu0 0
        %1753 = vmatpush1.bf16.msra.mxu0 0
        %1754 = vmatprep.subr.bf16.mxu0 0
        %1755 = vmatpush1.bf16.msra.mxu0 0
        %1756 = vmatprep.subr.bf16.mxu0 0
        %1757 = vmatpush1.bf16.msra.mxu0 0
        %1758 = vmatprep.subr.bf16.mxu0 0
        %1759 = vmatpush1.bf16.msra.mxu0 0
        %1760 = vmatprep.subr.bf16.mxu0 0
        %1761 = vmatpush1.bf16.msra.mxu0 0
        %1762 = vmatprep.subr.bf16.mxu0 0
        %1763 = vmatpush1.bf16.msra.mxu0 0
        %1764 = vmatprep.subr.bf16.mxu0 0
        %1765 = vmatpush1.bf16.msra.mxu0 0
        %1766 = vmatprep.subr.bf16.mxu0 0
        %1767 = vmatpush1.bf16.msra.mxu0 0
        %1768 = vmatprep.subr.bf16.mxu0 0
        %1769 = vmatpush1.bf16.msra.mxu0 0
        %1770 = vmatprep.subr.bf16.mxu0 0
        %1771 = vmatpush1.bf16.msra.mxu0 0
        %1772 = vmatprep.subr.bf16.mxu0 0
        %1773 = vmatpush1.bf16.msra.mxu0 0
        %1774 = vmatprep.subr.bf16.mxu0 0
        %1775 = vmatpush1.bf16.msra.mxu0 0
        %1776 = vmatprep.mubr.bf16.mxu0 0
        %1777 = vmatmul.mubr.bf16.gmra.mrb[0].mxu0 %v1733
        %v1778 = vpop.f32.mrb[0].mxu0
        %v1779 = vadd.f32 1e-06, %v1778
        %v1780 = vpop.f32.mrb[0].mxu0
        %v1781 = vadd.f32 1e-06, %v1780
        %v1782 = vpop.f32.mrb[0].mxu0
        %v1783 = vadd.f32 1e-06, %v1782
        %v1784 = vpop.f32.mrb[0].mxu0
        %v1785 = vadd.f32 1e-06, %v1784
        %1786 = vmatprep.mubr.bf16.mxu0 0
        %1787 = vmatmul.mubr.bf16.gmra.mrb[0].mxu0 %v1736
        %v1788 = vpop.f32.mrb[0].mxu0
        %v1789 = vadd.f32 1e-06, %v1788
        %v1790 = vpop.f32.mrb[0].mxu0
        %v1791 = vadd.f32 1e-06, %v1790
        %v1792 = vpop.f32.mrb[0].mxu0
        %v1793 = vadd.f32 1e-06, %v1792
        %v1794 = vpop.f32.mrb[0].mxu0
        %v1795 = vadd.f32 1e-06, %v1794
        %1796 = vmatprep.mubr.bf16.mxu0 0
        %1797 = vmatmul.mubr.bf16.gmra.mrb[0].mxu0 %v1739
        %v1798 = vpop.f32.mrb[0].mxu0
        %v1799 = vadd.f32 1e-06, %v1798
        %v1800 = vpop.f32.mrb[0].mxu0
        %v1801 = vadd.f32 1e-06, %v1800
        %v1802 = vpop.f32.mrb[0].mxu0
        %v1803 = vadd.f32 1e-06, %v1802
        %v1804 = vpop.f32.mrb[0].mxu0
        %v1805 = vadd.f32 1e-06, %v1804
        %1806 = vmatprep.mubr.bf16.mxu0 0
        %1807 = vmatmul.mubr.bf16.gmra.mrb[0].mxu0 %v1742
        %v1808 = vpop.f32.mrb[0].mxu0
        %v1809 = vadd.f32 1e-06, %v1808
        %v1810 = vpop.f32.mrb[0].mxu0
        %v1811 = vadd.f32 1e-06, %v1810
        %v1812 = vpop.f32.mrb[0].mxu0
        %v1813 = vadd.f32 1e-06, %v1812
        %v1814 = vpop.f32.mrb[0].mxu0
        %v1815 = vadd.f32 1e-06, %v1814
        %1816 = vdwg.mxu0
        %v1817 = vrcp.pop %v1779
        %v1818 = vrcp.pop %v1781
        %v1819 = vrcp.pop %v1783
        %v1820 = vrcp.pop %v1785
        %v1821 = vrcp.pop %v1789
        %v1822 = vrcp.pop %v1791
        %v1823 = vrcp.pop %v1793
        %v1824 = vrcp.pop %v1795
        %v1825 = vrcp.pop %v1799
        %v1826 = vrcp.pop %v1801
        %v1827 = vrcp.pop %v1803
        %v1828 = vrcp.pop %v1805
        %v1829 = vrcp.pop %v1809
        %v1830 = vrcp.pop %v1811
        %v1831 = vrcp.pop %v1813
        %v1832 = vrcp.pop %v1815
        %v1833 = vmul.f32 %v1716, %v1817
        %v1834 = vmul.f32 %v1717, %v1818
        %v1835 = vmul.f32 %v1718, %v1819
        %v1836 = vmul.f32 %v1719, %v1820
        %v1837 = vmul.f32 %v1720, %v1821
        %v1838 = vmul.f32 %v1721, %v1822
        %v1839 = vmul.f32 %v1722, %v1823
        %v1840 = vmul.f32 %v1723, %v1824
        %v1841 = vmul.f32 %v1724, %v1825
        %v1842 = vmul.f32 %v1725, %v1826
        %v1843 = vmul.f32 %v1726, %v1827
        %v1844 = vmul.f32 %v1727, %v1828
        %v1845 = vmul.f32 %v1728, %v1829
        %v1846 = vmul.f32 %v1729, %v1830
        %v1847 = vmul.f32 %v1730, %v1831
        %v1848 = vmul.f32 %v1731, %v1832
        %v1849 = vpack.c.bf16 %v1835, %v1833
        %v1850 = vpack.c.bf16 %v1836, %v1834
        %v1851 = vpack.c.bf16 %v1839, %v1837
        %v1852 = vpack.c.bf16 %v1840, %v1838
        %v1853 = vpack.c.bf16 %v1843, %v1841
        %v1854 = vpack.c.bf16 %v1844, %v1842
        %v1855 = vpack.c.bf16 %v1847, %v1845
        %v1856 = vpack.c.bf16 %v1848, %v1846
        %1857 = vst [vmem:[#allocation3 + $0x80] sm:$0xff] %v1849
        %1858 = vst [vmem:[#allocation3 + $0x88] sm:$0xff] %v1850
        %1859 = vst [vmem:[#allocation3 + $0x90] sm:$0xff] %v1851
        %1860 = vst [vmem:[#allocation3 + $0x98] sm:$0xff] %v1852
        %1861 = vst [vmem:[#allocation3 + $0xa0] sm:$0xff] %v1853
        %1862 = vst [vmem:[#allocation3 + $0xa8] sm:$0xff] %v1854
        %1863 = vst [vmem:[#allocation3 + $0xb0] sm:$0xff] %v1855
        %1864 = vst [vmem:[#allocation3 + $0xb8] sm:$0xff] %v1856
        %v1865 = vld [vmem:[#allocation3] sm:$0xff]
        %v1866 = vld [vmem:[#allocation3 + $0x8] sm:$0xff]
        %v1867 = vld [vmem:[#allocation3 + $0x10] sm:$0xff]
        %v1868 = vld [vmem:[#allocation3 + $0x18] sm:$0xff]
        %v1869 = vld [vmem:[#allocation3 + $0x20] sm:$0xff]
        %v1870 = vld [vmem:[#allocation3 + $0x28] sm:$0xff]
        %v1871 = vld [vmem:[#allocation3 + $0x30] sm:$0xff]
        %v1872 = vld [vmem:[#allocation3 + $0x38] sm:$0xff]
        %v1873 = vld [vmem:[#allocation3 + $0x40] sm:$0xff]
        %v1874 = vld [vmem:[#allocation3 + $0x48] sm:$0xff]
        %v1875 = vld [vmem:[#allocation3 + $0x50] sm:$0xff]
        %v1876 = vld [vmem:[#allocation3 + $0x58] sm:$0xff]
        %v1877 = vld [vmem:[#allocation3 + $0x60] sm:$0xff]
        %v1878 = vld [vmem:[#allocation3 + $0x68] sm:$0xff]
        %v1879 = vld [vmem:[#allocation3 + $0x70] sm:$0xff]
        %v1880 = vld [vmem:[#allocation3 + $0x78] sm:$0xff]
        %v1881 = vld [vmem:[#allocation3 + $0x80] sm:$0xff]
        %v1882 = vld [vmem:[#allocation3 + $0x88] sm:$0xff]
        %v1883 = vld [vmem:[#allocation3 + $0x90] sm:$0xff]
        %v1884 = vld [vmem:[#allocation3 + $0x98] sm:$0xff]
        %v1885 = vld [vmem:[#allocation3 + $0xa0] sm:$0xff]
        %v1886 = vld [vmem:[#allocation3 + $0xa8] sm:$0xff]
        %v1887 = vld [vmem:[#allocation3 + $0xb0] sm:$0xff]
        %v1888 = vld [vmem:[#allocation3 + $0xb8] sm:$0xff]
        %1889 = vmatprep.subr.bf16.mxu0 %v1850
        %1890 = vmatpush1.bf16.xpose.msra.mxu0 %v1849
        %1891 = vmatprep.subr.bf16.mxu0 %v1852
        %1892 = vmatpush1.bf16.xpose.msra.mxu0 %v1851
        %1893 = vmatprep.subr.bf16.mxu0 %v1854
        %1894 = vmatpush1.bf16.xpose.msra.mxu0 %v1853
        %1895 = vmatprep.subr.bf16.mxu0 %v1856
        %1896 = vmatpush1.bf16.xpose.msra.mxu0 %v1855
        %1897 = vmatprep.subr.bf16.mxu0 0
        %1898 = vmatpush1.bf16.xpose.msra.mxu0 0
        %1899 = vmatprep.subr.bf16.mxu0 0
        %1900 = vmatpush1.bf16.xpose.msra.mxu0 0
        %1901 = vmatprep.subr.bf16.mxu0 0
        %1902 = vmatpush1.bf16.xpose.msra.mxu0 0
        %1903 = vmatprep.subr.bf16.mxu0 0
        %1904 = vmatpush1.bf16.xpose.msra.mxu0 0
        %1905 = vmatprep.subr.bf16.mxu0 0
        %1906 = vmatpush1.bf16.xpose.msra.mxu0 0
        %1907 = vmatprep.subr.bf16.mxu0 0
        %1908 = vmatpush1.bf16.xpose.msra.mxu0 0
        %1909 = vmatprep.subr.bf16.mxu0 0
        %1910 = vmatpush1.bf16.xpose.msra.mxu0 0
        %1911 = vmatprep.subr.bf16.mxu0 0
        %1912 = vmatpush1.bf16.xpose.msra.mxu0 0
        %1913 = vmatprep.subr.bf16.mxu0 0
        %1914 = vmatpush1.bf16.xpose.msra.mxu0 0
        %1915 = vmatprep.subr.bf16.mxu0 0
        %1916 = vmatpush1.bf16.xpose.msra.mxu0 0
        %1917 = vmatprep.subr.bf16.mxu0 0
        %1918 = vmatpush1.bf16.xpose.msra.mxu0 0
        %1919 = vmatprep.subr.bf16.mxu0 0
        %1920 = vmatpush1.bf16.xpose.msra.mxu0 0
        %1921 = vmatprep.mubr.bf16.mxu0 %v1866
        %1922 = vmatmul.mubr.bf16.gmra.mrb[0].mxu0 %v1865
        %v1923 = vpop.f32.mrb[0].mxu0
        %v1924 = vadd.f32 0.0, %v1923
        %v1925 = vpop.f32.mrb[0].mxu0
        %v1926 = vpop.f32.mrb[0].mxu0
        %v1927 = vadd.f32 0.0, %v1926
        %v1928 = vpop.f32.mrb[0].mxu0
        %1929 = vmatprep.mubr.bf16.mxu0 %v1868
        %1930 = vmatmul.mubr.bf16.gmra.mrb[0].mxu0 %v1867
        %v1931 = vpop.f32.mrb[0].mxu0
        %v1932 = vadd.f32 0.0, %v1931
        %v1933 = vpop.f32.mrb[0].mxu0
        %v1934 = vpop.f32.mrb[0].mxu0
        %v1935 = vadd.f32 0.0, %v1934
        %v1936 = vpop.f32.mrb[0].mxu0
        %1937 = vmatprep.mubr.bf16.mxu0 %v1870
        %1938 = vmatmul.mubr.bf16.gmra.mrb[0].mxu0 %v1869
        %v1939 = vpop.f32.mrb[0].mxu0
        %v1940 = vadd.f32 0.0, %v1939
        %v1941 = vpop.f32.mrb[0].mxu0
        %v1942 = vpop.f32.mrb[0].mxu0
        %v1943 = vadd.f32 0.0, %v1942
        %v1944 = vpop.f32.mrb[0].mxu0
        %1945 = vmatprep.mubr.bf16.mxu0 %v1872
        %1946 = vmatmul.mubr.bf16.gmra.mrb[0].mxu0 %v1871
        %v1947 = vpop.f32.mrb[0].mxu0
        %v1948 = vadd.f32 0.0, %v1947
        %v1949 = vpop.f32.mrb[0].mxu0
        %v1950 = vpop.f32.mrb[0].mxu0
        %v1951 = vadd.f32 0.0, %v1950
        %v1952 = vpop.f32.mrb[0].mxu0
        %1953 = vmatprep.mubr.bf16.mxu0 %v1874
        %1954 = vmatmul.mubr.bf16.gmra.mrb[0].mxu0 %v1873
        %v1955 = vpop.f32.mrb[0].mxu0
        %v1956 = vadd.f32 0.0, %v1955
        %v1957 = vpop.f32.mrb[0].mxu0
        %v1958 = vpop.f32.mrb[0].mxu0
        %v1959 = vadd.f32 0.0, %v1958
        %v1960 = vpop.f32.mrb[0].mxu0
        %1961 = vmatprep.mubr.bf16.mxu0 %v1876
        %1962 = vmatmul.mubr.bf16.gmra.mrb[0].mxu0 %v1875
        %v1963 = vpop.f32.mrb[0].mxu0
        %v1964 = vadd.f32 0.0, %v1963
        %v1965 = vpop.f32.mrb[0].mxu0
        %v1966 = vpop.f32.mrb[0].mxu0
        %v1967 = vadd.f32 0.0, %v1966
        %v1968 = vpop.f32.mrb[0].mxu0
        %1969 = vmatprep.mubr.bf16.mxu0 %v1878
        %1970 = vmatmul.mubr.bf16.gmra.mrb[0].mxu0 %v1877
        %v1971 = vpop.f32.mrb[0].mxu0
        %v1972 = vadd.f32 0.0, %v1971
        %v1973 = vpop.f32.mrb[0].mxu0
        %v1974 = vpop.f32.mrb[0].mxu0
        %v1975 = vadd.f32 0.0, %v1974
        %v1976 = vpop.f32.mrb[0].mxu0
        %1977 = vmatprep.mubr.bf16.mxu0 %v1880
        %1978 = vmatmul.mubr.bf16.gmra.mrb[0].mxu0 %v1879
        %v1979 = vpop.f32.mrb[0].mxu0
        %v1980 = vadd.f32 0.0, %v1979
        %v1981 = vpop.f32.mrb[0].mxu0
        %v1982 = vpop.f32.mrb[0].mxu0
        %v1983 = vadd.f32 0.0, %v1982
        %v1984 = vpop.f32.mrb[0].mxu0
        %1985 = vmatprep.mubr.bf16.mxu0 %v1882
        %1986 = vmatmul.mubr.bf16.gmra.mrb[0].mxu0 %v1881
        %v1987 = vpop.f32.mrb[0].mxu0
        %v1988 = vadd.f32 0.0, %v1987
        %v1989 = vpop.f32.mrb[0].mxu0
        %v1990 = vpop.f32.mrb[0].mxu0
        %v1991 = vadd.f32 0.0, %v1990
        %v1992 = vpop.f32.mrb[0].mxu0
        %1993 = vmatprep.mubr.bf16.mxu0 %v1884
        %1994 = vmatmul.mubr.bf16.gmra.mrb[0].mxu0 %v1883
        %v1995 = vpop.f32.mrb[0].mxu0
        %v1996 = vadd.f32 0.0, %v1995
        %v1997 = vpop.f32.mrb[0].mxu0
        %v1998 = vpop.f32.mrb[0].mxu0
        %v1999 = vadd.f32 0.0, %v1998
        %v2000 = vpop.f32.mrb[0].mxu0
        %2001 = vmatprep.mubr.bf16.mxu0 %v1886
        %2002 = vmatmul.mubr.bf16.gmra.mrb[0].mxu0 %v1885
        %v2003 = vpop.f32.mrb[0].mxu0
        %v2004 = vadd.f32 0.0, %v2003
        %v2005 = vpop.f32.mrb[0].mxu0
        %v2006 = vpop.f32.mrb[0].mxu0
        %v2007 = vadd.f32 0.0, %v2006
        %v2008 = vpop.f32.mrb[0].mxu0
        %2009 = vmatprep.mubr.bf16.mxu0 %v1888
        %2010 = vmatmul.mubr.bf16.gmra.mrb[0].mxu0 %v1887
        %v2011 = vpop.f32.mrb[0].mxu0
        %v2012 = vadd.f32 0.0, %v2011
        %v2013 = vpop.f32.mrb[0].mxu0
        %v2014 = vpop.f32.mrb[0].mxu0
        %v2015 = vadd.f32 0.0, %v2014
        %v2016 = vpop.f32.mrb[0].mxu0
        %2017 = vdwg.mxu0
        %v2018 = vpack.c.bf16 %v1991, %v1988
        %v2019 = vpack.c.bf16 %v1999, %v1996
        %v2020 = vpack.c.bf16 %v2007, %v2004
        %v2021 = vpack.c.bf16 %v2015, %v2012
        %v2022 = vmul.f32 %v1502, %v1924
        %v2023 = vmul.f32 %v1503, %v1927
        %v2024 = vmul.f32 %v1504, %v1932
        %v2025 = vmul.f32 %v1505, %v1935
        %v2026 = vmul.f32 %v1506, %v1940
        %v2027 = vmul.f32 %v1507, %v1943
        %v2028 = vmul.f32 %v1508, %v1948
        %v2029 = vmul.f32 %v1509, %v1951
        %v2030 = vmul.f32 %v1510, %v1956
        %v2031 = vmul.f32 %v1511, %v1959
        %v2032 = vmul.f32 %v1512, %v1964
        %v2033 = vmul.f32 %v1513, %v1967
        %v2034 = vmul.f32 %v1514, %v1972
        %v2035 = vmul.f32 %v1515, %v1975
        %v2036 = vmul.f32 %v1516, %v1980
        %v2037 = vmul.f32 %v1517, %v1983
        %v2039 = vsel %vm726, %v1518, 0
        %v2042 = vsel %vm726, %v1519, 0
        %v2045 = vsel %vm726, %v1520, 0
        %v2048 = vsel %vm726, %v1521, 0
        %v2051 = vsel %vm726, %v1522, 0
        %v2054 = vsel %vm726, %v1523, 0
        %v2057 = vsel %vm726, %v1524, 0
        %v2060 = vsel %vm726, %v1525, 0
        %2062 = vmatprep.subr.bf16.mxu0 0
        %2063 = vmatpush1.bf16.msra.mxu0 %v2018
        %2064 = vmatprep.subr.bf16.mxu0 0
        %2065 = vmatpush1.bf16.msra.mxu0 %v2019
        %2066 = vmatprep.subr.bf16.mxu0 0
        %2067 = vmatpush1.bf16.msra.mxu0 %v2020
        %2068 = vmatprep.subr.bf16.mxu0 0
        %2069 = vmatpush1.bf16.msra.mxu0 %v2021
        %2070 = vmatprep.subr.bf16.mxu0 0
        %2071 = vmatpush1.bf16.msra.mxu0 0
        %2072 = vmatprep.subr.bf16.mxu0 0
        %2073 = vmatpush1.bf16.msra.mxu0 0
        %2074 = vmatprep.subr.bf16.mxu0 0
        %2075 = vmatpush1.bf16.msra.mxu0 0
        %2076 = vmatprep.subr.bf16.mxu0 0
        %2077 = vmatpush1.bf16.msra.mxu0 0
        %2078 = vmatprep.subr.bf16.mxu0 0
        %2079 = vmatpush1.bf16.msra.mxu0 0
        %2080 = vmatprep.subr.bf16.mxu0 0
        %2081 = vmatpush1.bf16.msra.mxu0 0
        %2082 = vmatprep.subr.bf16.mxu0 0
        %2083 = vmatpush1.bf16.msra.mxu0 0
        %2084 = vmatprep.subr.bf16.mxu0 0
        %2085 = vmatpush1.bf16.msra.mxu0 0
        %2086 = vmatprep.subr.bf16.mxu0 0
        %2087 = vmatpush1.bf16.msra.mxu0 0
        %2088 = vmatprep.subr.bf16.mxu0 0
        %2089 = vmatpush1.bf16.msra.mxu0 0
        %2090 = vmatprep.subr.bf16.mxu0 0
        %2091 = vmatpush1.bf16.msra.mxu0 0
        %2092 = vmatprep.subr.bf16.mxu0 0
        %2093 = vmatpush1.bf16.msra.mxu0 0
        %2094 = vmatprep.mubr.bf16.mxu0 0
        %2095 = vmatmul.mubr.bf16.gmra.mrb[0].mxu0 %v2039
        %v2096 = vpop.f32.mrb[0].mxu0
        %v2097 = vadd.f32 1e-06, %v2096
        %v2098 = vpop.f32.mrb[0].mxu0
        %v2099 = vpop.f32.mrb[0].mxu0
        %v2100 = vadd.f32 1e-06, %v2099
        %v2101 = vpop.f32.mrb[0].mxu0
        %2102 = vmatprep.mubr.bf16.mxu0 0
        %2103 = vmatmul.mubr.bf16.gmra.mrb[0].mxu0 %v2042
        %v2104 = vpop.f32.mrb[0].mxu0
        %v2105 = vadd.f32 1e-06, %v2104
        %v2106 = vpop.f32.mrb[0].mxu0
        %v2107 = vpop.f32.mrb[0].mxu0
        %v2108 = vadd.f32 1e-06, %v2107
        %v2109 = vpop.f32.mrb[0].mxu0
        %2110 = vmatprep.mubr.bf16.mxu0 0
        %2111 = vmatmul.mubr.bf16.gmra.mrb[0].mxu0 %v2045
        %v2112 = vpop.f32.mrb[0].mxu0
        %v2113 = vadd.f32 1e-06, %v2112
        %v2114 = vpop.f32.mrb[0].mxu0
        %v2115 = vpop.f32.mrb[0].mxu0
        %v2116 = vadd.f32 1e-06, %v2115
        %v2117 = vpop.f32.mrb[0].mxu0
        %2118 = vmatprep.mubr.bf16.mxu0 0
        %2119 = vmatmul.mubr.bf16.gmra.mrb[0].mxu0 %v2048
        %v2120 = vpop.f32.mrb[0].mxu0
        %v2121 = vadd.f32 1e-06, %v2120
        %v2122 = vpop.f32.mrb[0].mxu0
        %v2123 = vpop.f32.mrb[0].mxu0
        %v2124 = vadd.f32 1e-06, %v2123
        %v2125 = vpop.f32.mrb[0].mxu0
        %2126 = vmatprep.mubr.bf16.mxu0 0
        %2127 = vmatmul.mubr.bf16.gmra.mrb[0].mxu0 %v2051
        %v2128 = vpop.f32.mrb[0].mxu0
        %v2129 = vadd.f32 1e-06, %v2128
        %v2130 = vpop.f32.mrb[0].mxu0
        %v2131 = vpop.f32.mrb[0].mxu0
        %v2132 = vadd.f32 1e-06, %v2131
        %v2133 = vpop.f32.mrb[0].mxu0
        %2134 = vmatprep.mubr.bf16.mxu0 0
        %2135 = vmatmul.mubr.bf16.gmra.mrb[0].mxu0 %v2054
        %v2136 = vpop.f32.mrb[0].mxu0
        %v2137 = vadd.f32 1e-06, %v2136
        %v2138 = vpop.f32.mrb[0].mxu0
        %v2139 = vpop.f32.mrb[0].mxu0
        %v2140 = vadd.f32 1e-06, %v2139
        %v2141 = vpop.f32.mrb[0].mxu0
        %2142 = vmatprep.mubr.bf16.mxu0 0
        %2143 = vmatmul.mubr.bf16.gmra.mrb[0].mxu0 %v2057
        %v2144 = vpop.f32.mrb[0].mxu0
        %v2145 = vadd.f32 1e-06, %v2144
        %v2146 = vpop.f32.mrb[0].mxu0
        %v2147 = vpop.f32.mrb[0].mxu0
        %v2148 = vadd.f32 1e-06, %v2147
        %v2149 = vpop.f32.mrb[0].mxu0
        %2150 = vmatprep.mubr.bf16.mxu0 0
        %2151 = vmatmul.mubr.bf16.gmra.mrb[0].mxu0 %v2060
        %v2152 = vpop.f32.mrb[0].mxu0
        %v2153 = vadd.f32 1e-06, %v2152
        %v2154 = vpop.f32.mrb[0].mxu0
        %v2155 = vpop.f32.mrb[0].mxu0
        %v2156 = vadd.f32 1e-06, %v2155
        %v2157 = vpop.f32.mrb[0].mxu0
        %2158 = vdwg.mxu0
        %v2159 = vrcp.pop %v2097
        %v2160 = vrcp.pop %v2100
        %v2161 = vrcp.pop %v2105
        %v2162 = vrcp.pop %v2108
        %v2163 = vrcp.pop %v2113
        %v2164 = vrcp.pop %v2116
        %v2165 = vrcp.pop %v2121
        %v2166 = vrcp.pop %v2124
        %v2167 = vrcp.pop %v2129
        %v2168 = vrcp.pop %v2132
        %v2169 = vrcp.pop %v2137
        %v2170 = vrcp.pop %v2140
        %v2171 = vrcp.pop %v2145
        %v2172 = vrcp.pop %v2148
        %v2173 = vrcp.pop %v2153
        %v2174 = vrcp.pop %v2156
        %v2175 = vmul.f32 %v2022, %v2159
        %v2176 = vmul.f32 %v2023, %v2160
        %v2177 = vmul.f32 %v2024, %v2161
        %v2178 = vmul.f32 %v2025, %v2162
        %v2179 = vmul.f32 %v2026, %v2163
        %v2180 = vmul.f32 %v2027, %v2164
        %v2181 = vmul.f32 %v2028, %v2165
        %v2182 = vmul.f32 %v2029, %v2166
        %v2183 = vmul.f32 %v2030, %v2167
        %v2184 = vmul.f32 %v2031, %v2168
        %v2185 = vmul.f32 %v2032, %v2169
        %v2186 = vmul.f32 %v2033, %v2170
        %v2187 = vmul.f32 %v2034, %v2171
        %v2188 = vmul.f32 %v2035, %v2172
        %v2189 = vmul.f32 %v2036, %v2173
        %v2190 = vmul.f32 %v2037, %v2174
        %v2191 = vpack.c.bf16 %v2176, %v2175
        %v2192 = vpack.c.bf16 %v2178, %v2177
        %v2193 = vpack.c.bf16 %v2180, %v2179
        %v2194 = vpack.c.bf16 %v2182, %v2181
        %v2195 = vpack.c.bf16 %v2184, %v2183
        %v2196 = vpack.c.bf16 %v2186, %v2185
        %v2197 = vpack.c.bf16 %v2188, %v2187
        %v2198 = vpack.c.bf16 %v2190, %v2189
        %2199 = vst.msk [vmem:[#allocation2 + $0x10] sm:$0xff] %vm726, %v2191
        %2200 = vst.msk [vmem:[#allocation2 + $0x28] sm:$0xff] %vm726, %v2192
        %2201 = vst.msk [vmem:[#allocation2 + $0x40] sm:$0xff] %vm726, %v2193
        %2202 = vst.msk [vmem:[#allocation2 + $0x58] sm:$0xff] %vm726, %v2194
        %2203 = vst.msk [vmem:[#allocation2 + $0x70] sm:$0xff] %vm726, %v2195
        %2204 = vst.msk [vmem:[#allocation2 + $0x88] sm:$0xff] %vm726, %v2196
        %2205 = vst.msk [vmem:[#allocation2 + $0xa0] sm:$0xff] %vm726, %v2197
        %2206 = vst.msk [vmem:[#allocation2 + $0xb8] sm:$0xff] %vm726, %v2198
        %v2207 = vld [vmem:[#allocation2] sm:$0xff]
        %v2208 = vld [vmem:[#allocation2 + $0x8] sm:$0xff]
        %v2209 = vld [vmem:[#allocation2 + $0x10] sm:$0xff]
        %v2210 = vld [vmem:[#allocation2 + $0x18] sm:$0xff]
        %v2211 = vld [vmem:[#allocation2 + $0x20] sm:$0xff]
        %v2212 = vld [vmem:[#allocation2 + $0x28] sm:$0xff]
        %v2213 = vld [vmem:[#allocation2 + $0x30] sm:$0xff]
        %v2214 = vld [vmem:[#allocation2 + $0x38] sm:$0xff]
        %v2215 = vld [vmem:[#allocation2 + $0x40] sm:$0xff]
        %v2216 = vld [vmem:[#allocation2 + $0x48] sm:$0xff]
        %v2217 = vld [vmem:[#allocation2 + $0x50] sm:$0xff]
        %v2218 = vld [vmem:[#allocation2 + $0x58] sm:$0xff]
        %v2219 = vld [vmem:[#allocation2 + $0x60] sm:$0xff]
        %v2220 = vld [vmem:[#allocation2 + $0x68] sm:$0xff]
        %v2221 = vld [vmem:[#allocation2 + $0x70] sm:$0xff]
        %v2222 = vld [vmem:[#allocation2 + $0x78] sm:$0xff]
        %v2223 = vld [vmem:[#allocation2 + $0x80] sm:$0xff]
        %v2224 = vld [vmem:[#allocation2 + $0x88] sm:$0xff]
        %v2225 = vld [vmem:[#allocation2 + $0x90] sm:$0xff]
        %v2226 = vld [vmem:[#allocation2 + $0x98] sm:$0xff]
        %v2227 = vld [vmem:[#allocation2 + $0xa0] sm:$0xff]
        %v2228 = vld [vmem:[#allocation2 + $0xa8] sm:$0xff]
        %v2229 = vld [vmem:[#allocation2 + $0xb0] sm:$0xff]
        %v2230 = vld [vmem:[#allocation2 + $0xb8] sm:$0xff]
        %2231 = vxpose.xlu0.c.b16.start [1/8] %v2191, 128
        %2232 = vxpose.xlu0.c.b16.cont [2/8] %v2192, 128
        %2233 = vxpose.xlu0.c.b16.cont [3/8] %v2193, 128
        %2234 = vxpose.xlu0.c.b16.cont [4/8] %v2194, 128
        %2235 = vxpose.xlu0.c.b16.cont [5/8] %v2195, 128
        %2236 = vxpose.xlu0.c.b16.cont [6/8] %v2196, 128
        %2237 = vxpose.xlu0.c.b16.cont [7/8] %v2197, 128
        %2238 = vxpose.xlu0.c.b16.end [8/8] %v2198, 128
        %v2239 = vpop.trf.xlu0
        %v2240 = vpop.trf.xlu0
        %v2241 = vpop.trf.xlu0
        %v2242 = vpop.trf.xlu0
        %v2243 = vpop.trf.xlu0
        %v2244 = vpop.trf.xlu0
        %v2245 = vpop.trf.xlu0
        %v2246 = vpop.trf.xlu0
        %2247 = vmatprep.subr.bf16.mxu0 %v2208
        %2248 = vmatpush1.bf16.msra.mxu0 %v2207
        %2249 = vmatprep.subr.bf16.mxu0 %v2211
        %2250 = vmatpush1.bf16.msra.mxu0 %v2210
        %2251 = vmatprep.subr.bf16.mxu0 %v2214
        %2252 = vmatpush1.bf16.msra.mxu0 %v2213
        %2253 = vmatprep.subr.bf16.mxu0 %v2217
        %2254 = vmatpush1.bf16.msra.mxu0 %v2216
        %2255 = vmatprep.subr.bf16.mxu0 %v2220
        %2256 = vmatpush1.bf16.msra.mxu0 %v2219
        %2257 = vmatprep.subr.bf16.mxu0 %v2223
        %2258 = vmatpush1.bf16.msra.mxu0 %v2222
        %2259 = vmatprep.subr.bf16.mxu0 %v2226
        %2260 = vmatpush1.bf16.msra.mxu0 %v2225
        %2261 = vmatprep.subr.bf16.mxu0 %v2229
        %2262 = vmatpush1.bf16.msra.mxu0 %v2228
        %2263 = vmatprep.subr.bf16.mxu0 0
        %2264 = vmatpush1.bf16.msra.mxu0 0
        %2265 = vmatprep.subr.bf16.mxu0 0
        %2266 = vmatpush1.bf16.msra.mxu0 0
        %2267 = vmatprep.subr.bf16.mxu0 0
        %2268 = vmatpush1.bf16.msra.mxu0 0
        %2269 = vmatprep.subr.bf16.mxu0 0
        %2270 = vmatpush1.bf16.msra.mxu0 0
        %2271 = vmatprep.subr.bf16.mxu0 0
        %2272 = vmatpush1.bf16.msra.mxu0 0
        %2273 = vmatprep.subr.bf16.mxu0 0
        %2274 = vmatpush1.bf16.msra.mxu0 0
        %2275 = vmatprep.subr.bf16.mxu0 0
        %2276 = vmatpush1.bf16.msra.mxu0 0
        %2277 = vmatprep.subr.bf16.mxu0 0
        %2278 = vmatpush1.bf16.msra.mxu0 0
        %2279 = vmatprep.mubr.bf16.mxu0 0
        %2280 = vmatmul.mubr.bf16.gmra.mrb[0].mxu0 %v2239
        %v2281 = vpop.f32.mrb[0].mxu0
        %v2282 = vadd.f32 0.0, %v2281
        %v2283 = vpop.f32.mrb[0].mxu0
        %v2284 = vadd.f32 0.0, %v2283
        %v2285 = vpop.f32.mrb[0].mxu0
        %v2286 = vadd.f32 0.0, %v2285
        %v2287 = vpop.f32.mrb[0].mxu0
        %v2288 = vadd.f32 0.0, %v2287
        %2289 = vmatprep.mubr.bf16.mxu0 0
        %2290 = vmatmul.mubr.bf16.gmra.mrb[0].mxu0 %v2240
        %v2291 = vpop.f32.mrb[0].mxu0
        %v2292 = vadd.f32 0.0, %v2291
        %v2293 = vpop.f32.mrb[0].mxu0
        %v2294 = vadd.f32 0.0, %v2293
        %v2295 = vpop.f32.mrb[0].mxu0
        %v2296 = vadd.f32 0.0, %v2295
        %v2297 = vpop.f32.mrb[0].mxu0
        %v2298 = vadd.f32 0.0, %v2297
        %2299 = vmatprep.mubr.bf16.mxu0 0
        %2300 = vmatmul.mubr.bf16.gmra.mrb[0].mxu0 %v2241
        %v2301 = vpop.f32.mrb[0].mxu0
        %v2302 = vadd.f32 0.0, %v2301
        %v2303 = vpop.f32.mrb[0].mxu0
        %v2304 = vadd.f32 0.0, %v2303
        %v2305 = vpop.f32.mrb[0].mxu0
        %v2306 = vadd.f32 0.0, %v2305
        %v2307 = vpop.f32.mrb[0].mxu0
        %v2308 = vadd.f32 0.0, %v2307
        %2309 = vmatprep.mubr.bf16.mxu0 0
        %2310 = vmatmul.mubr.bf16.gmra.mrb[0].mxu0 %v2242
        %v2311 = vpop.f32.mrb[0].mxu0
        %v2312 = vadd.f32 0.0, %v2311
        %v2313 = vpop.f32.mrb[0].mxu0
        %v2314 = vadd.f32 0.0, %v2313
        %v2315 = vpop.f32.mrb[0].mxu0
        %v2316 = vadd.f32 0.0, %v2315
        %v2317 = vpop.f32.mrb[0].mxu0
        %v2318 = vadd.f32 0.0, %v2317
        %2319 = vdwg.mxu0
        %2320 = vmatprep.subr.bf16.mxu0 0
        %2321 = vmatpush1.bf16.msra.mxu0 %v2209
        %2322 = vmatprep.subr.bf16.mxu0 0
        %2323 = vmatpush1.bf16.msra.mxu0 %v2212
        %2324 = vmatprep.subr.bf16.mxu0 0
        %2325 = vmatpush1.bf16.msra.mxu0 %v2215
        %2326 = vmatprep.subr.bf16.mxu0 0
        %2327 = vmatpush1.bf16.msra.mxu0 %v2218
        %2328 = vmatprep.subr.bf16.mxu0 0
        %2329 = vmatpush1.bf16.msra.mxu0 %v2221
        %2330 = vmatprep.subr.bf16.mxu0 0
        %2331 = vmatpush1.bf16.msra.mxu0 %v2224
        %2332 = vmatprep.subr.bf16.mxu0 0
        %2333 = vmatpush1.bf16.msra.mxu0 %v2227
        %2334 = vmatprep.subr.bf16.mxu0 0
        %2335 = vmatpush1.bf16.msra.mxu0 %v2230
        %2336 = vmatprep.subr.bf16.mxu0 0
        %2337 = vmatpush1.bf16.msra.mxu0 0
        %2338 = vmatprep.subr.bf16.mxu0 0
        %2339 = vmatpush1.bf16.msra.mxu0 0
        %2340 = vmatprep.subr.bf16.mxu0 0
        %2341 = vmatpush1.bf16.msra.mxu0 0
        %2342 = vmatprep.subr.bf16.mxu0 0
        %2343 = vmatpush1.bf16.msra.mxu0 0
        %2344 = vmatprep.subr.bf16.mxu0 0
        %2345 = vmatpush1.bf16.msra.mxu0 0
        %2346 = vmatprep.subr.bf16.mxu0 0
        %2347 = vmatpush1.bf16.msra.mxu0 0
        %2348 = vmatprep.subr.bf16.mxu0 0
        %2349 = vmatpush1.bf16.msra.mxu0 0
        %2350 = vmatprep.subr.bf16.mxu0 0
        %2351 = vmatpush1.bf16.msra.mxu0 0
        %2352 = vmatprep.mubr.bf16.mxu0 0
        %2353 = vmatmul.mubr.bf16.gmra.mrb[0].mxu0 %v2239
        %v2354 = vpop.f32.mrb[0].mxu0
        %v2355 = vadd.f32 0.0, %v2354
        %v2356 = vpop.f32.mrb[0].mxu0
        %v2357 = vpop.f32.mrb[0].mxu0
        %v2358 = vadd.f32 0.0, %v2357
        %v2359 = vpop.f32.mrb[0].mxu0
        %2360 = vmatprep.mubr.bf16.mxu0 0
        %2361 = vmatmul.mubr.bf16.gmra.mrb[0].mxu0 %v2240
        %v2362 = vpop.f32.mrb[0].mxu0
        %v2363 = vadd.f32 0.0, %v2362
        %v2364 = vpop.f32.mrb[0].mxu0
        %v2365 = vpop.f32.mrb[0].mxu0
        %v2366 = vadd.f32 0.0, %v2365
        %v2367 = vpop.f32.mrb[0].mxu0
        %2368 = vmatprep.mubr.bf16.mxu0 0
        %2369 = vmatmul.mubr.bf16.gmra.mrb[0].mxu0 %v2241
        %v2370 = vpop.f32.mrb[0].mxu0
        %v2371 = vadd.f32 0.0, %v2370
        %v2372 = vpop.f32.mrb[0].mxu0
        %v2373 = vpop.f32.mrb[0].mxu0
        %v2374 = vadd.f32 0.0, %v2373
        %v2375 = vpop.f32.mrb[0].mxu0
        %2376 = vmatprep.mubr.bf16.mxu0 0
        %2377 = vmatmul.mubr.bf16.gmra.mrb[0].mxu0 %v2242
        %v2378 = vpop.f32.mrb[0].mxu0
        %v2379 = vadd.f32 0.0, %v2378
        %v2380 = vpop.f32.mrb[0].mxu0
        %v2381 = vpop.f32.mrb[0].mxu0
        %v2382 = vadd.f32 0.0, %v2381
        %v2383 = vpop.f32.mrb[0].mxu0
        %2384 = vdwg.mxu0
        %v2385 = vpack.c.bf16 %v2358, %v2355
        %v2386 = vpack.c.bf16 %v2366, %v2363
        %v2387 = vpack.c.bf16 %v2374, %v2371
        %v2388 = vpack.c.bf16 %v2382, %v2379
        %v2389 = vmul.f32 %v1833, %v2282
        %v2390 = vmul.f32 %v1834, %v2284
        %v2391 = vmul.f32 %v1835, %v2286
        %v2392 = vmul.f32 %v1836, %v2288
        %v2393 = vmul.f32 %v1837, %v2292
        %v2394 = vmul.f32 %v1838, %v2294
        %v2395 = vmul.f32 %v1839, %v2296
        %v2396 = vmul.f32 %v1840, %v2298
        %v2397 = vmul.f32 %v1841, %v2302
        %v2398 = vmul.f32 %v1842, %v2304
        %v2399 = vmul.f32 %v1843, %v2306
        %v2400 = vmul.f32 %v1844, %v2308
        %v2401 = vmul.f32 %v1845, %v2312
        %v2402 = vmul.f32 %v1846, %v2314
        %v2403 = vmul.f32 %v1847, %v2316
        %v2404 = vmul.f32 %v1848, %v2318
        %v2406 = vsel %vm726, %v2385, 0
        %v2409 = vsel %vm726, %v2386, 0
        %v2412 = vsel %vm726, %v2387, 0
        %v2415 = vsel %vm726, %v2388, 0
        %2417 = vmatprep.subr.bf16.mxu0 %v1850
        %2418 = vmatpush1.bf16.msra.mxu0 %v1849
        %2419 = vmatprep.subr.bf16.mxu0 %v1852
        %2420 = vmatpush1.bf16.msra.mxu0 %v1851
        %2421 = vmatprep.subr.bf16.mxu0 %v1854
        %2422 = vmatpush1.bf16.msra.mxu0 %v1853
        %2423 = vmatprep.subr.bf16.mxu0 %v1856
        %2424 = vmatpush1.bf16.msra.mxu0 %v1855
        %2425 = vmatprep.subr.bf16.mxu0 0
        %2426 = vmatpush1.bf16.msra.mxu0 0
        %2427 = vmatprep.subr.bf16.mxu0 0
        %2428 = vmatpush1.bf16.msra.mxu0 0
        %2429 = vmatprep.subr.bf16.mxu0 0
        %2430 = vmatpush1.bf16.msra.mxu0 0
        %2431 = vmatprep.subr.bf16.mxu0 0
        %2432 = vmatpush1.bf16.msra.mxu0 0
        %2433 = vmatprep.subr.bf16.mxu0 0
        %2434 = vmatpush1.bf16.msra.mxu0 0
        %2435 = vmatprep.subr.bf16.mxu0 0
        %2436 = vmatpush1.bf16.msra.mxu0 0
        %2437 = vmatprep.subr.bf16.mxu0 0
        %2438 = vmatpush1.bf16.msra.mxu0 0
        %2439 = vmatprep.subr.bf16.mxu0 0
        %2440 = vmatpush1.bf16.msra.mxu0 0
        %2441 = vmatprep.subr.bf16.mxu0 0
        %2442 = vmatpush1.bf16.msra.mxu0 0
        %2443 = vmatprep.subr.bf16.mxu0 0
        %2444 = vmatpush1.bf16.msra.mxu0 0
        %2445 = vmatprep.subr.bf16.mxu0 0
        %2446 = vmatpush1.bf16.msra.mxu0 0
        %2447 = vmatprep.subr.bf16.mxu0 0
        %2448 = vmatpush1.bf16.msra.mxu0 0
        %2449 = vmatprep.mubr.bf16.mxu0 0
        %2450 = vmatmul.mubr.bf16.gmra.mrb[0].mxu0 %v2406
        %v2451 = vpop.f32.mrb[0].mxu0
        %v2452 = vadd.f32 1e-06, %v2451
        %v2453 = vpop.f32.mrb[0].mxu0
        %v2454 = vadd.f32 1e-06, %v2453
        %v2455 = vpop.f32.mrb[0].mxu0
        %v2456 = vadd.f32 1e-06, %v2455
        %v2457 = vpop.f32.mrb[0].mxu0
        %v2458 = vadd.f32 1e-06, %v2457
        %2459 = vmatprep.mubr.bf16.mxu0 0
        %2460 = vmatmul.mubr.bf16.gmra.mrb[0].mxu0 %v2409
        %v2461 = vpop.f32.mrb[0].mxu0
        %v2462 = vadd.f32 1e-06, %v2461
        %v2463 = vpop.f32.mrb[0].mxu0
        %v2464 = vadd.f32 1e-06, %v2463
        %v2465 = vpop.f32.mrb[0].mxu0
        %v2466 = vadd.f32 1e-06, %v2465
        %v2467 = vpop.f32.mrb[0].mxu0
        %v2468 = vadd.f32 1e-06, %v2467
        %2469 = vmatprep.mubr.bf16.mxu0 0
        %2470 = vmatmul.mubr.bf16.gmra.mrb[0].mxu0 %v2412
        %v2471 = vpop.f32.mrb[0].mxu0
        %v2472 = vadd.f32 1e-06, %v2471
        %v2473 = vpop.f32.mrb[0].mxu0
        %v2474 = vadd.f32 1e-06, %v2473
        %v2475 = vpop.f32.mrb[0].mxu0
        %v2476 = vadd.f32 1e-06, %v2475
        %v2477 = vpop.f32.mrb[0].mxu0
        %v2478 = vadd.f32 1e-06, %v2477
        %2479 = vmatprep.mubr.bf16.mxu0 0
        %2480 = vmatmul.mubr.bf16.gmra.mrb[0].mxu0 %v2415
        %v2481 = vpop.f32.mrb[0].mxu0
        %v2482 = vadd.f32 1e-06, %v2481
        %v2483 = vpop.f32.mrb[0].mxu0
        %v2484 = vadd.f32 1e-06, %v2483
        %v2485 = vpop.f32.mrb[0].mxu0
        %v2486 = vadd.f32 1e-06, %v2485
        %v2487 = vpop.f32.mrb[0].mxu0
        %v2488 = vadd.f32 1e-06, %v2487
        %2489 = vdwg.mxu0
        %v2490 = vrcp.pop %v2452
        %v2491 = vrcp.pop %v2454
        %v2492 = vrcp.pop %v2456
        %v2493 = vrcp.pop %v2458
        %v2494 = vrcp.pop %v2462
        %v2495 = vrcp.pop %v2464
        %v2496 = vrcp.pop %v2466
        %v2497 = vrcp.pop %v2468
        %v2498 = vrcp.pop %v2472
        %v2499 = vrcp.pop %v2474
        %v2500 = vrcp.pop %v2476
        %v2501 = vrcp.pop %v2478
        %v2502 = vrcp.pop %v2482
        %v2503 = vrcp.pop %v2484
        %v2504 = vrcp.pop %v2486
        %v2505 = vrcp.pop %v2488
        %v2506 = vmul.f32 %v2389, %v2490
        %v2507 = vmul.f32 %v2390, %v2491
        %v2508 = vmul.f32 %v2391, %v2492
        %v2509 = vmul.f32 %v2392, %v2493
        %v2510 = vmul.f32 %v2393, %v2494
        %v2511 = vmul.f32 %v2394, %v2495
        %v2512 = vmul.f32 %v2395, %v2496
        %v2513 = vmul.f32 %v2396, %v2497
        %v2514 = vmul.f32 %v2397, %v2498
        %v2515 = vmul.f32 %v2398, %v2499
        %v2516 = vmul.f32 %v2399, %v2500
        %v2517 = vmul.f32 %v2400, %v2501
        %v2518 = vmul.f32 %v2401, %v2502
        %v2519 = vmul.f32 %v2402, %v2503
        %v2520 = vmul.f32 %v2403, %v2504
        %v2521 = vmul.f32 %v2404, %v2505
        %v2522 = vpack.c.bf16 %v2508, %v2506
        %v2523 = vpack.c.bf16 %v2509, %v2507
        %v2524 = vpack.c.bf16 %v2512, %v2510
        %v2525 = vpack.c.bf16 %v2513, %v2511
        %v2526 = vpack.c.bf16 %v2516, %v2514
        %v2527 = vpack.c.bf16 %v2517, %v2515
        %v2528 = vpack.c.bf16 %v2520, %v2518
        %v2529 = vpack.c.bf16 %v2521, %v2519
        %2530 = vst [vmem:[#allocation3 + $0x80] sm:$0xff] %v2522
        %2531 = vst [vmem:[#allocation3 + $0x88] sm:$0xff] %v2523
        %2532 = vst [vmem:[#allocation3 + $0x90] sm:$0xff] %v2524
        %2533 = vst [vmem:[#allocation3 + $0x98] sm:$0xff] %v2525
        %2534 = vst [vmem:[#allocation3 + $0xa0] sm:$0xff] %v2526
        %2535 = vst [vmem:[#allocation3 + $0xa8] sm:$0xff] %v2527
        %2536 = vst [vmem:[#allocation3 + $0xb0] sm:$0xff] %v2528
        %2537 = vst [vmem:[#allocation3 + $0xb8] sm:$0xff] %v2529
        %v2538 = vld [vmem:[#allocation3] sm:$0xff]
        %v2539 = vld [vmem:[#allocation3 + $0x8] sm:$0xff]
        %v2540 = vld [vmem:[#allocation3 + $0x10] sm:$0xff]
        %v2541 = vld [vmem:[#allocation3 + $0x18] sm:$0xff]
        %v2542 = vld [vmem:[#allocation3 + $0x20] sm:$0xff]
        %v2543 = vld [vmem:[#allocation3 + $0x28] sm:$0xff]
        %v2544 = vld [vmem:[#allocation3 + $0x30] sm:$0xff]
        %v2545 = vld [vmem:[#allocation3 + $0x38] sm:$0xff]
        %v2546 = vld [vmem:[#allocation3 + $0x40] sm:$0xff]
        %v2547 = vld [vmem:[#allocation3 + $0x48] sm:$0xff]
        %v2548 = vld [vmem:[#allocation3 + $0x50] sm:$0xff]
        %v2549 = vld [vmem:[#allocation3 + $0x58] sm:$0xff]
        %v2550 = vld [vmem:[#allocation3 + $0x60] sm:$0xff]
        %v2551 = vld [vmem:[#allocation3 + $0x68] sm:$0xff]
        %v2552 = vld [vmem:[#allocation3 + $0x70] sm:$0xff]
        %v2553 = vld [vmem:[#allocation3 + $0x78] sm:$0xff]
        %v2554 = vld [vmem:[#allocation3 + $0x80] sm:$0xff]
        %v2555 = vld [vmem:[#allocation3 + $0x88] sm:$0xff]
        %v2556 = vld [vmem:[#allocation3 + $0x90] sm:$0xff]
        %v2557 = vld [vmem:[#allocation3 + $0x98] sm:$0xff]
        %v2558 = vld [vmem:[#allocation3 + $0xa0] sm:$0xff]
        %v2559 = vld [vmem:[#allocation3 + $0xa8] sm:$0xff]
        %v2560 = vld [vmem:[#allocation3 + $0xb0] sm:$0xff]
        %v2561 = vld [vmem:[#allocation3 + $0xb8] sm:$0xff]
        %2562 = vmatprep.subr.bf16.mxu0 %v2523
        %2563 = vmatpush1.bf16.xpose.msra.mxu0 %v2522
        %2564 = vmatprep.subr.bf16.mxu0 %v2525
        %2565 = vmatpush1.bf16.xpose.msra.mxu0 %v2524
        %2566 = vmatprep.subr.bf16.mxu0 %v2527
        %2567 = vmatpush1.bf16.xpose.msra.mxu0 %v2526
        %2568 = vmatprep.subr.bf16.mxu0 %v2529
        %2569 = vmatpush1.bf16.xpose.msra.mxu0 %v2528
        %2570 = vmatprep.subr.bf16.mxu0 0
        %2571 = vmatpush1.bf16.xpose.msra.mxu0 0
        %2572 = vmatprep.subr.bf16.mxu0 0
        %2573 = vmatpush1.bf16.xpose.msra.mxu0 0
        %2574 = vmatprep.subr.bf16.mxu0 0
        %2575 = vmatpush1.bf16.xpose.msra.mxu0 0
        %2576 = vmatprep.subr.bf16.mxu0 0
        %2577 = vmatpush1.bf16.xpose.msra.mxu0 0
        %2578 = vmatprep.subr.bf16.mxu0 0
        %2579 = vmatpush1.bf16.xpose.msra.mxu0 0
        %2580 = vmatprep.subr.bf16.mxu0 0
        %2581 = vmatpush1.bf16.xpose.msra.mxu0 0
        %2582 = vmatprep.subr.bf16.mxu0 0
        %2583 = vmatpush1.bf16.xpose.msra.mxu0 0
        %2584 = vmatprep.subr.bf16.mxu0 0
        %2585 = vmatpush1.bf16.xpose.msra.mxu0 0
        %2586 = vmatprep.subr.bf16.mxu0 0
        %2587 = vmatpush1.bf16.xpose.msra.mxu0 0
        %2588 = vmatprep.subr.bf16.mxu0 0
        %2589 = vmatpush1.bf16.xpose.msra.mxu0 0
        %2590 = vmatprep.subr.bf16.mxu0 0
        %2591 = vmatpush1.bf16.xpose.msra.mxu0 0
        %2592 = vmatprep.subr.bf16.mxu0 0
        %2593 = vmatpush1.bf16.xpose.msra.mxu0 0
        %2594 = vmatprep.mubr.bf16.mxu0 %v2539
        %2595 = vmatmul.mubr.bf16.gmra.mrb[0].mxu0 %v2538
        %v2596 = vpop.f32.mrb[0].mxu0
        %v2597 = vadd.f32 0.0, %v2596
        %v2598 = vpop.f32.mrb[0].mxu0
        %v2599 = vpop.f32.mrb[0].mxu0
        %v2600 = vadd.f32 0.0, %v2599
        %v2601 = vpop.f32.mrb[0].mxu0
        %2602 = vmatprep.mubr.bf16.mxu0 %v2541
        %2603 = vmatmul.mubr.bf16.gmra.mrb[0].mxu0 %v2540
        %v2604 = vpop.f32.mrb[0].mxu0
        %v2605 = vadd.f32 0.0, %v2604
        %v2606 = vpop.f32.mrb[0].mxu0
        %v2607 = vpop.f32.mrb[0].mxu0
        %v2608 = vadd.f32 0.0, %v2607
        %v2609 = vpop.f32.mrb[0].mxu0
        %2610 = vmatprep.mubr.bf16.mxu0 %v2543
        %2611 = vmatmul.mubr.bf16.gmra.mrb[0].mxu0 %v2542
        %v2612 = vpop.f32.mrb[0].mxu0
        %v2613 = vadd.f32 0.0, %v2612
        %v2614 = vpop.f32.mrb[0].mxu0
        %v2615 = vpop.f32.mrb[0].mxu0
        %v2616 = vadd.f32 0.0, %v2615
        %v2617 = vpop.f32.mrb[0].mxu0
        %2618 = vmatprep.mubr.bf16.mxu0 %v2545
        %2619 = vmatmul.mubr.bf16.gmra.mrb[0].mxu0 %v2544
        %v2620 = vpop.f32.mrb[0].mxu0
        %v2621 = vadd.f32 0.0, %v2620
        %v2622 = vpop.f32.mrb[0].mxu0
        %v2623 = vpop.f32.mrb[0].mxu0
        %v2624 = vadd.f32 0.0, %v2623
        %v2625 = vpop.f32.mrb[0].mxu0
        %2626 = vmatprep.mubr.bf16.mxu0 %v2547
        %2627 = vmatmul.mubr.bf16.gmra.mrb[0].mxu0 %v2546
        %v2628 = vpop.f32.mrb[0].mxu0
        %v2629 = vadd.f32 0.0, %v2628
        %v2630 = vpop.f32.mrb[0].mxu0
        %v2631 = vpop.f32.mrb[0].mxu0
        %v2632 = vadd.f32 0.0, %v2631
        %v2633 = vpop.f32.mrb[0].mxu0
        %2634 = vmatprep.mubr.bf16.mxu0 %v2549
        %2635 = vmatmul.mubr.bf16.gmra.mrb[0].mxu0 %v2548
        %v2636 = vpop.f32.mrb[0].mxu0
        %v2637 = vadd.f32 0.0, %v2636
        %v2638 = vpop.f32.mrb[0].mxu0
        %v2639 = vpop.f32.mrb[0].mxu0
        %v2640 = vadd.f32 0.0, %v2639
        %v2641 = vpop.f32.mrb[0].mxu0
        %2642 = vmatprep.mubr.bf16.mxu0 %v2551
        %2643 = vmatmul.mubr.bf16.gmra.mrb[0].mxu0 %v2550
        %v2644 = vpop.f32.mrb[0].mxu0
        %v2645 = vadd.f32 0.0, %v2644
        %v2646 = vpop.f32.mrb[0].mxu0
        %v2647 = vpop.f32.mrb[0].mxu0
        %v2648 = vadd.f32 0.0, %v2647
        %v2649 = vpop.f32.mrb[0].mxu0
        %2650 = vmatprep.mubr.bf16.mxu0 %v2553
        %2651 = vmatmul.mubr.bf16.gmra.mrb[0].mxu0 %v2552
        %v2652 = vpop.f32.mrb[0].mxu0
        %v2653 = vadd.f32 0.0, %v2652
        %v2654 = vpop.f32.mrb[0].mxu0
        %v2655 = vpop.f32.mrb[0].mxu0
        %v2656 = vadd.f32 0.0, %v2655
        %v2657 = vpop.f32.mrb[0].mxu0
        %2658 = vmatprep.mubr.bf16.mxu0 %v2555
        %2659 = vmatmul.mubr.bf16.gmra.mrb[0].mxu0 %v2554
        %v2660 = vpop.f32.mrb[0].mxu0
        %v2661 = vadd.f32 0.0, %v2660
        %v2662 = vpop.f32.mrb[0].mxu0
        %v2663 = vpop.f32.mrb[0].mxu0
        %v2664 = vadd.f32 0.0, %v2663
        %v2665 = vpop.f32.mrb[0].mxu0
        %2666 = vmatprep.mubr.bf16.mxu0 %v2557
        %2667 = vmatmul.mubr.bf16.gmra.mrb[0].mxu0 %v2556
        %v2668 = vpop.f32.mrb[0].mxu0
        %v2669 = vadd.f32 0.0, %v2668
        %v2670 = vpop.f32.mrb[0].mxu0
        %v2671 = vpop.f32.mrb[0].mxu0
        %v2672 = vadd.f32 0.0, %v2671
        %v2673 = vpop.f32.mrb[0].mxu0
        %2674 = vmatprep.mubr.bf16.mxu0 %v2559
        %2675 = vmatmul.mubr.bf16.gmra.mrb[0].mxu0 %v2558
        %v2676 = vpop.f32.mrb[0].mxu0
        %v2677 = vadd.f32 0.0, %v2676
        %v2678 = vpop.f32.mrb[0].mxu0
        %v2679 = vpop.f32.mrb[0].mxu0
        %v2680 = vadd.f32 0.0, %v2679
        %v2681 = vpop.f32.mrb[0].mxu0
        %2682 = vmatprep.mubr.bf16.mxu0 %v2561
        %2683 = vmatmul.mubr.bf16.gmra.mrb[0].mxu0 %v2560
        %v2684 = vpop.f32.mrb[0].mxu0
        %v2685 = vadd.f32 0.0, %v2684
        %v2686 = vpop.f32.mrb[0].mxu0
        %v2687 = vpop.f32.mrb[0].mxu0
        %v2688 = vadd.f32 0.0, %v2687
        %v2689 = vpop.f32.mrb[0].mxu0
        %2690 = vdwg.mxu0
        %v2691 = vpack.c.bf16 %v2664, %v2661
        %v2692 = vpack.c.bf16 %v2672, %v2669
        %v2693 = vpack.c.bf16 %v2680, %v2677
        %v2694 = vpack.c.bf16 %v2688, %v2685
        %v2695 = vmul.f32 %v2175, %v2597
        %v2696 = vmul.f32 %v2176, %v2600
        %v2697 = vmul.f32 %v2177, %v2605
        %v2698 = vmul.f32 %v2178, %v2608
        %v2699 = vmul.f32 %v2179, %v2613
        %v2700 = vmul.f32 %v2180, %v2616
        %v2701 = vmul.f32 %v2181, %v2621
        %v2702 = vmul.f32 %v2182, %v2624
        %v2703 = vmul.f32 %v2183, %v2629
        %v2704 = vmul.f32 %v2184, %v2632
        %v2705 = vmul.f32 %v2185, %v2637
        %v2706 = vmul.f32 %v2186, %v2640
        %v2707 = vmul.f32 %v2187, %v2645
        %v2708 = vmul.f32 %v2188, %v2648
        %v2709 = vmul.f32 %v2189, %v2653
        %v2710 = vmul.f32 %v2190, %v2656
        %v2712 = vsel %vm726, %v2191, 0
        %v2715 = vsel %vm726, %v2192, 0
        %v2718 = vsel %vm726, %v2193, 0
        %v2721 = vsel %vm726, %v2194, 0
        %v2724 = vsel %vm726, %v2195, 0
        %v2727 = vsel %vm726, %v2196, 0
        %v2730 = vsel %vm726, %v2197, 0
        %v2733 = vsel %vm726, %v2198, 0
        %2735 = vmatprep.subr.bf16.mxu0 0
        %2736 = vmatpush1.bf16.msra.mxu0 %v2691
        %2737 = vmatprep.subr.bf16.mxu0 0
        %2738 = vmatpush1.bf16.msra.mxu0 %v2692
        %2739 = vmatprep.subr.bf16.mxu0 0
        %2740 = vmatpush1.bf16.msra.mxu0 %v2693
        %2741 = vmatprep.subr.bf16.mxu0 0
        %2742 = vmatpush1.bf16.msra.mxu0 %v2694
        %2743 = vmatprep.subr.bf16.mxu0 0
        %2744 = vmatpush1.bf16.msra.mxu0 0
        %2745 = vmatprep.subr.bf16.mxu0 0
        %2746 = vmatpush1.bf16.msra.mxu0 0
        %2747 = vmatprep.subr.bf16.mxu0 0
        %2748 = vmatpush1.bf16.msra.mxu0 0
        %2749 = vmatprep.subr.bf16.mxu0 0
        %2750 = vmatpush1.bf16.msra.mxu0 0
        %2751 = vmatprep.subr.bf16.mxu0 0
        %2752 = vmatpush1.bf16.msra.mxu0 0
        %2753 = vmatprep.subr.bf16.mxu0 0
        %2754 = vmatpush1.bf16.msra.mxu0 0
        %2755 = vmatprep.subr.bf16.mxu0 0
        %2756 = vmatpush1.bf16.msra.mxu0 0
        %2757 = vmatprep.subr.bf16.mxu0 0
        %2758 = vmatpush1.bf16.msra.mxu0 0
        %2759 = vmatprep.subr.bf16.mxu0 0
        %2760 = vmatpush1.bf16.msra.mxu0 0
        %2761 = vmatprep.subr.bf16.mxu0 0
        %2762 = vmatpush1.bf16.msra.mxu0 0
        %2763 = vmatprep.subr.bf16.mxu0 0
        %2764 = vmatpush1.bf16.msra.mxu0 0
        %2765 = vmatprep.subr.bf16.mxu0 0
        %2766 = vmatpush1.bf16.msra.mxu0 0
        %2767 = vmatprep.mubr.bf16.mxu0 0
        %2768 = vmatmul.mubr.bf16.gmra.mrb[0].mxu0 %v2712
        %v2769 = vpop.f32.mrb[0].mxu0
        %v2770 = vadd.f32 1e-06, %v2769
        %v2771 = vpop.f32.mrb[0].mxu0
        %v2772 = vpop.f32.mrb[0].mxu0
        %v2773 = vadd.f32 1e-06, %v2772
        %v2774 = vpop.f32.mrb[0].mxu0
        %2775 = vmatprep.mubr.bf16.mxu0 0
        %2776 = vmatmul.mubr.bf16.gmra.mrb[0].mxu0 %v2715
        %v2777 = vpop.f32.mrb[0].mxu0
        %v2778 = vadd.f32 1e-06, %v2777
        %v2779 = vpop.f32.mrb[0].mxu0
        %v2780 = vpop.f32.mrb[0].mxu0
        %v2781 = vadd.f32 1e-06, %v2780
        %v2782 = vpop.f32.mrb[0].mxu0
        %2783 = vmatprep.mubr.bf16.mxu0 0
        %2784 = vmatmul.mubr.bf16.gmra.mrb[0].mxu0 %v2718
        %v2785 = vpop.f32.mrb[0].mxu0
        %v2786 = vadd.f32 1e-06, %v2785
        %v2787 = vpop.f32.mrb[0].mxu0
        %v2788 = vpop.f32.mrb[0].mxu0
        %v2789 = vadd.f32 1e-06, %v2788
        %v2790 = vpop.f32.mrb[0].mxu0
        %2791 = vmatprep.mubr.bf16.mxu0 0
        %2792 = vmatmul.mubr.bf16.gmra.mrb[0].mxu0 %v2721
        %v2793 = vpop.f32.mrb[0].mxu0
        %v2794 = vadd.f32 1e-06, %v2793
        %v2795 = vpop.f32.mrb[0].mxu0
        %v2796 = vpop.f32.mrb[0].mxu0
        %v2797 = vadd.f32 1e-06, %v2796
        %v2798 = vpop.f32.mrb[0].mxu0
        %2799 = vmatprep.mubr.bf16.mxu0 0
        %2800 = vmatmul.mubr.bf16.gmra.mrb[0].mxu0 %v2724
        %v2801 = vpop.f32.mrb[0].mxu0
        %v2802 = vadd.f32 1e-06, %v2801
        %v2803 = vpop.f32.mrb[0].mxu0
        %v2804 = vpop.f32.mrb[0].mxu0
        %v2805 = vadd.f32 1e-06, %v2804
        %v2806 = vpop.f32.mrb[0].mxu0
        %2807 = vmatprep.mubr.bf16.mxu0 0
        %2808 = vmatmul.mubr.bf16.gmra.mrb[0].mxu0 %v2727
        %v2809 = vpop.f32.mrb[0].mxu0
        %v2810 = vadd.f32 1e-06, %v2809
        %v2811 = vpop.f32.mrb[0].mxu0
        %v2812 = vpop.f32.mrb[0].mxu0
        %v2813 = vadd.f32 1e-06, %v2812
        %v2814 = vpop.f32.mrb[0].mxu0
        %2815 = vmatprep.mubr.bf16.mxu0 0
        %2816 = vmatmul.mubr.bf16.gmra.mrb[0].mxu0 %v2730
        %v2817 = vpop.f32.mrb[0].mxu0
        %v2818 = vadd.f32 1e-06, %v2817
        %v2819 = vpop.f32.mrb[0].mxu0
        %v2820 = vpop.f32.mrb[0].mxu0
        %v2821 = vadd.f32 1e-06, %v2820
        %v2822 = vpop.f32.mrb[0].mxu0
        %2823 = vmatprep.mubr.bf16.mxu0 0
        %2824 = vmatmul.mubr.bf16.gmra.mrb[0].mxu0 %v2733
        %v2825 = vpop.f32.mrb[0].mxu0
        %v2826 = vadd.f32 1e-06, %v2825
        %v2827 = vpop.f32.mrb[0].mxu0
        %v2828 = vpop.f32.mrb[0].mxu0
        %v2829 = vadd.f32 1e-06, %v2828
        %v2830 = vpop.f32.mrb[0].mxu0
        %2831 = vdwg.mxu0
        %v2832 = vrcp.pop %v2770
        %v2833 = vrcp.pop %v2773
        %v2834 = vrcp.pop %v2778
        %v2835 = vrcp.pop %v2781
        %v2836 = vrcp.pop %v2786
        %v2837 = vrcp.pop %v2789
        %v2838 = vrcp.pop %v2794
        %v2839 = vrcp.pop %v2797
        %v2840 = vrcp.pop %v2802
        %v2841 = vrcp.pop %v2805
        %v2842 = vrcp.pop %v2810
        %v2843 = vrcp.pop %v2813
        %v2844 = vrcp.pop %v2818
        %v2845 = vrcp.pop %v2821
        %v2846 = vrcp.pop %v2826
        %v2847 = vrcp.pop %v2829
        %v2848 = vmul.f32 %v2695, %v2832
        %v2849 = vmul.f32 %v2696, %v2833
        %v2850 = vmul.f32 %v2697, %v2834
        %v2851 = vmul.f32 %v2698, %v2835
        %v2852 = vmul.f32 %v2699, %v2836
        %v2853 = vmul.f32 %v2700, %v2837
        %v2854 = vmul.f32 %v2701, %v2838
        %v2855 = vmul.f32 %v2702, %v2839
        %v2856 = vmul.f32 %v2703, %v2840
        %v2857 = vmul.f32 %v2704, %v2841
        %v2858 = vmul.f32 %v2705, %v2842
        %v2859 = vmul.f32 %v2706, %v2843
        %v2860 = vmul.f32 %v2707, %v2844
        %v2861 = vmul.f32 %v2708, %v2845
        %v2862 = vmul.f32 %v2709, %v2846
        %v2863 = vmul.f32 %v2710, %v2847
        %v2864 = vpack.c.bf16 %v2849, %v2848
        %v2865 = vpack.c.bf16 %v2851, %v2850
        %v2866 = vpack.c.bf16 %v2853, %v2852
        %v2867 = vpack.c.bf16 %v2855, %v2854
        %v2868 = vpack.c.bf16 %v2857, %v2856
        %v2869 = vpack.c.bf16 %v2859, %v2858
        %v2870 = vpack.c.bf16 %v2861, %v2860
        %v2871 = vpack.c.bf16 %v2863, %v2862
        %2872 = vst.msk [vmem:[#allocation2 + $0x10] sm:$0xff] %vm726, %v2864
        %2873 = vst.msk [vmem:[#allocation2 + $0x28] sm:$0xff] %vm726, %v2865
        %2874 = vst.msk [vmem:[#allocation2 + $0x40] sm:$0xff] %vm726, %v2866
        %2875 = vst.msk [vmem:[#allocation2 + $0x58] sm:$0xff] %vm726, %v2867
        %2876 = vst.msk [vmem:[#allocation2 + $0x70] sm:$0xff] %vm726, %v2868
        %2877 = vst.msk [vmem:[#allocation2 + $0x88] sm:$0xff] %vm726, %v2869
        %2878 = vst.msk [vmem:[#allocation2 + $0xa0] sm:$0xff] %vm726, %v2870
        %2879 = vst.msk [vmem:[#allocation2 + $0xb8] sm:$0xff] %vm726, %v2871
        %v2880 = vld [vmem:[#allocation2] sm:$0xff]
        %v2881 = vld [vmem:[#allocation2 + $0x8] sm:$0xff]
        %v2882 = vld [vmem:[#allocation2 + $0x10] sm:$0xff]
        %v2883 = vld [vmem:[#allocation2 + $0x18] sm:$0xff]
        %v2884 = vld [vmem:[#allocation2 + $0x20] sm:$0xff]
        %v2885 = vld [vmem:[#allocation2 + $0x28] sm:$0xff]
        %v2886 = vld [vmem:[#allocation2 + $0x30] sm:$0xff]
        %v2887 = vld [vmem:[#allocation2 + $0x38] sm:$0xff]
        %v2888 = vld [vmem:[#allocation2 + $0x40] sm:$0xff]
        %v2889 = vld [vmem:[#allocation2 + $0x48] sm:$0xff]
        %v2890 = vld [vmem:[#allocation2 + $0x50] sm:$0xff]
        %v2891 = vld [vmem:[#allocation2 + $0x58] sm:$0xff]
        %v2892 = vld [vmem:[#allocation2 + $0x60] sm:$0xff]
        %v2893 = vld [vmem:[#allocation2 + $0x68] sm:$0xff]
        %v2894 = vld [vmem:[#allocation2 + $0x70] sm:$0xff]
        %v2895 = vld [vmem:[#allocation2 + $0x78] sm:$0xff]
        %v2896 = vld [vmem:[#allocation2 + $0x80] sm:$0xff]
        %v2897 = vld [vmem:[#allocation2 + $0x88] sm:$0xff]
        %v2898 = vld [vmem:[#allocation2 + $0x90] sm:$0xff]
        %v2899 = vld [vmem:[#allocation2 + $0x98] sm:$0xff]
        %v2900 = vld [vmem:[#allocation2 + $0xa0] sm:$0xff]
        %v2901 = vld [vmem:[#allocation2 + $0xa8] sm:$0xff]
        %v2902 = vld [vmem:[#allocation2 + $0xb0] sm:$0xff]
        %v2903 = vld [vmem:[#allocation2 + $0xb8] sm:$0xff]
        %2904 = vxpose.xlu0.c.b16.start [1/8] %v2864, 128
        %2905 = vxpose.xlu0.c.b16.cont [2/8] %v2865, 128
        %2906 = vxpose.xlu0.c.b16.cont [3/8] %v2866, 128
        %2907 = vxpose.xlu0.c.b16.cont [4/8] %v2867, 128
        %2908 = vxpose.xlu0.c.b16.cont [5/8] %v2868, 128
        %2909 = vxpose.xlu0.c.b16.cont [6/8] %v2869, 128
        %2910 = vxpose.xlu0.c.b16.cont [7/8] %v2870, 128
        %2911 = vxpose.xlu0.c.b16.end [8/8] %v2871, 128
        %v2912 = vpop.trf.xlu0
        %v2913 = vpop.trf.xlu0
        %v2914 = vpop.trf.xlu0
        %v2915 = vpop.trf.xlu0
        %v2916 = vpop.trf.xlu0
        %v2917 = vpop.trf.xlu0
        %v2918 = vpop.trf.xlu0
        %v2919 = vpop.trf.xlu0
        %2920 = vmatprep.subr.bf16.mxu0 %v2881
        %2921 = vmatpush1.bf16.msra.mxu0 %v2880
        %2922 = vmatprep.subr.bf16.mxu0 %v2884
        %2923 = vmatpush1.bf16.msra.mxu0 %v2883
        %2924 = vmatprep.subr.bf16.mxu0 %v2887
        %2925 = vmatpush1.bf16.msra.mxu0 %v2886
        %2926 = vmatprep.subr.bf16.mxu0 %v2890
        %2927 = vmatpush1.bf16.msra.mxu0 %v2889
        %2928 = vmatprep.subr.bf16.mxu0 %v2893
        %2929 = vmatpush1.bf16.msra.mxu0 %v2892
        %2930 = vmatprep.subr.bf16.mxu0 %v2896
        %2931 = vmatpush1.bf16.msra.mxu0 %v2895
        %2932 = vmatprep.subr.bf16.mxu0 %v2899
        %2933 = vmatpush1.bf16.msra.mxu0 %v2898
        %2934 = vmatprep.subr.bf16.mxu0 %v2902
        %2935 = vmatpush1.bf16.msra.mxu0 %v2901
        %2936 = vmatprep.subr.bf16.mxu0 0
        %2937 = vmatpush1.bf16.msra.mxu0 0
        %2938 = vmatprep.subr.bf16.mxu0 0
        %2939 = vmatpush1.bf16.msra.mxu0 0
        %2940 = vmatprep.subr.bf16.mxu0 0
        %2941 = vmatpush1.bf16.msra.mxu0 0
        %2942 = vmatprep.subr.bf16.mxu0 0
        %2943 = vmatpush1.bf16.msra.mxu0 0
        %2944 = vmatprep.subr.bf16.mxu0 0
        %2945 = vmatpush1.bf16.msra.mxu0 0
        %2946 = vmatprep.subr.bf16.mxu0 0
        %2947 = vmatpush1.bf16.msra.mxu0 0
        %2948 = vmatprep.subr.bf16.mxu0 0
        %2949 = vmatpush1.bf16.msra.mxu0 0
        %2950 = vmatprep.subr.bf16.mxu0 0
        %2951 = vmatpush1.bf16.msra.mxu0 0
        %2952 = vmatprep.mubr.bf16.mxu0 0
        %2953 = vmatmul.mubr.bf16.gmra.mrb[0].mxu0 %v2912
        %v2954 = vpop.f32.mrb[0].mxu0
        %v2955 = vadd.f32 0.0, %v2954
        %v2956 = vpop.f32.mrb[0].mxu0
        %v2957 = vadd.f32 0.0, %v2956
        %v2958 = vpop.f32.mrb[0].mxu0
        %v2959 = vadd.f32 0.0, %v2958
        %v2960 = vpop.f32.mrb[0].mxu0
        %v2961 = vadd.f32 0.0, %v2960
        %2962 = vmatprep.mubr.bf16.mxu0 0
        %2963 = vmatmul.mubr.bf16.gmra.mrb[0].mxu0 %v2913
        %v2964 = vpop.f32.mrb[0].mxu0
        %v2965 = vadd.f32 0.0, %v2964
        %v2966 = vpop.f32.mrb[0].mxu0
        %v2967 = vadd.f32 0.0, %v2966
        %v2968 = vpop.f32.mrb[0].mxu0
        %v2969 = vadd.f32 0.0, %v2968
        %v2970 = vpop.f32.mrb[0].mxu0
        %v2971 = vadd.f32 0.0, %v2970
        %2972 = vmatprep.mubr.bf16.mxu0 0
        %2973 = vmatmul.mubr.bf16.gmra.mrb[0].mxu0 %v2914
        %v2974 = vpop.f32.mrb[0].mxu0
        %v2975 = vadd.f32 0.0, %v2974
        %v2976 = vpop.f32.mrb[0].mxu0
        %v2977 = vadd.f32 0.0, %v2976
        %v2978 = vpop.f32.mrb[0].mxu0
        %v2979 = vadd.f32 0.0, %v2978
        %v2980 = vpop.f32.mrb[0].mxu0
        %v2981 = vadd.f32 0.0, %v2980
        %2982 = vmatprep.mubr.bf16.mxu0 0
        %2983 = vmatmul.mubr.bf16.gmra.mrb[0].mxu0 %v2915
        %v2984 = vpop.f32.mrb[0].mxu0
        %v2985 = vadd.f32 0.0, %v2984
        %v2986 = vpop.f32.mrb[0].mxu0
        %v2987 = vadd.f32 0.0, %v2986
        %v2988 = vpop.f32.mrb[0].mxu0
        %v2989 = vadd.f32 0.0, %v2988
        %v2990 = vpop.f32.mrb[0].mxu0
        %v2991 = vadd.f32 0.0, %v2990
        %2992 = vdwg.mxu0
        %2993 = vmatprep.subr.bf16.mxu0 0
        %2994 = vmatpush1.bf16.msra.mxu0 %v2882
        %2995 = vmatprep.subr.bf16.mxu0 0
        %2996 = vmatpush1.bf16.msra.mxu0 %v2885
        %2997 = vmatprep.subr.bf16.mxu0 0
        %2998 = vmatpush1.bf16.msra.mxu0 %v2888
        %2999 = vmatprep.subr.bf16.mxu0 0
        %3000 = vmatpush1.bf16.msra.mxu0 %v2891
        %3001 = vmatprep.subr.bf16.mxu0 0
        %3002 = vmatpush1.bf16.msra.mxu0 %v2894
        %3003 = vmatprep.subr.bf16.mxu0 0
        %3004 = vmatpush1.bf16.msra.mxu0 %v2897
        %3005 = vmatprep.subr.bf16.mxu0 0
        %3006 = vmatpush1.bf16.msra.mxu0 %v2900
        %3007 = vmatprep.subr.bf16.mxu0 0
        %3008 = vmatpush1.bf16.msra.mxu0 %v2903
        %3009 = vmatprep.subr.bf16.mxu0 0
        %3010 = vmatpush1.bf16.msra.mxu0 0
        %3011 = vmatprep.subr.bf16.mxu0 0
        %3012 = vmatpush1.bf16.msra.mxu0 0
        %3013 = vmatprep.subr.bf16.mxu0 0
        %3014 = vmatpush1.bf16.msra.mxu0 0
        %3015 = vmatprep.subr.bf16.mxu0 0
        %3016 = vmatpush1.bf16.msra.mxu0 0
        %3017 = vmatprep.subr.bf16.mxu0 0
        %3018 = vmatpush1.bf16.msra.mxu0 0
        %3019 = vmatprep.subr.bf16.mxu0 0
        %3020 = vmatpush1.bf16.msra.mxu0 0
        %3021 = vmatprep.subr.bf16.mxu0 0
        %3022 = vmatpush1.bf16.msra.mxu0 0
        %3023 = vmatprep.subr.bf16.mxu0 0
        %3024 = vmatpush1.bf16.msra.mxu0 0
        %3025 = vmatprep.mubr.bf16.mxu0 0
        %3026 = vmatmul.mubr.bf16.gmra.mrb[0].mxu0 %v2912
        %v3027 = vpop.f32.mrb[0].mxu0
        %v3028 = vadd.f32 0.0, %v3027
        %v3029 = vpop.f32.mrb[0].mxu0
        %v3030 = vpop.f32.mrb[0].mxu0
        %v3031 = vadd.f32 0.0, %v3030
        %v3032 = vpop.f32.mrb[0].mxu0
        %3033 = vmatprep.mubr.bf16.mxu0 0
        %3034 = vmatmul.mubr.bf16.gmra.mrb[0].mxu0 %v2913
        %v3035 = vpop.f32.mrb[0].mxu0
        %v3036 = vadd.f32 0.0, %v3035
        %v3037 = vpop.f32.mrb[0].mxu0
        %v3038 = vpop.f32.mrb[0].mxu0
        %v3039 = vadd.f32 0.0, %v3038
        %v3040 = vpop.f32.mrb[0].mxu0
        %3041 = vmatprep.mubr.bf16.mxu0 0
        %3042 = vmatmul.mubr.bf16.gmra.mrb[0].mxu0 %v2914
        %v3043 = vpop.f32.mrb[0].mxu0
        %v3044 = vadd.f32 0.0, %v3043
        %v3045 = vpop.f32.mrb[0].mxu0
        %v3046 = vpop.f32.mrb[0].mxu0
        %v3047 = vadd.f32 0.0, %v3046
        %v3048 = vpop.f32.mrb[0].mxu0
        %3049 = vmatprep.mubr.bf16.mxu0 0
        %3050 = vmatmul.mubr.bf16.gmra.mrb[0].mxu0 %v2915
        %v3051 = vpop.f32.mrb[0].mxu0
        %v3052 = vadd.f32 0.0, %v3051
        %v3053 = vpop.f32.mrb[0].mxu0
        %v3054 = vpop.f32.mrb[0].mxu0
        %v3055 = vadd.f32 0.0, %v3054
        %v3056 = vpop.f32.mrb[0].mxu0
        %3057 = vdwg.mxu0
        %v3058 = vpack.c.bf16 %v3031, %v3028
        %v3059 = vpack.c.bf16 %v3039, %v3036
        %v3060 = vpack.c.bf16 %v3047, %v3044
        %v3061 = vpack.c.bf16 %v3055, %v3052
        %v3062 = vmul.f32 %v2506, %v2955
        %v3063 = vmul.f32 %v2507, %v2957
        %v3064 = vmul.f32 %v2508, %v2959
        %v3065 = vmul.f32 %v2509, %v2961
        %v3066 = vmul.f32 %v2510, %v2965
        %v3067 = vmul.f32 %v2511, %v2967
        %v3068 = vmul.f32 %v2512, %v2969
        %v3069 = vmul.f32 %v2513, %v2971
        %v3070 = vmul.f32 %v2514, %v2975
        %v3071 = vmul.f32 %v2515, %v2977
        %v3072 = vmul.f32 %v2516, %v2979
        %v3073 = vmul.f32 %v2517, %v2981
        %v3074 = vmul.f32 %v2518, %v2985
        %v3075 = vmul.f32 %v2519, %v2987
        %v3076 = vmul.f32 %v2520, %v2989
        %v3077 = vmul.f32 %v2521, %v2991
        %v3079 = vsel %vm726, %v3058, 0
        %v3082 = vsel %vm726, %v3059, 0
        %v3085 = vsel %vm726, %v3060, 0
        %v3088 = vsel %vm726, %v3061, 0
        %3090 = vmatprep.subr.bf16.mxu0 %v2523
        %3091 = vmatpush1.bf16.msra.mxu0 %v2522
        %3092 = vmatprep.subr.bf16.mxu0 %v2525
        %3093 = vmatpush1.bf16.msra.mxu0 %v2524
        %3094 = vmatprep.subr.bf16.mxu0 %v2527
        %3095 = vmatpush1.bf16.msra.mxu0 %v2526
        %3096 = vmatprep.subr.bf16.mxu0 %v2529
        %3097 = vmatpush1.bf16.msra.mxu0 %v2528
        %3098 = vmatprep.subr.bf16.mxu0 0
        %3099 = vmatpush1.bf16.msra.mxu0 0
        %3100 = vmatprep.subr.bf16.mxu0 0
        %3101 = vmatpush1.bf16.msra.mxu0 0
        %3102 = vmatprep.subr.bf16.mxu0 0
        %3103 = vmatpush1.bf16.msra.mxu0 0
        %3104 = vmatprep.subr.bf16.mxu0 0
        %3105 = vmatpush1.bf16.msra.mxu0 0
        %3106 = vmatprep.subr.bf16.mxu0 0
        %3107 = vmatpush1.bf16.msra.mxu0 0
        %3108 = vmatprep.subr.bf16.mxu0 0
        %3109 = vmatpush1.bf16.msra.mxu0 0
        %3110 = vmatprep.subr.bf16.mxu0 0
        %3111 = vmatpush1.bf16.msra.mxu0 0
        %3112 = vmatprep.subr.bf16.mxu0 0
        %3113 = vmatpush1.bf16.msra.mxu0 0
        %3114 = vmatprep.subr.bf16.mxu0 0
        %3115 = vmatpush1.bf16.msra.mxu0 0
        %3116 = vmatprep.subr.bf16.mxu0 0
        %3117 = vmatpush1.bf16.msra.mxu0 0
        %3118 = vmatprep.subr.bf16.mxu0 0
        %3119 = vmatpush1.bf16.msra.mxu0 0
        %3120 = vmatprep.subr.bf16.mxu0 0
        %3121 = vmatpush1.bf16.msra.mxu0 0
        %3122 = vmatprep.mubr.bf16.mxu0 0
        %3123 = vmatmul.mubr.bf16.gmra.mrb[0].mxu0 %v3079
        %v3124 = vpop.f32.mrb[0].mxu0
        %v3125 = vadd.f32 1e-06, %v3124
        %v3126 = vpop.f32.mrb[0].mxu0
        %v3127 = vadd.f32 1e-06, %v3126
        %v3128 = vpop.f32.mrb[0].mxu0
        %v3129 = vadd.f32 1e-06, %v3128
        %v3130 = vpop.f32.mrb[0].mxu0
        %v3131 = vadd.f32 1e-06, %v3130
        %3132 = vmatprep.mubr.bf16.mxu0 0
        %3133 = vmatmul.mubr.bf16.gmra.mrb[0].mxu0 %v3082
        %v3134 = vpop.f32.mrb[0].mxu0
        %v3135 = vadd.f32 1e-06, %v3134
        %v3136 = vpop.f32.mrb[0].mxu0
        %v3137 = vadd.f32 1e-06, %v3136
        %v3138 = vpop.f32.mrb[0].mxu0
        %v3139 = vadd.f32 1e-06, %v3138
        %v3140 = vpop.f32.mrb[0].mxu0
        %v3141 = vadd.f32 1e-06, %v3140
        %3142 = vmatprep.mubr.bf16.mxu0 0
        %3143 = vmatmul.mubr.bf16.gmra.mrb[0].mxu0 %v3085
        %v3144 = vpop.f32.mrb[0].mxu0
        %v3145 = vadd.f32 1e-06, %v3144
        %v3146 = vpop.f32.mrb[0].mxu0
        %v3147 = vadd.f32 1e-06, %v3146
        %v3148 = vpop.f32.mrb[0].mxu0
        %v3149 = vadd.f32 1e-06, %v3148
        %v3150 = vpop.f32.mrb[0].mxu0
        %v3151 = vadd.f32 1e-06, %v3150
        %3152 = vmatprep.mubr.bf16.mxu0 0
        %3153 = vmatmul.mubr.bf16.gmra.mrb[0].mxu0 %v3088
        %v3154 = vpop.f32.mrb[0].mxu0
        %v3155 = vadd.f32 1e-06, %v3154
        %v3156 = vpop.f32.mrb[0].mxu0
        %v3157 = vadd.f32 1e-06, %v3156
        %v3158 = vpop.f32.mrb[0].mxu0
        %v3159 = vadd.f32 1e-06, %v3158
        %v3160 = vpop.f32.mrb[0].mxu0
        %v3161 = vadd.f32 1e-06, %v3160
        %3162 = vdwg.mxu0
        %v3163 = vrcp.pop %v3125
        %v3164 = vrcp.pop %v3127
        %v3165 = vrcp.pop %v3129
        %v3166 = vrcp.pop %v3131
        %v3167 = vrcp.pop %v3135
        %v3168 = vrcp.pop %v3137
        %v3169 = vrcp.pop %v3139
        %v3170 = vrcp.pop %v3141
        %v3171 = vrcp.pop %v3145
        %v3172 = vrcp.pop %v3147
        %v3173 = vrcp.pop %v3149
        %v3174 = vrcp.pop %v3151
        %v3175 = vrcp.pop %v3155
        %v3176 = vrcp.pop %v3157
        %v3177 = vrcp.pop %v3159
        %v3178 = vrcp.pop %v3161
        %v3179 = vmul.f32 %v3062, %v3163
        %v3180 = vmul.f32 %v3063, %v3164
        %v3181 = vmul.f32 %v3064, %v3165
        %v3182 = vmul.f32 %v3065, %v3166
        %v3183 = vmul.f32 %v3066, %v3167
        %v3184 = vmul.f32 %v3067, %v3168
        %v3185 = vmul.f32 %v3068, %v3169
        %v3186 = vmul.f32 %v3069, %v3170
        %v3187 = vmul.f32 %v3070, %v3171
        %v3188 = vmul.f32 %v3071, %v3172
        %v3189 = vmul.f32 %v3072, %v3173
        %v3190 = vmul.f32 %v3073, %v3174
        %v3191 = vmul.f32 %v3074, %v3175
        %v3192 = vmul.f32 %v3075, %v3176
        %v3193 = vmul.f32 %v3076, %v3177
        %v3194 = vmul.f32 %v3077, %v3178
        %v3195 = vpack.c.bf16 %v3181, %v3179
        %v3196 = vpack.c.bf16 %v3182, %v3180
        %v3197 = vpack.c.bf16 %v3185, %v3183
        %v3198 = vpack.c.bf16 %v3186, %v3184
        %v3199 = vpack.c.bf16 %v3189, %v3187
        %v3200 = vpack.c.bf16 %v3190, %v3188
        %v3201 = vpack.c.bf16 %v3193, %v3191
        %v3202 = vpack.c.bf16 %v3194, %v3192
        %3203 = vst [vmem:[#allocation3 + $0x80] sm:$0xff] %v3195
        %3204 = vst [vmem:[#allocation3 + $0x88] sm:$0xff] %v3196
        %3205 = vst [vmem:[#allocation3 + $0x90] sm:$0xff] %v3197
        %3206 = vst [vmem:[#allocation3 + $0x98] sm:$0xff] %v3198
        %3207 = vst [vmem:[#allocation3 + $0xa0] sm:$0xff] %v3199
        %3208 = vst [vmem:[#allocation3 + $0xa8] sm:$0xff] %v3200
        %3209 = vst [vmem:[#allocation3 + $0xb0] sm:$0xff] %v3201
        %3210 = vst [vmem:[#allocation3 + $0xb8] sm:$0xff] %v3202
        %v3211 = vld [vmem:[#allocation3] sm:$0xff]
        %v3212 = vld [vmem:[#allocation3 + $0x8] sm:$0xff]
        %v3213 = vld [vmem:[#allocation3 + $0x10] sm:$0xff]
        %v3214 = vld [vmem:[#allocation3 + $0x18] sm:$0xff]
        %v3215 = vld [vmem:[#allocation3 + $0x20] sm:$0xff]
        %v3216 = vld [vmem:[#allocation3 + $0x28] sm:$0xff]
        %v3217 = vld [vmem:[#allocation3 + $0x30] sm:$0xff]
        %v3218 = vld [vmem:[#allocation3 + $0x38] sm:$0xff]
        %v3219 = vld [vmem:[#allocation3 + $0x40] sm:$0xff]
        %v3220 = vld [vmem:[#allocation3 + $0x48] sm:$0xff]
        %v3221 = vld [vmem:[#allocation3 + $0x50] sm:$0xff]
        %v3222 = vld [vmem:[#allocation3 + $0x58] sm:$0xff]
        %v3223 = vld [vmem:[#allocation3 + $0x60] sm:$0xff]
        %v3224 = vld [vmem:[#allocation3 + $0x68] sm:$0xff]
        %v3225 = vld [vmem:[#allocation3 + $0x70] sm:$0xff]
        %v3226 = vld [vmem:[#allocation3 + $0x78] sm:$0xff]
        %v3227 = vld [vmem:[#allocation3 + $0x80] sm:$0xff]
        %v3228 = vld [vmem:[#allocation3 + $0x88] sm:$0xff]
        %v3229 = vld [vmem:[#allocation3 + $0x90] sm:$0xff]
        %v3230 = vld [vmem:[#allocation3 + $0x98] sm:$0xff]
        %v3231 = vld [vmem:[#allocation3 + $0xa0] sm:$0xff]
        %v3232 = vld [vmem:[#allocation3 + $0xa8] sm:$0xff]
        %v3233 = vld [vmem:[#allocation3 + $0xb0] sm:$0xff]
        %v3234 = vld [vmem:[#allocation3 + $0xb8] sm:$0xff]
        %3235 = vmatprep.subr.bf16.mxu0 %v3196
        %3236 = vmatpush1.bf16.xpose.msra.mxu0 %v3195
        %3237 = vmatprep.subr.bf16.mxu0 %v3198
        %3238 = vmatpush1.bf16.xpose.msra.mxu0 %v3197
        %3239 = vmatprep.subr.bf16.mxu0 %v3200
        %3240 = vmatpush1.bf16.xpose.msra.mxu0 %v3199
        %3241 = vmatprep.subr.bf16.mxu0 %v3202
        %3242 = vmatpush1.bf16.xpose.msra.mxu0 %v3201
        %3243 = vmatprep.subr.bf16.mxu0 0
        %3244 = vmatpush1.bf16.xpose.msra.mxu0 0
        %3245 = vmatprep.subr.bf16.mxu0 0
        %3246 = vmatpush1.bf16.xpose.msra.mxu0 0
        %3247 = vmatprep.subr.bf16.mxu0 0
        %3248 = vmatpush1.bf16.xpose.msra.mxu0 0
        %3249 = vmatprep.subr.bf16.mxu0 0
        %3250 = vmatpush1.bf16.xpose.msra.mxu0 0
        %3251 = vmatprep.subr.bf16.mxu0 0
        %3252 = vmatpush1.bf16.xpose.msra.mxu0 0
        %3253 = vmatprep.subr.bf16.mxu0 0
        %3254 = vmatpush1.bf16.xpose.msra.mxu0 0
        %3255 = vmatprep.subr.bf16.mxu0 0
        %3256 = vmatpush1.bf16.xpose.msra.mxu0 0
        %3257 = vmatprep.subr.bf16.mxu0 0
        %3258 = vmatpush1.bf16.xpose.msra.mxu0 0
        %3259 = vmatprep.subr.bf16.mxu0 0
        %3260 = vmatpush1.bf16.xpose.msra.mxu0 0
        %3261 = vmatprep.subr.bf16.mxu0 0
        %3262 = vmatpush1.bf16.xpose.msra.mxu0 0
        %3263 = vmatprep.subr.bf16.mxu0 0
        %3264 = vmatpush1.bf16.xpose.msra.mxu0 0
        %3265 = vmatprep.subr.bf16.mxu0 0
        %3266 = vmatpush1.bf16.xpose.msra.mxu0 0
        %3267 = vmatprep.mubr.bf16.mxu0 %v3212
        %3268 = vmatmul.mubr.bf16.gmra.mrb[0].mxu0 %v3211
        %v3269 = vpop.f32.mrb[0].mxu0
        %v3270 = vadd.f32 0.0, %v3269
        %v3271 = vpop.f32.mrb[0].mxu0
        %v3272 = vpop.f32.mrb[0].mxu0
        %v3273 = vadd.f32 0.0, %v3272
        %v3274 = vpop.f32.mrb[0].mxu0
        %3275 = vmatprep.mubr.bf16.mxu0 %v3214
        %3276 = vmatmul.mubr.bf16.gmra.mrb[0].mxu0 %v3213
        %v3277 = vpop.f32.mrb[0].mxu0
        %v3278 = vadd.f32 0.0, %v3277
        %v3279 = vpop.f32.mrb[0].mxu0
        %v3280 = vpop.f32.mrb[0].mxu0
        %v3281 = vadd.f32 0.0, %v3280
        %v3282 = vpop.f32.mrb[0].mxu0
        %3283 = vmatprep.mubr.bf16.mxu0 %v3216
        %3284 = vmatmul.mubr.bf16.gmra.mrb[0].mxu0 %v3215
        %v3285 = vpop.f32.mrb[0].mxu0
        %v3286 = vadd.f32 0.0, %v3285
        %v3287 = vpop.f32.mrb[0].mxu0
        %v3288 = vpop.f32.mrb[0].mxu0
        %v3289 = vadd.f32 0.0, %v3288
        %v3290 = vpop.f32.mrb[0].mxu0
        %3291 = vmatprep.mubr.bf16.mxu0 %v3218
        %3292 = vmatmul.mubr.bf16.gmra.mrb[0].mxu0 %v3217
        %v3293 = vpop.f32.mrb[0].mxu0
        %v3294 = vadd.f32 0.0, %v3293
        %v3295 = vpop.f32.mrb[0].mxu0
        %v3296 = vpop.f32.mrb[0].mxu0
        %v3297 = vadd.f32 0.0, %v3296
        %v3298 = vpop.f32.mrb[0].mxu0
        %3299 = vmatprep.mubr.bf16.mxu0 %v3220
        %3300 = vmatmul.mubr.bf16.gmra.mrb[0].mxu0 %v3219
        %v3301 = vpop.f32.mrb[0].mxu0
        %v3302 = vadd.f32 0.0, %v3301
        %v3303 = vpop.f32.mrb[0].mxu0
        %v3304 = vpop.f32.mrb[0].mxu0
        %v3305 = vadd.f32 0.0, %v3304
        %v3306 = vpop.f32.mrb[0].mxu0
        %3307 = vmatprep.mubr.bf16.mxu0 %v3222
        %3308 = vmatmul.mubr.bf16.gmra.mrb[0].mxu0 %v3221
        %v3309 = vpop.f32.mrb[0].mxu0
        %v3310 = vadd.f32 0.0, %v3309
        %v3311 = vpop.f32.mrb[0].mxu0
        %v3312 = vpop.f32.mrb[0].mxu0
        %v3313 = vadd.f32 0.0, %v3312
        %v3314 = vpop.f32.mrb[0].mxu0
        %3315 = vmatprep.mubr.bf16.mxu0 %v3224
        %3316 = vmatmul.mubr.bf16.gmra.mrb[0].mxu0 %v3223
        %v3317 = vpop.f32.mrb[0].mxu0
        %v3318 = vadd.f32 0.0, %v3317
        %v3319 = vpop.f32.mrb[0].mxu0
        %v3320 = vpop.f32.mrb[0].mxu0
        %v3321 = vadd.f32 0.0, %v3320
        %v3322 = vpop.f32.mrb[0].mxu0
        %3323 = vmatprep.mubr.bf16.mxu0 %v3226
        %3324 = vmatmul.mubr.bf16.gmra.mrb[0].mxu0 %v3225
        %v3325 = vpop.f32.mrb[0].mxu0
        %v3326 = vadd.f32 0.0, %v3325
        %v3327 = vpop.f32.mrb[0].mxu0
        %v3328 = vpop.f32.mrb[0].mxu0
        %v3329 = vadd.f32 0.0, %v3328
        %v3330 = vpop.f32.mrb[0].mxu0
        %3331 = vmatprep.mubr.bf16.mxu0 %v3228
        %3332 = vmatmul.mubr.bf16.gmra.mrb[0].mxu0 %v3227
        %v3333 = vpop.f32.mrb[0].mxu0
        %v3334 = vadd.f32 0.0, %v3333
        %v3335 = vpop.f32.mrb[0].mxu0
        %v3336 = vpop.f32.mrb[0].mxu0
        %v3337 = vadd.f32 0.0, %v3336
        %v3338 = vpop.f32.mrb[0].mxu0
        %3339 = vmatprep.mubr.bf16.mxu0 %v3230
        %3340 = vmatmul.mubr.bf16.gmra.mrb[0].mxu0 %v3229
        %v3341 = vpop.f32.mrb[0].mxu0
        %v3342 = vadd.f32 0.0, %v3341
        %v3343 = vpop.f32.mrb[0].mxu0
        %v3344 = vpop.f32.mrb[0].mxu0
        %v3345 = vadd.f32 0.0, %v3344
        %v3346 = vpop.f32.mrb[0].mxu0
        %3347 = vmatprep.mubr.bf16.mxu0 %v3232
        %3348 = vmatmul.mubr.bf16.gmra.mrb[0].mxu0 %v3231
        %v3349 = vpop.f32.mrb[0].mxu0
        %v3350 = vadd.f32 0.0, %v3349
        %v3351 = vpop.f32.mrb[0].mxu0
        %v3352 = vpop.f32.mrb[0].mxu0
        %v3353 = vadd.f32 0.0, %v3352
        %v3354 = vpop.f32.mrb[0].mxu0
        %3355 = vmatprep.mubr.bf16.mxu0 %v3234
        %3356 = vmatmul.mubr.bf16.gmra.mrb[0].mxu0 %v3233
        %v3357 = vpop.f32.mrb[0].mxu0
        %v3358 = vadd.f32 0.0, %v3357
        %v3359 = vpop.f32.mrb[0].mxu0
        %v3360 = vpop.f32.mrb[0].mxu0
        %v3361 = vadd.f32 0.0, %v3360
        %v3362 = vpop.f32.mrb[0].mxu0
        %3363 = vdwg.mxu0
        %v3364 = vpack.c.bf16 %v3337, %v3334
        %v3365 = vpack.c.bf16 %v3345, %v3342
        %v3366 = vpack.c.bf16 %v3353, %v3350
        %v3367 = vpack.c.bf16 %v3361, %v3358
        %v3368 = vmul.f32 %v2848, %v3270
        %v3369 = vmul.f32 %v2849, %v3273
        %v3370 = vmul.f32 %v2850, %v3278
        %v3371 = vmul.f32 %v2851, %v3281
        %v3372 = vmul.f32 %v2852, %v3286
        %v3373 = vmul.f32 %v2853, %v3289
        %v3374 = vmul.f32 %v2854, %v3294
        %v3375 = vmul.f32 %v2855, %v3297
        %v3376 = vmul.f32 %v2856, %v3302
        %v3377 = vmul.f32 %v2857, %v3305
        %v3378 = vmul.f32 %v2858, %v3310
        %v3379 = vmul.f32 %v2859, %v3313
        %v3380 = vmul.f32 %v2860, %v3318
        %v3381 = vmul.f32 %v2861, %v3321
        %v3382 = vmul.f32 %v2862, %v3326
        %v3383 = vmul.f32 %v2863, %v3329
        %v3385 = vsel %vm726, %v2864, 0
        %v3388 = vsel %vm726, %v2865, 0
        %v3391 = vsel %vm726, %v2866, 0
        %v3394 = vsel %vm726, %v2867, 0
        %v3397 = vsel %vm726, %v2868, 0
        %v3400 = vsel %vm726, %v2869, 0
        %v3403 = vsel %vm726, %v2870, 0
        %v3406 = vsel %vm726, %v2871, 0
        %3408 = vmatprep.subr.bf16.mxu0 0
        %3409 = vmatpush1.bf16.msra.mxu0 %v3364
        %3410 = vmatprep.subr.bf16.mxu0 0
        %3411 = vmatpush1.bf16.msra.mxu0 %v3365
        %3412 = vmatprep.subr.bf16.mxu0 0
        %3413 = vmatpush1.bf16.msra.mxu0 %v3366
        %3414 = vmatprep.subr.bf16.mxu0 0
        %3415 = vmatpush1.bf16.msra.mxu0 %v3367
        %3416 = vmatprep.subr.bf16.mxu0 0
        %3417 = vmatpush1.bf16.msra.mxu0 0
        %3418 = vmatprep.subr.bf16.mxu0 0
        %3419 = vmatpush1.bf16.msra.mxu0 0
        %3420 = vmatprep.subr.bf16.mxu0 0
        %3421 = vmatpush1.bf16.msra.mxu0 0
        %3422 = vmatprep.subr.bf16.mxu0 0
        %3423 = vmatpush1.bf16.msra.mxu0 0
        %3424 = vmatprep.subr.bf16.mxu0 0
        %3425 = vmatpush1.bf16.msra.mxu0 0
        %3426 = vmatprep.subr.bf16.mxu0 0
        %3427 = vmatpush1.bf16.msra.mxu0 0
        %3428 = vmatprep.subr.bf16.mxu0 0
        %3429 = vmatpush1.bf16.msra.mxu0 0
        %3430 = vmatprep.subr.bf16.mxu0 0
        %3431 = vmatpush1.bf16.msra.mxu0 0
        %3432 = vmatprep.subr.bf16.mxu0 0
        %3433 = vmatpush1.bf16.msra.mxu0 0
        %3434 = vmatprep.subr.bf16.mxu0 0
        %3435 = vmatpush1.bf16.msra.mxu0 0
        %3436 = vmatprep.subr.bf16.mxu0 0
        %3437 = vmatpush1.bf16.msra.mxu0 0
        %3438 = vmatprep.subr.bf16.mxu0 0
        %3439 = vmatpush1.bf16.msra.mxu0 0
        %3440 = vmatprep.mubr.bf16.mxu0 0
        %3441 = vmatmul.mubr.bf16.gmra.mrb[0].mxu0 %v3385
        %v3442 = vpop.f32.mrb[0].mxu0
        %v3443 = vadd.f32 1e-06, %v3442
        %v3444 = vpop.f32.mrb[0].mxu0
        %v3445 = vpop.f32.mrb[0].mxu0
        %v3446 = vadd.f32 1e-06, %v3445
        %v3447 = vpop.f32.mrb[0].mxu0
        %3448 = vmatprep.mubr.bf16.mxu0 0
        %3449 = vmatmul.mubr.bf16.gmra.mrb[0].mxu0 %v3388
        %v3450 = vpop.f32.mrb[0].mxu0
        %v3451 = vadd.f32 1e-06, %v3450
        %v3452 = vpop.f32.mrb[0].mxu0
        %v3453 = vpop.f32.mrb[0].mxu0
        %v3454 = vadd.f32 1e-06, %v3453
        %v3455 = vpop.f32.mrb[0].mxu0
        %3456 = vmatprep.mubr.bf16.mxu0 0
        %3457 = vmatmul.mubr.bf16.gmra.mrb[0].mxu0 %v3391
        %v3458 = vpop.f32.mrb[0].mxu0
        %v3459 = vadd.f32 1e-06, %v3458
        %v3460 = vpop.f32.mrb[0].mxu0
        %v3461 = vpop.f32.mrb[0].mxu0
        %v3462 = vadd.f32 1e-06, %v3461
        %v3463 = vpop.f32.mrb[0].mxu0
        %3464 = vmatprep.mubr.bf16.mxu0 0
        %3465 = vmatmul.mubr.bf16.gmra.mrb[0].mxu0 %v3394
        %v3466 = vpop.f32.mrb[0].mxu0
        %v3467 = vadd.f32 1e-06, %v3466
        %v3468 = vpop.f32.mrb[0].mxu0
        %v3469 = vpop.f32.mrb[0].mxu0
        %v3470 = vadd.f32 1e-06, %v3469
        %v3471 = vpop.f32.mrb[0].mxu0
        %3472 = vmatprep.mubr.bf16.mxu0 0
        %3473 = vmatmul.mubr.bf16.gmra.mrb[0].mxu0 %v3397
        %v3474 = vpop.f32.mrb[0].mxu0
        %v3475 = vadd.f32 1e-06, %v3474
        %v3476 = vpop.f32.mrb[0].mxu0
        %v3477 = vpop.f32.mrb[0].mxu0
        %v3478 = vadd.f32 1e-06, %v3477
        %v3479 = vpop.f32.mrb[0].mxu0
        %3480 = vmatprep.mubr.bf16.mxu0 0
        %3481 = vmatmul.mubr.bf16.gmra.mrb[0].mxu0 %v3400
        %v3482 = vpop.f32.mrb[0].mxu0
        %v3483 = vadd.f32 1e-06, %v3482
        %v3484 = vpop.f32.mrb[0].mxu0
        %v3485 = vpop.f32.mrb[0].mxu0
        %v3486 = vadd.f32 1e-06, %v3485
        %v3487 = vpop.f32.mrb[0].mxu0
        %3488 = vmatprep.mubr.bf16.mxu0 0
        %3489 = vmatmul.mubr.bf16.gmra.mrb[0].mxu0 %v3403
        %v3490 = vpop.f32.mrb[0].mxu0
        %v3491 = vadd.f32 1e-06, %v3490
        %v3492 = vpop.f32.mrb[0].mxu0
        %v3493 = vpop.f32.mrb[0].mxu0
        %v3494 = vadd.f32 1e-06, %v3493
        %v3495 = vpop.f32.mrb[0].mxu0
        %3496 = vmatprep.mubr.bf16.mxu0 0
        %3497 = vmatmul.mubr.bf16.gmra.mrb[0].mxu0 %v3406
        %v3498 = vpop.f32.mrb[0].mxu0
        %v3499 = vadd.f32 1e-06, %v3498
        %v3500 = vpop.f32.mrb[0].mxu0
        %v3501 = vpop.f32.mrb[0].mxu0
        %v3502 = vadd.f32 1e-06, %v3501
        %v3503 = vpop.f32.mrb[0].mxu0
        %3504 = vdwg.mxu0
        %v3505 = vrcp.pop %v3443
        %v3506 = vrcp.pop %v3446
        %v3507 = vrcp.pop %v3451
        %v3508 = vrcp.pop %v3454
        %v3509 = vrcp.pop %v3459
        %v3510 = vrcp.pop %v3462
        %v3511 = vrcp.pop %v3467
        %v3512 = vrcp.pop %v3470
        %v3513 = vrcp.pop %v3475
        %v3514 = vrcp.pop %v3478
        %v3515 = vrcp.pop %v3483
        %v3516 = vrcp.pop %v3486
        %v3517 = vrcp.pop %v3491
        %v3518 = vrcp.pop %v3494
        %v3519 = vrcp.pop %v3499
        %v3520 = vrcp.pop %v3502
        %v3521 = vmul.f32 %v3368, %v3505
        %v3522 = vmul.f32 %v3369, %v3506
        %v3523 = vmul.f32 %v3370, %v3507
        %v3524 = vmul.f32 %v3371, %v3508
        %v3525 = vmul.f32 %v3372, %v3509
        %v3526 = vmul.f32 %v3373, %v3510
        %v3527 = vmul.f32 %v3374, %v3511
        %v3528 = vmul.f32 %v3375, %v3512
        %v3529 = vmul.f32 %v3376, %v3513
        %v3530 = vmul.f32 %v3377, %v3514
        %v3531 = vmul.f32 %v3378, %v3515
        %v3532 = vmul.f32 %v3379, %v3516
        %v3533 = vmul.f32 %v3380, %v3517
        %v3534 = vmul.f32 %v3381, %v3518
        %v3535 = vmul.f32 %v3382, %v3519
        %v3536 = vmul.f32 %v3383, %v3520
        %v3537 = vpack.c.bf16 %v3522, %v3521
        %v3538 = vpack.c.bf16 %v3524, %v3523
        %v3539 = vpack.c.bf16 %v3526, %v3525
        %v3540 = vpack.c.bf16 %v3528, %v3527
        %v3541 = vpack.c.bf16 %v3530, %v3529
        %v3542 = vpack.c.bf16 %v3532, %v3531
        %v3543 = vpack.c.bf16 %v3534, %v3533
        %v3544 = vpack.c.bf16 %v3536, %v3535
        %3545 = vst.msk [vmem:[#allocation2 + $0x10] sm:$0xff] %vm726, %v3537
        %3546 = vst.msk [vmem:[#allocation2 + $0x28] sm:$0xff] %vm726, %v3538
        %3547 = vst.msk [vmem:[#allocation2 + $0x40] sm:$0xff] %vm726, %v3539
        %3548 = vst.msk [vmem:[#allocation2 + $0x58] sm:$0xff] %vm726, %v3540
        %3549 = vst.msk [vmem:[#allocation2 + $0x70] sm:$0xff] %vm726, %v3541
        %3550 = vst.msk [vmem:[#allocation2 + $0x88] sm:$0xff] %vm726, %v3542
        %3551 = vst.msk [vmem:[#allocation2 + $0xa0] sm:$0xff] %vm726, %v3543
        %3552 = vst.msk [vmem:[#allocation2 + $0xb8] sm:$0xff] %vm726, %v3544
        %v3553 = vld [vmem:[#allocation2] sm:$0xff]
        %v3554 = vld [vmem:[#allocation2 + $0x8] sm:$0xff]
        %v3555 = vld [vmem:[#allocation2 + $0x10] sm:$0xff]
        %v3556 = vld [vmem:[#allocation2 + $0x18] sm:$0xff]
        %v3557 = vld [vmem:[#allocation2 + $0x20] sm:$0xff]
        %v3558 = vld [vmem:[#allocation2 + $0x28] sm:$0xff]
        %v3559 = vld [vmem:[#allocation2 + $0x30] sm:$0xff]
        %v3560 = vld [vmem:[#allocation2 + $0x38] sm:$0xff]
        %v3561 = vld [vmem:[#allocation2 + $0x40] sm:$0xff]
        %v3562 = vld [vmem:[#allocation2 + $0x48] sm:$0xff]
        %v3563 = vld [vmem:[#allocation2 + $0x50] sm:$0xff]
        %v3564 = vld [vmem:[#allocation2 + $0x58] sm:$0xff]
        %v3565 = vld [vmem:[#allocation2 + $0x60] sm:$0xff]
        %v3566 = vld [vmem:[#allocation2 + $0x68] sm:$0xff]
        %v3567 = vld [vmem:[#allocation2 + $0x70] sm:$0xff]
        %v3568 = vld [vmem:[#allocation2 + $0x78] sm:$0xff]
        %v3569 = vld [vmem:[#allocation2 + $0x80] sm:$0xff]
        %v3570 = vld [vmem:[#allocation2 + $0x88] sm:$0xff]
        %v3571 = vld [vmem:[#allocation2 + $0x90] sm:$0xff]
        %v3572 = vld [vmem:[#allocation2 + $0x98] sm:$0xff]
        %v3573 = vld [vmem:[#allocation2 + $0xa0] sm:$0xff]
        %v3574 = vld [vmem:[#allocation2 + $0xa8] sm:$0xff]
        %v3575 = vld [vmem:[#allocation2 + $0xb0] sm:$0xff]
        %v3576 = vld [vmem:[#allocation2 + $0xb8] sm:$0xff]
        %3577 = vxpose.xlu0.c.b16.start [1/8] %v3537, 128
        %3578 = vxpose.xlu0.c.b16.cont [2/8] %v3538, 128
        %3579 = vxpose.xlu0.c.b16.cont [3/8] %v3539, 128
        %3580 = vxpose.xlu0.c.b16.cont [4/8] %v3540, 128
        %3581 = vxpose.xlu0.c.b16.cont [5/8] %v3541, 128
        %3582 = vxpose.xlu0.c.b16.cont [6/8] %v3542, 128
        %3583 = vxpose.xlu0.c.b16.cont [7/8] %v3543, 128
        %3584 = vxpose.xlu0.c.b16.end [8/8] %v3544, 128
        %v3585 = vpop.trf.xlu0
        %v3586 = vpop.trf.xlu0
        %v3587 = vpop.trf.xlu0
        %v3588 = vpop.trf.xlu0
        %v3589 = vpop.trf.xlu0
        %v3590 = vpop.trf.xlu0
        %v3591 = vpop.trf.xlu0
        %v3592 = vpop.trf.xlu0
        %3593 = vmatprep.subr.bf16.mxu0 %v3554
        %3594 = vmatpush1.bf16.msra.mxu0 %v3553
        %3595 = vmatprep.subr.bf16.mxu0 %v3557
        %3596 = vmatpush1.bf16.msra.mxu0 %v3556
        %3597 = vmatprep.subr.bf16.mxu0 %v3560
        %3598 = vmatpush1.bf16.msra.mxu0 %v3559
        %3599 = vmatprep.subr.bf16.mxu0 %v3563
        %3600 = vmatpush1.bf16.msra.mxu0 %v3562
        %3601 = vmatprep.subr.bf16.mxu0 %v3566
        %3602 = vmatpush1.bf16.msra.mxu0 %v3565
        %3603 = vmatprep.subr.bf16.mxu0 %v3569
        %3604 = vmatpush1.bf16.msra.mxu0 %v3568
        %3605 = vmatprep.subr.bf16.mxu0 %v3572
        %3606 = vmatpush1.bf16.msra.mxu0 %v3571
        %3607 = vmatprep.subr.bf16.mxu0 %v3575
        %3608 = vmatpush1.bf16.msra.mxu0 %v3574
        %3609 = vmatprep.subr.bf16.mxu0 0
        %3610 = vmatpush1.bf16.msra.mxu0 0
        %3611 = vmatprep.subr.bf16.mxu0 0
        %3612 = vmatpush1.bf16.msra.mxu0 0
        %3613 = vmatprep.subr.bf16.mxu0 0
        %3614 = vmatpush1.bf16.msra.mxu0 0
        %3615 = vmatprep.subr.bf16.mxu0 0
        %3616 = vmatpush1.bf16.msra.mxu0 0
        %3617 = vmatprep.subr.bf16.mxu0 0
        %3618 = vmatpush1.bf16.msra.mxu0 0
        %3619 = vmatprep.subr.bf16.mxu0 0
        %3620 = vmatpush1.bf16.msra.mxu0 0
        %3621 = vmatprep.subr.bf16.mxu0 0
        %3622 = vmatpush1.bf16.msra.mxu0 0
        %3623 = vmatprep.subr.bf16.mxu0 0
        %3624 = vmatpush1.bf16.msra.mxu0 0
        %3625 = vmatprep.mubr.bf16.mxu0 0
        %3626 = vmatmul.mubr.bf16.gmra.mrb[0].mxu0 %v3585
        %v3627 = vpop.f32.mrb[0].mxu0
        %v3628 = vadd.f32 0.0, %v3627
        %v3629 = vpop.f32.mrb[0].mxu0
        %v3630 = vadd.f32 0.0, %v3629
        %v3631 = vpop.f32.mrb[0].mxu0
        %v3632 = vadd.f32 0.0, %v3631
        %v3633 = vpop.f32.mrb[0].mxu0
        %v3634 = vadd.f32 0.0, %v3633
        %3635 = vmatprep.mubr.bf16.mxu0 0
        %3636 = vmatmul.mubr.bf16.gmra.mrb[0].mxu0 %v3586
        %v3637 = vpop.f32.mrb[0].mxu0
        %v3638 = vadd.f32 0.0, %v3637
        %v3639 = vpop.f32.mrb[0].mxu0
        %v3640 = vadd.f32 0.0, %v3639
        %v3641 = vpop.f32.mrb[0].mxu0
        %v3642 = vadd.f32 0.0, %v3641
        %v3643 = vpop.f32.mrb[0].mxu0
        %v3644 = vadd.f32 0.0, %v3643
        %3645 = vmatprep.mubr.bf16.mxu0 0
        %3646 = vmatmul.mubr.bf16.gmra.mrb[0].mxu0 %v3587
        %v3647 = vpop.f32.mrb[0].mxu0
        %v3648 = vadd.f32 0.0, %v3647
        %v3649 = vpop.f32.mrb[0].mxu0
        %v3650 = vadd.f32 0.0, %v3649
        %v3651 = vpop.f32.mrb[0].mxu0
        %v3652 = vadd.f32 0.0, %v3651
        %v3653 = vpop.f32.mrb[0].mxu0
        %v3654 = vadd.f32 0.0, %v3653
        %3655 = vmatprep.mubr.bf16.mxu0 0
        %3656 = vmatmul.mubr.bf16.gmra.mrb[0].mxu0 %v3588
        %v3657 = vpop.f32.mrb[0].mxu0
        %v3658 = vadd.f32 0.0, %v3657
        %v3659 = vpop.f32.mrb[0].mxu0
        %v3660 = vadd.f32 0.0, %v3659
        %v3661 = vpop.f32.mrb[0].mxu0
        %v3662 = vadd.f32 0.0, %v3661
        %v3663 = vpop.f32.mrb[0].mxu0
        %v3664 = vadd.f32 0.0, %v3663
        %3665 = vdwg.mxu0
        %3666 = vmatprep.subr.bf16.mxu0 0
        %3667 = vmatpush1.bf16.msra.mxu0 %v3555
        %3668 = vmatprep.subr.bf16.mxu0 0
        %3669 = vmatpush1.bf16.msra.mxu0 %v3558
        %3670 = vmatprep.subr.bf16.mxu0 0
        %3671 = vmatpush1.bf16.msra.mxu0 %v3561
        %3672 = vmatprep.subr.bf16.mxu0 0
        %3673 = vmatpush1.bf16.msra.mxu0 %v3564
        %3674 = vmatprep.subr.bf16.mxu0 0
        %3675 = vmatpush1.bf16.msra.mxu0 %v3567
        %3676 = vmatprep.subr.bf16.mxu0 0
        %3677 = vmatpush1.bf16.msra.mxu0 %v3570
        %3678 = vmatprep.subr.bf16.mxu0 0
        %3679 = vmatpush1.bf16.msra.mxu0 %v3573
        %3680 = vmatprep.subr.bf16.mxu0 0
        %3681 = vmatpush1.bf16.msra.mxu0 %v3576
        %3682 = vmatprep.subr.bf16.mxu0 0
        %3683 = vmatpush1.bf16.msra.mxu0 0
        %3684 = vmatprep.subr.bf16.mxu0 0
        %3685 = vmatpush1.bf16.msra.mxu0 0
        %3686 = vmatprep.subr.bf16.mxu0 0
        %3687 = vmatpush1.bf16.msra.mxu0 0
        %3688 = vmatprep.subr.bf16.mxu0 0
        %3689 = vmatpush1.bf16.msra.mxu0 0
        %3690 = vmatprep.subr.bf16.mxu0 0
        %3691 = vmatpush1.bf16.msra.mxu0 0
        %3692 = vmatprep.subr.bf16.mxu0 0
        %3693 = vmatpush1.bf16.msra.mxu0 0
        %3694 = vmatprep.subr.bf16.mxu0 0
        %3695 = vmatpush1.bf16.msra.mxu0 0
        %3696 = vmatprep.subr.bf16.mxu0 0
        %3697 = vmatpush1.bf16.msra.mxu0 0
        %3698 = vmatprep.mubr.bf16.mxu0 0
        %3699 = vmatmul.mubr.bf16.gmra.mrb[0].mxu0 %v3585
        %v3700 = vpop.f32.mrb[0].mxu0
        %v3701 = vadd.f32 0.0, %v3700
        %v3702 = vpop.f32.mrb[0].mxu0
        %v3703 = vpop.f32.mrb[0].mxu0
        %v3704 = vadd.f32 0.0, %v3703
        %v3705 = vpop.f32.mrb[0].mxu0
        %3706 = vmatprep.mubr.bf16.mxu0 0
        %3707 = vmatmul.mubr.bf16.gmra.mrb[0].mxu0 %v3586
        %v3708 = vpop.f32.mrb[0].mxu0
        %v3709 = vadd.f32 0.0, %v3708
        %v3710 = vpop.f32.mrb[0].mxu0
        %v3711 = vpop.f32.mrb[0].mxu0
        %v3712 = vadd.f32 0.0, %v3711
        %v3713 = vpop.f32.mrb[0].mxu0
        %3714 = vmatprep.mubr.bf16.mxu0 0
        %3715 = vmatmul.mubr.bf16.gmra.mrb[0].mxu0 %v3587
        %v3716 = vpop.f32.mrb[0].mxu0
        %v3717 = vadd.f32 0.0, %v3716
        %v3718 = vpop.f32.mrb[0].mxu0
        %v3719 = vpop.f32.mrb[0].mxu0
        %v3720 = vadd.f32 0.0, %v3719
        %v3721 = vpop.f32.mrb[0].mxu0
        %3722 = vmatprep.mubr.bf16.mxu0 0
        %3723 = vmatmul.mubr.bf16.gmra.mrb[0].mxu0 %v3588
        %v3724 = vpop.f32.mrb[0].mxu0
        %v3725 = vadd.f32 0.0, %v3724
        %v3726 = vpop.f32.mrb[0].mxu0
        %v3727 = vpop.f32.mrb[0].mxu0
        %v3728 = vadd.f32 0.0, %v3727
        %v3729 = vpop.f32.mrb[0].mxu0
        %3730 = vdwg.mxu0
        %v3731 = vpack.c.bf16 %v3704, %v3701
        %v3732 = vpack.c.bf16 %v3712, %v3709
        %v3733 = vpack.c.bf16 %v3720, %v3717
        %v3734 = vpack.c.bf16 %v3728, %v3725
        %v3735 = vmul.f32 %v3179, %v3628
        %v3736 = vmul.f32 %v3180, %v3630
        %v3737 = vmul.f32 %v3181, %v3632
        %v3738 = vmul.f32 %v3182, %v3634
        %v3739 = vmul.f32 %v3183, %v3638
        %v3740 = vmul.f32 %v3184, %v3640
        %v3741 = vmul.f32 %v3185, %v3642
        %v3742 = vmul.f32 %v3186, %v3644
        %v3743 = vmul.f32 %v3187, %v3648
        %v3744 = vmul.f32 %v3188, %v3650
        %v3745 = vmul.f32 %v3189, %v3652
        %v3746 = vmul.f32 %v3190, %v3654
        %v3747 = vmul.f32 %v3191, %v3658
        %v3748 = vmul.f32 %v3192, %v3660
        %v3749 = vmul.f32 %v3193, %v3662
        %v3750 = vmul.f32 %v3194, %v3664
        %v3752 = vsel %vm726, %v3731, 0
        %v3755 = vsel %vm726, %v3732, 0
        %v3758 = vsel %vm726, %v3733, 0
        %v3761 = vsel %vm726, %v3734, 0
        %3763 = vmatprep.subr.bf16.mxu0 %v3196
        %3764 = vmatpush1.bf16.msra.mxu0 %v3195
        %3765 = vmatprep.subr.bf16.mxu0 %v3198
        %3766 = vmatpush1.bf16.msra.mxu0 %v3197
        %3767 = vmatprep.subr.bf16.mxu0 %v3200
        %3768 = vmatpush1.bf16.msra.mxu0 %v3199
        %3769 = vmatprep.subr.bf16.mxu0 %v3202
        %3770 = vmatpush1.bf16.msra.mxu0 %v3201
        %3771 = vmatprep.subr.bf16.mxu0 0
        %3772 = vmatpush1.bf16.msra.mxu0 0
        %3773 = vmatprep.subr.bf16.mxu0 0
        %3774 = vmatpush1.bf16.msra.mxu0 0
        %3775 = vmatprep.subr.bf16.mxu0 0
        %3776 = vmatpush1.bf16.msra.mxu0 0
        %3777 = vmatprep.subr.bf16.mxu0 0
        %3778 = vmatpush1.bf16.msra.mxu0 0
        %3779 = vmatprep.subr.bf16.mxu0 0
        %3780 = vmatpush1.bf16.msra.mxu0 0
        %3781 = vmatprep.subr.bf16.mxu0 0
        %3782 = vmatpush1.bf16.msra.mxu0 0
        %3783 = vmatprep.subr.bf16.mxu0 0
        %3784 = vmatpush1.bf16.msra.mxu0 0
        %3785 = vmatprep.subr.bf16.mxu0 0
        %3786 = vmatpush1.bf16.msra.mxu0 0
        %3787 = vmatprep.subr.bf16.mxu0 0
        %3788 = vmatpush1.bf16.msra.mxu0 0
        %3789 = vmatprep.subr.bf16.mxu0 0
        %3790 = vmatpush1.bf16.msra.mxu0 0
        %3791 = vmatprep.subr.bf16.mxu0 0
        %3792 = vmatpush1.bf16.msra.mxu0 0
        %3793 = vmatprep.subr.bf16.mxu0 0
        %3794 = vmatpush1.bf16.msra.mxu0 0
        %3795 = vmatprep.mubr.bf16.mxu0 0
        %3796 = vmatmul.mubr.bf16.gmra.mrb[0].mxu0 %v3752
        %v3797 = vpop.f32.mrb[0].mxu0
        %v3798 = vadd.f32 1e-06, %v3797
        %v3799 = vpop.f32.mrb[0].mxu0
        %v3800 = vadd.f32 1e-06, %v3799
        %v3801 = vpop.f32.mrb[0].mxu0
        %v3802 = vadd.f32 1e-06, %v3801
        %v3803 = vpop.f32.mrb[0].mxu0
        %v3804 = vadd.f32 1e-06, %v3803
        %3805 = vmatprep.mubr.bf16.mxu0 0
        %3806 = vmatmul.mubr.bf16.gmra.mrb[0].mxu0 %v3755
        %v3807 = vpop.f32.mrb[0].mxu0
        %v3808 = vadd.f32 1e-06, %v3807
        %v3809 = vpop.f32.mrb[0].mxu0
        %v3810 = vadd.f32 1e-06, %v3809
        %v3811 = vpop.f32.mrb[0].mxu0
        %v3812 = vadd.f32 1e-06, %v3811
        %v3813 = vpop.f32.mrb[0].mxu0
        %v3814 = vadd.f32 1e-06, %v3813
        %3815 = vmatprep.mubr.bf16.mxu0 0
        %3816 = vmatmul.mubr.bf16.gmra.mrb[0].mxu0 %v3758
        %v3817 = vpop.f32.mrb[0].mxu0
        %v3818 = vadd.f32 1e-06, %v3817
        %v3819 = vpop.f32.mrb[0].mxu0
        %v3820 = vadd.f32 1e-06, %v3819
        %v3821 = vpop.f32.mrb[0].mxu0
        %v3822 = vadd.f32 1e-06, %v3821
        %v3823 = vpop.f32.mrb[0].mxu0
        %v3824 = vadd.f32 1e-06, %v3823
        %3825 = vmatprep.mubr.bf16.mxu0 0
        %3826 = vmatmul.mubr.bf16.gmra.mrb[0].mxu0 %v3761
        %v3827 = vpop.f32.mrb[0].mxu0
        %v3828 = vadd.f32 1e-06, %v3827
        %v3829 = vpop.f32.mrb[0].mxu0
        %v3830 = vadd.f32 1e-06, %v3829
        %v3831 = vpop.f32.mrb[0].mxu0
        %v3832 = vadd.f32 1e-06, %v3831
        %v3833 = vpop.f32.mrb[0].mxu0
        %v3834 = vadd.f32 1e-06, %v3833
        %3835 = vdwg.mxu0
        %v3836 = vrcp.pop %v3798
        %v3837 = vrcp.pop %v3800
        %v3838 = vrcp.pop %v3802
        %v3839 = vrcp.pop %v3804
        %v3840 = vrcp.pop %v3808
        %v3841 = vrcp.pop %v3810
        %v3842 = vrcp.pop %v3812
        %v3843 = vrcp.pop %v3814
        %v3844 = vrcp.pop %v3818
        %v3845 = vrcp.pop %v3820
        %v3846 = vrcp.pop %v3822
        %v3847 = vrcp.pop %v3824
        %v3848 = vrcp.pop %v3828
        %v3849 = vrcp.pop %v3830
        %v3850 = vrcp.pop %v3832
        %v3851 = vrcp.pop %v3834
        %v3852 = vmul.f32 %v3735, %v3836
        %v3853 = vmul.f32 %v3736, %v3837
        %v3854 = vmul.f32 %v3737, %v3838
        %v3855 = vmul.f32 %v3738, %v3839
        %v3856 = vmul.f32 %v3739, %v3840
        %v3857 = vmul.f32 %v3740, %v3841
        %v3858 = vmul.f32 %v3741, %v3842
        %v3859 = vmul.f32 %v3742, %v3843
        %v3860 = vmul.f32 %v3743, %v3844
        %v3861 = vmul.f32 %v3744, %v3845
        %v3862 = vmul.f32 %v3745, %v3846
        %v3863 = vmul.f32 %v3746, %v3847
        %v3864 = vmul.f32 %v3747, %v3848
        %v3865 = vmul.f32 %v3748, %v3849
        %v3866 = vmul.f32 %v3749, %v3850
        %v3867 = vmul.f32 %v3750, %v3851
        %v3868 = vpack.c.bf16 %v3854, %v3852
        %v3869 = vpack.c.bf16 %v3855, %v3853
        %v3870 = vpack.c.bf16 %v3858, %v3856
        %v3871 = vpack.c.bf16 %v3859, %v3857
        %v3872 = vpack.c.bf16 %v3862, %v3860
        %v3873 = vpack.c.bf16 %v3863, %v3861
        %v3874 = vpack.c.bf16 %v3866, %v3864
        %v3875 = vpack.c.bf16 %v3867, %v3865
        %3876 = vst [vmem:[#allocation3 + $0x80] sm:$0xff] %v3868
        %3877 = vst [vmem:[#allocation3 + $0x88] sm:$0xff] %v3869
        %3878 = vst [vmem:[#allocation3 + $0x90] sm:$0xff] %v3870
        %3879 = vst [vmem:[#allocation3 + $0x98] sm:$0xff] %v3871
        %3880 = vst [vmem:[#allocation3 + $0xa0] sm:$0xff] %v3872
        %3881 = vst [vmem:[#allocation3 + $0xa8] sm:$0xff] %v3873
        %3882 = vst [vmem:[#allocation3 + $0xb0] sm:$0xff] %v3874
        %3883 = vst [vmem:[#allocation3 + $0xb8] sm:$0xff] %v3875
        %v3884 = vld [vmem:[#allocation3] sm:$0xff]
        %v3885 = vld [vmem:[#allocation3 + $0x8] sm:$0xff]
        %v3886 = vld [vmem:[#allocation3 + $0x10] sm:$0xff]
        %v3887 = vld [vmem:[#allocation3 + $0x18] sm:$0xff]
        %v3888 = vld [vmem:[#allocation3 + $0x20] sm:$0xff]
        %v3889 = vld [vmem:[#allocation3 + $0x28] sm:$0xff]
        %v3890 = vld [vmem:[#allocation3 + $0x30] sm:$0xff]
        %v3891 = vld [vmem:[#allocation3 + $0x38] sm:$0xff]
        %v3892 = vld [vmem:[#allocation3 + $0x40] sm:$0xff]
        %v3893 = vld [vmem:[#allocation3 + $0x48] sm:$0xff]
        %v3894 = vld [vmem:[#allocation3 + $0x50] sm:$0xff]
        %v3895 = vld [vmem:[#allocation3 + $0x58] sm:$0xff]
        %v3896 = vld [vmem:[#allocation3 + $0x60] sm:$0xff]
        %v3897 = vld [vmem:[#allocation3 + $0x68] sm:$0xff]
        %v3898 = vld [vmem:[#allocation3 + $0x70] sm:$0xff]
        %v3899 = vld [vmem:[#allocation3 + $0x78] sm:$0xff]
        %v3900 = vld [vmem:[#allocation3 + $0x80] sm:$0xff]
        %v3901 = vld [vmem:[#allocation3 + $0x88] sm:$0xff]
        %v3902 = vld [vmem:[#allocation3 + $0x90] sm:$0xff]
        %v3903 = vld [vmem:[#allocation3 + $0x98] sm:$0xff]
        %v3904 = vld [vmem:[#allocation3 + $0xa0] sm:$0xff]
        %v3905 = vld [vmem:[#allocation3 + $0xa8] sm:$0xff]
        %v3906 = vld [vmem:[#allocation3 + $0xb0] sm:$0xff]
        %v3907 = vld [vmem:[#allocation3 + $0xb8] sm:$0xff]
        %3908 = vmatprep.subr.bf16.mxu0 %v3869
        %3909 = vmatpush1.bf16.xpose.msra.mxu0 %v3868
        %3910 = vmatprep.subr.bf16.mxu0 %v3871
        %3911 = vmatpush1.bf16.xpose.msra.mxu0 %v3870
        %3912 = vmatprep.subr.bf16.mxu0 %v3873
        %3913 = vmatpush1.bf16.xpose.msra.mxu0 %v3872
        %3914 = vmatprep.subr.bf16.mxu0 %v3875
        %3915 = vmatpush1.bf16.xpose.msra.mxu0 %v3874
        %3916 = vmatprep.subr.bf16.mxu0 0
        %3917 = vmatpush1.bf16.xpose.msra.mxu0 0
        %3918 = vmatprep.subr.bf16.mxu0 0
        %3919 = vmatpush1.bf16.xpose.msra.mxu0 0
        %3920 = vmatprep.subr.bf16.mxu0 0
        %3921 = vmatpush1.bf16.xpose.msra.mxu0 0
        %3922 = vmatprep.subr.bf16.mxu0 0
        %3923 = vmatpush1.bf16.xpose.msra.mxu0 0
        %3924 = vmatprep.subr.bf16.mxu0 0
        %3925 = vmatpush1.bf16.xpose.msra.mxu0 0
        %3926 = vmatprep.subr.bf16.mxu0 0
        %3927 = vmatpush1.bf16.xpose.msra.mxu0 0
        %3928 = vmatprep.subr.bf16.mxu0 0
        %3929 = vmatpush1.bf16.xpose.msra.mxu0 0
        %3930 = vmatprep.subr.bf16.mxu0 0
        %3931 = vmatpush1.bf16.xpose.msra.mxu0 0
        %3932 = vmatprep.subr.bf16.mxu0 0
        %3933 = vmatpush1.bf16.xpose.msra.mxu0 0
        %3934 = vmatprep.subr.bf16.mxu0 0
        %3935 = vmatpush1.bf16.xpose.msra.mxu0 0
        %3936 = vmatprep.subr.bf16.mxu0 0
        %3937 = vmatpush1.bf16.xpose.msra.mxu0 0
        %3938 = vmatprep.subr.bf16.mxu0 0
        %3939 = vmatpush1.bf16.xpose.msra.mxu0 0
        %3940 = vmatprep.mubr.bf16.mxu0 %v3885
        %3941 = vmatmul.mubr.bf16.gmra.mrb[0].mxu0 %v3884
        %v3942 = vpop.f32.mrb[0].mxu0
        %v3943 = vadd.f32 0.0, %v3942
        %v3944 = vpop.f32.mrb[0].mxu0
        %v3945 = vpop.f32.mrb[0].mxu0
        %v3946 = vadd.f32 0.0, %v3945
        %v3947 = vpop.f32.mrb[0].mxu0
        %3948 = vmatprep.mubr.bf16.mxu0 %v3887
        %3949 = vmatmul.mubr.bf16.gmra.mrb[0].mxu0 %v3886
        %v3950 = vpop.f32.mrb[0].mxu0
        %v3951 = vadd.f32 0.0, %v3950
        %v3952 = vpop.f32.mrb[0].mxu0
        %v3953 = vpop.f32.mrb[0].mxu0
        %v3954 = vadd.f32 0.0, %v3953
        %v3955 = vpop.f32.mrb[0].mxu0
        %3956 = vmatprep.mubr.bf16.mxu0 %v3889
        %3957 = vmatmul.mubr.bf16.gmra.mrb[0].mxu0 %v3888
        %v3958 = vpop.f32.mrb[0].mxu0
        %v3959 = vadd.f32 0.0, %v3958
        %v3960 = vpop.f32.mrb[0].mxu0
        %v3961 = vpop.f32.mrb[0].mxu0
        %v3962 = vadd.f32 0.0, %v3961
        %v3963 = vpop.f32.mrb[0].mxu0
        %3964 = vmatprep.mubr.bf16.mxu0 %v3891
        %3965 = vmatmul.mubr.bf16.gmra.mrb[0].mxu0 %v3890
        %v3966 = vpop.f32.mrb[0].mxu0
        %v3967 = vadd.f32 0.0, %v3966
        %v3968 = vpop.f32.mrb[0].mxu0
        %v3969 = vpop.f32.mrb[0].mxu0
        %v3970 = vadd.f32 0.0, %v3969
        %v3971 = vpop.f32.mrb[0].mxu0
        %3972 = vmatprep.mubr.bf16.mxu0 %v3893
        %3973 = vmatmul.mubr.bf16.gmra.mrb[0].mxu0 %v3892
        %v3974 = vpop.f32.mrb[0].mxu0
        %v3975 = vadd.f32 0.0, %v3974
        %v3976 = vpop.f32.mrb[0].mxu0
        %v3977 = vpop.f32.mrb[0].mxu0
        %v3978 = vadd.f32 0.0, %v3977
        %v3979 = vpop.f32.mrb[0].mxu0
        %3980 = vmatprep.mubr.bf16.mxu0 %v3895
        %3981 = vmatmul.mubr.bf16.gmra.mrb[0].mxu0 %v3894
        %v3982 = vpop.f32.mrb[0].mxu0
        %v3983 = vadd.f32 0.0, %v3982
        %v3984 = vpop.f32.mrb[0].mxu0
        %v3985 = vpop.f32.mrb[0].mxu0
        %v3986 = vadd.f32 0.0, %v3985
        %v3987 = vpop.f32.mrb[0].mxu0
        %3988 = vmatprep.mubr.bf16.mxu0 %v3897
        %3989 = vmatmul.mubr.bf16.gmra.mrb[0].mxu0 %v3896
        %v3990 = vpop.f32.mrb[0].mxu0
        %v3991 = vadd.f32 0.0, %v3990
        %v3992 = vpop.f32.mrb[0].mxu0
        %v3993 = vpop.f32.mrb[0].mxu0
        %v3994 = vadd.f32 0.0, %v3993
        %v3995 = vpop.f32.mrb[0].mxu0
        %3996 = vmatprep.mubr.bf16.mxu0 %v3899
        %3997 = vmatmul.mubr.bf16.gmra.mrb[0].mxu0 %v3898
        %v3998 = vpop.f32.mrb[0].mxu0
        %v3999 = vadd.f32 0.0, %v3998
        %v4000 = vpop.f32.mrb[0].mxu0
        %v4001 = vpop.f32.mrb[0].mxu0
        %v4002 = vadd.f32 0.0, %v4001
        %v4003 = vpop.f32.mrb[0].mxu0
        %4004 = vmatprep.mubr.bf16.mxu0 %v3901
        %4005 = vmatmul.mubr.bf16.gmra.mrb[0].mxu0 %v3900
        %v4006 = vpop.f32.mrb[0].mxu0
        %v4007 = vadd.f32 0.0, %v4006
        %v4008 = vpop.f32.mrb[0].mxu0
        %v4009 = vpop.f32.mrb[0].mxu0
        %v4010 = vadd.f32 0.0, %v4009
        %v4011 = vpop.f32.mrb[0].mxu0
        %4012 = vmatprep.mubr.bf16.mxu0 %v3903
        %4013 = vmatmul.mubr.bf16.gmra.mrb[0].mxu0 %v3902
        %v4014 = vpop.f32.mrb[0].mxu0
        %v4015 = vadd.f32 0.0, %v4014
        %v4016 = vpop.f32.mrb[0].mxu0
        %v4017 = vpop.f32.mrb[0].mxu0
        %v4018 = vadd.f32 0.0, %v4017
        %v4019 = vpop.f32.mrb[0].mxu0
        %4020 = vmatprep.mubr.bf16.mxu0 %v3905
        %4021 = vmatmul.mubr.bf16.gmra.mrb[0].mxu0 %v3904
        %v4022 = vpop.f32.mrb[0].mxu0
        %v4023 = vadd.f32 0.0, %v4022
        %v4024 = vpop.f32.mrb[0].mxu0
        %v4025 = vpop.f32.mrb[0].mxu0
        %v4026 = vadd.f32 0.0, %v4025
        %v4027 = vpop.f32.mrb[0].mxu0
        %4028 = vmatprep.mubr.bf16.mxu0 %v3907
        %4029 = vmatmul.mubr.bf16.gmra.mrb[0].mxu0 %v3906
        %v4030 = vpop.f32.mrb[0].mxu0
        %v4031 = vadd.f32 0.0, %v4030
        %v4032 = vpop.f32.mrb[0].mxu0
        %v4033 = vpop.f32.mrb[0].mxu0
        %v4034 = vadd.f32 0.0, %v4033
        %v4035 = vpop.f32.mrb[0].mxu0
        %4036 = vdwg.mxu0
        %v4037 = vpack.c.bf16 %v4010, %v4007
        %v4038 = vpack.c.bf16 %v4018, %v4015
        %v4039 = vpack.c.bf16 %v4026, %v4023
        %v4040 = vpack.c.bf16 %v4034, %v4031
        %v4041 = vmul.f32 %v3521, %v3943
        %v4042 = vmul.f32 %v3522, %v3946
        %v4043 = vmul.f32 %v3523, %v3951
        %v4044 = vmul.f32 %v3524, %v3954
        %v4045 = vmul.f32 %v3525, %v3959
        %v4046 = vmul.f32 %v3526, %v3962
        %v4047 = vmul.f32 %v3527, %v3967
        %v4048 = vmul.f32 %v3528, %v3970
        %v4049 = vmul.f32 %v3529, %v3975
        %v4050 = vmul.f32 %v3530, %v3978
        %v4051 = vmul.f32 %v3531, %v3983
        %v4052 = vmul.f32 %v3532, %v3986
        %v4053 = vmul.f32 %v3533, %v3991
        %v4054 = vmul.f32 %v3534, %v3994
        %v4055 = vmul.f32 %v3535, %v3999
        %v4056 = vmul.f32 %v3536, %v4002
        %v4058 = vsel %vm726, %v3537, 0
        %v4061 = vsel %vm726, %v3538, 0
        %v4064 = vsel %vm726, %v3539, 0
        %v4067 = vsel %vm726, %v3540, 0
        %v4070 = vsel %vm726, %v3541, 0
        %v4073 = vsel %vm726, %v3542, 0
        %v4076 = vsel %vm726, %v3543, 0
        %v4079 = vsel %vm726, %v3544, 0
        %4081 = vmatprep.subr.bf16.mxu0 0
        %4082 = vmatpush1.bf16.msra.mxu0 %v4037
        %4083 = vmatprep.subr.bf16.mxu0 0
        %4084 = vmatpush1.bf16.msra.mxu0 %v4038
        %4085 = vmatprep.subr.bf16.mxu0 0
        %4086 = vmatpush1.bf16.msra.mxu0 %v4039
        %4087 = vmatprep.subr.bf16.mxu0 0
        %4088 = vmatpush1.bf16.msra.mxu0 %v4040
        %4089 = vmatprep.subr.bf16.mxu0 0
        %4090 = vmatpush1.bf16.msra.mxu0 0
        %4091 = vmatprep.subr.bf16.mxu0 0
        %4092 = vmatpush1.bf16.msra.mxu0 0
        %4093 = vmatprep.subr.bf16.mxu0 0
        %4094 = vmatpush1.bf16.msra.mxu0 0
        %4095 = vmatprep.subr.bf16.mxu0 0
        %4096 = vmatpush1.bf16.msra.mxu0 0
        %4097 = vmatprep.subr.bf16.mxu0 0
        %4098 = vmatpush1.bf16.msra.mxu0 0
        %4099 = vmatprep.subr.bf16.mxu0 0
        %4100 = vmatpush1.bf16.msra.mxu0 0
        %4101 = vmatprep.subr.bf16.mxu0 0
        %4102 = vmatpush1.bf16.msra.mxu0 0
        %4103 = vmatprep.subr.bf16.mxu0 0
        %4104 = vmatpush1.bf16.msra.mxu0 0
        %4105 = vmatprep.subr.bf16.mxu0 0
        %4106 = vmatpush1.bf16.msra.mxu0 0
        %4107 = vmatprep.subr.bf16.mxu0 0
        %4108 = vmatpush1.bf16.msra.mxu0 0
        %4109 = vmatprep.subr.bf16.mxu0 0
        %4110 = vmatpush1.bf16.msra.mxu0 0
        %4111 = vmatprep.subr.bf16.mxu0 0
        %4112 = vmatpush1.bf16.msra.mxu0 0
        %4113 = vmatprep.mubr.bf16.mxu0 0
        %4114 = vmatmul.mubr.bf16.gmra.mrb[0].mxu0 %v4058
        %v4115 = vpop.f32.mrb[0].mxu0
        %v4116 = vadd.f32 1e-06, %v4115
        %v4117 = vpop.f32.mrb[0].mxu0
        %v4118 = vpop.f32.mrb[0].mxu0
        %v4119 = vadd.f32 1e-06, %v4118
        %v4120 = vpop.f32.mrb[0].mxu0
        %4121 = vmatprep.mubr.bf16.mxu0 0
        %4122 = vmatmul.mubr.bf16.gmra.mrb[0].mxu0 %v4061
        %v4123 = vpop.f32.mrb[0].mxu0
        %v4124 = vadd.f32 1e-06, %v4123
        %v4125 = vpop.f32.mrb[0].mxu0
        %v4126 = vpop.f32.mrb[0].mxu0
        %v4127 = vadd.f32 1e-06, %v4126
        %v4128 = vpop.f32.mrb[0].mxu0
        %4129 = vmatprep.mubr.bf16.mxu0 0
        %4130 = vmatmul.mubr.bf16.gmra.mrb[0].mxu0 %v4064
        %v4131 = vpop.f32.mrb[0].mxu0
        %v4132 = vadd.f32 1e-06, %v4131
        %v4133 = vpop.f32.mrb[0].mxu0
        %v4134 = vpop.f32.mrb[0].mxu0
        %v4135 = vadd.f32 1e-06, %v4134
        %v4136 = vpop.f32.mrb[0].mxu0
        %4137 = vmatprep.mubr.bf16.mxu0 0
        %4138 = vmatmul.mubr.bf16.gmra.mrb[0].mxu0 %v4067
        %v4139 = vpop.f32.mrb[0].mxu0
        %v4140 = vadd.f32 1e-06, %v4139
        %v4141 = vpop.f32.mrb[0].mxu0
        %v4142 = vpop.f32.mrb[0].mxu0
        %v4143 = vadd.f32 1e-06, %v4142
        %v4144 = vpop.f32.mrb[0].mxu0
        %4145 = vmatprep.mubr.bf16.mxu0 0
        %4146 = vmatmul.mubr.bf16.gmra.mrb[0].mxu0 %v4070
        %v4147 = vpop.f32.mrb[0].mxu0
        %v4148 = vadd.f32 1e-06, %v4147
        %v4149 = vpop.f32.mrb[0].mxu0
        %v4150 = vpop.f32.mrb[0].mxu0
        %v4151 = vadd.f32 1e-06, %v4150
        %v4152 = vpop.f32.mrb[0].mxu0
        %4153 = vmatprep.mubr.bf16.mxu0 0
        %4154 = vmatmul.mubr.bf16.gmra.mrb[0].mxu0 %v4073
        %v4155 = vpop.f32.mrb[0].mxu0
        %v4156 = vadd.f32 1e-06, %v4155
        %v4157 = vpop.f32.mrb[0].mxu0
        %v4158 = vpop.f32.mrb[0].mxu0
        %v4159 = vadd.f32 1e-06, %v4158
        %v4160 = vpop.f32.mrb[0].mxu0
        %4161 = vmatprep.mubr.bf16.mxu0 0
        %4162 = vmatmul.mubr.bf16.gmra.mrb[0].mxu0 %v4076
        %v4163 = vpop.f32.mrb[0].mxu0
        %v4164 = vadd.f32 1e-06, %v4163
        %v4165 = vpop.f32.mrb[0].mxu0
        %v4166 = vpop.f32.mrb[0].mxu0
        %v4167 = vadd.f32 1e-06, %v4166
        %v4168 = vpop.f32.mrb[0].mxu0
        %4169 = vmatprep.mubr.bf16.mxu0 0
        %4170 = vmatmul.mubr.bf16.gmra.mrb[0].mxu0 %v4079
        %v4171 = vpop.f32.mrb[0].mxu0
        %v4172 = vadd.f32 1e-06, %v4171
        %v4173 = vpop.f32.mrb[0].mxu0
        %v4174 = vpop.f32.mrb[0].mxu0
        %v4175 = vadd.f32 1e-06, %v4174
        %v4176 = vpop.f32.mrb[0].mxu0
        %4177 = vdwg.mxu0
        %v4178 = vrcp.pop %v4116
        %v4179 = vrcp.pop %v4119
        %v4180 = vrcp.pop %v4124
        %v4181 = vrcp.pop %v4127
        %v4182 = vrcp.pop %v4132
        %v4183 = vrcp.pop %v4135
        %v4184 = vrcp.pop %v4140
        %v4185 = vrcp.pop %v4143
        %v4186 = vrcp.pop %v4148
        %v4187 = vrcp.pop %v4151
        %v4188 = vrcp.pop %v4156
        %v4189 = vrcp.pop %v4159
        %v4190 = vrcp.pop %v4164
        %v4191 = vrcp.pop %v4167
        %v4192 = vrcp.pop %v4172
        %v4193 = vrcp.pop %v4175
        %v4194 = vmul.f32 %v4041, %v4178
        %v4195 = vmul.f32 %v4042, %v4179
        %v4196 = vmul.f32 %v4043, %v4180
        %v4197 = vmul.f32 %v4044, %v4181
        %v4198 = vmul.f32 %v4045, %v4182
        %v4199 = vmul.f32 %v4046, %v4183
        %v4200 = vmul.f32 %v4047, %v4184
        %v4201 = vmul.f32 %v4048, %v4185
        %v4202 = vmul.f32 %v4049, %v4186
        %v4203 = vmul.f32 %v4050, %v4187
        %v4204 = vmul.f32 %v4051, %v4188
        %v4205 = vmul.f32 %v4052, %v4189
        %v4206 = vmul.f32 %v4053, %v4190
        %v4207 = vmul.f32 %v4054, %v4191
        %v4208 = vmul.f32 %v4055, %v4192
        %v4209 = vmul.f32 %v4056, %v4193
        %v4210 = vpack.c.bf16 %v4195, %v4194
        %v4211 = vpack.c.bf16 %v4197, %v4196
        %v4212 = vpack.c.bf16 %v4199, %v4198
        %v4213 = vpack.c.bf16 %v4201, %v4200
        %v4214 = vpack.c.bf16 %v4203, %v4202
        %v4215 = vpack.c.bf16 %v4205, %v4204
        %v4216 = vpack.c.bf16 %v4207, %v4206
        %v4217 = vpack.c.bf16 %v4209, %v4208
        %4218 = vst.msk [vmem:[#allocation2 + $0x10] sm:$0xff] %vm726, %v4210
        %4219 = vst.msk [vmem:[#allocation2 + $0x28] sm:$0xff] %vm726, %v4211
        %4220 = vst.msk [vmem:[#allocation2 + $0x40] sm:$0xff] %vm726, %v4212
        %4221 = vst.msk [vmem:[#allocation2 + $0x58] sm:$0xff] %vm726, %v4213
        %4222 = vst.msk [vmem:[#allocation2 + $0x70] sm:$0xff] %vm726, %v4214
        %4223 = vst.msk [vmem:[#allocation2 + $0x88] sm:$0xff] %vm726, %v4215
        %4224 = vst.msk [vmem:[#allocation2 + $0xa0] sm:$0xff] %vm726, %v4216
        %4225 = vst.msk [vmem:[#allocation2 + $0xb8] sm:$0xff] %vm726, %v4217
        %v4226 = vld [vmem:[#allocation2] sm:$0xff]
        %v4227 = vld [vmem:[#allocation2 + $0x8] sm:$0xff]
        %v4228 = vld [vmem:[#allocation2 + $0x10] sm:$0xff]
        %v4229 = vld [vmem:[#allocation2 + $0x18] sm:$0xff]
        %v4230 = vld [vmem:[#allocation2 + $0x20] sm:$0xff]
        %v4231 = vld [vmem:[#allocation2 + $0x28] sm:$0xff]
        %v4232 = vld [vmem:[#allocation2 + $0x30] sm:$0xff]
        %v4233 = vld [vmem:[#allocation2 + $0x38] sm:$0xff]
        %v4234 = vld [vmem:[#allocation2 + $0x40] sm:$0xff]
        %v4235 = vld [vmem:[#allocation2 + $0x48] sm:$0xff]
        %v4236 = vld [vmem:[#allocation2 + $0x50] sm:$0xff]
        %v4237 = vld [vmem:[#allocation2 + $0x58] sm:$0xff]
        %v4238 = vld [vmem:[#allocation2 + $0x60] sm:$0xff]
        %v4239 = vld [vmem:[#allocation2 + $0x68] sm:$0xff]
        %v4240 = vld [vmem:[#allocation2 + $0x70] sm:$0xff]
        %v4241 = vld [vmem:[#allocation2 + $0x78] sm:$0xff]
        %v4242 = vld [vmem:[#allocation2 + $0x80] sm:$0xff]
        %v4243 = vld [vmem:[#allocation2 + $0x88] sm:$0xff]
        %v4244 = vld [vmem:[#allocation2 + $0x90] sm:$0xff]
        %v4245 = vld [vmem:[#allocation2 + $0x98] sm:$0xff]
        %v4246 = vld [vmem:[#allocation2 + $0xa0] sm:$0xff]
        %v4247 = vld [vmem:[#allocation2 + $0xa8] sm:$0xff]
        %v4248 = vld [vmem:[#allocation2 + $0xb0] sm:$0xff]
        %v4249 = vld [vmem:[#allocation2 + $0xb8] sm:$0xff]
        %4250 = vxpose.xlu0.c.b16.start [1/8] %v4210, 128
        %4251 = vxpose.xlu0.c.b16.cont [2/8] %v4211, 128
        %4252 = vxpose.xlu0.c.b16.cont [3/8] %v4212, 128
        %4253 = vxpose.xlu0.c.b16.cont [4/8] %v4213, 128
        %4254 = vxpose.xlu0.c.b16.cont [5/8] %v4214, 128
        %4255 = vxpose.xlu0.c.b16.cont [6/8] %v4215, 128
        %4256 = vxpose.xlu0.c.b16.cont [7/8] %v4216, 128
        %4257 = vxpose.xlu0.c.b16.end [8/8] %v4217, 128
        %v4258 = vpop.trf.xlu0
        %v4259 = vpop.trf.xlu0
        %v4260 = vpop.trf.xlu0
        %v4261 = vpop.trf.xlu0
        %v4262 = vpop.trf.xlu0
        %v4263 = vpop.trf.xlu0
        %v4264 = vpop.trf.xlu0
        %v4265 = vpop.trf.xlu0
        %4266 = vmatprep.subr.bf16.mxu0 %v4227
        %4267 = vmatpush1.bf16.msra.mxu0 %v4226
        %4268 = vmatprep.subr.bf16.mxu0 %v4230
        %4269 = vmatpush1.bf16.msra.mxu0 %v4229
        %4270 = vmatprep.subr.bf16.mxu0 %v4233
        %4271 = vmatpush1.bf16.msra.mxu0 %v4232
        %4272 = vmatprep.subr.bf16.mxu0 %v4236
        %4273 = vmatpush1.bf16.msra.mxu0 %v4235
        %4274 = vmatprep.subr.bf16.mxu0 %v4239
        %4275 = vmatpush1.bf16.msra.mxu0 %v4238
        %4276 = vmatprep.subr.bf16.mxu0 %v4242
        %4277 = vmatpush1.bf16.msra.mxu0 %v4241
        %4278 = vmatprep.subr.bf16.mxu0 %v4245
        %4279 = vmatpush1.bf16.msra.mxu0 %v4244
        %4280 = vmatprep.subr.bf16.mxu0 %v4248
        %4281 = vmatpush1.bf16.msra.mxu0 %v4247
        %4282 = vmatprep.subr.bf16.mxu0 0
        %4283 = vmatpush1.bf16.msra.mxu0 0
        %4284 = vmatprep.subr.bf16.mxu0 0
        %4285 = vmatpush1.bf16.msra.mxu0 0
        %4286 = vmatprep.subr.bf16.mxu0 0
        %4287 = vmatpush1.bf16.msra.mxu0 0
        %4288 = vmatprep.subr.bf16.mxu0 0
        %4289 = vmatpush1.bf16.msra.mxu0 0
        %4290 = vmatprep.subr.bf16.mxu0 0
        %4291 = vmatpush1.bf16.msra.mxu0 0
        %4292 = vmatprep.subr.bf16.mxu0 0
        %4293 = vmatpush1.bf16.msra.mxu0 0
        %4294 = vmatprep.subr.bf16.mxu0 0
        %4295 = vmatpush1.bf16.msra.mxu0 0
        %4296 = vmatprep.subr.bf16.mxu0 0
        %4297 = vmatpush1.bf16.msra.mxu0 0
        %4298 = vmatprep.mubr.bf16.mxu0 0
        %4299 = vmatmul.mubr.bf16.gmra.mrb[0].mxu0 %v4258
        %v4300 = vpop.f32.mrb[0].mxu0
        %v4301 = vadd.f32 0.0, %v4300
        %v4302 = vpop.f32.mrb[0].mxu0
        %v4303 = vadd.f32 0.0, %v4302
        %v4304 = vpop.f32.mrb[0].mxu0
        %v4305 = vadd.f32 0.0, %v4304
        %v4306 = vpop.f32.mrb[0].mxu0
        %v4307 = vadd.f32 0.0, %v4306
        %4308 = vmatprep.mubr.bf16.mxu0 0
        %4309 = vmatmul.mubr.bf16.gmra.mrb[0].mxu0 %v4259
        %v4310 = vpop.f32.mrb[0].mxu0
        %v4311 = vadd.f32 0.0, %v4310
        %v4312 = vpop.f32.mrb[0].mxu0
        %v4313 = vadd.f32 0.0, %v4312
        %v4314 = vpop.f32.mrb[0].mxu0
        %v4315 = vadd.f32 0.0, %v4314
        %v4316 = vpop.f32.mrb[0].mxu0
        %v4317 = vadd.f32 0.0, %v4316
        %4318 = vmatprep.mubr.bf16.mxu0 0
        %4319 = vmatmul.mubr.bf16.gmra.mrb[0].mxu0 %v4260
        %v4320 = vpop.f32.mrb[0].mxu0
        %v4321 = vadd.f32 0.0, %v4320
        %v4322 = vpop.f32.mrb[0].mxu0
        %v4323 = vadd.f32 0.0, %v4322
        %v4324 = vpop.f32.mrb[0].mxu0
        %v4325 = vadd.f32 0.0, %v4324
        %v4326 = vpop.f32.mrb[0].mxu0
        %v4327 = vadd.f32 0.0, %v4326
        %4328 = vmatprep.mubr.bf16.mxu0 0
        %4329 = vmatmul.mubr.bf16.gmra.mrb[0].mxu0 %v4261
        %v4330 = vpop.f32.mrb[0].mxu0
        %v4331 = vadd.f32 0.0, %v4330
        %v4332 = vpop.f32.mrb[0].mxu0
        %v4333 = vadd.f32 0.0, %v4332
        %v4334 = vpop.f32.mrb[0].mxu0
        %v4335 = vadd.f32 0.0, %v4334
        %v4336 = vpop.f32.mrb[0].mxu0
        %v4337 = vadd.f32 0.0, %v4336
        %4338 = vdwg.mxu0
        %4339 = vmatprep.subr.bf16.mxu0 0
        %4340 = vmatpush1.bf16.msra.mxu0 %v4228
        %4341 = vmatprep.subr.bf16.mxu0 0
        %4342 = vmatpush1.bf16.msra.mxu0 %v4231
        %4343 = vmatprep.subr.bf16.mxu0 0
        %4344 = vmatpush1.bf16.msra.mxu0 %v4234
        %4345 = vmatprep.subr.bf16.mxu0 0
        %4346 = vmatpush1.bf16.msra.mxu0 %v4237
        %4347 = vmatprep.subr.bf16.mxu0 0
        %4348 = vmatpush1.bf16.msra.mxu0 %v4240
        %4349 = vmatprep.subr.bf16.mxu0 0
        %4350 = vmatpush1.bf16.msra.mxu0 %v4243
        %4351 = vmatprep.subr.bf16.mxu0 0
        %4352 = vmatpush1.bf16.msra.mxu0 %v4246
        %4353 = vmatprep.subr.bf16.mxu0 0
        %4354 = vmatpush1.bf16.msra.mxu0 %v4249
        %4355 = vmatprep.subr.bf16.mxu0 0
        %4356 = vmatpush1.bf16.msra.mxu0 0
        %4357 = vmatprep.subr.bf16.mxu0 0
        %4358 = vmatpush1.bf16.msra.mxu0 0
        %4359 = vmatprep.subr.bf16.mxu0 0
        %4360 = vmatpush1.bf16.msra.mxu0 0
        %4361 = vmatprep.subr.bf16.mxu0 0
        %4362 = vmatpush1.bf16.msra.mxu0 0
        %4363 = vmatprep.subr.bf16.mxu0 0
        %4364 = vmatpush1.bf16.msra.mxu0 0
        %4365 = vmatprep.subr.bf16.mxu0 0
        %4366 = vmatpush1.bf16.msra.mxu0 0
        %4367 = vmatprep.subr.bf16.mxu0 0
        %4368 = vmatpush1.bf16.msra.mxu0 0
        %4369 = vmatprep.subr.bf16.mxu0 0
        %4370 = vmatpush1.bf16.msra.mxu0 0
        %4371 = vmatprep.mubr.bf16.mxu0 0
        %4372 = vmatmul.mubr.bf16.gmra.mrb[0].mxu0 %v4258
        %v4373 = vpop.f32.mrb[0].mxu0
        %v4374 = vadd.f32 0.0, %v4373
        %v4375 = vpop.f32.mrb[0].mxu0
        %v4376 = vpop.f32.mrb[0].mxu0
        %v4377 = vadd.f32 0.0, %v4376
        %v4378 = vpop.f32.mrb[0].mxu0
        %4379 = vmatprep.mubr.bf16.mxu0 0
        %4380 = vmatmul.mubr.bf16.gmra.mrb[0].mxu0 %v4259
        %v4381 = vpop.f32.mrb[0].mxu0
        %v4382 = vadd.f32 0.0, %v4381
        %v4383 = vpop.f32.mrb[0].mxu0
        %v4384 = vpop.f32.mrb[0].mxu0
        %v4385 = vadd.f32 0.0, %v4384
        %v4386 = vpop.f32.mrb[0].mxu0
        %4387 = vmatprep.mubr.bf16.mxu0 0
        %4388 = vmatmul.mubr.bf16.gmra.mrb[0].mxu0 %v4260
        %v4389 = vpop.f32.mrb[0].mxu0
        %v4390 = vadd.f32 0.0, %v4389
        %v4391 = vpop.f32.mrb[0].mxu0
        %v4392 = vpop.f32.mrb[0].mxu0
        %v4393 = vadd.f32 0.0, %v4392
        %v4394 = vpop.f32.mrb[0].mxu0
        %4395 = vmatprep.mubr.bf16.mxu0 0
        %4396 = vmatmul.mubr.bf16.gmra.mrb[0].mxu0 %v4261
        %v4397 = vpop.f32.mrb[0].mxu0
        %v4398 = vadd.f32 0.0, %v4397
        %v4399 = vpop.f32.mrb[0].mxu0
        %v4400 = vpop.f32.mrb[0].mxu0
        %v4401 = vadd.f32 0.0, %v4400
        %v4402 = vpop.f32.mrb[0].mxu0
        %4403 = vdwg.mxu0
        %v4404 = vpack.c.bf16 %v4377, %v4374
        %v4405 = vpack.c.bf16 %v4385, %v4382
        %v4406 = vpack.c.bf16 %v4393, %v4390
        %v4407 = vpack.c.bf16 %v4401, %v4398
        %v4408 = vmul.f32 %v3852, %v4301
        %v4409 = vmul.f32 %v3853, %v4303
        %v4410 = vmul.f32 %v3854, %v4305
        %v4411 = vmul.f32 %v3855, %v4307
        %v4412 = vmul.f32 %v3856, %v4311
        %v4413 = vmul.f32 %v3857, %v4313
        %v4414 = vmul.f32 %v3858, %v4315
        %v4415 = vmul.f32 %v3859, %v4317
        %v4416 = vmul.f32 %v3860, %v4321
        %v4417 = vmul.f32 %v3861, %v4323
        %v4418 = vmul.f32 %v3862, %v4325
        %v4419 = vmul.f32 %v3863, %v4327
        %v4420 = vmul.f32 %v3864, %v4331
        %v4421 = vmul.f32 %v3865, %v4333
        %v4422 = vmul.f32 %v3866, %v4335
        %v4423 = vmul.f32 %v3867, %v4337
        %v4425 = vsel %vm726, %v4404, 0
        %v4428 = vsel %vm726, %v4405, 0
        %v4431 = vsel %vm726, %v4406, 0
        %v4434 = vsel %vm726, %v4407, 0
        %4436 = vmatprep.subr.bf16.mxu0 %v3869
        %4437 = vmatpush1.bf16.msra.mxu0 %v3868
        %4438 = vmatprep.subr.bf16.mxu0 %v3871
        %4439 = vmatpush1.bf16.msra.mxu0 %v3870
        %4440 = vmatprep.subr.bf16.mxu0 %v3873
        %4441 = vmatpush1.bf16.msra.mxu0 %v3872
        %4442 = vmatprep.subr.bf16.mxu0 %v3875
        %4443 = vmatpush1.bf16.msra.mxu0 %v3874
        %4444 = vmatprep.subr.bf16.mxu0 0
        %4445 = vmatpush1.bf16.msra.mxu0 0
        %4446 = vmatprep.subr.bf16.mxu0 0
        %4447 = vmatpush1.bf16.msra.mxu0 0
        %4448 = vmatprep.subr.bf16.mxu0 0
        %4449 = vmatpush1.bf16.msra.mxu0 0
        %4450 = vmatprep.subr.bf16.mxu0 0
        %4451 = vmatpush1.bf16.msra.mxu0 0
        %4452 = vmatprep.subr.bf16.mxu0 0
        %4453 = vmatpush1.bf16.msra.mxu0 0
        %4454 = vmatprep.subr.bf16.mxu0 0
        %4455 = vmatpush1.bf16.msra.mxu0 0
        %4456 = vmatprep.subr.bf16.mxu0 0
        %4457 = vmatpush1.bf16.msra.mxu0 0
        %4458 = vmatprep.subr.bf16.mxu0 0
        %4459 = vmatpush1.bf16.msra.mxu0 0
        %4460 = vmatprep.subr.bf16.mxu0 0
        %4461 = vmatpush1.bf16.msra.mxu0 0
        %4462 = vmatprep.subr.bf16.mxu0 0
        %4463 = vmatpush1.bf16.msra.mxu0 0
        %4464 = vmatprep.subr.bf16.mxu0 0
        %4465 = vmatpush1.bf16.msra.mxu0 0
        %4466 = vmatprep.subr.bf16.mxu0 0
        %4467 = vmatpush1.bf16.msra.mxu0 0
        %4468 = vmatprep.mubr.bf16.mxu0 0
        %4469 = vmatmul.mubr.bf16.gmra.mrb[0].mxu0 %v4425
        %v4470 = vpop.f32.mrb[0].mxu0
        %v4471 = vadd.f32 1e-06, %v4470
        %v4472 = vpop.f32.mrb[0].mxu0
        %v4473 = vadd.f32 1e-06, %v4472
        %v4474 = vpop.f32.mrb[0].mxu0
        %v4475 = vadd.f32 1e-06, %v4474
        %v4476 = vpop.f32.mrb[0].mxu0
        %v4477 = vadd.f32 1e-06, %v4476
        %4478 = vmatprep.mubr.bf16.mxu0 0
        %4479 = vmatmul.mubr.bf16.gmra.mrb[0].mxu0 %v4428
        %v4480 = vpop.f32.mrb[0].mxu0
        %v4481 = vadd.f32 1e-06, %v4480
        %v4482 = vpop.f32.mrb[0].mxu0
        %v4483 = vadd.f32 1e-06, %v4482
        %v4484 = vpop.f32.mrb[0].mxu0
        %v4485 = vadd.f32 1e-06, %v4484
        %v4486 = vpop.f32.mrb[0].mxu0
        %v4487 = vadd.f32 1e-06, %v4486
        %4488 = vmatprep.mubr.bf16.mxu0 0
        %4489 = vmatmul.mubr.bf16.gmra.mrb[0].mxu0 %v4431
        %v4490 = vpop.f32.mrb[0].mxu0
        %v4491 = vadd.f32 1e-06, %v4490
        %v4492 = vpop.f32.mrb[0].mxu0
        %v4493 = vadd.f32 1e-06, %v4492
        %v4494 = vpop.f32.mrb[0].mxu0
        %v4495 = vadd.f32 1e-06, %v4494
        %v4496 = vpop.f32.mrb[0].mxu0
        %v4497 = vadd.f32 1e-06, %v4496
        %4498 = vmatprep.mubr.bf16.mxu0 0
        %4499 = vmatmul.mubr.bf16.gmra.mrb[0].mxu0 %v4434
        %v4500 = vpop.f32.mrb[0].mxu0
        %v4501 = vadd.f32 1e-06, %v4500
        %v4502 = vpop.f32.mrb[0].mxu0
        %v4503 = vadd.f32 1e-06, %v4502
        %v4504 = vpop.f32.mrb[0].mxu0
        %v4505 = vadd.f32 1e-06, %v4504
        %v4506 = vpop.f32.mrb[0].mxu0
        %v4507 = vadd.f32 1e-06, %v4506
        %4508 = vdwg.mxu0
        %v4509 = vrcp.pop %v4471
        %v4510 = vrcp.pop %v4473
        %v4511 = vrcp.pop %v4475
        %v4512 = vrcp.pop %v4477
        %v4513 = vrcp.pop %v4481
        %v4514 = vrcp.pop %v4483
        %v4515 = vrcp.pop %v4485
        %v4516 = vrcp.pop %v4487
        %v4517 = vrcp.pop %v4491
        %v4518 = vrcp.pop %v4493
        %v4519 = vrcp.pop %v4495
        %v4520 = vrcp.pop %v4497
        %v4521 = vrcp.pop %v4501
        %v4522 = vrcp.pop %v4503
        %v4523 = vrcp.pop %v4505
        %v4524 = vrcp.pop %v4507
        %v4525 = vmul.f32 %v4408, %v4509
        %v4526 = vmul.f32 %v4409, %v4510
        %v4527 = vmul.f32 %v4410, %v4511
        %v4528 = vmul.f32 %v4411, %v4512
        %v4529 = vmul.f32 %v4412, %v4513
        %v4530 = vmul.f32 %v4413, %v4514
        %v4531 = vmul.f32 %v4414, %v4515
        %v4532 = vmul.f32 %v4415, %v4516
        %v4533 = vmul.f32 %v4416, %v4517
        %v4534 = vmul.f32 %v4417, %v4518
        %v4535 = vmul.f32 %v4418, %v4519
        %v4536 = vmul.f32 %v4419, %v4520
        %v4537 = vmul.f32 %v4420, %v4521
        %v4538 = vmul.f32 %v4421, %v4522
        %v4539 = vmul.f32 %v4422, %v4523
        %v4540 = vmul.f32 %v4423, %v4524
        %v4541 = vpack.c.bf16 %v4527, %v4525
        %v4542 = vpack.c.bf16 %v4528, %v4526
        %v4543 = vpack.c.bf16 %v4531, %v4529
        %v4544 = vpack.c.bf16 %v4532, %v4530
        %v4545 = vpack.c.bf16 %v4535, %v4533
        %v4546 = vpack.c.bf16 %v4536, %v4534
        %v4547 = vpack.c.bf16 %v4539, %v4537
        %v4548 = vpack.c.bf16 %v4540, %v4538
        %4549 = vst [vmem:[#allocation3 + $0x80] sm:$0xff] %v4541
        %4550 = vst [vmem:[#allocation3 + $0x88] sm:$0xff] %v4542
        %4551 = vst [vmem:[#allocation3 + $0x90] sm:$0xff] %v4543
        %4552 = vst [vmem:[#allocation3 + $0x98] sm:$0xff] %v4544
        %4553 = vst [vmem:[#allocation3 + $0xa0] sm:$0xff] %v4545
        %4554 = vst [vmem:[#allocation3 + $0xa8] sm:$0xff] %v4546
        %4555 = vst [vmem:[#allocation3 + $0xb0] sm:$0xff] %v4547
        %4556 = vst [vmem:[#allocation3 + $0xb8] sm:$0xff] %v4548
        %v4557 = vld [vmem:[#allocation3] sm:$0xff]
        %v4558 = vld [vmem:[#allocation3 + $0x8] sm:$0xff]
        %v4559 = vld [vmem:[#allocation3 + $0x10] sm:$0xff]
        %v4560 = vld [vmem:[#allocation3 + $0x18] sm:$0xff]
        %v4561 = vld [vmem:[#allocation3 + $0x20] sm:$0xff]
        %v4562 = vld [vmem:[#allocation3 + $0x28] sm:$0xff]
        %v4563 = vld [vmem:[#allocation3 + $0x30] sm:$0xff]
        %v4564 = vld [vmem:[#allocation3 + $0x38] sm:$0xff]
        %v4565 = vld [vmem:[#allocation3 + $0x40] sm:$0xff]
        %v4566 = vld [vmem:[#allocation3 + $0x48] sm:$0xff]
        %v4567 = vld [vmem:[#allocation3 + $0x50] sm:$0xff]
        %v4568 = vld [vmem:[#allocation3 + $0x58] sm:$0xff]
        %v4569 = vld [vmem:[#allocation3 + $0x60] sm:$0xff]
        %v4570 = vld [vmem:[#allocation3 + $0x68] sm:$0xff]
        %v4571 = vld [vmem:[#allocation3 + $0x70] sm:$0xff]
        %v4572 = vld [vmem:[#allocation3 + $0x78] sm:$0xff]
        %v4573 = vld [vmem:[#allocation3 + $0x80] sm:$0xff]
        %v4574 = vld [vmem:[#allocation3 + $0x88] sm:$0xff]
        %v4575 = vld [vmem:[#allocation3 + $0x90] sm:$0xff]
        %v4576 = vld [vmem:[#allocation3 + $0x98] sm:$0xff]
        %v4577 = vld [vmem:[#allocation3 + $0xa0] sm:$0xff]
        %v4578 = vld [vmem:[#allocation3 + $0xa8] sm:$0xff]
        %v4579 = vld [vmem:[#allocation3 + $0xb0] sm:$0xff]
        %v4580 = vld [vmem:[#allocation3 + $0xb8] sm:$0xff]
        %4581 = vmatprep.subr.bf16.mxu0 %v4542
        %4582 = vmatpush1.bf16.xpose.msra.mxu0 %v4541
        %4583 = vmatprep.subr.bf16.mxu0 %v4544
        %4584 = vmatpush1.bf16.xpose.msra.mxu0 %v4543
        %4585 = vmatprep.subr.bf16.mxu0 %v4546
        %4586 = vmatpush1.bf16.xpose.msra.mxu0 %v4545
        %4587 = vmatprep.subr.bf16.mxu0 %v4548
        %4588 = vmatpush1.bf16.xpose.msra.mxu0 %v4547
        %4589 = vmatprep.subr.bf16.mxu0 0
        %4590 = vmatpush1.bf16.xpose.msra.mxu0 0
        %4591 = vmatprep.subr.bf16.mxu0 0
        %4592 = vmatpush1.bf16.xpose.msra.mxu0 0
        %4593 = vmatprep.subr.bf16.mxu0 0
        %4594 = vmatpush1.bf16.xpose.msra.mxu0 0
        %4595 = vmatprep.subr.bf16.mxu0 0
        %4596 = vmatpush1.bf16.xpose.msra.mxu0 0
        %4597 = vmatprep.subr.bf16.mxu0 0
        %4598 = vmatpush1.bf16.xpose.msra.mxu0 0
        %4599 = vmatprep.subr.bf16.mxu0 0
        %4600 = vmatpush1.bf16.xpose.msra.mxu0 0
        %4601 = vmatprep.subr.bf16.mxu0 0
        %4602 = vmatpush1.bf16.xpose.msra.mxu0 0
        %4603 = vmatprep.subr.bf16.mxu0 0
        %4604 = vmatpush1.bf16.xpose.msra.mxu0 0
        %4605 = vmatprep.subr.bf16.mxu0 0
        %4606 = vmatpush1.bf16.xpose.msra.mxu0 0
        %4607 = vmatprep.subr.bf16.mxu0 0
        %4608 = vmatpush1.bf16.xpose.msra.mxu0 0
        %4609 = vmatprep.subr.bf16.mxu0 0
        %4610 = vmatpush1.bf16.xpose.msra.mxu0 0
        %4611 = vmatprep.subr.bf16.mxu0 0
        %4612 = vmatpush1.bf16.xpose.msra.mxu0 0
        %4613 = vmatprep.mubr.bf16.mxu0 %v4558
        %4614 = vmatmul.mubr.bf16.gmra.mrb[0].mxu0 %v4557
        %v4615 = vpop.f32.mrb[0].mxu0
        %v4616 = vadd.f32 0.0, %v4615
        %v4617 = vpop.f32.mrb[0].mxu0
        %v4618 = vpop.f32.mrb[0].mxu0
        %v4619 = vadd.f32 0.0, %v4618
        %v4620 = vpop.f32.mrb[0].mxu0
        %4621 = vmatprep.mubr.bf16.mxu0 %v4560
        %4622 = vmatmul.mubr.bf16.gmra.mrb[0].mxu0 %v4559
        %v4623 = vpop.f32.mrb[0].mxu0
        %v4624 = vadd.f32 0.0, %v4623
        %v4625 = vpop.f32.mrb[0].mxu0
        %v4626 = vpop.f32.mrb[0].mxu0
        %v4627 = vadd.f32 0.0, %v4626
        %v4628 = vpop.f32.mrb[0].mxu0
        %4629 = vmatprep.mubr.bf16.mxu0 %v4562
        %4630 = vmatmul.mubr.bf16.gmra.mrb[0].mxu0 %v4561
        %v4631 = vpop.f32.mrb[0].mxu0
        %v4632 = vadd.f32 0.0, %v4631
        %v4633 = vpop.f32.mrb[0].mxu0
        %v4634 = vpop.f32.mrb[0].mxu0
        %v4635 = vadd.f32 0.0, %v4634
        %v4636 = vpop.f32.mrb[0].mxu0
        %4637 = vmatprep.mubr.bf16.mxu0 %v4564
        %4638 = vmatmul.mubr.bf16.gmra.mrb[0].mxu0 %v4563
        %v4639 = vpop.f32.mrb[0].mxu0
        %v4640 = vadd.f32 0.0, %v4639
        %v4641 = vpop.f32.mrb[0].mxu0
        %v4642 = vpop.f32.mrb[0].mxu0
        %v4643 = vadd.f32 0.0, %v4642
        %v4644 = vpop.f32.mrb[0].mxu0
        %4645 = vmatprep.mubr.bf16.mxu0 %v4566
        %4646 = vmatmul.mubr.bf16.gmra.mrb[0].mxu0 %v4565
        %v4647 = vpop.f32.mrb[0].mxu0
        %v4648 = vadd.f32 0.0, %v4647
        %v4649 = vpop.f32.mrb[0].mxu0
        %v4650 = vpop.f32.mrb[0].mxu0
        %v4651 = vadd.f32 0.0, %v4650
        %v4652 = vpop.f32.mrb[0].mxu0
        %4653 = vmatprep.mubr.bf16.mxu0 %v4568
        %4654 = vmatmul.mubr.bf16.gmra.mrb[0].mxu0 %v4567
        %v4655 = vpop.f32.mrb[0].mxu0
        %v4656 = vadd.f32 0.0, %v4655
        %v4657 = vpop.f32.mrb[0].mxu0
        %v4658 = vpop.f32.mrb[0].mxu0
        %v4659 = vadd.f32 0.0, %v4658
        %v4660 = vpop.f32.mrb[0].mxu0
        %4661 = vmatprep.mubr.bf16.mxu0 %v4570
        %4662 = vmatmul.mubr.bf16.gmra.mrb[0].mxu0 %v4569
        %v4663 = vpop.f32.mrb[0].mxu0
        %v4664 = vadd.f32 0.0, %v4663
        %v4665 = vpop.f32.mrb[0].mxu0
        %v4666 = vpop.f32.mrb[0].mxu0
        %v4667 = vadd.f32 0.0, %v4666
        %v4668 = vpop.f32.mrb[0].mxu0
        %4669 = vmatprep.mubr.bf16.mxu0 %v4572
        %4670 = vmatmul.mubr.bf16.gmra.mrb[0].mxu0 %v4571
        %v4671 = vpop.f32.mrb[0].mxu0
        %v4672 = vadd.f32 0.0, %v4671
        %v4673 = vpop.f32.mrb[0].mxu0
        %v4674 = vpop.f32.mrb[0].mxu0
        %v4675 = vadd.f32 0.0, %v4674
        %v4676 = vpop.f32.mrb[0].mxu0
        %4677 = vmatprep.mubr.bf16.mxu0 %v4574
        %4678 = vmatmul.mubr.bf16.gmra.mrb[0].mxu0 %v4573
        %v4679 = vpop.f32.mrb[0].mxu0
        %v4680 = vadd.f32 0.0, %v4679
        %v4681 = vpop.f32.mrb[0].mxu0
        %v4682 = vpop.f32.mrb[0].mxu0
        %v4683 = vadd.f32 0.0, %v4682
        %v4684 = vpop.f32.mrb[0].mxu0
        %4685 = vmatprep.mubr.bf16.mxu0 %v4576
        %4686 = vmatmul.mubr.bf16.gmra.mrb[0].mxu0 %v4575
        %v4687 = vpop.f32.mrb[0].mxu0
        %v4688 = vadd.f32 0.0, %v4687
        %v4689 = vpop.f32.mrb[0].mxu0
        %v4690 = vpop.f32.mrb[0].mxu0
        %v4691 = vadd.f32 0.0, %v4690
        %v4692 = vpop.f32.mrb[0].mxu0
        %4693 = vmatprep.mubr.bf16.mxu0 %v4578
        %4694 = vmatmul.mubr.bf16.gmra.mrb[0].mxu0 %v4577
        %v4695 = vpop.f32.mrb[0].mxu0
        %v4696 = vadd.f32 0.0, %v4695
        %v4697 = vpop.f32.mrb[0].mxu0
        %v4698 = vpop.f32.mrb[0].mxu0
        %v4699 = vadd.f32 0.0, %v4698
        %v4700 = vpop.f32.mrb[0].mxu0
        %4701 = vmatprep.mubr.bf16.mxu0 %v4580
        %4702 = vmatmul.mubr.bf16.gmra.mrb[0].mxu0 %v4579
        %v4703 = vpop.f32.mrb[0].mxu0
        %v4704 = vadd.f32 0.0, %v4703
        %v4705 = vpop.f32.mrb[0].mxu0
        %v4706 = vpop.f32.mrb[0].mxu0
        %v4707 = vadd.f32 0.0, %v4706
        %v4708 = vpop.f32.mrb[0].mxu0
        %4709 = vdwg.mxu0
        %v4710 = vpack.c.bf16 %v4683, %v4680
        %v4711 = vpack.c.bf16 %v4691, %v4688
        %v4712 = vpack.c.bf16 %v4699, %v4696
        %v4713 = vpack.c.bf16 %v4707, %v4704
        %v4714 = vmul.f32 %v4194, %v4616
        %v4715 = vmul.f32 %v4195, %v4619
        %v4716 = vmul.f32 %v4196, %v4624
        %v4717 = vmul.f32 %v4197, %v4627
        %v4718 = vmul.f32 %v4198, %v4632
        %v4719 = vmul.f32 %v4199, %v4635
        %v4720 = vmul.f32 %v4200, %v4640
        %v4721 = vmul.f32 %v4201, %v4643
        %v4722 = vmul.f32 %v4202, %v4648
        %v4723 = vmul.f32 %v4203, %v4651
        %v4724 = vmul.f32 %v4204, %v4656
        %v4725 = vmul.f32 %v4205, %v4659
        %v4726 = vmul.f32 %v4206, %v4664
        %v4727 = vmul.f32 %v4207, %v4667
        %v4728 = vmul.f32 %v4208, %v4672
        %v4729 = vmul.f32 %v4209, %v4675
        %v4731 = vsel %vm726, %v4210, 0
        %v4734 = vsel %vm726, %v4211, 0
        %v4737 = vsel %vm726, %v4212, 0
        %v4740 = vsel %vm726, %v4213, 0
        %v4743 = vsel %vm726, %v4214, 0
        %v4746 = vsel %vm726, %v4215, 0
        %v4749 = vsel %vm726, %v4216, 0
        %v4752 = vsel %vm726, %v4217, 0
        %4754 = vmatprep.subr.bf16.mxu0 0
        %4755 = vmatpush1.bf16.msra.mxu0 %v4710
        %4756 = vmatprep.subr.bf16.mxu0 0
        %4757 = vmatpush1.bf16.msra.mxu0 %v4711
        %4758 = vmatprep.subr.bf16.mxu0 0
        %4759 = vmatpush1.bf16.msra.mxu0 %v4712
        %4760 = vmatprep.subr.bf16.mxu0 0
        %4761 = vmatpush1.bf16.msra.mxu0 %v4713
        %4762 = vmatprep.subr.bf16.mxu0 0
        %4763 = vmatpush1.bf16.msra.mxu0 0
        %4764 = vmatprep.subr.bf16.mxu0 0
        %4765 = vmatpush1.bf16.msra.mxu0 0
        %4766 = vmatprep.subr.bf16.mxu0 0
        %4767 = vmatpush1.bf16.msra.mxu0 0
        %4768 = vmatprep.subr.bf16.mxu0 0
        %4769 = vmatpush1.bf16.msra.mxu0 0
        %4770 = vmatprep.subr.bf16.mxu0 0
        %4771 = vmatpush1.bf16.msra.mxu0 0
        %4772 = vmatprep.subr.bf16.mxu0 0
        %4773 = vmatpush1.bf16.msra.mxu0 0
        %4774 = vmatprep.subr.bf16.mxu0 0
        %4775 = vmatpush1.bf16.msra.mxu0 0
        %4776 = vmatprep.subr.bf16.mxu0 0
        %4777 = vmatpush1.bf16.msra.mxu0 0
        %4778 = vmatprep.subr.bf16.mxu0 0
        %4779 = vmatpush1.bf16.msra.mxu0 0
        %4780 = vmatprep.subr.bf16.mxu0 0
        %4781 = vmatpush1.bf16.msra.mxu0 0
        %4782 = vmatprep.subr.bf16.mxu0 0
        %4783 = vmatpush1.bf16.msra.mxu0 0
        %4784 = vmatprep.subr.bf16.mxu0 0
        %4785 = vmatpush1.bf16.msra.mxu0 0
        %4786 = vmatprep.mubr.bf16.mxu0 0
        %4787 = vmatmul.mubr.bf16.gmra.mrb[0].mxu0 %v4731
        %v4788 = vpop.f32.mrb[0].mxu0
        %v4789 = vadd.f32 1e-06, %v4788
        %v4790 = vpop.f32.mrb[0].mxu0
        %v4791 = vpop.f32.mrb[0].mxu0
        %v4792 = vadd.f32 1e-06, %v4791
        %v4793 = vpop.f32.mrb[0].mxu0
        %4794 = vmatprep.mubr.bf16.mxu0 0
        %4795 = vmatmul.mubr.bf16.gmra.mrb[0].mxu0 %v4734
        %v4796 = vpop.f32.mrb[0].mxu0
        %v4797 = vadd.f32 1e-06, %v4796
        %v4798 = vpop.f32.mrb[0].mxu0
        %v4799 = vpop.f32.mrb[0].mxu0
        %v4800 = vadd.f32 1e-06, %v4799
        %v4801 = vpop.f32.mrb[0].mxu0
        %4802 = vmatprep.mubr.bf16.mxu0 0
        %4803 = vmatmul.mubr.bf16.gmra.mrb[0].mxu0 %v4737
        %v4804 = vpop.f32.mrb[0].mxu0
        %v4805 = vadd.f32 1e-06, %v4804
        %v4806 = vpop.f32.mrb[0].mxu0
        %v4807 = vpop.f32.mrb[0].mxu0
        %v4808 = vadd.f32 1e-06, %v4807
        %v4809 = vpop.f32.mrb[0].mxu0
        %4810 = vmatprep.mubr.bf16.mxu0 0
        %4811 = vmatmul.mubr.bf16.gmra.mrb[0].mxu0 %v4740
        %v4812 = vpop.f32.mrb[0].mxu0
        %v4813 = vadd.f32 1e-06, %v4812
        %v4814 = vpop.f32.mrb[0].mxu0
        %v4815 = vpop.f32.mrb[0].mxu0
        %v4816 = vadd.f32 1e-06, %v4815
        %v4817 = vpop.f32.mrb[0].mxu0
        %4818 = vmatprep.mubr.bf16.mxu0 0
        %4819 = vmatmul.mubr.bf16.gmra.mrb[0].mxu0 %v4743
        %v4820 = vpop.f32.mrb[0].mxu0
        %v4821 = vadd.f32 1e-06, %v4820
        %v4822 = vpop.f32.mrb[0].mxu0
        %v4823 = vpop.f32.mrb[0].mxu0
        %v4824 = vadd.f32 1e-06, %v4823
        %v4825 = vpop.f32.mrb[0].mxu0
        %4826 = vmatprep.mubr.bf16.mxu0 0
        %4827 = vmatmul.mubr.bf16.gmra.mrb[0].mxu0 %v4746
        %v4828 = vpop.f32.mrb[0].mxu0
        %v4829 = vadd.f32 1e-06, %v4828
        %v4830 = vpop.f32.mrb[0].mxu0
        %v4831 = vpop.f32.mrb[0].mxu0
        %v4832 = vadd.f32 1e-06, %v4831
        %v4833 = vpop.f32.mrb[0].mxu0
        %4834 = vmatprep.mubr.bf16.mxu0 0
        %4835 = vmatmul.mubr.bf16.gmra.mrb[0].mxu0 %v4749
        %v4836 = vpop.f32.mrb[0].mxu0
        %v4837 = vadd.f32 1e-06, %v4836
        %v4838 = vpop.f32.mrb[0].mxu0
        %v4839 = vpop.f32.mrb[0].mxu0
        %v4840 = vadd.f32 1e-06, %v4839
        %v4841 = vpop.f32.mrb[0].mxu0
        %4842 = vmatprep.mubr.bf16.mxu0 0
        %4843 = vmatmul.mubr.bf16.gmra.mrb[0].mxu0 %v4752
        %v4844 = vpop.f32.mrb[0].mxu0
        %v4845 = vadd.f32 1e-06, %v4844
        %v4846 = vpop.f32.mrb[0].mxu0
        %v4847 = vpop.f32.mrb[0].mxu0
        %v4848 = vadd.f32 1e-06, %v4847
        %v4849 = vpop.f32.mrb[0].mxu0
        %4850 = vdwg.mxu0
        %v4851 = vrcp.pop %v4789
        %v4852 = vrcp.pop %v4792
        %v4853 = vrcp.pop %v4797
        %v4854 = vrcp.pop %v4800
        %v4855 = vrcp.pop %v4805
        %v4856 = vrcp.pop %v4808
        %v4857 = vrcp.pop %v4813
        %v4858 = vrcp.pop %v4816
        %v4859 = vrcp.pop %v4821
        %v4860 = vrcp.pop %v4824
        %v4861 = vrcp.pop %v4829
        %v4862 = vrcp.pop %v4832
        %v4863 = vrcp.pop %v4837
        %v4864 = vrcp.pop %v4840
        %v4865 = vrcp.pop %v4845
        %v4866 = vrcp.pop %v4848
        %v4867 = vmul.f32 %v4714, %v4851
        %v4868 = vmul.f32 %v4715, %v4852
        %v4869 = vmul.f32 %v4716, %v4853
        %v4870 = vmul.f32 %v4717, %v4854
        %v4871 = vmul.f32 %v4718, %v4855
        %v4872 = vmul.f32 %v4719, %v4856
        %v4873 = vmul.f32 %v4720, %v4857
        %v4874 = vmul.f32 %v4721, %v4858
        %v4875 = vmul.f32 %v4722, %v4859
        %v4876 = vmul.f32 %v4723, %v4860
        %v4877 = vmul.f32 %v4724, %v4861
        %v4878 = vmul.f32 %v4725, %v4862
        %v4879 = vmul.f32 %v4726, %v4863
        %v4880 = vmul.f32 %v4727, %v4864
        %v4881 = vmul.f32 %v4728, %v4865
        %v4882 = vmul.f32 %v4729, %v4866
        %v4883 = vpack.c.bf16 %v4868, %v4867
        %v4884 = vpack.c.bf16 %v4870, %v4869
        %v4885 = vpack.c.bf16 %v4872, %v4871
        %v4886 = vpack.c.bf16 %v4874, %v4873
        %v4887 = vpack.c.bf16 %v4876, %v4875
        %v4888 = vpack.c.bf16 %v4878, %v4877
        %v4889 = vpack.c.bf16 %v4880, %v4879
        %v4890 = vpack.c.bf16 %v4882, %v4881
        %4891 = vst.msk [vmem:[#allocation2 + $0x10] sm:$0xff] %vm726, %v4883
        %4892 = vst.msk [vmem:[#allocation2 + $0x28] sm:$0xff] %vm726, %v4884
        %4893 = vst.msk [vmem:[#allocation2 + $0x40] sm:$0xff] %vm726, %v4885
        %4894 = vst.msk [vmem:[#allocation2 + $0x58] sm:$0xff] %vm726, %v4886
        %4895 = vst.msk [vmem:[#allocation2 + $0x70] sm:$0xff] %vm726, %v4887
        %4896 = vst.msk [vmem:[#allocation2 + $0x88] sm:$0xff] %vm726, %v4888
        %4897 = vst.msk [vmem:[#allocation2 + $0xa0] sm:$0xff] %vm726, %v4889
        %4898 = vst.msk [vmem:[#allocation2 + $0xb8] sm:$0xff] %vm726, %v4890
        %v4899 = vld [vmem:[#allocation2] sm:$0xff]
        %v4900 = vld [vmem:[#allocation2 + $0x8] sm:$0xff]
        %v4901 = vld [vmem:[#allocation2 + $0x10] sm:$0xff]
        %v4902 = vld [vmem:[#allocation2 + $0x18] sm:$0xff]
        %v4903 = vld [vmem:[#allocation2 + $0x20] sm:$0xff]
        %v4904 = vld [vmem:[#allocation2 + $0x28] sm:$0xff]
        %v4905 = vld [vmem:[#allocation2 + $0x30] sm:$0xff]
        %v4906 = vld [vmem:[#allocation2 + $0x38] sm:$0xff]
        %v4907 = vld [vmem:[#allocation2 + $0x40] sm:$0xff]
        %v4908 = vld [vmem:[#allocation2 + $0x48] sm:$0xff]
        %v4909 = vld [vmem:[#allocation2 + $0x50] sm:$0xff]
        %v4910 = vld [vmem:[#allocation2 + $0x58] sm:$0xff]
        %v4911 = vld [vmem:[#allocation2 + $0x60] sm:$0xff]
        %v4912 = vld [vmem:[#allocation2 + $0x68] sm:$0xff]
        %v4913 = vld [vmem:[#allocation2 + $0x70] sm:$0xff]
        %v4914 = vld [vmem:[#allocation2 + $0x78] sm:$0xff]
        %v4915 = vld [vmem:[#allocation2 + $0x80] sm:$0xff]
        %v4916 = vld [vmem:[#allocation2 + $0x88] sm:$0xff]
        %v4917 = vld [vmem:[#allocation2 + $0x90] sm:$0xff]
        %v4918 = vld [vmem:[#allocation2 + $0x98] sm:$0xff]
        %v4919 = vld [vmem:[#allocation2 + $0xa0] sm:$0xff]
        %v4920 = vld [vmem:[#allocation2 + $0xa8] sm:$0xff]
        %v4921 = vld [vmem:[#allocation2 + $0xb0] sm:$0xff]
        %v4922 = vld [vmem:[#allocation2 + $0xb8] sm:$0xff]
        %4923 = vxpose.xlu0.c.b16.start [1/8] %v4883, 128
        %4924 = vxpose.xlu0.c.b16.cont [2/8] %v4884, 128
        %4925 = vxpose.xlu0.c.b16.cont [3/8] %v4885, 128
        %4926 = vxpose.xlu0.c.b16.cont [4/8] %v4886, 128
        %4927 = vxpose.xlu0.c.b16.cont [5/8] %v4887, 128
        %4928 = vxpose.xlu0.c.b16.cont [6/8] %v4888, 128
        %4929 = vxpose.xlu0.c.b16.cont [7/8] %v4889, 128
        %4930 = vxpose.xlu0.c.b16.end [8/8] %v4890, 128
        %v4931 = vpop.trf.xlu0
        %v4932 = vpop.trf.xlu0
        %v4933 = vpop.trf.xlu0
        %v4934 = vpop.trf.xlu0
        %v4935 = vpop.trf.xlu0
        %v4936 = vpop.trf.xlu0
        %v4937 = vpop.trf.xlu0
        %v4938 = vpop.trf.xlu0
        %4939 = vmatprep.subr.bf16.mxu0 %v4900
        %4940 = vmatpush1.bf16.msra.mxu0 %v4899
        %4941 = vmatprep.subr.bf16.mxu0 %v4903
        %4942 = vmatpush1.bf16.msra.mxu0 %v4902
        %4943 = vmatprep.subr.bf16.mxu0 %v4906
        %4944 = vmatpush1.bf16.msra.mxu0 %v4905
        %4945 = vmatprep.subr.bf16.mxu0 %v4909
        %4946 = vmatpush1.bf16.msra.mxu0 %v4908
        %4947 = vmatprep.subr.bf16.mxu0 %v4912
        %4948 = vmatpush1.bf16.msra.mxu0 %v4911
        %4949 = vmatprep.subr.bf16.mxu0 %v4915
        %4950 = vmatpush1.bf16.msra.mxu0 %v4914
        %4951 = vmatprep.subr.bf16.mxu0 %v4918
        %4952 = vmatpush1.bf16.msra.mxu0 %v4917
        %4953 = vmatprep.subr.bf16.mxu0 %v4921
        %4954 = vmatpush1.bf16.msra.mxu0 %v4920
        %4955 = vmatprep.subr.bf16.mxu0 0
        %4956 = vmatpush1.bf16.msra.mxu0 0
        %4957 = vmatprep.subr.bf16.mxu0 0
        %4958 = vmatpush1.bf16.msra.mxu0 0
        %4959 = vmatprep.subr.bf16.mxu0 0
        %4960 = vmatpush1.bf16.msra.mxu0 0
        %4961 = vmatprep.subr.bf16.mxu0 0
        %4962 = vmatpush1.bf16.msra.mxu0 0
        %4963 = vmatprep.subr.bf16.mxu0 0
        %4964 = vmatpush1.bf16.msra.mxu0 0
        %4965 = vmatprep.subr.bf16.mxu0 0
        %4966 = vmatpush1.bf16.msra.mxu0 0
        %4967 = vmatprep.subr.bf16.mxu0 0
        %4968 = vmatpush1.bf16.msra.mxu0 0
        %4969 = vmatprep.subr.bf16.mxu0 0
        %4970 = vmatpush1.bf16.msra.mxu0 0
        %4971 = vmatprep.mubr.bf16.mxu0 0
        %4972 = vmatmul.mubr.bf16.gmra.mrb[0].mxu0 %v4931
        %v4973 = vpop.f32.mrb[0].mxu0
        %v4974 = vadd.f32 0.0, %v4973
        %v4975 = vpop.f32.mrb[0].mxu0
        %v4976 = vadd.f32 0.0, %v4975
        %v4977 = vpop.f32.mrb[0].mxu0
        %v4978 = vadd.f32 0.0, %v4977
        %v4979 = vpop.f32.mrb[0].mxu0
        %v4980 = vadd.f32 0.0, %v4979
        %4981 = vmatprep.mubr.bf16.mxu0 0
        %4982 = vmatmul.mubr.bf16.gmra.mrb[0].mxu0 %v4932
        %v4983 = vpop.f32.mrb[0].mxu0
        %v4984 = vadd.f32 0.0, %v4983
        %v4985 = vpop.f32.mrb[0].mxu0
        %v4986 = vadd.f32 0.0, %v4985
        %v4987 = vpop.f32.mrb[0].mxu0
        %v4988 = vadd.f32 0.0, %v4987
        %v4989 = vpop.f32.mrb[0].mxu0
        %v4990 = vadd.f32 0.0, %v4989
        %4991 = vmatprep.mubr.bf16.mxu0 0
        %4992 = vmatmul.mubr.bf16.gmra.mrb[0].mxu0 %v4933
        %v4993 = vpop.f32.mrb[0].mxu0
        %v4994 = vadd.f32 0.0, %v4993
        %v4995 = vpop.f32.mrb[0].mxu0
        %v4996 = vadd.f32 0.0, %v4995
        %v4997 = vpop.f32.mrb[0].mxu0
        %v4998 = vadd.f32 0.0, %v4997
        %v4999 = vpop.f32.mrb[0].mxu0
        %v5000 = vadd.f32 0.0, %v4999
        %5001 = vmatprep.mubr.bf16.mxu0 0
        %5002 = vmatmul.mubr.bf16.gmra.mrb[0].mxu0 %v4934
        %v5003 = vpop.f32.mrb[0].mxu0
        %v5004 = vadd.f32 0.0, %v5003
        %v5005 = vpop.f32.mrb[0].mxu0
        %v5006 = vadd.f32 0.0, %v5005
        %v5007 = vpop.f32.mrb[0].mxu0
        %v5008 = vadd.f32 0.0, %v5007
        %v5009 = vpop.f32.mrb[0].mxu0
        %v5010 = vadd.f32 0.0, %v5009
        %5011 = vdwg.mxu0
        %5012 = vmatprep.subr.bf16.mxu0 0
        %5013 = vmatpush1.bf16.msra.mxu0 %v4901
        %5014 = vmatprep.subr.bf16.mxu0 0
        %5015 = vmatpush1.bf16.msra.mxu0 %v4904
        %5016 = vmatprep.subr.bf16.mxu0 0
        %5017 = vmatpush1.bf16.msra.mxu0 %v4907
        %5018 = vmatprep.subr.bf16.mxu0 0
        %5019 = vmatpush1.bf16.msra.mxu0 %v4910
        %5020 = vmatprep.subr.bf16.mxu0 0
        %5021 = vmatpush1.bf16.msra.mxu0 %v4913
        %5022 = vmatprep.subr.bf16.mxu0 0
        %5023 = vmatpush1.bf16.msra.mxu0 %v4916
        %5024 = vmatprep.subr.bf16.mxu0 0
        %5025 = vmatpush1.bf16.msra.mxu0 %v4919
        %5026 = vmatprep.subr.bf16.mxu0 0
        %5027 = vmatpush1.bf16.msra.mxu0 %v4922
        %5028 = vmatprep.subr.bf16.mxu0 0
        %5029 = vmatpush1.bf16.msra.mxu0 0
        %5030 = vmatprep.subr.bf16.mxu0 0
        %5031 = vmatpush1.bf16.msra.mxu0 0
        %5032 = vmatprep.subr.bf16.mxu0 0
        %5033 = vmatpush1.bf16.msra.mxu0 0
        %5034 = vmatprep.subr.bf16.mxu0 0
        %5035 = vmatpush1.bf16.msra.mxu0 0
        %5036 = vmatprep.subr.bf16.mxu0 0
        %5037 = vmatpush1.bf16.msra.mxu0 0
        %5038 = vmatprep.subr.bf16.mxu0 0
        %5039 = vmatpush1.bf16.msra.mxu0 0
        %5040 = vmatprep.subr.bf16.mxu0 0
        %5041 = vmatpush1.bf16.msra.mxu0 0
        %5042 = vmatprep.subr.bf16.mxu0 0
        %5043 = vmatpush1.bf16.msra.mxu0 0
        %5044 = vmatprep.mubr.bf16.mxu0 0
        %5045 = vmatmul.mubr.bf16.gmra.mrb[0].mxu0 %v4931
        %v5046 = vpop.f32.mrb[0].mxu0
        %v5047 = vadd.f32 0.0, %v5046
        %v5048 = vpop.f32.mrb[0].mxu0
        %v5049 = vpop.f32.mrb[0].mxu0
        %v5050 = vadd.f32 0.0, %v5049
        %v5051 = vpop.f32.mrb[0].mxu0
        %5052 = vmatprep.mubr.bf16.mxu0 0
        %5053 = vmatmul.mubr.bf16.gmra.mrb[0].mxu0 %v4932
        %v5054 = vpop.f32.mrb[0].mxu0
        %v5055 = vadd.f32 0.0, %v5054
        %v5056 = vpop.f32.mrb[0].mxu0
        %v5057 = vpop.f32.mrb[0].mxu0
        %v5058 = vadd.f32 0.0, %v5057
        %v5059 = vpop.f32.mrb[0].mxu0
        %5060 = vmatprep.mubr.bf16.mxu0 0
        %5061 = vmatmul.mubr.bf16.gmra.mrb[0].mxu0 %v4933
        %v5062 = vpop.f32.mrb[0].mxu0
        %v5063 = vadd.f32 0.0, %v5062
        %v5064 = vpop.f32.mrb[0].mxu0
        %v5065 = vpop.f32.mrb[0].mxu0
        %v5066 = vadd.f32 0.0, %v5065
        %v5067 = vpop.f32.mrb[0].mxu0
        %5068 = vmatprep.mubr.bf16.mxu0 0
        %5069 = vmatmul.mubr.bf16.gmra.mrb[0].mxu0 %v4934
        %v5070 = vpop.f32.mrb[0].mxu0
        %v5071 = vadd.f32 0.0, %v5070
        %v5072 = vpop.f32.mrb[0].mxu0
        %v5073 = vpop.f32.mrb[0].mxu0
        %v5074 = vadd.f32 0.0, %v5073
        %v5075 = vpop.f32.mrb[0].mxu0
        %5076 = vdwg.mxu0
        %v5077 = vpack.c.bf16 %v5050, %v5047
        %v5078 = vpack.c.bf16 %v5058, %v5055
        %v5079 = vpack.c.bf16 %v5066, %v5063
        %v5080 = vpack.c.bf16 %v5074, %v5071
        %v5081 = vmul.f32 %v4525, %v4974
        %v5082 = vmul.f32 %v4526, %v4976
        %v5083 = vmul.f32 %v4527, %v4978
        %v5084 = vmul.f32 %v4528, %v4980
        %v5085 = vmul.f32 %v4529, %v4984
        %v5086 = vmul.f32 %v4530, %v4986
        %v5087 = vmul.f32 %v4531, %v4988
        %v5088 = vmul.f32 %v4532, %v4990
        %v5089 = vmul.f32 %v4533, %v4994
        %v5090 = vmul.f32 %v4534, %v4996
        %v5091 = vmul.f32 %v4535, %v4998
        %v5092 = vmul.f32 %v4536, %v5000
        %v5093 = vmul.f32 %v4537, %v5004
        %v5094 = vmul.f32 %v4538, %v5006
        %v5095 = vmul.f32 %v4539, %v5008
        %v5096 = vmul.f32 %v4540, %v5010
        %v5098 = vsel %vm726, %v5077, 0
        %v5101 = vsel %vm726, %v5078, 0
        %v5104 = vsel %vm726, %v5079, 0
        %v5107 = vsel %vm726, %v5080, 0
        %5109 = vmatprep.subr.bf16.mxu0 %v4542
        %5110 = vmatpush1.bf16.msra.mxu0 %v4541
        %5111 = vmatprep.subr.bf16.mxu0 %v4544
        %5112 = vmatpush1.bf16.msra.mxu0 %v4543
        %5113 = vmatprep.subr.bf16.mxu0 %v4546
        %5114 = vmatpush1.bf16.msra.mxu0 %v4545
        %5115 = vmatprep.subr.bf16.mxu0 %v4548
        %5116 = vmatpush1.bf16.msra.mxu0 %v4547
        %5117 = vmatprep.subr.bf16.mxu0 0
        %5118 = vmatpush1.bf16.msra.mxu0 0
        %5119 = vmatprep.subr.bf16.mxu0 0
        %5120 = vmatpush1.bf16.msra.mxu0 0
        %5121 = vmatprep.subr.bf16.mxu0 0
        %5122 = vmatpush1.bf16.msra.mxu0 0
        %5123 = vmatprep.subr.bf16.mxu0 0
        %5124 = vmatpush1.bf16.msra.mxu0 0
        %5125 = vmatprep.subr.bf16.mxu0 0
        %5126 = vmatpush1.bf16.msra.mxu0 0
        %5127 = vmatprep.subr.bf16.mxu0 0
        %5128 = vmatpush1.bf16.msra.mxu0 0
        %5129 = vmatprep.subr.bf16.mxu0 0
        %5130 = vmatpush1.bf16.msra.mxu0 0
        %5131 = vmatprep.subr.bf16.mxu0 0
        %5132 = vmatpush1.bf16.msra.mxu0 0
        %5133 = vmatprep.subr.bf16.mxu0 0
        %5134 = vmatpush1.bf16.msra.mxu0 0
        %5135 = vmatprep.subr.bf16.mxu0 0
        %5136 = vmatpush1.bf16.msra.mxu0 0
        %5137 = vmatprep.subr.bf16.mxu0 0
        %5138 = vmatpush1.bf16.msra.mxu0 0
        %5139 = vmatprep.subr.bf16.mxu0 0
        %5140 = vmatpush1.bf16.msra.mxu0 0
        %5141 = vmatprep.mubr.bf16.mxu0 0
        %5142 = vmatmul.mubr.bf16.gmra.mrb[0].mxu0 %v5098
        %v5143 = vpop.f32.mrb[0].mxu0
        %v5144 = vadd.f32 1e-06, %v5143
        %v5145 = vpop.f32.mrb[0].mxu0
        %v5146 = vadd.f32 1e-06, %v5145
        %v5147 = vpop.f32.mrb[0].mxu0
        %v5148 = vadd.f32 1e-06, %v5147
        %v5149 = vpop.f32.mrb[0].mxu0
        %v5150 = vadd.f32 1e-06, %v5149
        %5151 = vmatprep.mubr.bf16.mxu0 0
        %5152 = vmatmul.mubr.bf16.gmra.mrb[0].mxu0 %v5101
        %v5153 = vpop.f32.mrb[0].mxu0
        %v5154 = vadd.f32 1e-06, %v5153
        %v5155 = vpop.f32.mrb[0].mxu0
        %v5156 = vadd.f32 1e-06, %v5155
        %v5157 = vpop.f32.mrb[0].mxu0
        %v5158 = vadd.f32 1e-06, %v5157
        %v5159 = vpop.f32.mrb[0].mxu0
        %v5160 = vadd.f32 1e-06, %v5159
        %5161 = vmatprep.mubr.bf16.mxu0 0
        %5162 = vmatmul.mubr.bf16.gmra.mrb[0].mxu0 %v5104
        %v5163 = vpop.f32.mrb[0].mxu0
        %v5164 = vadd.f32 1e-06, %v5163
        %v5165 = vpop.f32.mrb[0].mxu0
        %v5166 = vadd.f32 1e-06, %v5165
        %v5167 = vpop.f32.mrb[0].mxu0
        %v5168 = vadd.f32 1e-06, %v5167
        %v5169 = vpop.f32.mrb[0].mxu0
        %v5170 = vadd.f32 1e-06, %v5169
        %5171 = vmatprep.mubr.bf16.mxu0 0
        %5172 = vmatmul.mubr.bf16.gmra.mrb[0].mxu0 %v5107
        %v5173 = vpop.f32.mrb[0].mxu0
        %v5174 = vadd.f32 1e-06, %v5173
        %v5175 = vpop.f32.mrb[0].mxu0
        %v5176 = vadd.f32 1e-06, %v5175
        %v5177 = vpop.f32.mrb[0].mxu0
        %v5178 = vadd.f32 1e-06, %v5177
        %v5179 = vpop.f32.mrb[0].mxu0
        %v5180 = vadd.f32 1e-06, %v5179
        %5181 = vdwg.mxu0
        %v5182 = vrcp.pop %v5144
        %v5183 = vrcp.pop %v5146
        %v5184 = vrcp.pop %v5148
        %v5185 = vrcp.pop %v5150
        %v5186 = vrcp.pop %v5154
        %v5187 = vrcp.pop %v5156
        %v5188 = vrcp.pop %v5158
        %v5189 = vrcp.pop %v5160
        %v5190 = vrcp.pop %v5164
        %v5191 = vrcp.pop %v5166
        %v5192 = vrcp.pop %v5168
        %v5193 = vrcp.pop %v5170
        %v5194 = vrcp.pop %v5174
        %v5195 = vrcp.pop %v5176
        %v5196 = vrcp.pop %v5178
        %v5197 = vrcp.pop %v5180
        %v5198 = vmul.f32 %v5081, %v5182
        %v5199 = vmul.f32 %v5082, %v5183
        %v5200 = vmul.f32 %v5083, %v5184
        %v5201 = vmul.f32 %v5084, %v5185
        %v5202 = vmul.f32 %v5085, %v5186
        %v5203 = vmul.f32 %v5086, %v5187
        %v5204 = vmul.f32 %v5087, %v5188
        %v5205 = vmul.f32 %v5088, %v5189
        %v5206 = vmul.f32 %v5089, %v5190
        %v5207 = vmul.f32 %v5090, %v5191
        %v5208 = vmul.f32 %v5091, %v5192
        %v5209 = vmul.f32 %v5092, %v5193
        %v5210 = vmul.f32 %v5093, %v5194
        %v5211 = vmul.f32 %v5094, %v5195
        %v5212 = vmul.f32 %v5095, %v5196
        %v5213 = vmul.f32 %v5096, %v5197
        %v5214 = vpack.c.bf16 %v5200, %v5198
        %v5215 = vpack.c.bf16 %v5201, %v5199
        %v5216 = vpack.c.bf16 %v5204, %v5202
        %v5217 = vpack.c.bf16 %v5205, %v5203
        %v5218 = vpack.c.bf16 %v5208, %v5206
        %v5219 = vpack.c.bf16 %v5209, %v5207
        %v5220 = vpack.c.bf16 %v5212, %v5210
        %v5221 = vpack.c.bf16 %v5213, %v5211
        %v5223 = vsel %vm726, %v4883, 0
        %v5226 = vsel %vm726, %v4884, 0
        %v5229 = vsel %vm726, %v4885, 0
        %v5232 = vsel %vm726, %v4886, 0
        %v5235 = vsel %vm726, %v4887, 0
        %v5238 = vsel %vm726, %v4888, 0
        %v5241 = vsel %vm726, %v4889, 0
        %v5244 = vsel %vm726, %v4890, 0
        %5246 = vmatprep.subr.bf16.mxu0 %v5215
        %5247 = vmatpush1.bf16.msra.mxu0 %v5214
        %5248 = vmatprep.subr.bf16.mxu0 %v5217
        %5249 = vmatpush1.bf16.msra.mxu0 %v5216
        %5250 = vmatprep.subr.bf16.mxu0 %v5219
        %5251 = vmatpush1.bf16.msra.mxu0 %v5218
        %5252 = vmatprep.subr.bf16.mxu0 %v5221
        %5253 = vmatpush1.bf16.msra.mxu0 %v5220
        %5254 = vmatprep.subr.bf16.mxu0 0
        %5255 = vmatpush1.bf16.msra.mxu0 0
        %5256 = vmatprep.subr.bf16.mxu0 0
        %5257 = vmatpush1.bf16.msra.mxu0 0
        %5258 = vmatprep.subr.bf16.mxu0 0
        %5259 = vmatpush1.bf16.msra.mxu0 0
        %5260 = vmatprep.subr.bf16.mxu0 0
        %5261 = vmatpush1.bf16.msra.mxu0 0
        %5262 = vmatprep.subr.bf16.mxu0 0
        %5263 = vmatpush1.bf16.msra.mxu0 0
        %5264 = vmatprep.subr.bf16.mxu0 0
        %5265 = vmatpush1.bf16.msra.mxu0 0
        %5266 = vmatprep.subr.bf16.mxu0 0
        %5267 = vmatpush1.bf16.msra.mxu0 0
        %5268 = vmatprep.subr.bf16.mxu0 0
        %5269 = vmatpush1.bf16.msra.mxu0 0
        %5270 = vmatprep.subr.bf16.mxu0 0
        %5271 = vmatpush1.bf16.msra.mxu0 0
        %5272 = vmatprep.subr.bf16.mxu0 0
        %5273 = vmatpush1.bf16.msra.mxu0 0
        %5274 = vmatprep.subr.bf16.mxu0 0
        %5275 = vmatpush1.bf16.msra.mxu0 0
        %5276 = vmatprep.subr.bf16.mxu0 0
        %5277 = vmatpush1.bf16.msra.mxu0 0
        %5278 = vmatprep.mubr.bf16.mxu0 0
        %5279 = vmatmul.mubr.bf16.gmra.mrb[0].mxu0 %v5223
        %v5280 = vpop.f32.mrb[0].mxu0
        %v5281 = vadd.f32 0.0, %v5280
        %v5282 = vpop.f32.mrb[0].mxu0
        %v5283 = vadd.f32 0.0, %v5282
        %v5284 = vpop.f32.mrb[0].mxu0
        %v5285 = vadd.f32 0.0, %v5284
        %v5286 = vpop.f32.mrb[0].mxu0
        %v5287 = vadd.f32 0.0, %v5286
        %5288 = vmatprep.mubr.bf16.mxu0 0
        %5289 = vmatmul.mubr.bf16.gmra.mrb[0].mxu0 %v5226
        %v5290 = vpop.f32.mrb[0].mxu0
        %v5291 = vadd.f32 0.0, %v5290
        %v5292 = vpop.f32.mrb[0].mxu0
        %v5293 = vadd.f32 0.0, %v5292
        %v5294 = vpop.f32.mrb[0].mxu0
        %v5295 = vadd.f32 0.0, %v5294
        %v5296 = vpop.f32.mrb[0].mxu0
        %v5297 = vadd.f32 0.0, %v5296
        %5298 = vmatprep.mubr.bf16.mxu0 0
        %5299 = vmatmul.mubr.bf16.gmra.mrb[0].mxu0 %v5229
        %v5300 = vpop.f32.mrb[0].mxu0
        %v5301 = vadd.f32 0.0, %v5300
        %v5302 = vpop.f32.mrb[0].mxu0
        %v5303 = vadd.f32 0.0, %v5302
        %v5304 = vpop.f32.mrb[0].mxu0
        %v5305 = vadd.f32 0.0, %v5304
        %v5306 = vpop.f32.mrb[0].mxu0
        %v5307 = vadd.f32 0.0, %v5306
        %5308 = vmatprep.mubr.bf16.mxu0 0
        %5309 = vmatmul.mubr.bf16.gmra.mrb[0].mxu0 %v5232
        %v5310 = vpop.f32.mrb[0].mxu0
        %v5311 = vadd.f32 0.0, %v5310
        %v5312 = vpop.f32.mrb[0].mxu0
        %v5313 = vadd.f32 0.0, %v5312
        %v5314 = vpop.f32.mrb[0].mxu0
        %v5315 = vadd.f32 0.0, %v5314
        %v5316 = vpop.f32.mrb[0].mxu0
        %v5317 = vadd.f32 0.0, %v5316
        %5318 = vmatprep.mubr.bf16.mxu0 0
        %5319 = vmatmul.mubr.bf16.gmra.mrb[0].mxu0 %v5235
        %v5320 = vpop.f32.mrb[0].mxu0
        %v5321 = vadd.f32 0.0, %v5320
        %v5322 = vpop.f32.mrb[0].mxu0
        %v5323 = vadd.f32 0.0, %v5322
        %v5324 = vpop.f32.mrb[0].mxu0
        %v5325 = vadd.f32 0.0, %v5324
        %v5326 = vpop.f32.mrb[0].mxu0
        %v5327 = vadd.f32 0.0, %v5326
        %5328 = vmatprep.mubr.bf16.mxu0 0
        %5329 = vmatmul.mubr.bf16.gmra.mrb[0].mxu0 %v5238
        %v5330 = vpop.f32.mrb[0].mxu0
        %v5331 = vadd.f32 0.0, %v5330
        %v5332 = vpop.f32.mrb[0].mxu0
        %v5333 = vadd.f32 0.0, %v5332
        %v5334 = vpop.f32.mrb[0].mxu0
        %v5335 = vadd.f32 0.0, %v5334
        %v5336 = vpop.f32.mrb[0].mxu0
        %v5337 = vadd.f32 0.0, %v5336
        %5338 = vmatprep.mubr.bf16.mxu0 0
        %5339 = vmatmul.mubr.bf16.gmra.mrb[0].mxu0 %v5241
        %v5340 = vpop.f32.mrb[0].mxu0
        %v5341 = vadd.f32 0.0, %v5340
        %v5342 = vpop.f32.mrb[0].mxu0
        %v5343 = vadd.f32 0.0, %v5342
        %v5344 = vpop.f32.mrb[0].mxu0
        %v5345 = vadd.f32 0.0, %v5344
        %v5346 = vpop.f32.mrb[0].mxu0
        %v5347 = vadd.f32 0.0, %v5346
        %5348 = vmatprep.mubr.bf16.mxu0 0
        %5349 = vmatmul.mubr.bf16.gmra.mrb[0].mxu0 %v5244
        %v5350 = vpop.f32.mrb[0].mxu0
        %v5351 = vadd.f32 0.0, %v5350
        %v5352 = vpop.f32.mrb[0].mxu0
        %v5353 = vadd.f32 0.0, %v5352
        %v5354 = vpop.f32.mrb[0].mxu0
        %v5355 = vadd.f32 0.0, %v5354
        %v5356 = vpop.f32.mrb[0].mxu0
        %v5357 = vadd.f32 0.0, %v5356
        %5358 = vdwg.mxu0
        %v5359 = vld [vmem:[#allocation7] sm:$0xf]
        %v5360 = vld [vmem:[#allocation7 + $0x4] sm:$0xf]
        %v5361 = vld [vmem:[#allocation7 + $0x8] sm:$0xf]
        %v5362 = vld [vmem:[#allocation7 + $0xc] sm:$0xf]
        %v5363 = vld [vmem:[#allocation7 + $0x10] sm:$0xf]
        %v5364 = vld [vmem:[#allocation7 + $0x14] sm:$0xf]
        %v5365 = vld [vmem:[#allocation7 + $0x18] sm:$0xf]
        %v5366 = vld [vmem:[#allocation7 + $0x1c] sm:$0xf]
        %v5367 = vld [vmem:[#allocation7 + $0x20] sm:$0xf]
        %v5368 = vld [vmem:[#allocation7 + $0x24] sm:$0xf]
        %v5369 = vld [vmem:[#allocation7 + $0x28] sm:$0xf]
        %v5370 = vld [vmem:[#allocation7 + $0x2c] sm:$0xf]
        %v5371 = vld [vmem:[#allocation7 + $0x30] sm:$0xf]
        %v5372 = vld [vmem:[#allocation7 + $0x34] sm:$0xf]
        %v5373 = vld [vmem:[#allocation7 + $0x38] sm:$0xf]
        %v5374 = vld [vmem:[#allocation7 + $0x3c] sm:$0xf]
        %v5375 = vpack.c.bf16 %v5285, %v5281
        %v5376 = vpack.c.bf16 %v5287, %v5283
        %v5377 = vpack.c.bf16 %v5295, %v5291
        %v5378 = vpack.c.bf16 %v5297, %v5293
        %v5379 = vpack.c.bf16 %v5305, %v5301
        %v5380 = vpack.c.bf16 %v5307, %v5303
        %v5381 = vpack.c.bf16 %v5315, %v5311
        %v5382 = vpack.c.bf16 %v5317, %v5313
        %v5383 = vpack.c.bf16 %v5325, %v5321
        %v5384 = vpack.c.bf16 %v5327, %v5323
        %v5385 = vpack.c.bf16 %v5335, %v5331
        %v5386 = vpack.c.bf16 %v5337, %v5333
        %v5387 = vpack.c.bf16 %v5345, %v5341
        %v5388 = vpack.c.bf16 %v5347, %v5343
        %v5389 = vpack.c.bf16 %v5355, %v5351
        %v5390 = vpack.c.bf16 %v5357, %v5353
        %v5391 = vld [vmem:[%s4] sm:$0xff]
        %v5392 = vld [vmem:[%s4 + $0x8] sm:$0xff]
        %v5393 = vld [vmem:[%s4 + $0x10] sm:$0xff]
        %v5394 = vld [vmem:[%s4 + $0x18] sm:$0xff]
        %v5395 = vld [vmem:[%s4 + $0x20] sm:$0xff]
        %v5396 = vld [vmem:[%s4 + $0x28] sm:$0xff]
        %v5397 = vld [vmem:[%s4 + $0x30] sm:$0xff]
        %v5398 = vld [vmem:[%s4 + $0x38] sm:$0xff]
        %v5399 = vld [vmem:[%s4 + $0x40] sm:$0xff]
        %v5400 = vld [vmem:[%s4 + $0x48] sm:$0xff]
        %v5401 = vld [vmem:[%s4 + $0x50] sm:$0xff]
        %v5402 = vld [vmem:[%s4 + $0x58] sm:$0xff]
        %v5403 = vld [vmem:[%s4 + $0x60] sm:$0xff]
        %v5404 = vld [vmem:[%s4 + $0x68] sm:$0xff]
        %v5405 = vld [vmem:[%s4 + $0x70] sm:$0xff]
        %v5406 = vld [vmem:[%s4 + $0x78] sm:$0xff]
        %5408 = vset.pattern.permute.xlu0 0
        %5409 = vperm.xlu0 %5408, %v5391
        %v5410 = vpop.permute.xlu0 %5409
        %5413 = vset.pattern.permute.xlu0 0
        %5414 = vperm.xlu0 %5413, %v5392
        %v5415 = vpop.permute.xlu0 %5414
        %5418 = vset.pattern.permute.xlu0 0
        %5419 = vperm.xlu0 %5418, %v5393
        %v5420 = vpop.permute.xlu0 %5419
        %5423 = vset.pattern.permute.xlu0 0
        %5424 = vperm.xlu0 %5423, %v5394
        %v5425 = vpop.permute.xlu0 %5424
        %5428 = vset.pattern.permute.xlu0 0
        %5429 = vperm.xlu0 %5428, %v5395
        %v5430 = vpop.permute.xlu0 %5429
        %5433 = vset.pattern.permute.xlu0 0
        %5434 = vperm.xlu0 %5433, %v5396
        %v5435 = vpop.permute.xlu0 %5434
        %5438 = vset.pattern.permute.xlu0 0
        %5439 = vperm.xlu0 %5438, %v5397
        %v5440 = vpop.permute.xlu0 %5439
        %5443 = vset.pattern.permute.xlu0 0
        %5444 = vperm.xlu0 %5443, %v5398
        %v5445 = vpop.permute.xlu0 %5444
        %5448 = vset.pattern.permute.xlu0 0
        %5449 = vperm.xlu0 %5448, %v5399
        %v5450 = vpop.permute.xlu0 %5449
        %5453 = vset.pattern.permute.xlu0 0
        %5454 = vperm.xlu0 %5453, %v5400
        %v5455 = vpop.permute.xlu0 %5454
        %5458 = vset.pattern.permute.xlu0 0
        %5459 = vperm.xlu0 %5458, %v5401
        %v5460 = vpop.permute.xlu0 %5459
        %5463 = vset.pattern.permute.xlu0 0
        %5464 = vperm.xlu0 %5463, %v5402
        %v5465 = vpop.permute.xlu0 %5464
        %5468 = vset.pattern.permute.xlu0 0
        %5469 = vperm.xlu0 %5468, %v5403
        %v5470 = vpop.permute.xlu0 %5469
        %5473 = vset.pattern.permute.xlu0 0
        %5474 = vperm.xlu0 %5473, %v5404
        %v5475 = vpop.permute.xlu0 %5474
        %5478 = vset.pattern.permute.xlu0 0
        %5479 = vperm.xlu0 %5478, %v5405
        %v5480 = vpop.permute.xlu0 %5479
        %5483 = vset.pattern.permute.xlu0 0
        %5484 = vperm.xlu0 %5483, %v5406
        %v5485 = vpop.permute.xlu0 %5484
        %v5503 = vunpack.c.l.b16 %v5359
        %v5504 = vunpack.c.l.b16 %v5360
        %v5505 = vunpack.c.l.b16 %v5361
        %v5506 = vunpack.c.l.b16 %v5362
        %v5507 = vunpack.c.l.b16 %v5363
        %v5508 = vunpack.c.l.b16 %v5364
        %v5509 = vunpack.c.l.b16 %v5365
        %v5510 = vunpack.c.l.b16 %v5366
        %v5511 = vunpack.c.l.b16 %v5367
        %v5512 = vunpack.c.l.b16 %v5368
        %v5513 = vunpack.c.l.b16 %v5369
        %v5514 = vunpack.c.l.b16 %v5370
        %v5515 = vunpack.c.l.b16 %v5371
        %v5516 = vunpack.c.l.b16 %v5372
        %v5517 = vunpack.c.l.b16 %v5373
        %v5518 = vunpack.c.l.b16 %v5374
        %v5519 = vpack.c.b16 %v5504, %v5503
        %v5520 = vpack.c.b16 %v5506, %v5505
        %v5521 = vpack.c.b16 %v5508, %v5507
        %v5522 = vpack.c.b16 %v5510, %v5509
        %v5523 = vpack.c.b16 %v5512, %v5511
        %v5524 = vpack.c.b16 %v5514, %v5513
        %v5525 = vpack.c.b16 %v5516, %v5515
        %v5526 = vpack.c.b16 %v5518, %v5517
        %5535 = vmatprep.subr.bf16.mxu0 %v5376
        %5536 = vmatpush1.bf16.msra.mxu0 %v5375
        %5537 = vmatprep.subr.bf16.mxu0 %v5378
        %5538 = vmatpush1.bf16.msra.mxu0 %v5377
        %5539 = vmatprep.subr.bf16.mxu0 %v5380
        %5540 = vmatpush1.bf16.msra.mxu0 %v5379
        %5541 = vmatprep.subr.bf16.mxu0 %v5382
        %5542 = vmatpush1.bf16.msra.mxu0 %v5381
        %5543 = vmatprep.subr.bf16.mxu0 %v5384
        %5544 = vmatpush1.bf16.msra.mxu0 %v5383
        %5545 = vmatprep.subr.bf16.mxu0 %v5386
        %5546 = vmatpush1.bf16.msra.mxu0 %v5385
        %5547 = vmatprep.subr.bf16.mxu0 %v5388
        %5548 = vmatpush1.bf16.msra.mxu0 %v5387
        %5549 = vmatprep.subr.bf16.mxu0 %v5390
        %5550 = vmatpush1.bf16.msra.mxu0 %v5389
        %5551 = vmatprep.subr.bf16.mxu0 0
        %5552 = vmatpush1.bf16.msra.mxu0 0
        %5553 = vmatprep.subr.bf16.mxu0 0
        %5554 = vmatpush1.bf16.msra.mxu0 0
        %5555 = vmatprep.subr.bf16.mxu0 0
        %5556 = vmatpush1.bf16.msra.mxu0 0
        %5557 = vmatprep.subr.bf16.mxu0 0
        %5558 = vmatpush1.bf16.msra.mxu0 0
        %5559 = vmatprep.subr.bf16.mxu0 0
        %5560 = vmatpush1.bf16.msra.mxu0 0
        %5561 = vmatprep.subr.bf16.mxu0 0
        %5562 = vmatpush1.bf16.msra.mxu0 0
        %5563 = vmatprep.subr.bf16.mxu0 0
        %5564 = vmatpush1.bf16.msra.mxu0 0
        %5565 = vmatprep.subr.bf16.mxu0 0
        %5566 = vmatpush1.bf16.msra.mxu0 0
        %5567 = vmatprep.mubr.bf16.mxu0 0
        %5568 = vmatmul.mubr.bf16.gmra.mrb[0].mxu0 %v5519
        %v5569 = vpop.f32.mrb[0].mxu0
        %v5570 = vadd.f32 %v5410, %v5569
        %v5571 = vpop.f32.mrb[0].mxu0
        %v5572 = vadd.f32 %v5410, %v5571
        %v5573 = vpop.f32.mrb[0].mxu0
        %v5574 = vadd.f32 %v5415, %v5573
        %v5575 = vpop.f32.mrb[0].mxu0
        %v5576 = vadd.f32 %v5415, %v5575
        %5577 = vmatprep.mubr.bf16.mxu0 0
        %5578 = vmatmul.mubr.bf16.gmra.mrb[0].mxu0 %v5520
        %v5579 = vpop.f32.mrb[0].mxu0
        %v5580 = vadd.f32 %v5420, %v5579
        %v5581 = vpop.f32.mrb[0].mxu0
        %v5582 = vadd.f32 %v5420, %v5581
        %v5583 = vpop.f32.mrb[0].mxu0
        %v5584 = vadd.f32 %v5425, %v5583
        %v5585 = vpop.f32.mrb[0].mxu0
        %v5586 = vadd.f32 %v5425, %v5585
        %5587 = vmatprep.mubr.bf16.mxu0 0
        %5588 = vmatmul.mubr.bf16.gmra.mrb[0].mxu0 %v5521
        %v5589 = vpop.f32.mrb[0].mxu0
        %v5590 = vadd.f32 %v5430, %v5589
        %v5591 = vpop.f32.mrb[0].mxu0
        %v5592 = vadd.f32 %v5430, %v5591
        %v5593 = vpop.f32.mrb[0].mxu0
        %v5594 = vadd.f32 %v5435, %v5593
        %v5595 = vpop.f32.mrb[0].mxu0
        %v5596 = vadd.f32 %v5435, %v5595
        %5597 = vmatprep.mubr.bf16.mxu0 0
        %5598 = vmatmul.mubr.bf16.gmra.mrb[0].mxu0 %v5522
        %v5599 = vpop.f32.mrb[0].mxu0
        %v5600 = vadd.f32 %v5440, %v5599
        %v5601 = vpop.f32.mrb[0].mxu0
        %v5602 = vadd.f32 %v5440, %v5601
        %v5603 = vpop.f32.mrb[0].mxu0
        %v5604 = vadd.f32 %v5445, %v5603
        %v5605 = vpop.f32.mrb[0].mxu0
        %v5606 = vadd.f32 %v5445, %v5605
        %5607 = vmatprep.mubr.bf16.mxu0 0
        %5608 = vmatmul.mubr.bf16.gmra.mrb[0].mxu0 %v5523
        %v5609 = vpop.f32.mrb[0].mxu0
        %v5610 = vadd.f32 %v5450, %v5609
        %v5611 = vpop.f32.mrb[0].mxu0
        %v5612 = vadd.f32 %v5450, %v5611
        %v5613 = vpop.f32.mrb[0].mxu0
        %v5614 = vadd.f32 %v5455, %v5613
        %v5615 = vpop.f32.mrb[0].mxu0
        %v5616 = vadd.f32 %v5455, %v5615
        %5617 = vmatprep.mubr.bf16.mxu0 0
        %5618 = vmatmul.mubr.bf16.gmra.mrb[0].mxu0 %v5524
        %v5619 = vpop.f32.mrb[0].mxu0
        %v5620 = vadd.f32 %v5460, %v5619
        %v5621 = vpop.f32.mrb[0].mxu0
        %v5622 = vadd.f32 %v5460, %v5621
        %v5623 = vpop.f32.mrb[0].mxu0
        %v5624 = vadd.f32 %v5465, %v5623
        %v5625 = vpop.f32.mrb[0].mxu0
        %v5626 = vadd.f32 %v5465, %v5625
        %5627 = vmatprep.mubr.bf16.mxu0 0
        %5628 = vmatmul.mubr.bf16.gmra.mrb[0].mxu0 %v5525
        %v5629 = vpop.f32.mrb[0].mxu0
        %v5630 = vadd.f32 %v5470, %v5629
        %v5631 = vpop.f32.mrb[0].mxu0
        %v5632 = vadd.f32 %v5470, %v5631
        %v5633 = vpop.f32.mrb[0].mxu0
        %v5634 = vadd.f32 %v5475, %v5633
        %v5635 = vpop.f32.mrb[0].mxu0
        %v5636 = vadd.f32 %v5475, %v5635
        %5637 = vmatprep.mubr.bf16.mxu0 0
        %5638 = vmatmul.mubr.bf16.gmra.mrb[0].mxu0 %v5526
        %v5639 = vpop.f32.mrb[0].mxu0
        %v5640 = vadd.f32 %v5480, %v5639
        %v5641 = vpop.f32.mrb[0].mxu0
        %v5642 = vadd.f32 %v5480, %v5641
        %v5643 = vpop.f32.mrb[0].mxu0
        %v5644 = vadd.f32 %v5485, %v5643
        %v5645 = vpop.f32.mrb[0].mxu0
        %v5646 = vadd.f32 %v5485, %v5645
        %5647 = vdwg.mxu0
        %v5648 = vadd.f32 %v301, %v5570
        %v5649 = vadd.f32 %v302, %v5572
        %v5650 = vadd.f32 %v303, %v5574
        %v5651 = vadd.f32 %v304, %v5576
        %v5652 = vadd.f32 %v305, %v5580
        %v5653 = vadd.f32 %v306, %v5582
        %v5654 = vadd.f32 %v307, %v5584
        %v5655 = vadd.f32 %v308, %v5586
        %v5656 = vadd.f32 %v309, %v5590
        %v5657 = vadd.f32 %v310, %v5592
        %v5658 = vadd.f32 %v311, %v5594
        %v5659 = vadd.f32 %v312, %v5596
        %v5660 = vadd.f32 %v313, %v5600
        %v5661 = vadd.f32 %v314, %v5602
        %v5662 = vadd.f32 %v315, %v5604
        %v5663 = vadd.f32 %v316, %v5606
        %v5664 = vadd.f32 %v317, %v5610
        %v5665 = vadd.f32 %v318, %v5612
        %v5666 = vadd.f32 %v319, %v5614
        %v5667 = vadd.f32 %v320, %v5616
        %v5668 = vadd.f32 %v321, %v5620
        %v5669 = vadd.f32 %v322, %v5622
        %v5670 = vadd.f32 %v323, %v5624
        %v5671 = vadd.f32 %v324, %v5626
        %v5672 = vadd.f32 %v325, %v5630
        %v5673 = vadd.f32 %v326, %v5632
        %v5674 = vadd.f32 %v327, %v5634
        %v5675 = vadd.f32 %v328, %v5636
        %v5676 = vadd.f32 %v329, %v5640
        %v5677 = vadd.f32 %v330, %v5642
        %v5678 = vadd.f32 %v331, %v5644
        %v5679 = vadd.f32 %v332, %v5646
        %v5680 = vmax.f32 %v5648, 0.0
        %v5681 = vmax.f32 %v5649, 0.0
        %v5682 = vmax.f32 %v5650, 0.0
        %v5683 = vmax.f32 %v5651, 0.0
        %v5684 = vmax.f32 %v5652, 0.0
        %v5685 = vmax.f32 %v5653, 0.0
        %v5686 = vmax.f32 %v5654, 0.0
        %v5687 = vmax.f32 %v5655, 0.0
        %v5688 = vmax.f32 %v5656, 0.0
        %v5689 = vmax.f32 %v5657, 0.0
        %v5690 = vmax.f32 %v5658, 0.0
        %v5691 = vmax.f32 %v5659, 0.0
        %v5692 = vmax.f32 %v5660, 0.0
        %v5693 = vmax.f32 %v5661, 0.0
        %v5694 = vmax.f32 %v5662, 0.0
        %v5695 = vmax.f32 %v5663, 0.0
        %v5696 = vmax.f32 %v5664, 0.0
        %v5697 = vmax.f32 %v5665, 0.0
        %v5698 = vmax.f32 %v5666, 0.0
        %v5699 = vmax.f32 %v5667, 0.0
        %v5700 = vmax.f32 %v5668, 0.0
        %v5701 = vmax.f32 %v5669, 0.0
        %v5702 = vmax.f32 %v5670, 0.0
        %v5703 = vmax.f32 %v5671, 0.0
        %v5704 = vmax.f32 %v5672, 0.0
        %v5705 = vmax.f32 %v5673, 0.0
        %v5706 = vmax.f32 %v5674, 0.0
        %v5707 = vmax.f32 %v5675, 0.0
        %v5708 = vmax.f32 %v5676, 0.0
        %v5709 = vmax.f32 %v5677, 0.0
        %v5710 = vmax.f32 %v5678, 0.0
        %v5711 = vmax.f32 %v5679, 0.0
        %5712 = vst [vmem:[%s289] sm:$0xff] %v5680
        %5713 = vst [vmem:[%s289 + $0x8] sm:$0xff] %v5681
        %5714 = vst [vmem:[%s289 + $0x10] sm:$0xff] %v5682
        %5715 = vst [vmem:[%s289 + $0x18] sm:$0xff] %v5683
        %5716 = vst [vmem:[%s289 + $0x20] sm:$0xff] %v5684
        %5717 = vst [vmem:[%s289 + $0x28] sm:$0xff] %v5685
        %5718 = vst [vmem:[%s289 + $0x30] sm:$0xff] %v5686
        %5719 = vst [vmem:[%s289 + $0x38] sm:$0xff] %v5687
        %5720 = vst [vmem:[%s289 + $0x40] sm:$0xff] %v5688
        %5721 = vst [vmem:[%s289 + $0x48] sm:$0xff] %v5689
        %5722 = vst [vmem:[%s289 + $0x50] sm:$0xff] %v5690
        %5723 = vst [vmem:[%s289 + $0x58] sm:$0xff] %v5691
        %5724 = vst [vmem:[%s289 + $0x60] sm:$0xff] %v5692
        %5725 = vst [vmem:[%s289 + $0x68] sm:$0xff] %v5693
        %5726 = vst [vmem:[%s289 + $0x70] sm:$0xff] %v5694
        %5727 = vst [vmem:[%s289 + $0x78] sm:$0xff] %v5695
        %5728 = vst [vmem:[%s289 + $0x80] sm:$0xff] %v5696
        %5729 = vst [vmem:[%s289 + $0x88] sm:$0xff] %v5697
        %5730 = vst [vmem:[%s289 + $0x90] sm:$0xff] %v5698
        %5731 = vst [vmem:[%s289 + $0x98] sm:$0xff] %v5699
        %5732 = vst [vmem:[%s289 + $0xa0] sm:$0xff] %v5700
        %5733 = vst [vmem:[%s289 + $0xa8] sm:$0xff] %v5701
        %5734 = vst [vmem:[%s289 + $0xb0] sm:$0xff] %v5702
        %5735 = vst [vmem:[%s289 + $0xb8] sm:$0xff] %v5703
        %5736 = vst [vmem:[%s289 + $0xc0] sm:$0xff] %v5704
        %5737 = vst [vmem:[%s289 + $0xc8] sm:$0xff] %v5705
        %5738 = vst [vmem:[%s289 + $0xd0] sm:$0xff] %v5706
        %5739 = vst [vmem:[%s289 + $0xd8] sm:$0xff] %v5707
        %5740 = vst [vmem:[%s289 + $0xe0] sm:$0xff] %v5708
        %5741 = vst [vmem:[%s289 + $0xe8] sm:$0xff] %v5709
        %5742 = vst [vmem:[%s289 + $0xf0] sm:$0xff] %v5710
        %5743 = vst [vmem:[%s289 + $0xf8] sm:$0xff] %v5711
        %s5744 = sand.u32 %s166, 1
        %s5745 = scalar_lea.sflag [#allocation6], %s5744
        %s5746 = sand.u32 %s166, 1
        %s5747 = smul.addr %s5746, 256
        %s5748 = scalar_lea.vmem [#allocation9], %s5747
        // Predicated region
        $region53: #{tpu_custom_call.1} parent=43 // pred_check
          %p5749 = pneg %p176
        $region54: #{tpu_custom_call.1} parent=43 // pred_check_branch
          %5751 = sbr.rel (%p5749) target = $region56
        $region55: #{tpu_custom_call.1} parent=43 // pred_region
          %s5753 = ssub.s32 4096, 4096
          %5754 = vsyncadd %s5745, %s5753
          %s5755 = smul.addr %s22, 32
          %s5756 = smul.addr %s5755, 128
          %s5757 = scalar_lea.hbm %s6, %s5756
          %s5758 = sshll.u32 %s5748, 4
          %s5759 = int_to_ptr.vmem [resolvable:$true] %s5758
          %5764 = dma.vmem_to_hbm [thread:$0]  %s5759, 4096, %s5757, %s5745, 256, 256, 16
        $region56: #{tpu_custom_call.1} parent=43 // pred_fallthru
          _
      $region44: #{tpu_custom_call.1} parent=5 // pred_fallthru
        _
      %p5765 = scmp.le.s32.totalorder 2, %s17
      // Predicated region
      $region57: #{tpu_custom_call.1} parent=5 // pred_check
        %p5766 = pneg %p5765
      $region58: #{tpu_custom_call.1} parent=5 // pred_check_branch
        %5768 = sbr.rel (%p5766) target = $region60
      $region59: #{tpu_custom_call.1} parent=5 // pred_region
        %s5769 = ssub.s32 %s17, 2
        // Predicated region
        $region61: #{tpu_custom_call.1} parent=59 // pred_check
          %p5770 = pneg %p182
        $region62: #{tpu_custom_call.1} parent=59 // pred_check_branch
          %5772 = sbr.rel (%p5770) target = $region64
        $region63: #{tpu_custom_call.1} parent=59 // pred_region
          %s5773 = sand.u32 %s167, 1
          %s5774 = scalar_lea.sflag [#allocation6], %s5773
          %s5775 = sand.u32 %s167, 1
          %s5776 = smul.addr %s5775, 256
          %s5777 = scalar_lea.vmem [#allocation9], %s5776
          %5778 = dma.done %s5774, 4096
        $region64: #{tpu_custom_call.1} parent=59 // pred_fallthru
          _
      $region60: #{tpu_custom_call.1} parent=5 // pred_fallthru
        _
    $region6: #{tpu_custom_call.1} parent=1 // loop_footer
      %s21 = sadd.s32 1, %s17
    $region7: #{tpu_custom_call.1} parent=1 // loop_footer_branch
      %16 = sbr.rel target = $region3
    $region8: #{tpu_custom_call.1} parent=1 // loop_exit
      _
    %5779 = vsyncpa [#allocation5], 1
    %s5780 = scalar_lea.sflag [#allocation5], 1
    %5781 = vsyncpa %s5780, 1
    %5782 = vsyncpa [#allocation8], 1
    %5783 = vsyncpa [#allocation6], 1
    %s5784 = scalar_lea.sflag [#allocation6], 1
    %5785 = vsyncpa %s5784, 1

</llo_original>
